<compile_context>
chip_gen: v7x
topology: tpu7x:2x2x1
jax: 0.10.0
libtpu: 0.0.40
codegen_flags: <defaults>
</compile_context>

<pallas_src>
import functools
import math

import jax
import jax.numpy as jnp
from jax.experimental import pallas as pl
from jax.experimental.pallas import tpu as pltpu


# ---------------------------------------------------------------- config ----
class Args:
    input_size = 8               # Conv1d channels == encoder LSTM time steps
    output_size = 4
    Attention_hidden_size = 16
    CNN_hid1 = 16                # unused by forward()
    kernel1 = 3
    long_interval = 12
    short_interval = 1
    cov = 4
    hidden_size = 32             # encoder / decoder hidden size


def make_config(args, seq_extra):
    k_ratio = args.long_interval // args.short_interval
    fd = k_ratio + args.cov                        # 16
    K = args.kernel1
    L1 = fd - K + 1                                # 14
    L2 = fd - 2 * (K - 1)                          # 12
    emb = round(math.sqrt(L2))                     # 3
    return dict(C=args.input_size, fd=fd, K=K, L1=L1, L2=L2, emb=emb,
                extra=seq_extra, F=emb + seq_extra, H=args.hidden_size,
                Ha=args.Attention_hidden_size, out_size=args.output_size)


PARAM_ORDER = ("conv1_w", "conv1_b", "conv2_w", "conv2_b",
               "lin3_wT", "lin3_b",
               "enc_wih_emb", "enc_wih_tail", "enc_whhT", "enc_b",
               "dec_wihT", "dec_whhT", "dec_b",
               "out_wT", "out_b",
               "attn_wq", "attn_wk", "attn_wv")


def build_params(cfg):
    C, K, L2, emb = cfg["C"], cfg["K"], cfg["L2"], cfg["emb"]
    extra, H, Ha, S = cfg["extra"], cfg["H"], cfg["Ha"], cfg["out_size"]
    key = jax.random.PRNGKey(0)

    def nxt(shape, scale=0.1):
        nonlocal key
        key, sub = jax.random.split(key)
        return (scale * jax.random.normal(sub, shape)).astype(jnp.float32)

    # NOTE: conv weights stored as (K, Cout, Cin) (PyTorch is (Cout, Cin, K));
    # LSTM weights stored pre-transposed (in_features, 4H), gate order i,f,g,o,
    # with b_ih + b_hh folded into one bias (synthetic params, no checkpoint).
    return {
        "conv1_w": nxt((K, C, C)), "conv1_b": nxt((C, 1)),
        "conv2_w": nxt((K, C, C)), "conv2_b": nxt((C, 1)),
        "lin3_wT": nxt((L2, emb)), "lin3_b": nxt((1, emb)),
        "enc_wih_emb": nxt((emb, 4 * H)), "enc_wih_tail": nxt((extra, 4 * H)),
        "enc_whhT": nxt((H, 4 * H)), "enc_b": nxt((1, 4 * H)),
        "dec_wihT": nxt((H, 4 * H)), "dec_whhT": nxt((H, 4 * H)),
        "dec_b": nxt((1, 4 * H)),
        "out_wT": nxt((H, 1)), "out_b": nxt((1, 1)),
        "attn_wq": nxt((S, H, Ha)), "attn_wk": nxt((S, H, Ha)),
        "attn_wv": nxt((S, Ha, 1)),
    }


def _lstm_cell(gates, c_prev, H):
    # One full-width sigmoid pass (EUP) + per-gate lane slices.
    sg = jax.nn.sigmoid(gates)
    i_g = sg[:, 0 * H:1 * H]
    f_g = sg[:, 1 * H:2 * H]
    o_g = sg[:, 3 * H:4 * H]
    g_g = jnp.tanh(gates[:, 2 * H:3 * H])
    c_new = f_g * c_prev + i_g * g_g
    h_new = o_g * jnp.tanh(c_new)
    return h_new, c_new


# ---------------------------------------------------------------- kernel ----
def _fused_model_kernel(x_ref,
                        c1w_ref, c1b_ref, c2w_ref, c2b_ref,
                        l3w_ref, l3b_ref,
                        ewe_ref, ewt_ref, ewh_ref, eb_ref,
                        dwi_ref, dwh_ref, db_ref,
                        ow_ref, ob_ref,
                        awq_ref, awk_ref, awv_ref,
                        out_ref,
                        kv_ref,
                        *, B, C, fd, K, L1, L2, H, out_size):
    f32 = jnp.float32
    T = C

    # Zero-pad the key/value buffer.  Rows not yet appended stay zero; since
    # the reference softmax is over the query axis, zero value-rows add
    # exactly nothing, so this reproduces the growing torch.cat([...]) exactly.
    kv_ref[...] = jnp.zeros(kv_ref.shape, f32)

    # ---- CNN front-end + hoisted encoder input projection (per batch) ------
    xp = []                                               # per batch: (T, 4H)
    for b in range(B):
        xd = x_ref[b, :, 0:fd]                            # (C, fd)  NCW
        acc1 = jnp.zeros((C, L1), f32)
        for k in range(K):
            acc1 = acc1 + jnp.dot(c1w_ref[k], xd[:, k:k + L1],
                                  preferred_element_type=f32)
        y1 = jax.nn.softplus(acc1 + c1b_ref[...])         # Conv1d + Softplus
        acc2 = jnp.zeros((C, L2), f32)
        for k in range(K):
            acc2 = acc2 + jnp.dot(c2w_ref[k], y1[:, k:k + L2],
                                  preferred_element_type=f32)
        y2 = jnp.maximum(acc2 + c2b_ref[...], 0.0)        # Conv1d + ReLU
        lin = (jnp.dot(y2, l3w_ref[...], preferred_element_type=f32)
               + l3b_ref[...])                            # layer3   (C, emb)
        tail = x_ref[b, :, fd:]                           # (C, extra)
        # Hoisted input projection of the encoder LSTM (+ folded gate bias).
        xp_b = (jnp.dot(lin, ewe_ref[...], preferred_element_type=f32)
                + jnp.dot(tail, ewt_ref[...], preferred_element_type=f32)
                + eb_ref[...])                            # (T, 4H)
        xp.append(xp_b)

    # ---- encoder LSTM: unrolled time loop, only h @ W_hh per step ----------
    h = jnp.zeros((B, H), f32)
    c = jnp.zeros((B, H), f32)
    for t in range(T):
        x_proj_t = jnp.concatenate([xp[b][t:t + 1, :] for b in range(B)],
                                   axis=0)                # (B, 4H)
        gates = x_proj_t + jnp.dot(h, ewh_ref[...], preferred_element_type=f32)
        h, c = _lstm_cell(gates, c, H)
        if t < T - 1:                                     # encoder_out[:, :-1]
            for b in range(B):
                kv_ref[b, t:t + 1, :] = h[b:b + 1, :]
    s_t, h_t, c_t = h, h, c

    # ---- decoder loop: additive attention + 2-step LSTM + linear head ------
    for step in range(out_size):
        wq = awq_ref[step]                                # (H, Ha)
        wk = awk_ref[step]                                # (H, Ha)
        wv = awv_ref[step]                                # (Ha, 1)
        row = (T - 1) + step
        for b in range(B):                                # append s_t
            kv_ref[b, row:row + 1, :] = s_t[b:b + 1, :]

        ctx0, ctx1 = [], []
        for b in range(B):
            keys = kv_ref[b]                              # (M, H), tail rows 0
            kp = jnp.dot(keys, wk, preferred_element_type=f32)      # (M, Ha)
            q0 = jnp.dot(h_t[b:b + 1, :], wq, preferred_element_type=f32)
            q1 = jnp.dot(c_t[b:b + 1, :], wq, preferred_element_type=f32)
            sc0 = jnp.dot(jnp.tanh(kp + q0), wv, preferred_element_type=f32)
            sc1 = jnp.dot(jnp.tanh(kp + q1), wv, preferred_element_type=f32)
            # softmax over the query axis (torch: softmax(scores, dim=1))
            mx = jnp.maximum(sc0, sc1)
            e0 = jnp.exp(sc0 - mx)
            e1 = jnp.exp(sc1 - mx)
            inv = 1.0 / (e0 + e1)
            a0 = e0 * inv                                 # (M, 1)
            a1 = e1 * inv
            ctx0.append(jnp.sum(a0 * keys, axis=0, keepdims=True))  # (1, H)
            ctx1.append(jnp.sum(a1 * keys, axis=0, keepdims=True))  # (1, H)
        dec_in0 = jnp.concatenate(ctx0, axis=0)           # (B, H) query row 0
        dec_in1 = jnp.concatenate(ctx1, axis=0)           # (B, H) query row 1

        h_d, c_d = h_t, c_t
        for x_step in (dec_in0, dec_in1):                 # 2-step decoder LSTM
            gates = (jnp.dot(x_step, dwi_ref[...], preferred_element_type=f32)
                     + jnp.dot(h_d, dwh_ref[...], preferred_element_type=f32)
                     + db_ref[...])
            h_d, c_d = _lstm_cell(gates, c_d, H)
        h_t, c_t = h_d, c_d
        s_t = h_d                                         # last-step output

        y = jnp.dot(s_t, ow_ref[...], preferred_element_type=f32) + ob_ref[...]
        out_ref[:, step:step + 1] = y.astype(out_ref.dtype)


def _full_block(shape):
    zeros = (0,) * len(shape)
    return pl.BlockSpec(shape, lambda i, _z=zeros: _z)


def model_forward(x, params, cfg):
    B = x.shape[0]
    C, H, out_size = cfg["C"], cfg["H"], cfg["out_size"]
    M = (C - 1) + out_size                                # max key rows
    plist = [params[k] for k in PARAM_ORDER]
    kernel = functools.partial(
        _fused_model_kernel, B=B, C=C, fd=cfg["fd"], K=cfg["K"],
        L1=cfg["L1"], L2=cfg["L2"], H=H, out_size=out_size)
    return pl.pallas_call(
        kernel,
        out_shape=jax.ShapeDtypeStruct((B, out_size), jnp.float32),
        grid=(1,),
        in_specs=[_full_block(x.shape)] + [_full_block(p.shape) for p in plist],
        out_specs=_full_block((B, out_size)),
        scratch_shapes=[pltpu.VMEM((B, M, H), jnp.float32)],
    )(x, *plist)


# --------------------------------------------------- pure-JAX reference -----
def reference_forward(x, params, cfg):
    B = x.shape[0]
    C, fd, K = cfg["C"], cfg["fd"], cfg["K"]
    H, out_size = cfg["H"], cfg["out_size"]

    def conv(xin, w, bias):
        Lout = xin.shape[2] - K + 1
        acc = jnp.zeros((B, C, Lout), jnp.float32)
        for k in range(K):
            acc = acc + jnp.einsum("oc,bcl->bol", w[k], xin[:, :, k:k + Lout])
        return acc + bias[None, :, :]

    dense = x[:, :, :fd]
    y1 = jax.nn.softplus(conv(dense, params["conv1_w"], params["conv1_b"]))
    y2 = jnp.maximum(conv(y1, params["conv2_w"], params["conv2_b"]), 0.0)
    lin = jnp.einsum("bcl,le->bce", y2, params["lin3_wT"]) + params["lin3_b"][None]
    lstm_in = jnp.concatenate([lin, x[:, :, fd:]], axis=2)        # (B, C, F)

    wih = jnp.concatenate([params["enc_wih_emb"], params["enc_wih_tail"]], axis=0)
    h = jnp.zeros((B, H), jnp.float32)
    c = jnp.zeros((B, H), jnp.float32)
    enc_out = []
    for t in range(C):
        g = lstm_in[:, t, :] @ wih + h @ params["enc_whhT"] + params["enc_b"]
        h, c = _lstm_cell(g, c, H)
        enc_out.append(h)
    enc_out = jnp.stack(enc_out, axis=1)                          # (B, C, H)

    s_t = enc_out[:, -1, :]
    keys = enc_out[:, :-1, :]
    h_t, c_t = h, c
    outs = []
    for step in range(out_size):
        keys = jnp.concatenate([keys, s_t[:, None, :]], axis=1)
        wq, wk, wv = (params["attn_wq"][step], params["attn_wk"][step],
                      params["attn_wv"][step])
        q = jnp.stack([h_t, c_t], axis=1)                         # (B, 2, H)
        qp = jnp.einsum("bnh,ha->bna", q, wq)
        kp = jnp.einsum("bmh,ha->bma", keys, wk)
        feat = jnp.tanh(qp[:, :, None, :] + kp[:, None, :, :])    # (B,2,m,Ha)
        scores = jnp.einsum("bnma,a->bnm", feat, wv[:, 0])
        attn = jax.nn.softmax(scores, axis=1)                     # over n
        dec_in = jnp.einsum("bnm,bmh->bnh", attn, keys)           # (B, 2, H)
        h_d, c_d = h_t, c_t
        for st in range(2):
            g = (dec_in[:, st, :] @ params["dec_wihT"]
                 + h_d @ params["dec_whhT"] + params["dec_b"])
            h_d, c_d = _lstm_cell(g, c_d, H)
        h_t, c_t = h_d, c_d
        s_t = h_d
        outs.append(s_t @ params["out_wT"] + params["out_b"])
    return jnp.concatenate(outs, axis=1)


# ----------------------------------------------------------------------------
if __name__ == "__main__":
    args = Args()
    seq_extra = 2                         # covariate tail appended to lstm input
    cfg = make_config(args, seq_extra)
    batch = 2
    L_total = cfg["fd"] + seq_extra       # 18

    params = build_params(cfg)
    x = jax.random.normal(jax.random.PRNGKey(0),
                          (batch, args.input_size, L_total), dtype=jnp.float32)

    out = jax.block_until_ready(model_forward(x, params, cfg))
    ref = jax.block_until_ready(reference_forward(x, params, cfg))

    assert out.shape == (batch, args.output_size), out.shape
    assert bool(jnp.all(jnp.isfinite(out)))
    assert bool(jnp.allclose(out, ref, rtol=1e-2, atol=1e-3)), (out, ref)
    print("KERNEL_OK")
</pallas_src>

<mosaic_0001>
module attributes {stable_mosaic.version = 11 : i64} {
  func.func @_fused_model_kernel(%arg0: i32, %arg1: memref<2x8x18xf32, #tpu.memory_space<vmem>>, %arg2: memref<3x8x8xf32, #tpu.memory_space<vmem>>, %arg3: memref<8x1xf32, #tpu.memory_space<vmem>>, %arg4: memref<3x8x8xf32, #tpu.memory_space<vmem>>, %arg5: memref<8x1xf32, #tpu.memory_space<vmem>>, %arg6: memref<12x3xf32, #tpu.memory_space<vmem>>, %arg7: memref<1x3xf32, #tpu.memory_space<vmem>>, %arg8: memref<3x128xf32, #tpu.memory_space<vmem>>, %arg9: memref<2x128xf32, #tpu.memory_space<vmem>>, %arg10: memref<32x128xf32, #tpu.memory_space<vmem>>, %arg11: memref<1x128xf32, #tpu.memory_space<vmem>>, %arg12: memref<32x128xf32, #tpu.memory_space<vmem>>, %arg13: memref<32x128xf32, #tpu.memory_space<vmem>>, %arg14: memref<1x128xf32, #tpu.memory_space<vmem>>, %arg15: memref<32x1xf32, #tpu.memory_space<vmem>>, %arg16: memref<1x1xf32, #tpu.memory_space<vmem>>, %arg17: memref<4x32x16xf32, #tpu.memory_space<vmem>>, %arg18: memref<4x32x16xf32, #tpu.memory_space<vmem>>, %arg19: memref<4x16x1xf32, #tpu.memory_space<vmem>>, %arg20: memref<2x4xf32, #tpu.memory_space<vmem>>, %arg21: memref<2x11x32xf32, #tpu.memory_space<vmem>>) attributes {dimension_semantics = [#tpu.dimension_semantics<arbitrary>], iteration_bounds = array<i64: 1>, scalar_prefetch = 0 : i64, scratch_operands = 1 : i64, tpu.core_type = #tpu.core_type<tc>, window_params = [{pipeline_mode = #tpu.pipeline_mode<synchronous>, transform_indices = @transform_0, window_bounds = array<i64: 2, 8, 18>}, {pipeline_mode = #tpu.pipeline_mode<synchronous>, transform_indices = @transform_1, window_bounds = array<i64: 3, 8, 8>}, {pipeline_mode = #tpu.pipeline_mode<synchronous>, transform_indices = @transform_2, window_bounds = array<i64: 8, 1>}, {pipeline_mode = #tpu.pipeline_mode<synchronous>, transform_indices = @transform_3, window_bounds = array<i64: 3, 8, 8>}, {pipeline_mode = #tpu.pipeline_mode<synchronous>, transform_indices = @transform_4, window_bounds = array<i64: 8, 1>}, {pipeline_mode = #tpu.pipeline_mode<synchronous>, transform_indices = @transform_5, window_bounds = array<i64: 12, 3>}, {pipeline_mode = #tpu.pipeline_mode<synchronous>, transform_indices = @transform_6, window_bounds = array<i64: 1, 3>}, {pipeline_mode = #tpu.pipeline_mode<synchronous>, transform_indices = @transform_7, window_bounds = array<i64: 3, 128>}, {pipeline_mode = #tpu.pipeline_mode<synchronous>, transform_indices = @transform_8, window_bounds = array<i64: 2, 128>}, {pipeline_mode = #tpu.pipeline_mode<synchronous>, transform_indices = @transform_9, window_bounds = array<i64: 32, 128>}, {pipeline_mode = #tpu.pipeline_mode<synchronous>, transform_indices = @transform_10, window_bounds = array<i64: 1, 128>}, {pipeline_mode = #tpu.pipeline_mode<synchronous>, transform_indices = @transform_11, window_bounds = array<i64: 32, 128>}, {pipeline_mode = #tpu.pipeline_mode<synchronous>, transform_indices = @transform_12, window_bounds = array<i64: 32, 128>}, {pipeline_mode = #tpu.pipeline_mode<synchronous>, transform_indices = @transform_13, window_bounds = array<i64: 1, 128>}, {pipeline_mode = #tpu.pipeline_mode<synchronous>, transform_indices = @transform_14, window_bounds = array<i64: 32, 1>}, {pipeline_mode = #tpu.pipeline_mode<synchronous>, transform_indices = @transform_15, window_bounds = array<i64: 1, 1>}, {pipeline_mode = #tpu.pipeline_mode<synchronous>, transform_indices = @transform_16, window_bounds = array<i64: 4, 32, 16>}, {pipeline_mode = #tpu.pipeline_mode<synchronous>, transform_indices = @transform_17, window_bounds = array<i64: 4, 32, 16>}, {pipeline_mode = #tpu.pipeline_mode<synchronous>, transform_indices = @transform_18, window_bounds = array<i64: 4, 16, 1>}, {pipeline_mode = #tpu.pipeline_mode<synchronous>, transform_indices = @transform_19, window_bounds = array<i64: 2, 4>}]} {
    %cst = arith.constant 0.000000e+00 : f32
    %0 = vector.broadcast %cst : f32 to vector<2x11x32xf32>
    %c0 = arith.constant 0 : index
    %c0_0 = arith.constant 0 : index
    %c0_1 = arith.constant 0 : index
    %1 = vector.load %arg21[%c0, %c0_0, %c0_1] : memref<2x11x32xf32, #tpu.memory_space<vmem>>, vector<2x11x32xf32>
    tpu.vector_store %arg21[%c0, %c0_0, %c0_1], %0 {strides = array<i32>} : memref<2x11x32xf32, #tpu.memory_space<vmem>>, vector<2x11x32xf32>,
    %c0_2 = arith.constant 0 : index
    %c0_3 = arith.constant 0 : index
    %c0_4 = arith.constant 0 : index
    %2 = vector.load %arg1[%c0_2, %c0_3, %c0_4] : memref<2x8x18xf32, #tpu.memory_space<vmem>>, vector<1x8x16xf32>
    %3 = vector.shape_cast %2 : vector<1x8x16xf32> to vector<8x16xf32>
    %cst_5 = arith.constant 0.000000e+00 : f32
    %4 = vector.broadcast %cst_5 : f32 to vector<8x14xf32>
    %c0_6 = arith.constant 0 : index
    %c0_7 = arith.constant 0 : index
    %c0_8 = arith.constant 0 : index
    %5 = vector.load %arg2[%c0_6, %c0_7, %c0_8] : memref<3x8x8xf32, #tpu.memory_space<vmem>>, vector<1x8x8xf32>
    %6 = vector.shape_cast %5 : vector<1x8x8xf32> to vector<8x8xf32>
    %7 = vector.extract_strided_slice %3 {offsets = [0, 0], sizes = [8, 14], strides = [1, 1]} : vector<8x16xf32> to vector<8x14xf32>
    %cst_9 = arith.constant dense<0.000000e+00> : vector<8x14xf32>
    %8 = tpu.matmul %6, %7, %cst_9 {dimension_numbers = #tpu.dot_dimension_numbers<[1], [0], [0], [1], [0, 0, 1, 1], [], []>} : vector<8x8xf32>, vector<8x14xf32>, vector<8x14xf32> -> vector<8x14xf32>
    %9 = arith.addf %4, %8 : vector<8x14xf32>
    %c1 = arith.constant 1 : index
    %c0_10 = arith.constant 0 : index
    %c0_11 = arith.constant 0 : index
    %10 = vector.load %arg2[%c1, %c0_10, %c0_11] : memref<3x8x8xf32, #tpu.memory_space<vmem>>, vector<1x8x8xf32>
    %11 = vector.shape_cast %10 : vector<1x8x8xf32> to vector<8x8xf32>
    %12 = vector.extract_strided_slice %3 {offsets = [0, 1], sizes = [8, 14], strides = [1, 1]} : vector<8x16xf32> to vector<8x14xf32>
    %cst_12 = arith.constant dense<0.000000e+00> : vector<8x14xf32>
    %13 = tpu.matmul %11, %12, %cst_12 {dimension_numbers = #tpu.dot_dimension_numbers<[1], [0], [0], [1], [0, 0, 1, 1], [], []>} : vector<8x8xf32>, vector<8x14xf32>, vector<8x14xf32> -> vector<8x14xf32>
    %14 = arith.addf %9, %13 : vector<8x14xf32>
    %c2 = arith.constant 2 : index
    %c0_13 = arith.constant 0 : index
    %c0_14 = arith.constant 0 : index
    %15 = vector.load %arg2[%c2, %c0_13, %c0_14] : memref<3x8x8xf32, #tpu.memory_space<vmem>>, vector<1x8x8xf32>
    %16 = vector.shape_cast %15 : vector<1x8x8xf32> to vector<8x8xf32>
    %17 = vector.extract_strided_slice %3 {offsets = [0, 2], sizes = [8, 14], strides = [1, 1]} : vector<8x16xf32> to vector<8x14xf32>
    %cst_15 = arith.constant dense<0.000000e+00> : vector<8x14xf32>
    %18 = tpu.matmul %16, %17, %cst_15 {dimension_numbers = #tpu.dot_dimension_numbers<[1], [0], [0], [1], [0, 0, 1, 1], [], []>} : vector<8x8xf32>, vector<8x14xf32>, vector<8x14xf32> -> vector<8x14xf32>
    %19 = arith.addf %14, %18 : vector<8x14xf32>
    %c0_16 = arith.constant 0 : index
    %c0_17 = arith.constant 0 : index
    %20 = vector.load %arg3[%c0_16, %c0_17] : memref<8x1xf32, #tpu.memory_space<vmem>>, vector<8x1xf32>
    %21 = vector.broadcast %20 : vector<8x1xf32> to vector<8x14xf32>
    %22 = arith.addf %19, %21 : vector<8x14xf32>
    %cst_18 = arith.constant 0.000000e+00 : f32
    %23 = vector.broadcast %cst_18 : f32 to vector<8x14xf32>
    %24 = arith.maximumf %22, %23 : vector<8x14xf32>
    %25 = vector.broadcast %cst_18 : f32 to vector<8x14xf32>
    %26 = arith.subf %22, %25 : vector<8x14xf32>
    %27 = arith.cmpf one, %26, %26 : vector<8x14xf32>
    %28 = vector.broadcast %cst_18 : f32 to vector<8x14xf32>
    %29 = arith.addf %22, %28 : vector<8x14xf32>
    %30 = math.absf %26 : vector<8x14xf32>
    %cst_19 = arith.constant 0.000000e+00 : f32
    %31 = vector.broadcast %cst_19 : f32 to vector<8x14xf32>
    %32 = arith.subf %31, %30 : vector<8x14xf32>
    %33 = math.exp %32 : vector<8x14xf32>
    %34 = math.log1p %33 : vector<8x14xf32>
    %35 = arith.addf %24, %34 : vector<8x14xf32>
    %36 = arith.select %27, %29, %35 : vector<8x14xi1>, vector<8x14xf32>
    %cst_20 = arith.constant 0.000000e+00 : f32
    %37 = vector.broadcast %cst_20 : f32 to vector<8x12xf32>
    %c0_21 = arith.constant 0 : index
    %c0_22 = arith.constant 0 : index
    %c0_23 = arith.constant 0 : index
    %38 = vector.load %arg4[%c0_21, %c0_22, %c0_23] : memref<3x8x8xf32, #tpu.memory_space<vmem>>, vector<1x8x8xf32>
    %39 = vector.shape_cast %38 : vector<1x8x8xf32> to vector<8x8xf32>
    %40 = vector.extract_strided_slice %36 {offsets = [0, 0], sizes = [8, 12], strides = [1, 1]} : vector<8x14xf32> to vector<8x12xf32>
    %cst_24 = arith.constant dense<0.000000e+00> : vector<8x12xf32>
    %41 = tpu.matmul %39, %40, %cst_24 {dimension_numbers = #tpu.dot_dimension_numbers<[1], [0], [0], [1], [0, 0, 1, 1], [], []>} : vector<8x8xf32>, vector<8x12xf32>, vector<8x12xf32> -> vector<8x12xf32>
    %42 = arith.addf %37, %41 : vector<8x12xf32>
    %c1_25 = arith.constant 1 : index
    %c0_26 = arith.constant 0 : index
    %c0_27 = arith.constant 0 : index
    %43 = vector.load %arg4[%c1_25, %c0_26, %c0_27] : memref<3x8x8xf32, #tpu.memory_space<vmem>>, vector<1x8x8xf32>
    %44 = vector.shape_cast %43 : vector<1x8x8xf32> to vector<8x8xf32>
    %45 = vector.extract_strided_slice %36 {offsets = [0, 1], sizes = [8, 12], strides = [1, 1]} : vector<8x14xf32> to vector<8x12xf32>
    %cst_28 = arith.constant dense<0.000000e+00> : vector<8x12xf32>
    %46 = tpu.matmul %44, %45, %cst_28 {dimension_numbers = #tpu.dot_dimension_numbers<[1], [0], [0], [1], [0, 0, 1, 1], [], []>} : vector<8x8xf32>, vector<8x12xf32>, vector<8x12xf32> -> vector<8x12xf32>
    %47 = arith.addf %42, %46 : vector<8x12xf32>
    %c2_29 = arith.constant 2 : index
    %c0_30 = arith.constant 0 : index
    %c0_31 = arith.constant 0 : index
    %48 = vector.load %arg4[%c2_29, %c0_30, %c0_31] : memref<3x8x8xf32, #tpu.memory_space<vmem>>, vector<1x8x8xf32>
    %49 = vector.shape_cast %48 : vector<1x8x8xf32> to vector<8x8xf32>
    %50 = vector.extract_strided_slice %36 {offsets = [0, 2], sizes = [8, 12], strides = [1, 1]} : vector<8x14xf32> to vector<8x12xf32>
    %cst_32 = arith.constant dense<0.000000e+00> : vector<8x12xf32>
    %51 = tpu.matmul %49, %50, %cst_32 {dimension_numbers = #tpu.dot_dimension_numbers<[1], [0], [0], [1], [0, 0, 1, 1], [], []>} : vector<8x8xf32>, vector<8x12xf32>, vector<8x12xf32> -> vector<8x12xf32>
    %52 = arith.addf %47, %51 : vector<8x12xf32>
    %c0_33 = arith.constant 0 : index
    %c0_34 = arith.constant 0 : index
    %53 = vector.load %arg5[%c0_33, %c0_34] : memref<8x1xf32, #tpu.memory_space<vmem>>, vector<8x1xf32>
    %54 = vector.broadcast %53 : vector<8x1xf32> to vector<8x12xf32>
    %55 = arith.addf %52, %54 : vector<8x12xf32>
    %cst_35 = arith.constant 0.000000e+00 : f32
    %56 = vector.broadcast %cst_35 : f32 to vector<8x12xf32>
    %57 = arith.maximumf %55, %56 : vector<8x12xf32>
    %c0_36 = arith.constant 0 : index
    %c0_37 = arith.constant 0 : index
    %58 = vector.load %arg6[%c0_36, %c0_37] : memref<12x3xf32, #tpu.memory_space<vmem>>, vector<12x3xf32>
    %cst_38 = arith.constant dense<0.000000e+00> : vector<8x3xf32>
    %59 = tpu.matmul %57, %58, %cst_38 {dimension_numbers = #tpu.dot_dimension_numbers<[1], [0], [0], [1], [0, 0, 1, 1], [], []>} : vector<8x12xf32>, vector<12x3xf32>, vector<8x3xf32> -> vector<8x3xf32>
    %c0_39 = arith.constant 0 : index
    %c0_40 = arith.constant 0 : index
    %60 = vector.load %arg7[%c0_39, %c0_40] : memref<1x3xf32, #tpu.memory_space<vmem>>, vector<1x3xf32>
    %61 = vector.broadcast %60 : vector<1x3xf32> to vector<8x3xf32>
    %62 = arith.addf %59, %61 : vector<8x3xf32>
    %c0_41 = arith.constant 0 : index
    %c0_42 = arith.constant 0 : index
    %c16 = arith.constant 16 : index
    %63 = vector.load %arg1[%c0_41, %c0_42, %c16] : memref<2x8x18xf32, #tpu.memory_space<vmem>>, vector<1x8x2xf32>
    %64 = vector.shape_cast %63 : vector<1x8x2xf32> to vector<8x2xf32>
    %c0_43 = arith.constant 0 : index
    %c0_44 = arith.constant 0 : index
    %65 = vector.load %arg8[%c0_43, %c0_44] : memref<3x128xf32, #tpu.memory_space<vmem>>, vector<3x128xf32>
    %cst_45 = arith.constant dense<0.000000e+00> : vector<8x128xf32>
    %66 = tpu.matmul %62, %65, %cst_45 {dimension_numbers = #tpu.dot_dimension_numbers<[1], [0], [0], [1], [0, 0, 1, 1], [], []>} : vector<8x3xf32>, vector<3x128xf32>, vector<8x128xf32> -> vector<8x128xf32>
    %c0_46 = arith.constant 0 : index
    %c0_47 = arith.constant 0 : index
    %67 = vector.load %arg9[%c0_46, %c0_47] : memref<2x128xf32, #tpu.memory_space<vmem>>, vector<2x128xf32>
    %cst_48 = arith.constant dense<0.000000e+00> : vector<8x128xf32>
    %68 = tpu.matmul %64, %67, %cst_48 {dimension_numbers = #tpu.dot_dimension_numbers<[1], [0], [0], [1], [0, 0, 1, 1], [], []>} : vector<8x2xf32>, vector<2x128xf32>, vector<8x128xf32> -> vector<8x128xf32>
    %69 = arith.addf %66, %68 : vector<8x128xf32>
    %c0_49 = arith.constant 0 : index
    %c0_50 = arith.constant 0 : index
    %70 = vector.load %arg11[%c0_49, %c0_50] : memref<1x128xf32, #tpu.memory_space<vmem>>, vector<1x128xf32>
    %71 = vector.broadcast %70 : vector<1x128xf32> to vector<8x128xf32>
    %72 = arith.addf %69, %71 : vector<8x128xf32>
    %c1_51 = arith.constant 1 : index
    %c0_52 = arith.constant 0 : index
    %c0_53 = arith.constant 0 : index
    %73 = vector.load %arg1[%c1_51, %c0_52, %c0_53] : memref<2x8x18xf32, #tpu.memory_space<vmem>>, vector<1x8x16xf32>
    %74 = vector.shape_cast %73 : vector<1x8x16xf32> to vector<8x16xf32>
    %cst_54 = arith.constant 0.000000e+00 : f32
    %75 = vector.broadcast %cst_54 : f32 to vector<8x14xf32>
    %c0_55 = arith.constant 0 : index
    %c0_56 = arith.constant 0 : index
    %c0_57 = arith.constant 0 : index
    %76 = vector.load %arg2[%c0_55, %c0_56, %c0_57] : memref<3x8x8xf32, #tpu.memory_space<vmem>>, vector<1x8x8xf32>
    %77 = vector.shape_cast %76 : vector<1x8x8xf32> to vector<8x8xf32>
    %78 = vector.extract_strided_slice %74 {offsets = [0, 0], sizes = [8, 14], strides = [1, 1]} : vector<8x16xf32> to vector<8x14xf32>
    %cst_58 = arith.constant dense<0.000000e+00> : vector<8x14xf32>
    %79 = tpu.matmul %77, %78, %cst_58 {dimension_numbers = #tpu.dot_dimension_numbers<[1], [0], [0], [1], [0, 0, 1, 1], [], []>} : vector<8x8xf32>, vector<8x14xf32>, vector<8x14xf32> -> vector<8x14xf32>
    %80 = arith.addf %75, %79 : vector<8x14xf32>
    %c1_59 = arith.constant 1 : index
    %c0_60 = arith.constant 0 : index
    %c0_61 = arith.constant 0 : index
    %81 = vector.load %arg2[%c1_59, %c0_60, %c0_61] : memref<3x8x8xf32, #tpu.memory_space<vmem>>, vector<1x8x8xf32>
    %82 = vector.shape_cast %81 : vector<1x8x8xf32> to vector<8x8xf32>
    %83 = vector.extract_strided_slice %74 {offsets = [0, 1], sizes = [8, 14], strides = [1, 1]} : vector<8x16xf32> to vector<8x14xf32>
    %cst_62 = arith.constant dense<0.000000e+00> : vector<8x14xf32>
    %84 = tpu.matmul %82, %83, %cst_62 {dimension_numbers = #tpu.dot_dimension_numbers<[1], [0], [0], [1], [0, 0, 1, 1], [], []>} : vector<8x8xf32>, vector<8x14xf32>, vector<8x14xf32> -> vector<8x14xf32>
    %85 = arith.addf %80, %84 : vector<8x14xf32>
    %c2_63 = arith.constant 2 : index
    %c0_64 = arith.constant 0 : index
    %c0_65 = arith.constant 0 : index
    %86 = vector.load %arg2[%c2_63, %c0_64, %c0_65] : memref<3x8x8xf32, #tpu.memory_space<vmem>>, vector<1x8x8xf32>
    %87 = vector.shape_cast %86 : vector<1x8x8xf32> to vector<8x8xf32>
    %88 = vector.extract_strided_slice %74 {offsets = [0, 2], sizes = [8, 14], strides = [1, 1]} : vector<8x16xf32> to vector<8x14xf32>
    %cst_66 = arith.constant dense<0.000000e+00> : vector<8x14xf32>
    %89 = tpu.matmul %87, %88, %cst_66 {dimension_numbers = #tpu.dot_dimension_numbers<[1], [0], [0], [1], [0, 0, 1, 1], [], []>} : vector<8x8xf32>, vector<8x14xf32>, vector<8x14xf32> -> vector<8x14xf32>
    %90 = arith.addf %85, %89 : vector<8x14xf32>
    %c0_67 = arith.constant 0 : index
    %c0_68 = arith.constant 0 : index
    %91 = vector.load %arg3[%c0_67, %c0_68] : memref<8x1xf32, #tpu.memory_space<vmem>>, vector<8x1xf32>
    %92 = vector.broadcast %91 : vector<8x1xf32> to vector<8x14xf32>
    %93 = arith.addf %90, %92 : vector<8x14xf32>
    %cst_69 = arith.constant 0.000000e+00 : f32
    %94 = vector.broadcast %cst_69 : f32 to vector<8x14xf32>
    %95 = arith.maximumf %93, %94 : vector<8x14xf32>
    %96 = vector.broadcast %cst_69 : f32 to vector<8x14xf32>
    %97 = arith.subf %93, %96 : vector<8x14xf32>
    %98 = arith.cmpf one, %97, %97 : vector<8x14xf32>
    %99 = vector.broadcast %cst_69 : f32 to vector<8x14xf32>
    %100 = arith.addf %93, %99 : vector<8x14xf32>
    %101 = math.absf %97 : vector<8x14xf32>
    %cst_70 = arith.constant 0.000000e+00 : f32
    %102 = vector.broadcast %cst_70 : f32 to vector<8x14xf32>
    %103 = arith.subf %102, %101 : vector<8x14xf32>
    %104 = math.exp %103 : vector<8x14xf32>
    %105 = math.log1p %104 : vector<8x14xf32>
    %106 = arith.addf %95, %105 : vector<8x14xf32>
    %107 = arith.select %98, %100, %106 : vector<8x14xi1>, vector<8x14xf32>
    %cst_71 = arith.constant 0.000000e+00 : f32
    %108 = vector.broadcast %cst_71 : f32 to vector<8x12xf32>
    %c0_72 = arith.constant 0 : index
    %c0_73 = arith.constant 0 : index
    %c0_74 = arith.constant 0 : index
    %109 = vector.load %arg4[%c0_72, %c0_73, %c0_74] : memref<3x8x8xf32, #tpu.memory_space<vmem>>, vector<1x8x8xf32>
    %110 = vector.shape_cast %109 : vector<1x8x8xf32> to vector<8x8xf32>
    %111 = vector.extract_strided_slice %107 {offsets = [0, 0], sizes = [8, 12], strides = [1, 1]} : vector<8x14xf32> to vector<8x12xf32>
    %cst_75 = arith.constant dense<0.000000e+00> : vector<8x12xf32>
    %112 = tpu.matmul %110, %111, %cst_75 {dimension_numbers = #tpu.dot_dimension_numbers<[1], [0], [0], [1], [0, 0, 1, 1], [], []>} : vector<8x8xf32>, vector<8x12xf32>, vector<8x12xf32> -> vector<8x12xf32>
    %113 = arith.addf %108, %112 : vector<8x12xf32>
    %c1_76 = arith.constant 1 : index
    %c0_77 = arith.constant 0 : index
    %c0_78 = arith.constant 0 : index
    %114 = vector.load %arg4[%c1_76, %c0_77, %c0_78] : memref<3x8x8xf32, #tpu.memory_space<vmem>>, vector<1x8x8xf32>
    %115 = vector.shape_cast %114 : vector<1x8x8xf32> to vector<8x8xf32>
    %116 = vector.extract_strided_slice %107 {offsets = [0, 1], sizes = [8, 12], strides = [1, 1]} : vector<8x14xf32> to vector<8x12xf32>
    %cst_79 = arith.constant dense<0.000000e+00> : vector<8x12xf32>
    %117 = tpu.matmul %115, %116, %cst_79 {dimension_numbers = #tpu.dot_dimension_numbers<[1], [0], [0], [1], [0, 0, 1, 1], [], []>} : vector<8x8xf32>, vector<8x12xf32>, vector<8x12xf32> -> vector<8x12xf32>
    %118 = arith.addf %113, %117 : vector<8x12xf32>
    %c2_80 = arith.constant 2 : index
    %c0_81 = arith.constant 0 : index
    %c0_82 = arith.constant 0 : index
    %119 = vector.load %arg4[%c2_80, %c0_81, %c0_82] : memref<3x8x8xf32, #tpu.memory_space<vmem>>, vector<1x8x8xf32>
    %120 = vector.shape_cast %119 : vector<1x8x8xf32> to vector<8x8xf32>
    %121 = vector.extract_strided_slice %107 {offsets = [0, 2], sizes = [8, 12], strides = [1, 1]} : vector<8x14xf32> to vector<8x12xf32>
    %cst_83 = arith.constant dense<0.000000e+00> : vector<8x12xf32>
    %122 = tpu.matmul %120, %121, %cst_83 {dimension_numbers = #tpu.dot_dimension_numbers<[1], [0], [0], [1], [0, 0, 1, 1], [], []>} : vector<8x8xf32>, vector<8x12xf32>, vector<8x12xf32> -> vector<8x12xf32>
    %123 = arith.addf %118, %122 : vector<8x12xf32>
    %c0_84 = arith.constant 0 : index
    %c0_85 = arith.constant 0 : index
    %124 = vector.load %arg5[%c0_84, %c0_85] : memref<8x1xf32, #tpu.memory_space<vmem>>, vector<8x1xf32>
    %125 = vector.broadcast %124 : vector<8x1xf32> to vector<8x12xf32>
    %126 = arith.addf %123, %125 : vector<8x12xf32>
    %cst_86 = arith.constant 0.000000e+00 : f32
    %127 = vector.broadcast %cst_86 : f32 to vector<8x12xf32>
    %128 = arith.maximumf %126, %127 : vector<8x12xf32>
    %c0_87 = arith.constant 0 : index
    %c0_88 = arith.constant 0 : index
    %129 = vector.load %arg6[%c0_87, %c0_88] : memref<12x3xf32, #tpu.memory_space<vmem>>, vector<12x3xf32>
    %cst_89 = arith.constant dense<0.000000e+00> : vector<8x3xf32>
    %130 = tpu.matmul %128, %129, %cst_89 {dimension_numbers = #tpu.dot_dimension_numbers<[1], [0], [0], [1], [0, 0, 1, 1], [], []>} : vector<8x12xf32>, vector<12x3xf32>, vector<8x3xf32> -> vector<8x3xf32>
    %c0_90 = arith.constant 0 : index
    %c0_91 = arith.constant 0 : index
    %131 = vector.load %arg7[%c0_90, %c0_91] : memref<1x3xf32, #tpu.memory_space<vmem>>, vector<1x3xf32>
    %132 = vector.broadcast %131 : vector<1x3xf32> to vector<8x3xf32>
    %133 = arith.addf %130, %132 : vector<8x3xf32>
    %c1_92 = arith.constant 1 : index
    %c0_93 = arith.constant 0 : index
    %c16_94 = arith.constant 16 : index
    %134 = vector.load %arg1[%c1_92, %c0_93, %c16_94] : memref<2x8x18xf32, #tpu.memory_space<vmem>>, vector<1x8x2xf32>
    %135 = vector.shape_cast %134 : vector<1x8x2xf32> to vector<8x2xf32>
    %c0_95 = arith.constant 0 : index
    %c0_96 = arith.constant 0 : index
    %136 = vector.load %arg8[%c0_95, %c0_96] : memref<3x128xf32, #tpu.memory_space<vmem>>, vector<3x128xf32>
    %cst_97 = arith.constant dense<0.000000e+00> : vector<8x128xf32>
    %137 = tpu.matmul %133, %136, %cst_97 {dimension_numbers = #tpu.dot_dimension_numbers<[1], [0], [0], [1], [0, 0, 1, 1], [], []>} : vector<8x3xf32>, vector<3x128xf32>, vector<8x128xf32> -> vector<8x128xf32>
    %c0_98 = arith.constant 0 : index
    %c0_99 = arith.constant 0 : index
    %138 = vector.load %arg9[%c0_98, %c0_99] : memref<2x128xf32, #tpu.memory_space<vmem>>, vector<2x128xf32>
    %cst_100 = arith.constant dense<0.000000e+00> : vector<8x128xf32>
    %139 = tpu.matmul %135, %138, %cst_100 {dimension_numbers = #tpu.dot_dimension_numbers<[1], [0], [0], [1], [0, 0, 1, 1], [], []>} : vector<8x2xf32>, vector<2x128xf32>, vector<8x128xf32> -> vector<8x128xf32>
    %140 = arith.addf %137, %139 : vector<8x128xf32>
    %c0_101 = arith.constant 0 : index
    %c0_102 = arith.constant 0 : index
    %141 = vector.load %arg11[%c0_101, %c0_102] : memref<1x128xf32, #tpu.memory_space<vmem>>, vector<1x128xf32>
    %142 = vector.broadcast %141 : vector<1x128xf32> to vector<8x128xf32>
    %143 = arith.addf %140, %142 : vector<8x128xf32>
    %cst_103 = arith.constant 0.000000e+00 : f32
    %144 = vector.broadcast %cst_103 : f32 to vector<2x32xf32>
    %cst_104 = arith.constant 0.000000e+00 : f32
    %145 = vector.broadcast %cst_104 : f32 to vector<2x32xf32>
    %146 = vector.extract_strided_slice %72 {offsets = [0, 0], sizes = [1, 128], strides = [1, 1]} : vector<8x128xf32> to vector<1x128xf32>
    %147 = vector.extract_strided_slice %143 {offsets = [0, 0], sizes = [1, 128], strides = [1, 1]} : vector<8x128xf32> to vector<1x128xf32>
    %148 = tpu.concatenate %146, %147 in 0 : vector<1x128xf32>, vector<1x128xf32> -> vector<2x128xf32>
    %c0_105 = arith.constant 0 : index
    %c0_106 = arith.constant 0 : index
    %149 = vector.load %arg10[%c0_105, %c0_106] : memref<32x128xf32, #tpu.memory_space<vmem>>, vector<32x128xf32>
    %cst_107 = arith.constant dense<0.000000e+00> : vector<2x128xf32>
    %150 = tpu.matmul %144, %149, %cst_107 {dimension_numbers = #tpu.dot_dimension_numbers<[1], [0], [0], [1], [0, 0, 1, 1], [], []>} : vector<2x32xf32>, vector<32x128xf32>, vector<2x128xf32> -> vector<2x128xf32>
    %151 = arith.addf %148, %150 : vector<2x128xf32>
    %152 = arith.negf %151 : vector<2x128xf32>
    %153 = math.exp %152 : vector<2x128xf32>
    %cst_108 = arith.constant 1.000000e+00 : f32
    %154 = vector.broadcast %cst_108 : f32 to vector<2x128xf32>
    %155 = arith.addf %154, %153 : vector<2x128xf32>
    %156 = arith.divf %154, %155 : vector<2x128xf32>
    %157 = vector.extract_strided_slice %156 {offsets = [0, 0], sizes = [2, 32], strides = [1, 1]} : vector<2x128xf32> to vector<2x32xf32>
    %158 = vector.extract_strided_slice %156 {offsets = [0, 32], sizes = [2, 32], strides = [1, 1]} : vector<2x128xf32> to vector<2x32xf32>
    %159 = vector.extract_strided_slice %156 {offsets = [0, 96], sizes = [2, 32], strides = [1, 1]} : vector<2x128xf32> to vector<2x32xf32>
    %160 = vector.extract_strided_slice %151 {offsets = [0, 64], sizes = [2, 32], strides = [1, 1]} : vector<2x128xf32> to vector<2x32xf32>
    %161 = math.tanh %160 : vector<2x32xf32>
    %162 = arith.mulf %158, %145 : vector<2x32xf32>
    %163 = arith.mulf %157, %161 : vector<2x32xf32>
    %164 = arith.addf %162, %163 : vector<2x32xf32>
    %165 = math.tanh %164 : vector<2x32xf32>
    %166 = arith.mulf %159, %165 : vector<2x32xf32>
    %167 = vector.extract_strided_slice %166 {offsets = [0, 0], sizes = [1, 32], strides = [1, 1]} : vector<2x32xf32> to vector<1x32xf32>
    %c0_109 = arith.constant 0 : index
    %c0_110 = arith.constant 0 : index
    %c0_111 = arith.constant 0 : index
    %168 = vector.load %arg21[%c0_109, %c0_110, %c0_111] : memref<2x11x32xf32, #tpu.memory_space<vmem>>, vector<1x1x32xf32>
    %169 = vector.shape_cast %168 : vector<1x1x32xf32> to vector<1x32xf32>
    %170 = vector.shape_cast %167 : vector<1x32xf32> to vector<1x1x32xf32>
    tpu.vector_store %arg21[%c0_109, %c0_110, %c0_111], %170 {strides = array<i32>} : memref<2x11x32xf32, #tpu.memory_space<vmem>>, vector<1x1x32xf32>,
    %171 = vector.extract_strided_slice %166 {offsets = [1, 0], sizes = [1, 32], strides = [1, 1]} : vector<2x32xf32> to vector<1x32xf32>
    %c1_112 = arith.constant 1 : index
    %c0_113 = arith.constant 0 : index
    %c0_114 = arith.constant 0 : index
    %172 = vector.load %arg21[%c1_112, %c0_113, %c0_114] : memref<2x11x32xf32, #tpu.memory_space<vmem>>, vector<1x1x32xf32>
    %173 = vector.shape_cast %172 : vector<1x1x32xf32> to vector<1x32xf32>
    %174 = vector.shape_cast %171 : vector<1x32xf32> to vector<1x1x32xf32>
    tpu.vector_store %arg21[%c1_112, %c0_113, %c0_114], %174 {strides = array<i32>} : memref<2x11x32xf32, #tpu.memory_space<vmem>>, vector<1x1x32xf32>,
    %175 = vector.extract_strided_slice %72 {offsets = [1, 0], sizes = [1, 128], strides = [1, 1]} : vector<8x128xf32> to vector<1x128xf32>
    %176 = vector.extract_strided_slice %143 {offsets = [1, 0], sizes = [1, 128], strides = [1, 1]} : vector<8x128xf32> to vector<1x128xf32>
    %177 = tpu.concatenate %175, %176 in 0 : vector<1x128xf32>, vector<1x128xf32> -> vector<2x128xf32>
    %c0_115 = arith.constant 0 : index
    %c0_116 = arith.constant 0 : index
    %178 = vector.load %arg10[%c0_115, %c0_116] : memref<32x128xf32, #tpu.memory_space<vmem>>, vector<32x128xf32>
    %cst_117 = arith.constant dense<0.000000e+00> : vector<2x128xf32>
    %179 = tpu.matmul %166, %178, %cst_117 {dimension_numbers = #tpu.dot_dimension_numbers<[1], [0], [0], [1], [0, 0, 1, 1], [], []>} : vector<2x32xf32>, vector<32x128xf32>, vector<2x128xf32> -> vector<2x128xf32>
    %180 = arith.addf %177, %179 : vector<2x128xf32>
    %181 = arith.negf %180 : vector<2x128xf32>
    %182 = math.exp %181 : vector<2x128xf32>
    %cst_118 = arith.constant 1.000000e+00 : f32
    %183 = vector.broadcast %cst_118 : f32 to vector<2x128xf32>
    %184 = arith.addf %183, %182 : vector<2x128xf32>
    %185 = arith.divf %183, %184 : vector<2x128xf32>
    %186 = vector.extract_strided_slice %185 {offsets = [0, 0], sizes = [2, 32], strides = [1, 1]} : vector<2x128xf32> to vector<2x32xf32>
    %187 = vector.extract_strided_slice %185 {offsets = [0, 32], sizes = [2, 32], strides = [1, 1]} : vector<2x128xf32> to vector<2x32xf32>
    %188 = vector.extract_strided_slice %185 {offsets = [0, 96], sizes = [2, 32], strides = [1, 1]} : vector<2x128xf32> to vector<2x32xf32>
    %189 = vector.extract_strided_slice %180 {offsets = [0, 64], sizes = [2, 32], strides = [1, 1]} : vector<2x128xf32> to vector<2x32xf32>
    %190 = math.tanh %189 : vector<2x32xf32>
    %191 = arith.mulf %187, %164 : vector<2x32xf32>
    %192 = arith.mulf %186, %190 : vector<2x32xf32>
    %193 = arith.addf %191, %192 : vector<2x32xf32>
    %194 = math.tanh %193 : vector<2x32xf32>
    %195 = arith.mulf %188, %194 : vector<2x32xf32>
    %196 = vector.extract_strided_slice %195 {offsets = [0, 0], sizes = [1, 32], strides = [1, 1]} : vector<2x32xf32> to vector<1x32xf32>
    %c0_119 = arith.constant 0 : index
    %c1_120 = arith.constant 1 : index
    %c0_121 = arith.constant 0 : index
    %197 = vector.load %arg21[%c0_119, %c1_120, %c0_121] : memref<2x11x32xf32, #tpu.memory_space<vmem>>, vector<1x1x32xf32>
    %198 = vector.shape_cast %197 : vector<1x1x32xf32> to vector<1x32xf32>
    %199 = vector.shape_cast %196 : vector<1x32xf32> to vector<1x1x32xf32>
    tpu.vector_store %arg21[%c0_119, %c1_120, %c0_121], %199 {strides = array<i32>} : memref<2x11x32xf32, #tpu.memory_space<vmem>>, vector<1x1x32xf32>,
    %200 = vector.extract_strided_slice %195 {offsets = [1, 0], sizes = [1, 32], strides = [1, 1]} : vector<2x32xf32> to vector<1x32xf32>
    %c1_122 = arith.constant 1 : index
    %c1_123 = arith.constant 1 : index
    %c0_124 = arith.constant 0 : index
    %201 = vector.load %arg21[%c1_122, %c1_123, %c0_124] : memref<2x11x32xf32, #tpu.memory_space<vmem>>, vector<1x1x32xf32>
    %202 = vector.shape_cast %201 : vector<1x1x32xf32> to vector<1x32xf32>
    %203 = vector.shape_cast %200 : vector<1x32xf32> to vector<1x1x32xf32>
    tpu.vector_store %arg21[%c1_122, %c1_123, %c0_124], %203 {strides = array<i32>} : memref<2x11x32xf32, #tpu.memory_space<vmem>>, vector<1x1x32xf32>,
    %204 = vector.extract_strided_slice %72 {offsets = [2, 0], sizes = [1, 128], strides = [1, 1]} : vector<8x128xf32> to vector<1x128xf32>
    %205 = vector.extract_strided_slice %143 {offsets = [2, 0], sizes = [1, 128], strides = [1, 1]} : vector<8x128xf32> to vector<1x128xf32>
    %206 = tpu.concatenate %204, %205 in 0 : vector<1x128xf32>, vector<1x128xf32> -> vector<2x128xf32>
    %c0_125 = arith.constant 0 : index
    %c0_126 = arith.constant 0 : index
    %207 = vector.load %arg10[%c0_125, %c0_126] : memref<32x128xf32, #tpu.memory_space<vmem>>, vector<32x128xf32>
    %cst_127 = arith.constant dense<0.000000e+00> : vector<2x128xf32>
    %208 = tpu.matmul %195, %207, %cst_127 {dimension_numbers = #tpu.dot_dimension_numbers<[1], [0], [0], [1], [0, 0, 1, 1], [], []>} : vector<2x32xf32>, vector<32x128xf32>, vector<2x128xf32> -> vector<2x128xf32>
    %209 = arith.addf %206, %208 : vector<2x128xf32>
    %210 = arith.negf %209 : vector<2x128xf32>
    %211 = math.exp %210 : vector<2x128xf32>
    %cst_128 = arith.constant 1.000000e+00 : f32
    %212 = vector.broadcast %cst_128 : f32 to vector<2x128xf32>
    %213 = arith.addf %212, %211 : vector<2x128xf32>
    %214 = arith.divf %212, %213 : vector<2x128xf32>
    %215 = vector.extract_strided_slice %214 {offsets = [0, 0], sizes = [2, 32], strides = [1, 1]} : vector<2x128xf32> to vector<2x32xf32>
    %216 = vector.extract_strided_slice %214 {offsets = [0, 32], sizes = [2, 32], strides = [1, 1]} : vector<2x128xf32> to vector<2x32xf32>
    %217 = vector.extract_strided_slice %214 {offsets = [0, 96], sizes = [2, 32], strides = [1, 1]} : vector<2x128xf32> to vector<2x32xf32>
    %218 = vector.extract_strided_slice %209 {offsets = [0, 64], sizes = [2, 32], strides = [1, 1]} : vector<2x128xf32> to vector<2x32xf32>
    %219 = math.tanh %218 : vector<2x32xf32>
    %220 = arith.mulf %216, %193 : vector<2x32xf32>
    %221 = arith.mulf %215, %219 : vector<2x32xf32>
    %222 = arith.addf %220, %221 : vector<2x32xf32>
    %223 = math.tanh %222 : vector<2x32xf32>
    %224 = arith.mulf %217, %223 : vector<2x32xf32>
    %225 = vector.extract_strided_slice %224 {offsets = [0, 0], sizes = [1, 32], strides = [1, 1]} : vector<2x32xf32> to vector<1x32xf32>
    %c0_129 = arith.constant 0 : index
    %c2_130 = arith.constant 2 : index
    %c0_131 = arith.constant 0 : index
    %226 = vector.load %arg21[%c0_129, %c2_130, %c0_131] : memref<2x11x32xf32, #tpu.memory_space<vmem>>, vector<1x1x32xf32>
    %227 = vector.shape_cast %226 : vector<1x1x32xf32> to vector<1x32xf32>
    %228 = vector.shape_cast %225 : vector<1x32xf32> to vector<1x1x32xf32>
    tpu.vector_store %arg21[%c0_129, %c2_130, %c0_131], %228 {strides = array<i32>} : memref<2x11x32xf32, #tpu.memory_space<vmem>>, vector<1x1x32xf32>,
    %229 = vector.extract_strided_slice %224 {offsets = [1, 0], sizes = [1, 32], strides = [1, 1]} : vector<2x32xf32> to vector<1x32xf32>
    %c1_132 = arith.constant 1 : index
    %c2_133 = arith.constant 2 : index
    %c0_134 = arith.constant 0 : index
    %230 = vector.load %arg21[%c1_132, %c2_133, %c0_134] : memref<2x11x32xf32, #tpu.memory_space<vmem>>, vector<1x1x32xf32>
    %231 = vector.shape_cast %230 : vector<1x1x32xf32> to vector<1x32xf32>
    %232 = vector.shape_cast %229 : vector<1x32xf32> to vector<1x1x32xf32>
    tpu.vector_store %arg21[%c1_132, %c2_133, %c0_134], %232 {strides = array<i32>} : memref<2x11x32xf32, #tpu.memory_space<vmem>>, vector<1x1x32xf32>,
    %233 = vector.extract_strided_slice %72 {offsets = [3, 0], sizes = [1, 128], strides = [1, 1]} : vector<8x128xf32> to vector<1x128xf32>
    %234 = vector.extract_strided_slice %143 {offsets = [3, 0], sizes = [1, 128], strides = [1, 1]} : vector<8x128xf32> to vector<1x128xf32>
    %235 = tpu.concatenate %233, %234 in 0 : vector<1x128xf32>, vector<1x128xf32> -> vector<2x128xf32>
    %c0_135 = arith.constant 0 : index
    %c0_136 = arith.constant 0 : index
    %236 = vector.load %arg10[%c0_135, %c0_136] : memref<32x128xf32, #tpu.memory_space<vmem>>, vector<32x128xf32>
    %cst_137 = arith.constant dense<0.000000e+00> : vector<2x128xf32>
    %237 = tpu.matmul %224, %236, %cst_137 {dimension_numbers = #tpu.dot_dimension_numbers<[1], [0], [0], [1], [0, 0, 1, 1], [], []>} : vector<2x32xf32>, vector<32x128xf32>, vector<2x128xf32> -> vector<2x128xf32>
    %238 = arith.addf %235, %237 : vector<2x128xf32>
    %239 = arith.negf %238 : vector<2x128xf32>
    %240 = math.exp %239 : vector<2x128xf32>
    %cst_138 = arith.constant 1.000000e+00 : f32
    %241 = vector.broadcast %cst_138 : f32 to vector<2x128xf32>
    %242 = arith.addf %241, %240 : vector<2x128xf32>
    %243 = arith.divf %241, %242 : vector<2x128xf32>
    %244 = vector.extract_strided_slice %243 {offsets = [0, 0], sizes = [2, 32], strides = [1, 1]} : vector<2x128xf32> to vector<2x32xf32>
    %245 = vector.extract_strided_slice %243 {offsets = [0, 32], sizes = [2, 32], strides = [1, 1]} : vector<2x128xf32> to vector<2x32xf32>
    %246 = vector.extract_strided_slice %243 {offsets = [0, 96], sizes = [2, 32], strides = [1, 1]} : vector<2x128xf32> to vector<2x32xf32>
    %247 = vector.extract_strided_slice %238 {offsets = [0, 64], sizes = [2, 32], strides = [1, 1]} : vector<2x128xf32> to vector<2x32xf32>
    %248 = math.tanh %247 : vector<2x32xf32>
    %249 = arith.mulf %245, %222 : vector<2x32xf32>
    %250 = arith.mulf %244, %248 : vector<2x32xf32>
    %251 = arith.addf %249, %250 : vector<2x32xf32>
    %252 = math.tanh %251 : vector<2x32xf32>
    %253 = arith.mulf %246, %252 : vector<2x32xf32>
    %254 = vector.extract_strided_slice %253 {offsets = [0, 0], sizes = [1, 32], strides = [1, 1]} : vector<2x32xf32> to vector<1x32xf32>
    %c0_139 = arith.constant 0 : index
    %c3 = arith.constant 3 : index
    %c0_140 = arith.constant 0 : index
    %255 = vector.load %arg21[%c0_139, %c3, %c0_140] : memref<2x11x32xf32, #tpu.memory_space<vmem>>, vector<1x1x32xf32>
    %256 = vector.shape_cast %255 : vector<1x1x32xf32> to vector<1x32xf32>
    %257 = vector.shape_cast %254 : vector<1x32xf32> to vector<1x1x32xf32>
    tpu.vector_store %arg21[%c0_139, %c3, %c0_140], %257 {strides = array<i32>} : memref<2x11x32xf32, #tpu.memory_space<vmem>>, vector<1x1x32xf32>,
    %258 = vector.extract_strided_slice %253 {offsets = [1, 0], sizes = [1, 32], strides = [1, 1]} : vector<2x32xf32> to vector<1x32xf32>
    %c1_141 = arith.constant 1 : index
    %c3_142 = arith.constant 3 : index
    %c0_143 = arith.constant 0 : index
    %259 = vector.load %arg21[%c1_141, %c3_142, %c0_143] : memref<2x11x32xf32, #tpu.memory_space<vmem>>, vector<1x1x32xf32>
    %260 = vector.shape_cast %259 : vector<1x1x32xf32> to vector<1x32xf32>
    %261 = vector.shape_cast %258 : vector<1x32xf32> to vector<1x1x32xf32>
    tpu.vector_store %arg21[%c1_141, %c3_142, %c0_143], %261 {strides = array<i32>} : memref<2x11x32xf32, #tpu.memory_space<vmem>>, vector<1x1x32xf32>,
    %262 = vector.extract_strided_slice %72 {offsets = [4, 0], sizes = [1, 128], strides = [1, 1]} : vector<8x128xf32> to vector<1x128xf32>
    %263 = vector.extract_strided_slice %143 {offsets = [4, 0], sizes = [1, 128], strides = [1, 1]} : vector<8x128xf32> to vector<1x128xf32>
    %264 = tpu.concatenate %262, %263 in 0 : vector<1x128xf32>, vector<1x128xf32> -> vector<2x128xf32>
    %c0_144 = arith.constant 0 : index
    %c0_145 = arith.constant 0 : index
    %265 = vector.load %arg10[%c0_144, %c0_145] : memref<32x128xf32, #tpu.memory_space<vmem>>, vector<32x128xf32>
    %cst_146 = arith.constant dense<0.000000e+00> : vector<2x128xf32>
    %266 = tpu.matmul %253, %265, %cst_146 {dimension_numbers = #tpu.dot_dimension_numbers<[1], [0], [0], [1], [0, 0, 1, 1], [], []>} : vector<2x32xf32>, vector<32x128xf32>, vector<2x128xf32> -> vector<2x128xf32>
    %267 = arith.addf %264, %266 : vector<2x128xf32>
    %268 = arith.negf %267 : vector<2x128xf32>
    %269 = math.exp %268 : vector<2x128xf32>
    %cst_147 = arith.constant 1.000000e+00 : f32
    %270 = vector.broadcast %cst_147 : f32 to vector<2x128xf32>
    %271 = arith.addf %270, %269 : vector<2x128xf32>
    %272 = arith.divf %270, %271 : vector<2x128xf32>
    %273 = vector.extract_strided_slice %272 {offsets = [0, 0], sizes = [2, 32], strides = [1, 1]} : vector<2x128xf32> to vector<2x32xf32>
    %274 = vector.extract_strided_slice %272 {offsets = [0, 32], sizes = [2, 32], strides = [1, 1]} : vector<2x128xf32> to vector<2x32xf32>
    %275 = vector.extract_strided_slice %272 {offsets = [0, 96], sizes = [2, 32], strides = [1, 1]} : vector<2x128xf32> to vector<2x32xf32>
    %276 = vector.extract_strided_slice %267 {offsets = [0, 64], sizes = [2, 32], strides = [1, 1]} : vector<2x128xf32> to vector<2x32xf32>
    %277 = math.tanh %276 : vector<2x32xf32>
    %278 = arith.mulf %274, %251 : vector<2x32xf32>
    %279 = arith.mulf %273, %277 : vector<2x32xf32>
    %280 = arith.addf %278, %279 : vector<2x32xf32>
    %281 = math.tanh %280 : vector<2x32xf32>
    %282 = arith.mulf %275, %281 : vector<2x32xf32>
    %283 = vector.extract_strided_slice %282 {offsets = [0, 0], sizes = [1, 32], strides = [1, 1]} : vector<2x32xf32> to vector<1x32xf32>
    %c0_148 = arith.constant 0 : index
    %c4 = arith.constant 4 : index
    %c0_149 = arith.constant 0 : index
    %284 = vector.load %arg21[%c0_148, %c4, %c0_149] : memref<2x11x32xf32, #tpu.memory_space<vmem>>, vector<1x1x32xf32>
    %285 = vector.shape_cast %284 : vector<1x1x32xf32> to vector<1x32xf32>
    %286 = vector.shape_cast %283 : vector<1x32xf32> to vector<1x1x32xf32>
    tpu.vector_store %arg21[%c0_148, %c4, %c0_149], %286 {strides = array<i32>} : memref<2x11x32xf32, #tpu.memory_space<vmem>>, vector<1x1x32xf32>,
    %287 = vector.extract_strided_slice %282 {offsets = [1, 0], sizes = [1, 32], strides = [1, 1]} : vector<2x32xf32> to vector<1x32xf32>
    %c1_150 = arith.constant 1 : index
    %c4_151 = arith.constant 4 : index
    %c0_152 = arith.constant 0 : index
    %288 = vector.load %arg21[%c1_150, %c4_151, %c0_152] : memref<2x11x32xf32, #tpu.memory_space<vmem>>, vector<1x1x32xf32>
    %289 = vector.shape_cast %288 : vector<1x1x32xf32> to vector<1x32xf32>
    %290 = vector.shape_cast %287 : vector<1x32xf32> to vector<1x1x32xf32>
    tpu.vector_store %arg21[%c1_150, %c4_151, %c0_152], %290 {strides = array<i32>} : memref<2x11x32xf32, #tpu.memory_space<vmem>>, vector<1x1x32xf32>,
    %291 = vector.extract_strided_slice %72 {offsets = [5, 0], sizes = [1, 128], strides = [1, 1]} : vector<8x128xf32> to vector<1x128xf32>
    %292 = vector.extract_strided_slice %143 {offsets = [5, 0], sizes = [1, 128], strides = [1, 1]} : vector<8x128xf32> to vector<1x128xf32>
    %293 = tpu.concatenate %291, %292 in 0 : vector<1x128xf32>, vector<1x128xf32> -> vector<2x128xf32>
    %c0_153 = arith.constant 0 : index
    %c0_154 = arith.constant 0 : index
    %294 = vector.load %arg10[%c0_153, %c0_154] : memref<32x128xf32, #tpu.memory_space<vmem>>, vector<32x128xf32>
    %cst_155 = arith.constant dense<0.000000e+00> : vector<2x128xf32>
    %295 = tpu.matmul %282, %294, %cst_155 {dimension_numbers = #tpu.dot_dimension_numbers<[1], [0], [0], [1], [0, 0, 1, 1], [], []>} : vector<2x32xf32>, vector<32x128xf32>, vector<2x128xf32> -> vector<2x128xf32>
    %296 = arith.addf %293, %295 : vector<2x128xf32>
    %297 = arith.negf %296 : vector<2x128xf32>
    %298 = math.exp %297 : vector<2x128xf32>
    %cst_156 = arith.constant 1.000000e+00 : f32
    %299 = vector.broadcast %cst_156 : f32 to vector<2x128xf32>
    %300 = arith.addf %299, %298 : vector<2x128xf32>
    %301 = arith.divf %299, %300 : vector<2x128xf32>
    %302 = vector.extract_strided_slice %301 {offsets = [0, 0], sizes = [2, 32], strides = [1, 1]} : vector<2x128xf32> to vector<2x32xf32>
    %303 = vector.extract_strided_slice %301 {offsets = [0, 32], sizes = [2, 32], strides = [1, 1]} : vector<2x128xf32> to vector<2x32xf32>
    %304 = vector.extract_strided_slice %301 {offsets = [0, 96], sizes = [2, 32], strides = [1, 1]} : vector<2x128xf32> to vector<2x32xf32>
    %305 = vector.extract_strided_slice %296 {offsets = [0, 64], sizes = [2, 32], strides = [1, 1]} : vector<2x128xf32> to vector<2x32xf32>
    %306 = math.tanh %305 : vector<2x32xf32>
    %307 = arith.mulf %303, %280 : vector<2x32xf32>
    %308 = arith.mulf %302, %306 : vector<2x32xf32>
    %309 = arith.addf %307, %308 : vector<2x32xf32>
    %310 = math.tanh %309 : vector<2x32xf32>
    %311 = arith.mulf %304, %310 : vector<2x32xf32>
    %312 = vector.extract_strided_slice %311 {offsets = [0, 0], sizes = [1, 32], strides = [1, 1]} : vector<2x32xf32> to vector<1x32xf32>
    %c0_157 = arith.constant 0 : index
    %c5 = arith.constant 5 : index
    %c0_158 = arith.constant 0 : index
    %313 = vector.load %arg21[%c0_157, %c5, %c0_158] : memref<2x11x32xf32, #tpu.memory_space<vmem>>, vector<1x1x32xf32>
    %314 = vector.shape_cast %313 : vector<1x1x32xf32> to vector<1x32xf32>
    %315 = vector.shape_cast %312 : vector<1x32xf32> to vector<1x1x32xf32>
    tpu.vector_store %arg21[%c0_157, %c5, %c0_158], %315 {strides = array<i32>} : memref<2x11x32xf32, #tpu.memory_space<vmem>>, vector<1x1x32xf32>,
    %316 = vector.extract_strided_slice %311 {offsets = [1, 0], sizes = [1, 32], strides = [1, 1]} : vector<2x32xf32> to vector<1x32xf32>
    %c1_159 = arith.constant 1 : index
    %c5_160 = arith.constant 5 : index
    %c0_161 = arith.constant 0 : index
    %317 = vector.load %arg21[%c1_159, %c5_160, %c0_161] : memref<2x11x32xf32, #tpu.memory_space<vmem>>, vector<1x1x32xf32>
    %318 = vector.shape_cast %317 : vector<1x1x32xf32> to vector<1x32xf32>
    %319 = vector.shape_cast %316 : vector<1x32xf32> to vector<1x1x32xf32>
    tpu.vector_store %arg21[%c1_159, %c5_160, %c0_161], %319 {strides = array<i32>} : memref<2x11x32xf32, #tpu.memory_space<vmem>>, vector<1x1x32xf32>,
    %320 = vector.extract_strided_slice %72 {offsets = [6, 0], sizes = [1, 128], strides = [1, 1]} : vector<8x128xf32> to vector<1x128xf32>
    %321 = vector.extract_strided_slice %143 {offsets = [6, 0], sizes = [1, 128], strides = [1, 1]} : vector<8x128xf32> to vector<1x128xf32>
    %322 = tpu.concatenate %320, %321 in 0 : vector<1x128xf32>, vector<1x128xf32> -> vector<2x128xf32>
    %c0_162 = arith.constant 0 : index
    %c0_163 = arith.constant 0 : index
    %323 = vector.load %arg10[%c0_162, %c0_163] : memref<32x128xf32, #tpu.memory_space<vmem>>, vector<32x128xf32>
    %cst_164 = arith.constant dense<0.000000e+00> : vector<2x128xf32>
    %324 = tpu.matmul %311, %323, %cst_164 {dimension_numbers = #tpu.dot_dimension_numbers<[1], [0], [0], [1], [0, 0, 1, 1], [], []>} : vector<2x32xf32>, vector<32x128xf32>, vector<2x128xf32> -> vector<2x128xf32>
    %325 = arith.addf %322, %324 : vector<2x128xf32>
    %326 = arith.negf %325 : vector<2x128xf32>
    %327 = math.exp %326 : vector<2x128xf32>
    %cst_165 = arith.constant 1.000000e+00 : f32
    %328 = vector.broadcast %cst_165 : f32 to vector<2x128xf32>
    %329 = arith.addf %328, %327 : vector<2x128xf32>
    %330 = arith.divf %328, %329 : vector<2x128xf32>
    %331 = vector.extract_strided_slice %330 {offsets = [0, 0], sizes = [2, 32], strides = [1, 1]} : vector<2x128xf32> to vector<2x32xf32>
    %332 = vector.extract_strided_slice %330 {offsets = [0, 32], sizes = [2, 32], strides = [1, 1]} : vector<2x128xf32> to vector<2x32xf32>
    %333 = vector.extract_strided_slice %330 {offsets = [0, 96], sizes = [2, 32], strides = [1, 1]} : vector<2x128xf32> to vector<2x32xf32>
    %334 = vector.extract_strided_slice %325 {offsets = [0, 64], sizes = [2, 32], strides = [1, 1]} : vector<2x128xf32> to vector<2x32xf32>
    %335 = math.tanh %334 : vector<2x32xf32>
    %336 = arith.mulf %332, %309 : vector<2x32xf32>
    %337 = arith.mulf %331, %335 : vector<2x32xf32>
    %338 = arith.addf %336, %337 : vector<2x32xf32>
    %339 = math.tanh %338 : vector<2x32xf32>
    %340 = arith.mulf %333, %339 : vector<2x32xf32>
    %341 = vector.extract_strided_slice %340 {offsets = [0, 0], sizes = [1, 32], strides = [1, 1]} : vector<2x32xf32> to vector<1x32xf32>
    %c0_166 = arith.constant 0 : index
    %c6 = arith.constant 6 : index
    %c0_167 = arith.constant 0 : index
    %342 = vector.load %arg21[%c0_166, %c6, %c0_167] : memref<2x11x32xf32, #tpu.memory_space<vmem>>, vector<1x1x32xf32>
    %343 = vector.shape_cast %342 : vector<1x1x32xf32> to vector<1x32xf32>
    %344 = vector.shape_cast %341 : vector<1x32xf32> to vector<1x1x32xf32>
    tpu.vector_store %arg21[%c0_166, %c6, %c0_167], %344 {strides = array<i32>} : memref<2x11x32xf32, #tpu.memory_space<vmem>>, vector<1x1x32xf32>,
    %345 = vector.extract_strided_slice %340 {offsets = [1, 0], sizes = [1, 32], strides = [1, 1]} : vector<2x32xf32> to vector<1x32xf32>
    %c1_168 = arith.constant 1 : index
    %c6_169 = arith.constant 6 : index
    %c0_170 = arith.constant 0 : index
    %346 = vector.load %arg21[%c1_168, %c6_169, %c0_170] : memref<2x11x32xf32, #tpu.memory_space<vmem>>, vector<1x1x32xf32>
    %347 = vector.shape_cast %346 : vector<1x1x32xf32> to vector<1x32xf32>
    %348 = vector.shape_cast %345 : vector<1x32xf32> to vector<1x1x32xf32>
    tpu.vector_store %arg21[%c1_168, %c6_169, %c0_170], %348 {strides = array<i32>} : memref<2x11x32xf32, #tpu.memory_space<vmem>>, vector<1x1x32xf32>,
    %349 = vector.extract_strided_slice %72 {offsets = [7, 0], sizes = [1, 128], strides = [1, 1]} : vector<8x128xf32> to vector<1x128xf32>
    %350 = vector.extract_strided_slice %143 {offsets = [7, 0], sizes = [1, 128], strides = [1, 1]} : vector<8x128xf32> to vector<1x128xf32>
    %351 = tpu.concatenate %349, %350 in 0 : vector<1x128xf32>, vector<1x128xf32> -> vector<2x128xf32>
    %c0_171 = arith.constant 0 : index
    %c0_172 = arith.constant 0 : index
    %352 = vector.load %arg10[%c0_171, %c0_172] : memref<32x128xf32, #tpu.memory_space<vmem>>, vector<32x128xf32>
    %cst_173 = arith.constant dense<0.000000e+00> : vector<2x128xf32>
    %353 = tpu.matmul %340, %352, %cst_173 {dimension_numbers = #tpu.dot_dimension_numbers<[1], [0], [0], [1], [0, 0, 1, 1], [], []>} : vector<2x32xf32>, vector<32x128xf32>, vector<2x128xf32> -> vector<2x128xf32>
    %354 = arith.addf %351, %353 : vector<2x128xf32>
    %355 = arith.negf %354 : vector<2x128xf32>
    %356 = math.exp %355 : vector<2x128xf32>
    %cst_174 = arith.constant 1.000000e+00 : f32
    %357 = vector.broadcast %cst_174 : f32 to vector<2x128xf32>
    %358 = arith.addf %357, %356 : vector<2x128xf32>
    %359 = arith.divf %357, %358 : vector<2x128xf32>
    %360 = vector.extract_strided_slice %359 {offsets = [0, 0], sizes = [2, 32], strides = [1, 1]} : vector<2x128xf32> to vector<2x32xf32>
    %361 = vector.extract_strided_slice %359 {offsets = [0, 32], sizes = [2, 32], strides = [1, 1]} : vector<2x128xf32> to vector<2x32xf32>
    %362 = vector.extract_strided_slice %359 {offsets = [0, 96], sizes = [2, 32], strides = [1, 1]} : vector<2x128xf32> to vector<2x32xf32>
    %363 = vector.extract_strided_slice %354 {offsets = [0, 64], sizes = [2, 32], strides = [1, 1]} : vector<2x128xf32> to vector<2x32xf32>
    %364 = math.tanh %363 : vector<2x32xf32>
    %365 = arith.mulf %361, %338 : vector<2x32xf32>
    %366 = arith.mulf %360, %364 : vector<2x32xf32>
    %367 = arith.addf %365, %366 : vector<2x32xf32>
    %368 = math.tanh %367 : vector<2x32xf32>
    %369 = arith.mulf %362, %368 : vector<2x32xf32>
    %c0_175 = arith.constant 0 : index
    %c0_176 = arith.constant 0 : index
    %c0_177 = arith.constant 0 : index
    %370 = vector.load %arg17[%c0_175, %c0_176, %c0_177] : memref<4x32x16xf32, #tpu.memory_space<vmem>>, vector<1x32x16xf32>
    %371 = vector.shape_cast %370 : vector<1x32x16xf32> to vector<32x16xf32>
    %c0_178 = arith.constant 0 : index
    %c0_179 = arith.constant 0 : index
    %c0_180 = arith.constant 0 : index
    %372 = vector.load %arg18[%c0_178, %c0_179, %c0_180] : memref<4x32x16xf32, #tpu.memory_space<vmem>>, vector<1x32x16xf32>
    %373 = vector.shape_cast %372 : vector<1x32x16xf32> to vector<32x16xf32>
    %c0_181 = arith.constant 0 : index
    %c0_182 = arith.constant 0 : index
    %c0_183 = arith.constant 0 : index
    %374 = vector.load %arg19[%c0_181, %c0_182, %c0_183] : memref<4x16x1xf32, #tpu.memory_space<vmem>>, vector<1x16x1xf32>
    %375 = vector.shape_cast %374 : vector<1x16x1xf32> to vector<16x1xf32>
    %376 = vector.extract_strided_slice %369 {offsets = [0, 0], sizes = [1, 32], strides = [1, 1]} : vector<2x32xf32> to vector<1x32xf32>
    %c0_184 = arith.constant 0 : index
    %c7 = arith.constant 7 : index
    %c0_185 = arith.constant 0 : index
    %377 = vector.load %arg21[%c0_184, %c7, %c0_185] : memref<2x11x32xf32, #tpu.memory_space<vmem>>, vector<1x1x32xf32>
    %378 = vector.shape_cast %377 : vector<1x1x32xf32> to vector<1x32xf32>
    %379 = vector.shape_cast %376 : vector<1x32xf32> to vector<1x1x32xf32>
    tpu.vector_store %arg21[%c0_184, %c7, %c0_185], %379 {strides = array<i32>} : memref<2x11x32xf32, #tpu.memory_space<vmem>>, vector<1x1x32xf32>,
    %380 = vector.extract_strided_slice %369 {offsets = [1, 0], sizes = [1, 32], strides = [1, 1]} : vector<2x32xf32> to vector<1x32xf32>
    %c1_186 = arith.constant 1 : index
    %c7_187 = arith.constant 7 : index
    %c0_188 = arith.constant 0 : index
    %381 = vector.load %arg21[%c1_186, %c7_187, %c0_188] : memref<2x11x32xf32, #tpu.memory_space<vmem>>, vector<1x1x32xf32>
    %382 = vector.shape_cast %381 : vector<1x1x32xf32> to vector<1x32xf32>
    %383 = vector.shape_cast %380 : vector<1x32xf32> to vector<1x1x32xf32>
    tpu.vector_store %arg21[%c1_186, %c7_187, %c0_188], %383 {strides = array<i32>} : memref<2x11x32xf32, #tpu.memory_space<vmem>>, vector<1x1x32xf32>,
    %c0_189 = arith.constant 0 : index
    %c0_190 = arith.constant 0 : index
    %c0_191 = arith.constant 0 : index
    %384 = vector.load %arg21[%c0_189, %c0_190, %c0_191] : memref<2x11x32xf32, #tpu.memory_space<vmem>>, vector<1x11x32xf32>
    %385 = vector.shape_cast %384 : vector<1x11x32xf32> to vector<11x32xf32>
    %cst_192 = arith.constant dense<0.000000e+00> : vector<11x16xf32>
    %386 = tpu.matmul %385, %373, %cst_192 {dimension_numbers = #tpu.dot_dimension_numbers<[1], [0], [0], [1], [0, 0, 1, 1], [], []>} : vector<11x32xf32>, vector<32x16xf32>, vector<11x16xf32> -> vector<11x16xf32>
    %387 = vector.extract_strided_slice %369 {offsets = [0, 0], sizes = [1, 32], strides = [1, 1]} : vector<2x32xf32> to vector<1x32xf32>
    %cst_193 = arith.constant dense<0.000000e+00> : vector<1x16xf32>
    %388 = tpu.matmul %387, %371, %cst_193 {dimension_numbers = #tpu.dot_dimension_numbers<[1], [0], [0], [1], [0, 0, 1, 1], [], []>} : vector<1x32xf32>, vector<32x16xf32>, vector<1x16xf32> -> vector<1x16xf32>
    %389 = vector.extract_strided_slice %367 {offsets = [0, 0], sizes = [1, 32], strides = [1, 1]} : vector<2x32xf32> to vector<1x32xf32>
    %cst_194 = arith.constant dense<0.000000e+00> : vector<1x16xf32>
    %390 = tpu.matmul %389, %371, %cst_194 {dimension_numbers = #tpu.dot_dimension_numbers<[1], [0], [0], [1], [0, 0, 1, 1], [], []>} : vector<1x32xf32>, vector<32x16xf32>, vector<1x16xf32> -> vector<1x16xf32>
    %391 = vector.broadcast %388 : vector<1x16xf32> to vector<11x16xf32>
    %392 = arith.addf %386, %391 : vector<11x16xf32>
    %393 = math.tanh %392 : vector<11x16xf32>
    %cst_195 = arith.constant dense<0.000000e+00> : vector<11x1xf32>
    %394 = tpu.matmul %393, %375, %cst_195 {dimension_numbers = #tpu.dot_dimension_numbers<[1], [0], [0], [1], [0, 0, 1, 1], [], []>} : vector<11x16xf32>, vector<16x1xf32>, vector<11x1xf32> -> vector<11x1xf32>
    %395 = vector.broadcast %390 : vector<1x16xf32> to vector<11x16xf32>
    %396 = arith.addf %386, %395 : vector<11x16xf32>
    %397 = math.tanh %396 : vector<11x16xf32>
    %cst_196 = arith.constant dense<0.000000e+00> : vector<11x1xf32>
    %398 = tpu.matmul %397, %375, %cst_196 {dimension_numbers = #tpu.dot_dimension_numbers<[1], [0], [0], [1], [0, 0, 1, 1], [], []>} : vector<11x16xf32>, vector<16x1xf32>, vector<11x1xf32> -> vector<11x1xf32>
    %399 = arith.maximumf %394, %398 : vector<11x1xf32>
    %400 = arith.subf %394, %399 : vector<11x1xf32>
    %401 = math.exp %400 : vector<11x1xf32>
    %402 = arith.subf %398, %399 : vector<11x1xf32>
    %403 = math.exp %402 : vector<11x1xf32>
    %404 = arith.addf %401, %403 : vector<11x1xf32>
    %cst_197 = arith.constant 1.000000e+00 : f32
    %405 = vector.broadcast %cst_197 : f32 to vector<11x1xf32>
    %406 = arith.divf %405, %404 : vector<11x1xf32>
    %407 = arith.mulf %401, %406 : vector<11x1xf32>
    %408 = arith.mulf %403, %406 : vector<11x1xf32>
    %409 = vector.broadcast %407 : vector<11x1xf32> to vector<11x32xf32>
    %410 = arith.mulf %409, %385 : vector<11x32xf32>
    %cst_198 = arith.constant dense<0.000000e+00> : vector<32xf32>
    %411 = vector.multi_reduction <add>, %410, %cst_198 [0] : vector<11x32xf32> to vector<32xf32>
    %412 = vector.shape_cast %411 : vector<32xf32> to vector<1x32xf32>
    %413 = vector.broadcast %408 : vector<11x1xf32> to vector<11x32xf32>
    %414 = arith.mulf %413, %385 : vector<11x32xf32>
    %cst_199 = arith.constant dense<0.000000e+00> : vector<32xf32>
    %415 = vector.multi_reduction <add>, %414, %cst_199 [0] : vector<11x32xf32> to vector<32xf32>
    %416 = vector.shape_cast %415 : vector<32xf32> to vector<1x32xf32>
    %c1_200 = arith.constant 1 : index
    %c0_201 = arith.constant 0 : index
    %c0_202 = arith.constant 0 : index
    %417 = vector.load %arg21[%c1_200, %c0_201, %c0_202] : memref<2x11x32xf32, #tpu.memory_space<vmem>>, vector<1x11x32xf32>
    %418 = vector.shape_cast %417 : vector<1x11x32xf32> to vector<11x32xf32>
    %cst_203 = arith.constant dense<0.000000e+00> : vector<11x16xf32>
    %419 = tpu.matmul %418, %373, %cst_203 {dimension_numbers = #tpu.dot_dimension_numbers<[1], [0], [0], [1], [0, 0, 1, 1], [], []>} : vector<11x32xf32>, vector<32x16xf32>, vector<11x16xf32> -> vector<11x16xf32>
    %420 = vector.extract_strided_slice %369 {offsets = [1, 0], sizes = [1, 32], strides = [1, 1]} : vector<2x32xf32> to vector<1x32xf32>
    %cst_204 = arith.constant dense<0.000000e+00> : vector<1x16xf32>
    %421 = tpu.matmul %420, %371, %cst_204 {dimension_numbers = #tpu.dot_dimension_numbers<[1], [0], [0], [1], [0, 0, 1, 1], [], []>} : vector<1x32xf32>, vector<32x16xf32>, vector<1x16xf32> -> vector<1x16xf32>
    %422 = vector.extract_strided_slice %367 {offsets = [1, 0], sizes = [1, 32], strides = [1, 1]} : vector<2x32xf32> to vector<1x32xf32>
    %cst_205 = arith.constant dense<0.000000e+00> : vector<1x16xf32>
    %423 = tpu.matmul %422, %371, %cst_205 {dimension_numbers = #tpu.dot_dimension_numbers<[1], [0], [0], [1], [0, 0, 1, 1], [], []>} : vector<1x32xf32>, vector<32x16xf32>, vector<1x16xf32> -> vector<1x16xf32>
    %424 = vector.broadcast %421 : vector<1x16xf32> to vector<11x16xf32>
    %425 = arith.addf %419, %424 : vector<11x16xf32>
    %426 = math.tanh %425 : vector<11x16xf32>
    %cst_206 = arith.constant dense<0.000000e+00> : vector<11x1xf32>
    %427 = tpu.matmul %426, %375, %cst_206 {dimension_numbers = #tpu.dot_dimension_numbers<[1], [0], [0], [1], [0, 0, 1, 1], [], []>} : vector<11x16xf32>, vector<16x1xf32>, vector<11x1xf32> -> vector<11x1xf32>
    %428 = vector.broadcast %423 : vector<1x16xf32> to vector<11x16xf32>
    %429 = arith.addf %419, %428 : vector<11x16xf32>
    %430 = math.tanh %429 : vector<11x16xf32>
    %cst_207 = arith.constant dense<0.000000e+00> : vector<11x1xf32>
    %431 = tpu.matmul %430, %375, %cst_207 {dimension_numbers = #tpu.dot_dimension_numbers<[1], [0], [0], [1], [0, 0, 1, 1], [], []>} : vector<11x16xf32>, vector<16x1xf32>, vector<11x1xf32> -> vector<11x1xf32>
    %432 = arith.maximumf %427, %431 : vector<11x1xf32>
    %433 = arith.subf %427, %432 : vector<11x1xf32>
    %434 = math.exp %433 : vector<11x1xf32>
    %435 = arith.subf %431, %432 : vector<11x1xf32>
    %436 = math.exp %435 : vector<11x1xf32>
    %437 = arith.addf %434, %436 : vector<11x1xf32>
    %cst_208 = arith.constant 1.000000e+00 : f32
    %438 = vector.broadcast %cst_208 : f32 to vector<11x1xf32>
    %439 = arith.divf %438, %437 : vector<11x1xf32>
    %440 = arith.mulf %434, %439 : vector<11x1xf32>
    %441 = arith.mulf %436, %439 : vector<11x1xf32>
    %442 = vector.broadcast %440 : vector<11x1xf32> to vector<11x32xf32>
    %443 = arith.mulf %442, %418 : vector<11x32xf32>
    %cst_209 = arith.constant dense<0.000000e+00> : vector<32xf32>
    %444 = vector.multi_reduction <add>, %443, %cst_209 [0] : vector<11x32xf32> to vector<32xf32>
    %445 = vector.shape_cast %444 : vector<32xf32> to vector<1x32xf32>
    %446 = vector.broadcast %441 : vector<11x1xf32> to vector<11x32xf32>
    %447 = arith.mulf %446, %418 : vector<11x32xf32>
    %cst_210 = arith.constant dense<0.000000e+00> : vector<32xf32>
    %448 = vector.multi_reduction <add>, %447, %cst_210 [0] : vector<11x32xf32> to vector<32xf32>
    %449 = vector.shape_cast %448 : vector<32xf32> to vector<1x32xf32>
    %450 = tpu.concatenate %412, %445 in 0 : vector<1x32xf32>, vector<1x32xf32> -> vector<2x32xf32>
    %451 = tpu.concatenate %416, %449 in 0 : vector<1x32xf32>, vector<1x32xf32> -> vector<2x32xf32>
    %c0_211 = arith.constant 0 : index
    %c0_212 = arith.constant 0 : index
    %452 = vector.load %arg12[%c0_211, %c0_212] : memref<32x128xf32, #tpu.memory_space<vmem>>, vector<32x128xf32>
    %cst_213 = arith.constant dense<0.000000e+00> : vector<2x128xf32>
    %453 = tpu.matmul %450, %452, %cst_213 {dimension_numbers = #tpu.dot_dimension_numbers<[1], [0], [0], [1], [0, 0, 1, 1], [], []>} : vector<2x32xf32>, vector<32x128xf32>, vector<2x128xf32> -> vector<2x128xf32>
    %c0_214 = arith.constant 0 : index
    %c0_215 = arith.constant 0 : index
    %454 = vector.load %arg13[%c0_214, %c0_215] : memref<32x128xf32, #tpu.memory_space<vmem>>, vector<32x128xf32>
    %cst_216 = arith.constant dense<0.000000e+00> : vector<2x128xf32>
    %455 = tpu.matmul %369, %454, %cst_216 {dimension_numbers = #tpu.dot_dimension_numbers<[1], [0], [0], [1], [0, 0, 1, 1], [], []>} : vector<2x32xf32>, vector<32x128xf32>, vector<2x128xf32> -> vector<2x128xf32>
    %456 = arith.addf %453, %455 : vector<2x128xf32>
    %c0_217 = arith.constant 0 : index
    %c0_218 = arith.constant 0 : index
    %457 = vector.load %arg14[%c0_217, %c0_218] : memref<1x128xf32, #tpu.memory_space<vmem>>, vector<1x128xf32>
    %458 = vector.broadcast %457 : vector<1x128xf32> to vector<2x128xf32>
    %459 = arith.addf %456, %458 : vector<2x128xf32>
    %460 = arith.negf %459 : vector<2x128xf32>
    %461 = math.exp %460 : vector<2x128xf32>
    %cst_219 = arith.constant 1.000000e+00 : f32
    %462 = vector.broadcast %cst_219 : f32 to vector<2x128xf32>
    %463 = arith.addf %462, %461 : vector<2x128xf32>
    %464 = arith.divf %462, %463 : vector<2x128xf32>
    %465 = vector.extract_strided_slice %464 {offsets = [0, 0], sizes = [2, 32], strides = [1, 1]} : vector<2x128xf32> to vector<2x32xf32>
    %466 = vector.extract_strided_slice %464 {offsets = [0, 32], sizes = [2, 32], strides = [1, 1]} : vector<2x128xf32> to vector<2x32xf32>
    %467 = vector.extract_strided_slice %464 {offsets = [0, 96], sizes = [2, 32], strides = [1, 1]} : vector<2x128xf32> to vector<2x32xf32>
    %468 = vector.extract_strided_slice %459 {offsets = [0, 64], sizes = [2, 32], strides = [1, 1]} : vector<2x128xf32> to vector<2x32xf32>
    %469 = math.tanh %468 : vector<2x32xf32>
    %470 = arith.mulf %466, %367 : vector<2x32xf32>
    %471 = arith.mulf %465, %469 : vector<2x32xf32>
    %472 = arith.addf %470, %471 : vector<2x32xf32>
    %473 = math.tanh %472 : vector<2x32xf32>
    %474 = arith.mulf %467, %473 : vector<2x32xf32>
    %c0_220 = arith.constant 0 : index
    %c0_221 = arith.constant 0 : index
    %475 = vector.load %arg12[%c0_220, %c0_221] : memref<32x128xf32, #tpu.memory_space<vmem>>, vector<32x128xf32>
    %cst_222 = arith.constant dense<0.000000e+00> : vector<2x128xf32>
    %476 = tpu.matmul %451, %475, %cst_222 {dimension_numbers = #tpu.dot_dimension_numbers<[1], [0], [0], [1], [0, 0, 1, 1], [], []>} : vector<2x32xf32>, vector<32x128xf32>, vector<2x128xf32> -> vector<2x128xf32>
    %c0_223 = arith.constant 0 : index
    %c0_224 = arith.constant 0 : index
    %477 = vector.load %arg13[%c0_223, %c0_224] : memref<32x128xf32, #tpu.memory_space<vmem>>, vector<32x128xf32>
    %cst_225 = arith.constant dense<0.000000e+00> : vector<2x128xf32>
    %478 = tpu.matmul %474, %477, %cst_225 {dimension_numbers = #tpu.dot_dimension_numbers<[1], [0], [0], [1], [0, 0, 1, 1], [], []>} : vector<2x32xf32>, vector<32x128xf32>, vector<2x128xf32> -> vector<2x128xf32>
    %479 = arith.addf %476, %478 : vector<2x128xf32>
    %c0_226 = arith.constant 0 : index
    %c0_227 = arith.constant 0 : index
    %480 = vector.load %arg14[%c0_226, %c0_227] : memref<1x128xf32, #tpu.memory_space<vmem>>, vector<1x128xf32>
    %481 = vector.broadcast %480 : vector<1x128xf32> to vector<2x128xf32>
    %482 = arith.addf %479, %481 : vector<2x128xf32>
    %483 = arith.negf %482 : vector<2x128xf32>
    %484 = math.exp %483 : vector<2x128xf32>
    %cst_228 = arith.constant 1.000000e+00 : f32
    %485 = vector.broadcast %cst_228 : f32 to vector<2x128xf32>
    %486 = arith.addf %485, %484 : vector<2x128xf32>
    %487 = arith.divf %485, %486 : vector<2x128xf32>
    %488 = vector.extract_strided_slice %487 {offsets = [0, 0], sizes = [2, 32], strides = [1, 1]} : vector<2x128xf32> to vector<2x32xf32>
    %489 = vector.extract_strided_slice %487 {offsets = [0, 32], sizes = [2, 32], strides = [1, 1]} : vector<2x128xf32> to vector<2x32xf32>
    %490 = vector.extract_strided_slice %487 {offsets = [0, 96], sizes = [2, 32], strides = [1, 1]} : vector<2x128xf32> to vector<2x32xf32>
    %491 = vector.extract_strided_slice %482 {offsets = [0, 64], sizes = [2, 32], strides = [1, 1]} : vector<2x128xf32> to vector<2x32xf32>
    %492 = math.tanh %491 : vector<2x32xf32>
    %493 = arith.mulf %489, %472 : vector<2x32xf32>
    %494 = arith.mulf %488, %492 : vector<2x32xf32>
    %495 = arith.addf %493, %494 : vector<2x32xf32>
    %496 = math.tanh %495 : vector<2x32xf32>
    %497 = arith.mulf %490, %496 : vector<2x32xf32>
    %c0_229 = arith.constant 0 : index
    %c0_230 = arith.constant 0 : index
    %498 = vector.load %arg15[%c0_229, %c0_230] : memref<32x1xf32, #tpu.memory_space<vmem>>, vector<32x1xf32>
    %cst_231 = arith.constant dense<0.000000e+00> : vector<2x1xf32>
    %499 = tpu.matmul %497, %498, %cst_231 {dimension_numbers = #tpu.dot_dimension_numbers<[1], [0], [0], [1], [0, 0, 1, 1], [], []>} : vector<2x32xf32>, vector<32x1xf32>, vector<2x1xf32> -> vector<2x1xf32>
    %c0_232 = arith.constant 0 : index
    %c0_233 = arith.constant 0 : index
    %500 = vector.load %arg16[%c0_232, %c0_233] : memref<1x1xf32, #tpu.memory_space<vmem>>, vector<1x1xf32>
    %501 = vector.broadcast %500 : vector<1x1xf32> to vector<2x1xf32>
    %502 = arith.addf %499, %501 : vector<2x1xf32>
    %c0_234 = arith.constant 0 : index
    %c0_235 = arith.constant 0 : index
    %503 = vector.load %arg20[%c0_234, %c0_235] : memref<2x4xf32, #tpu.memory_space<vmem>>, vector<2x1xf32>
    tpu.vector_store %arg20[%c0_234, %c0_235], %502 {strides = array<i32>} : memref<2x4xf32, #tpu.memory_space<vmem>>, vector<2x1xf32>,
    %c1_236 = arith.constant 1 : index
    %c0_237 = arith.constant 0 : index
    %c0_238 = arith.constant 0 : index
    %504 = vector.load %arg17[%c1_236, %c0_237, %c0_238] : memref<4x32x16xf32, #tpu.memory_space<vmem>>, vector<1x32x16xf32>
    %505 = vector.shape_cast %504 : vector<1x32x16xf32> to vector<32x16xf32>
    %c1_239 = arith.constant 1 : index
    %c0_240 = arith.constant 0 : index
    %c0_241 = arith.constant 0 : index
    %506 = vector.load %arg18[%c1_239, %c0_240, %c0_241] : memref<4x32x16xf32, #tpu.memory_space<vmem>>, vector<1x32x16xf32>
    %507 = vector.shape_cast %506 : vector<1x32x16xf32> to vector<32x16xf32>
    %c1_242 = arith.constant 1 : index
    %c0_243 = arith.constant 0 : index
    %c0_244 = arith.constant 0 : index
    %508 = vector.load %arg19[%c1_242, %c0_243, %c0_244] : memref<4x16x1xf32, #tpu.memory_space<vmem>>, vector<1x16x1xf32>
    %509 = vector.shape_cast %508 : vector<1x16x1xf32> to vector<16x1xf32>
    %510 = vector.extract_strided_slice %497 {offsets = [0, 0], sizes = [1, 32], strides = [1, 1]} : vector<2x32xf32> to vector<1x32xf32>
    %c0_245 = arith.constant 0 : index
    %c8 = arith.constant 8 : index
    %c0_246 = arith.constant 0 : index
    %511 = vector.load %arg21[%c0_245, %c8, %c0_246] : memref<2x11x32xf32, #tpu.memory_space<vmem>>, vector<1x1x32xf32>
    %512 = vector.shape_cast %511 : vector<1x1x32xf32> to vector<1x32xf32>
    %513 = vector.shape_cast %510 : vector<1x32xf32> to vector<1x1x32xf32>
    tpu.vector_store %arg21[%c0_245, %c8, %c0_246], %513 {strides = array<i32>} : memref<2x11x32xf32, #tpu.memory_space<vmem>>, vector<1x1x32xf32>,
    %514 = vector.extract_strided_slice %497 {offsets = [1, 0], sizes = [1, 32], strides = [1, 1]} : vector<2x32xf32> to vector<1x32xf32>
    %c1_247 = arith.constant 1 : index
    %c8_248 = arith.constant 8 : index
    %c0_249 = arith.constant 0 : index
    %515 = vector.load %arg21[%c1_247, %c8_248, %c0_249] : memref<2x11x32xf32, #tpu.memory_space<vmem>>, vector<1x1x32xf32>
    %516 = vector.shape_cast %515 : vector<1x1x32xf32> to vector<1x32xf32>
    %517 = vector.shape_cast %514 : vector<1x32xf32> to vector<1x1x32xf32>
    tpu.vector_store %arg21[%c1_247, %c8_248, %c0_249], %517 {strides = array<i32>} : memref<2x11x32xf32, #tpu.memory_space<vmem>>, vector<1x1x32xf32>,
    %c0_250 = arith.constant 0 : index
    %c0_251 = arith.constant 0 : index
    %c0_252 = arith.constant 0 : index
    %518 = vector.load %arg21[%c0_250, %c0_251, %c0_252] : memref<2x11x32xf32, #tpu.memory_space<vmem>>, vector<1x11x32xf32>
    %519 = vector.shape_cast %518 : vector<1x11x32xf32> to vector<11x32xf32>
    %cst_253 = arith.constant dense<0.000000e+00> : vector<11x16xf32>
    %520 = tpu.matmul %519, %507, %cst_253 {dimension_numbers = #tpu.dot_dimension_numbers<[1], [0], [0], [1], [0, 0, 1, 1], [], []>} : vector<11x32xf32>, vector<32x16xf32>, vector<11x16xf32> -> vector<11x16xf32>
    %521 = vector.extract_strided_slice %497 {offsets = [0, 0], sizes = [1, 32], strides = [1, 1]} : vector<2x32xf32> to vector<1x32xf32>
    %cst_254 = arith.constant dense<0.000000e+00> : vector<1x16xf32>
    %522 = tpu.matmul %521, %505, %cst_254 {dimension_numbers = #tpu.dot_dimension_numbers<[1], [0], [0], [1], [0, 0, 1, 1], [], []>} : vector<1x32xf32>, vector<32x16xf32>, vector<1x16xf32> -> vector<1x16xf32>
    %523 = vector.extract_strided_slice %495 {offsets = [0, 0], sizes = [1, 32], strides = [1, 1]} : vector<2x32xf32> to vector<1x32xf32>
    %cst_255 = arith.constant dense<0.000000e+00> : vector<1x16xf32>
    %524 = tpu.matmul %523, %505, %cst_255 {dimension_numbers = #tpu.dot_dimension_numbers<[1], [0], [0], [1], [0, 0, 1, 1], [], []>} : vector<1x32xf32>, vector<32x16xf32>, vector<1x16xf32> -> vector<1x16xf32>
    %525 = vector.broadcast %522 : vector<1x16xf32> to vector<11x16xf32>
    %526 = arith.addf %520, %525 : vector<11x16xf32>
    %527 = math.tanh %526 : vector<11x16xf32>
    %cst_256 = arith.constant dense<0.000000e+00> : vector<11x1xf32>
    %528 = tpu.matmul %527, %509, %cst_256 {dimension_numbers = #tpu.dot_dimension_numbers<[1], [0], [0], [1], [0, 0, 1, 1], [], []>} : vector<11x16xf32>, vector<16x1xf32>, vector<11x1xf32> -> vector<11x1xf32>
    %529 = vector.broadcast %524 : vector<1x16xf32> to vector<11x16xf32>
    %530 = arith.addf %520, %529 : vector<11x16xf32>
    %531 = math.tanh %530 : vector<11x16xf32>
    %cst_257 = arith.constant dense<0.000000e+00> : vector<11x1xf32>
    %532 = tpu.matmul %531, %509, %cst_257 {dimension_numbers = #tpu.dot_dimension_numbers<[1], [0], [0], [1], [0, 0, 1, 1], [], []>} : vector<11x16xf32>, vector<16x1xf32>, vector<11x1xf32> -> vector<11x1xf32>
    %533 = arith.maximumf %528, %532 : vector<11x1xf32>
    %534 = arith.subf %528, %533 : vector<11x1xf32>
    %535 = math.exp %534 : vector<11x1xf32>
    %536 = arith.subf %532, %533 : vector<11x1xf32>
    %537 = math.exp %536 : vector<11x1xf32>
    %538 = arith.addf %535, %537 : vector<11x1xf32>
    %cst_258 = arith.constant 1.000000e+00 : f32
    %539 = vector.broadcast %cst_258 : f32 to vector<11x1xf32>
    %540 = arith.divf %539, %538 : vector<11x1xf32>
    %541 = arith.mulf %535, %540 : vector<11x1xf32>
    %542 = arith.mulf %537, %540 : vector<11x1xf32>
    %543 = vector.broadcast %541 : vector<11x1xf32> to vector<11x32xf32>
    %544 = arith.mulf %543, %519 : vector<11x32xf32>
    %cst_259 = arith.constant dense<0.000000e+00> : vector<32xf32>
    %545 = vector.multi_reduction <add>, %544, %cst_259 [0] : vector<11x32xf32> to vector<32xf32>
    %546 = vector.shape_cast %545 : vector<32xf32> to vector<1x32xf32>
    %547 = vector.broadcast %542 : vector<11x1xf32> to vector<11x32xf32>
    %548 = arith.mulf %547, %519 : vector<11x32xf32>
    %cst_260 = arith.constant dense<0.000000e+00> : vector<32xf32>
    %549 = vector.multi_reduction <add>, %548, %cst_260 [0] : vector<11x32xf32> to vector<32xf32>
    %550 = vector.shape_cast %549 : vector<32xf32> to vector<1x32xf32>
    %c1_261 = arith.constant 1 : index
    %c0_262 = arith.constant 0 : index
    %c0_263 = arith.constant 0 : index
    %551 = vector.load %arg21[%c1_261, %c0_262, %c0_263] : memref<2x11x32xf32, #tpu.memory_space<vmem>>, vector<1x11x32xf32>
    %552 = vector.shape_cast %551 : vector<1x11x32xf32> to vector<11x32xf32>
    %cst_264 = arith.constant dense<0.000000e+00> : vector<11x16xf32>
    %553 = tpu.matmul %552, %507, %cst_264 {dimension_numbers = #tpu.dot_dimension_numbers<[1], [0], [0], [1], [0, 0, 1, 1], [], []>} : vector<11x32xf32>, vector<32x16xf32>, vector<11x16xf32> -> vector<11x16xf32>
    %554 = vector.extract_strided_slice %497 {offsets = [1, 0], sizes = [1, 32], strides = [1, 1]} : vector<2x32xf32> to vector<1x32xf32>
    %cst_265 = arith.constant dense<0.000000e+00> : vector<1x16xf32>
    %555 = tpu.matmul %554, %505, %cst_265 {dimension_numbers = #tpu.dot_dimension_numbers<[1], [0], [0], [1], [0, 0, 1, 1], [], []>} : vector<1x32xf32>, vector<32x16xf32>, vector<1x16xf32> -> vector<1x16xf32>
    %556 = vector.extract_strided_slice %495 {offsets = [1, 0], sizes = [1, 32], strides = [1, 1]} : vector<2x32xf32> to vector<1x32xf32>
    %cst_266 = arith.constant dense<0.000000e+00> : vector<1x16xf32>
    %557 = tpu.matmul %556, %505, %cst_266 {dimension_numbers = #tpu.dot_dimension_numbers<[1], [0], [0], [1], [0, 0, 1, 1], [], []>} : vector<1x32xf32>, vector<32x16xf32>, vector<1x16xf32> -> vector<1x16xf32>
    %558 = vector.broadcast %555 : vector<1x16xf32> to vector<11x16xf32>
    %559 = arith.addf %553, %558 : vector<11x16xf32>
    %560 = math.tanh %559 : vector<11x16xf32>
    %cst_267 = arith.constant dense<0.000000e+00> : vector<11x1xf32>
    %561 = tpu.matmul %560, %509, %cst_267 {dimension_numbers = #tpu.dot_dimension_numbers<[1], [0], [0], [1], [0, 0, 1, 1], [], []>} : vector<11x16xf32>, vector<16x1xf32>, vector<11x1xf32> -> vector<11x1xf32>
    %562 = vector.broadcast %557 : vector<1x16xf32> to vector<11x16xf32>
    %563 = arith.addf %553, %562 : vector<11x16xf32>
    %564 = math.tanh %563 : vector<11x16xf32>
    %cst_268 = arith.constant dense<0.000000e+00> : vector<11x1xf32>
    %565 = tpu.matmul %564, %509, %cst_268 {dimension_numbers = #tpu.dot_dimension_numbers<[1], [0], [0], [1], [0, 0, 1, 1], [], []>} : vector<11x16xf32>, vector<16x1xf32>, vector<11x1xf32> -> vector<11x1xf32>
    %566 = arith.maximumf %561, %565 : vector<11x1xf32>
    %567 = arith.subf %561, %566 : vector<11x1xf32>
    %568 = math.exp %567 : vector<11x1xf32>
    %569 = arith.subf %565, %566 : vector<11x1xf32>
    %570 = math.exp %569 : vector<11x1xf32>
    %571 = arith.addf %568, %570 : vector<11x1xf32>
    %cst_269 = arith.constant 1.000000e+00 : f32
    %572 = vector.broadcast %cst_269 : f32 to vector<11x1xf32>
    %573 = arith.divf %572, %571 : vector<11x1xf32>
    %574 = arith.mulf %568, %573 : vector<11x1xf32>
    %575 = arith.mulf %570, %573 : vector<11x1xf32>
    %576 = vector.broadcast %574 : vector<11x1xf32> to vector<11x32xf32>
    %577 = arith.mulf %576, %552 : vector<11x32xf32>
    %cst_270 = arith.constant dense<0.000000e+00> : vector<32xf32>
    %578 = vector.multi_reduction <add>, %577, %cst_270 [0] : vector<11x32xf32> to vector<32xf32>
    %579 = vector.shape_cast %578 : vector<32xf32> to vector<1x32xf32>
    %580 = vector.broadcast %575 : vector<11x1xf32> to vector<11x32xf32>
    %581 = arith.mulf %580, %552 : vector<11x32xf32>
    %cst_271 = arith.constant dense<0.000000e+00> : vector<32xf32>
    %582 = vector.multi_reduction <add>, %581, %cst_271 [0] : vector<11x32xf32> to vector<32xf32>
    %583 = vector.shape_cast %582 : vector<32xf32> to vector<1x32xf32>
    %584 = tpu.concatenate %546, %579 in 0 : vector<1x32xf32>, vector<1x32xf32> -> vector<2x32xf32>
    %585 = tpu.concatenate %550, %583 in 0 : vector<1x32xf32>, vector<1x32xf32> -> vector<2x32xf32>
    %c0_272 = arith.constant 0 : index
    %c0_273 = arith.constant 0 : index
    %586 = vector.load %arg12[%c0_272, %c0_273] : memref<32x128xf32, #tpu.memory_space<vmem>>, vector<32x128xf32>
    %cst_274 = arith.constant dense<0.000000e+00> : vector<2x128xf32>
    %587 = tpu.matmul %584, %586, %cst_274 {dimension_numbers = #tpu.dot_dimension_numbers<[1], [0], [0], [1], [0, 0, 1, 1], [], []>} : vector<2x32xf32>, vector<32x128xf32>, vector<2x128xf32> -> vector<2x128xf32>
    %c0_275 = arith.constant 0 : index
    %c0_276 = arith.constant 0 : index
    %588 = vector.load %arg13[%c0_275, %c0_276] : memref<32x128xf32, #tpu.memory_space<vmem>>, vector<32x128xf32>
    %cst_277 = arith.constant dense<0.000000e+00> : vector<2x128xf32>
    %589 = tpu.matmul %497, %588, %cst_277 {dimension_numbers = #tpu.dot_dimension_numbers<[1], [0], [0], [1], [0, 0, 1, 1], [], []>} : vector<2x32xf32>, vector<32x128xf32>, vector<2x128xf32> -> vector<2x128xf32>
    %590 = arith.addf %587, %589 : vector<2x128xf32>
    %c0_278 = arith.constant 0 : index
    %c0_279 = arith.constant 0 : index
    %591 = vector.load %arg14[%c0_278, %c0_279] : memref<1x128xf32, #tpu.memory_space<vmem>>, vector<1x128xf32>
    %592 = vector.broadcast %591 : vector<1x128xf32> to vector<2x128xf32>
    %593 = arith.addf %590, %592 : vector<2x128xf32>
    %594 = arith.negf %593 : vector<2x128xf32>
    %595 = math.exp %594 : vector<2x128xf32>
    %cst_280 = arith.constant 1.000000e+00 : f32
    %596 = vector.broadcast %cst_280 : f32 to vector<2x128xf32>
    %597 = arith.addf %596, %595 : vector<2x128xf32>
    %598 = arith.divf %596, %597 : vector<2x128xf32>
    %599 = vector.extract_strided_slice %598 {offsets = [0, 0], sizes = [2, 32], strides = [1, 1]} : vector<2x128xf32> to vector<2x32xf32>
    %600 = vector.extract_strided_slice %598 {offsets = [0, 32], sizes = [2, 32], strides = [1, 1]} : vector<2x128xf32> to vector<2x32xf32>
    %601 = vector.extract_strided_slice %598 {offsets = [0, 96], sizes = [2, 32], strides = [1, 1]} : vector<2x128xf32> to vector<2x32xf32>
    %602 = vector.extract_strided_slice %593 {offsets = [0, 64], sizes = [2, 32], strides = [1, 1]} : vector<2x128xf32> to vector<2x32xf32>
    %603 = math.tanh %602 : vector<2x32xf32>
    %604 = arith.mulf %600, %495 : vector<2x32xf32>
    %605 = arith.mulf %599, %603 : vector<2x32xf32>
    %606 = arith.addf %604, %605 : vector<2x32xf32>
    %607 = math.tanh %606 : vector<2x32xf32>
    %608 = arith.mulf %601, %607 : vector<2x32xf32>
    %c0_281 = arith.constant 0 : index
    %c0_282 = arith.constant 0 : index
    %609 = vector.load %arg12[%c0_281, %c0_282] : memref<32x128xf32, #tpu.memory_space<vmem>>, vector<32x128xf32>
    %cst_283 = arith.constant dense<0.000000e+00> : vector<2x128xf32>
    %610 = tpu.matmul %585, %609, %cst_283 {dimension_numbers = #tpu.dot_dimension_numbers<[1], [0], [0], [1], [0, 0, 1, 1], [], []>} : vector<2x32xf32>, vector<32x128xf32>, vector<2x128xf32> -> vector<2x128xf32>
    %c0_284 = arith.constant 0 : index
    %c0_285 = arith.constant 0 : index
    %611 = vector.load %arg13[%c0_284, %c0_285] : memref<32x128xf32, #tpu.memory_space<vmem>>, vector<32x128xf32>
    %cst_286 = arith.constant dense<0.000000e+00> : vector<2x128xf32>
    %612 = tpu.matmul %608, %611, %cst_286 {dimension_numbers = #tpu.dot_dimension_numbers<[1], [0], [0], [1], [0, 0, 1, 1], [], []>} : vector<2x32xf32>, vector<32x128xf32>, vector<2x128xf32> -> vector<2x128xf32>
    %613 = arith.addf %610, %612 : vector<2x128xf32>
    %c0_287 = arith.constant 0 : index
    %c0_288 = arith.constant 0 : index
    %614 = vector.load %arg14[%c0_287, %c0_288] : memref<1x128xf32, #tpu.memory_space<vmem>>, vector<1x128xf32>
    %615 = vector.broadcast %614 : vector<1x128xf32> to vector<2x128xf32>
    %616 = arith.addf %613, %615 : vector<2x128xf32>
    %617 = arith.negf %616 : vector<2x128xf32>
    %618 = math.exp %617 : vector<2x128xf32>
    %cst_289 = arith.constant 1.000000e+00 : f32
    %619 = vector.broadcast %cst_289 : f32 to vector<2x128xf32>
    %620 = arith.addf %619, %618 : vector<2x128xf32>
    %621 = arith.divf %619, %620 : vector<2x128xf32>
    %622 = vector.extract_strided_slice %621 {offsets = [0, 0], sizes = [2, 32], strides = [1, 1]} : vector<2x128xf32> to vector<2x32xf32>
    %623 = vector.extract_strided_slice %621 {offsets = [0, 32], sizes = [2, 32], strides = [1, 1]} : vector<2x128xf32> to vector<2x32xf32>
    %624 = vector.extract_strided_slice %621 {offsets = [0, 96], sizes = [2, 32], strides = [1, 1]} : vector<2x128xf32> to vector<2x32xf32>
    %625 = vector.extract_strided_slice %616 {offsets = [0, 64], sizes = [2, 32], strides = [1, 1]} : vector<2x128xf32> to vector<2x32xf32>
    %626 = math.tanh %625 : vector<2x32xf32>
    %627 = arith.mulf %623, %606 : vector<2x32xf32>
    %628 = arith.mulf %622, %626 : vector<2x32xf32>
    %629 = arith.addf %627, %628 : vector<2x32xf32>
    %630 = math.tanh %629 : vector<2x32xf32>
    %631 = arith.mulf %624, %630 : vector<2x32xf32>
    %c0_290 = arith.constant 0 : index
    %c0_291 = arith.constant 0 : index
    %632 = vector.load %arg15[%c0_290, %c0_291] : memref<32x1xf32, #tpu.memory_space<vmem>>, vector<32x1xf32>
    %cst_292 = arith.constant dense<0.000000e+00> : vector<2x1xf32>
    %633 = tpu.matmul %631, %632, %cst_292 {dimension_numbers = #tpu.dot_dimension_numbers<[1], [0], [0], [1], [0, 0, 1, 1], [], []>} : vector<2x32xf32>, vector<32x1xf32>, vector<2x1xf32> -> vector<2x1xf32>
    %c0_293 = arith.constant 0 : index
    %c0_294 = arith.constant 0 : index
    %634 = vector.load %arg16[%c0_293, %c0_294] : memref<1x1xf32, #tpu.memory_space<vmem>>, vector<1x1xf32>
    %635 = vector.broadcast %634 : vector<1x1xf32> to vector<2x1xf32>
    %636 = arith.addf %633, %635 : vector<2x1xf32>
    %c0_295 = arith.constant 0 : index
    %c1_296 = arith.constant 1 : index
    %637 = vector.load %arg20[%c0_295, %c1_296] : memref<2x4xf32, #tpu.memory_space<vmem>>, vector<2x1xf32>
    tpu.vector_store %arg20[%c0_295, %c1_296], %636 {strides = array<i32>} : memref<2x4xf32, #tpu.memory_space<vmem>>, vector<2x1xf32>,
    %c2_297 = arith.constant 2 : index
    %c0_298 = arith.constant 0 : index
    %c0_299 = arith.constant 0 : index
    %638 = vector.load %arg17[%c2_297, %c0_298, %c0_299] : memref<4x32x16xf32, #tpu.memory_space<vmem>>, vector<1x32x16xf32>
    %639 = vector.shape_cast %638 : vector<1x32x16xf32> to vector<32x16xf32>
    %c2_300 = arith.constant 2 : index
    %c0_301 = arith.constant 0 : index
    %c0_302 = arith.constant 0 : index
    %640 = vector.load %arg18[%c2_300, %c0_301, %c0_302] : memref<4x32x16xf32, #tpu.memory_space<vmem>>, vector<1x32x16xf32>
    %641 = vector.shape_cast %640 : vector<1x32x16xf32> to vector<32x16xf32>
    %c2_303 = arith.constant 2 : index
    %c0_304 = arith.constant 0 : index
    %c0_305 = arith.constant 0 : index
    %642 = vector.load %arg19[%c2_303, %c0_304, %c0_305] : memref<4x16x1xf32, #tpu.memory_space<vmem>>, vector<1x16x1xf32>
    %643 = vector.shape_cast %642 : vector<1x16x1xf32> to vector<16x1xf32>
    %644 = vector.extract_strided_slice %631 {offsets = [0, 0], sizes = [1, 32], strides = [1, 1]} : vector<2x32xf32> to vector<1x32xf32>
    %c0_306 = arith.constant 0 : index
    %c9 = arith.constant 9 : index
    %c0_307 = arith.constant 0 : index
    %645 = vector.load %arg21[%c0_306, %c9, %c0_307] : memref<2x11x32xf32, #tpu.memory_space<vmem>>, vector<1x1x32xf32>
    %646 = vector.shape_cast %645 : vector<1x1x32xf32> to vector<1x32xf32>
    %647 = vector.shape_cast %644 : vector<1x32xf32> to vector<1x1x32xf32>
    tpu.vector_store %arg21[%c0_306, %c9, %c0_307], %647 {strides = array<i32>} : memref<2x11x32xf32, #tpu.memory_space<vmem>>, vector<1x1x32xf32>,
    %648 = vector.extract_strided_slice %631 {offsets = [1, 0], sizes = [1, 32], strides = [1, 1]} : vector<2x32xf32> to vector<1x32xf32>
    %c1_308 = arith.constant 1 : index
    %c9_309 = arith.constant 9 : index
    %c0_310 = arith.constant 0 : index
    %649 = vector.load %arg21[%c1_308, %c9_309, %c0_310] : memref<2x11x32xf32, #tpu.memory_space<vmem>>, vector<1x1x32xf32>
    %650 = vector.shape_cast %649 : vector<1x1x32xf32> to vector<1x32xf32>
    %651 = vector.shape_cast %648 : vector<1x32xf32> to vector<1x1x32xf32>
    tpu.vector_store %arg21[%c1_308, %c9_309, %c0_310], %651 {strides = array<i32>} : memref<2x11x32xf32, #tpu.memory_space<vmem>>, vector<1x1x32xf32>,
    %c0_311 = arith.constant 0 : index
    %c0_312 = arith.constant 0 : index
    %c0_313 = arith.constant 0 : index
    %652 = vector.load %arg21[%c0_311, %c0_312, %c0_313] : memref<2x11x32xf32, #tpu.memory_space<vmem>>, vector<1x11x32xf32>
    %653 = vector.shape_cast %652 : vector<1x11x32xf32> to vector<11x32xf32>
    %cst_314 = arith.constant dense<0.000000e+00> : vector<11x16xf32>
    %654 = tpu.matmul %653, %641, %cst_314 {dimension_numbers = #tpu.dot_dimension_numbers<[1], [0], [0], [1], [0, 0, 1, 1], [], []>} : vector<11x32xf32>, vector<32x16xf32>, vector<11x16xf32> -> vector<11x16xf32>
    %655 = vector.extract_strided_slice %631 {offsets = [0, 0], sizes = [1, 32], strides = [1, 1]} : vector<2x32xf32> to vector<1x32xf32>
    %cst_315 = arith.constant dense<0.000000e+00> : vector<1x16xf32>
    %656 = tpu.matmul %655, %639, %cst_315 {dimension_numbers = #tpu.dot_dimension_numbers<[1], [0], [0], [1], [0, 0, 1, 1], [], []>} : vector<1x32xf32>, vector<32x16xf32>, vector<1x16xf32> -> vector<1x16xf32>
    %657 = vector.extract_strided_slice %629 {offsets = [0, 0], sizes = [1, 32], strides = [1, 1]} : vector<2x32xf32> to vector<1x32xf32>
    %cst_316 = arith.constant dense<0.000000e+00> : vector<1x16xf32>
    %658 = tpu.matmul %657, %639, %cst_316 {dimension_numbers = #tpu.dot_dimension_numbers<[1], [0], [0], [1], [0, 0, 1, 1], [], []>} : vector<1x32xf32>, vector<32x16xf32>, vector<1x16xf32> -> vector<1x16xf32>
    %659 = vector.broadcast %656 : vector<1x16xf32> to vector<11x16xf32>
    %660 = arith.addf %654, %659 : vector<11x16xf32>
    %661 = math.tanh %660 : vector<11x16xf32>
    %cst_317 = arith.constant dense<0.000000e+00> : vector<11x1xf32>
    %662 = tpu.matmul %661, %643, %cst_317 {dimension_numbers = #tpu.dot_dimension_numbers<[1], [0], [0], [1], [0, 0, 1, 1], [], []>} : vector<11x16xf32>, vector<16x1xf32>, vector<11x1xf32> -> vector<11x1xf32>
    %663 = vector.broadcast %658 : vector<1x16xf32> to vector<11x16xf32>
    %664 = arith.addf %654, %663 : vector<11x16xf32>
    %665 = math.tanh %664 : vector<11x16xf32>
    %cst_318 = arith.constant dense<0.000000e+00> : vector<11x1xf32>
    %666 = tpu.matmul %665, %643, %cst_318 {dimension_numbers = #tpu.dot_dimension_numbers<[1], [0], [0], [1], [0, 0, 1, 1], [], []>} : vector<11x16xf32>, vector<16x1xf32>, vector<11x1xf32> -> vector<11x1xf32>
    %667 = arith.maximumf %662, %666 : vector<11x1xf32>
    %668 = arith.subf %662, %667 : vector<11x1xf32>
    %669 = math.exp %668 : vector<11x1xf32>
    %670 = arith.subf %666, %667 : vector<11x1xf32>
    %671 = math.exp %670 : vector<11x1xf32>
    %672 = arith.addf %669, %671 : vector<11x1xf32>
    %cst_319 = arith.constant 1.000000e+00 : f32
    %673 = vector.broadcast %cst_319 : f32 to vector<11x1xf32>
    %674 = arith.divf %673, %672 : vector<11x1xf32>
    %675 = arith.mulf %669, %674 : vector<11x1xf32>
    %676 = arith.mulf %671, %674 : vector<11x1xf32>
    %677 = vector.broadcast %675 : vector<11x1xf32> to vector<11x32xf32>
    %678 = arith.mulf %677, %653 : vector<11x32xf32>
    %cst_320 = arith.constant dense<0.000000e+00> : vector<32xf32>
    %679 = vector.multi_reduction <add>, %678, %cst_320 [0] : vector<11x32xf32> to vector<32xf32>
    %680 = vector.shape_cast %679 : vector<32xf32> to vector<1x32xf32>
    %681 = vector.broadcast %676 : vector<11x1xf32> to vector<11x32xf32>
    %682 = arith.mulf %681, %653 : vector<11x32xf32>
    %cst_321 = arith.constant dense<0.000000e+00> : vector<32xf32>
    %683 = vector.multi_reduction <add>, %682, %cst_321 [0] : vector<11x32xf32> to vector<32xf32>
    %684 = vector.shape_cast %683 : vector<32xf32> to vector<1x32xf32>
    %c1_322 = arith.constant 1 : index
    %c0_323 = arith.constant 0 : index
    %c0_324 = arith.constant 0 : index
    %685 = vector.load %arg21[%c1_322, %c0_323, %c0_324] : memref<2x11x32xf32, #tpu.memory_space<vmem>>, vector<1x11x32xf32>
    %686 = vector.shape_cast %685 : vector<1x11x32xf32> to vector<11x32xf32>
    %cst_325 = arith.constant dense<0.000000e+00> : vector<11x16xf32>
    %687 = tpu.matmul %686, %641, %cst_325 {dimension_numbers = #tpu.dot_dimension_numbers<[1], [0], [0], [1], [0, 0, 1, 1], [], []>} : vector<11x32xf32>, vector<32x16xf32>, vector<11x16xf32> -> vector<11x16xf32>
    %688 = vector.extract_strided_slice %631 {offsets = [1, 0], sizes = [1, 32], strides = [1, 1]} : vector<2x32xf32> to vector<1x32xf32>
    %cst_326 = arith.constant dense<0.000000e+00> : vector<1x16xf32>
    %689 = tpu.matmul %688, %639, %cst_326 {dimension_numbers = #tpu.dot_dimension_numbers<[1], [0], [0], [1], [0, 0, 1, 1], [], []>} : vector<1x32xf32>, vector<32x16xf32>, vector<1x16xf32> -> vector<1x16xf32>
    %690 = vector.extract_strided_slice %629 {offsets = [1, 0], sizes = [1, 32], strides = [1, 1]} : vector<2x32xf32> to vector<1x32xf32>
    %cst_327 = arith.constant dense<0.000000e+00> : vector<1x16xf32>
    %691 = tpu.matmul %690, %639, %cst_327 {dimension_numbers = #tpu.dot_dimension_numbers<[1], [0], [0], [1], [0, 0, 1, 1], [], []>} : vector<1x32xf32>, vector<32x16xf32>, vector<1x16xf32> -> vector<1x16xf32>
    %692 = vector.broadcast %689 : vector<1x16xf32> to vector<11x16xf32>
    %693 = arith.addf %687, %692 : vector<11x16xf32>
    %694 = math.tanh %693 : vector<11x16xf32>
    %cst_328 = arith.constant dense<0.000000e+00> : vector<11x1xf32>
    %695 = tpu.matmul %694, %643, %cst_328 {dimension_numbers = #tpu.dot_dimension_numbers<[1], [0], [0], [1], [0, 0, 1, 1], [], []>} : vector<11x16xf32>, vector<16x1xf32>, vector<11x1xf32> -> vector<11x1xf32>
    %696 = vector.broadcast %691 : vector<1x16xf32> to vector<11x16xf32>
    %697 = arith.addf %687, %696 : vector<11x16xf32>
    %698 = math.tanh %697 : vector<11x16xf32>
    %cst_329 = arith.constant dense<0.000000e+00> : vector<11x1xf32>
    %699 = tpu.matmul %698, %643, %cst_329 {dimension_numbers = #tpu.dot_dimension_numbers<[1], [0], [0], [1], [0, 0, 1, 1], [], []>} : vector<11x16xf32>, vector<16x1xf32>, vector<11x1xf32> -> vector<11x1xf32>
    %700 = arith.maximumf %695, %699 : vector<11x1xf32>
    %701 = arith.subf %695, %700 : vector<11x1xf32>
    %702 = math.exp %701 : vector<11x1xf32>
    %703 = arith.subf %699, %700 : vector<11x1xf32>
    %704 = math.exp %703 : vector<11x1xf32>
    %705 = arith.addf %702, %704 : vector<11x1xf32>
    %cst_330 = arith.constant 1.000000e+00 : f32
    %706 = vector.broadcast %cst_330 : f32 to vector<11x1xf32>
    %707 = arith.divf %706, %705 : vector<11x1xf32>
    %708 = arith.mulf %702, %707 : vector<11x1xf32>
    %709 = arith.mulf %704, %707 : vector<11x1xf32>
    %710 = vector.broadcast %708 : vector<11x1xf32> to vector<11x32xf32>
    %711 = arith.mulf %710, %686 : vector<11x32xf32>
    %cst_331 = arith.constant dense<0.000000e+00> : vector<32xf32>
    %712 = vector.multi_reduction <add>, %711, %cst_331 [0] : vector<11x32xf32> to vector<32xf32>
    %713 = vector.shape_cast %712 : vector<32xf32> to vector<1x32xf32>
    %714 = vector.broadcast %709 : vector<11x1xf32> to vector<11x32xf32>
    %715 = arith.mulf %714, %686 : vector<11x32xf32>
    %cst_332 = arith.constant dense<0.000000e+00> : vector<32xf32>
    %716 = vector.multi_reduction <add>, %715, %cst_332 [0] : vector<11x32xf32> to vector<32xf32>
    %717 = vector.shape_cast %716 : vector<32xf32> to vector<1x32xf32>
    %718 = tpu.concatenate %680, %713 in 0 : vector<1x32xf32>, vector<1x32xf32> -> vector<2x32xf32>
    %719 = tpu.concatenate %684, %717 in 0 : vector<1x32xf32>, vector<1x32xf32> -> vector<2x32xf32>
    %c0_333 = arith.constant 0 : index
    %c0_334 = arith.constant 0 : index
    %720 = vector.load %arg12[%c0_333, %c0_334] : memref<32x128xf32, #tpu.memory_space<vmem>>, vector<32x128xf32>
    %cst_335 = arith.constant dense<0.000000e+00> : vector<2x128xf32>
    %721 = tpu.matmul %718, %720, %cst_335 {dimension_numbers = #tpu.dot_dimension_numbers<[1], [0], [0], [1], [0, 0, 1, 1], [], []>} : vector<2x32xf32>, vector<32x128xf32>, vector<2x128xf32> -> vector<2x128xf32>
    %c0_336 = arith.constant 0 : index
    %c0_337 = arith.constant 0 : index
    %722 = vector.load %arg13[%c0_336, %c0_337] : memref<32x128xf32, #tpu.memory_space<vmem>>, vector<32x128xf32>
    %cst_338 = arith.constant dense<0.000000e+00> : vector<2x128xf32>
    %723 = tpu.matmul %631, %722, %cst_338 {dimension_numbers = #tpu.dot_dimension_numbers<[1], [0], [0], [1], [0, 0, 1, 1], [], []>} : vector<2x32xf32>, vector<32x128xf32>, vector<2x128xf32> -> vector<2x128xf32>
    %724 = arith.addf %721, %723 : vector<2x128xf32>
    %c0_339 = arith.constant 0 : index
    %c0_340 = arith.constant 0 : index
    %725 = vector.load %arg14[%c0_339, %c0_340] : memref<1x128xf32, #tpu.memory_space<vmem>>, vector<1x128xf32>
    %726 = vector.broadcast %725 : vector<1x128xf32> to vector<2x128xf32>
    %727 = arith.addf %724, %726 : vector<2x128xf32>
    %728 = arith.negf %727 : vector<2x128xf32>
    %729 = math.exp %728 : vector<2x128xf32>
    %cst_341 = arith.constant 1.000000e+00 : f32
    %730 = vector.broadcast %cst_341 : f32 to vector<2x128xf32>
    %731 = arith.addf %730, %729 : vector<2x128xf32>
    %732 = arith.divf %730, %731 : vector<2x128xf32>
    %733 = vector.extract_strided_slice %732 {offsets = [0, 0], sizes = [2, 32], strides = [1, 1]} : vector<2x128xf32> to vector<2x32xf32>
    %734 = vector.extract_strided_slice %732 {offsets = [0, 32], sizes = [2, 32], strides = [1, 1]} : vector<2x128xf32> to vector<2x32xf32>
    %735 = vector.extract_strided_slice %732 {offsets = [0, 96], sizes = [2, 32], strides = [1, 1]} : vector<2x128xf32> to vector<2x32xf32>
    %736 = vector.extract_strided_slice %727 {offsets = [0, 64], sizes = [2, 32], strides = [1, 1]} : vector<2x128xf32> to vector<2x32xf32>
    %737 = math.tanh %736 : vector<2x32xf32>
    %738 = arith.mulf %734, %629 : vector<2x32xf32>
    %739 = arith.mulf %733, %737 : vector<2x32xf32>
    %740 = arith.addf %738, %739 : vector<2x32xf32>
    %741 = math.tanh %740 : vector<2x32xf32>
    %742 = arith.mulf %735, %741 : vector<2x32xf32>
    %c0_342 = arith.constant 0 : index
    %c0_343 = arith.constant 0 : index
    %743 = vector.load %arg12[%c0_342, %c0_343] : memref<32x128xf32, #tpu.memory_space<vmem>>, vector<32x128xf32>
    %cst_344 = arith.constant dense<0.000000e+00> : vector<2x128xf32>
    %744 = tpu.matmul %719, %743, %cst_344 {dimension_numbers = #tpu.dot_dimension_numbers<[1], [0], [0], [1], [0, 0, 1, 1], [], []>} : vector<2x32xf32>, vector<32x128xf32>, vector<2x128xf32> -> vector<2x128xf32>
    %c0_345 = arith.constant 0 : index
    %c0_346 = arith.constant 0 : index
    %745 = vector.load %arg13[%c0_345, %c0_346] : memref<32x128xf32, #tpu.memory_space<vmem>>, vector<32x128xf32>
    %cst_347 = arith.constant dense<0.000000e+00> : vector<2x128xf32>
    %746 = tpu.matmul %742, %745, %cst_347 {dimension_numbers = #tpu.dot_dimension_numbers<[1], [0], [0], [1], [0, 0, 1, 1], [], []>} : vector<2x32xf32>, vector<32x128xf32>, vector<2x128xf32> -> vector<2x128xf32>
    %747 = arith.addf %744, %746 : vector<2x128xf32>
    %c0_348 = arith.constant 0 : index
    %c0_349 = arith.constant 0 : index
    %748 = vector.load %arg14[%c0_348, %c0_349] : memref<1x128xf32, #tpu.memory_space<vmem>>, vector<1x128xf32>
    %749 = vector.broadcast %748 : vector<1x128xf32> to vector<2x128xf32>
    %750 = arith.addf %747, %749 : vector<2x128xf32>
    %751 = arith.negf %750 : vector<2x128xf32>
    %752 = math.exp %751 : vector<2x128xf32>
    %cst_350 = arith.constant 1.000000e+00 : f32
    %753 = vector.broadcast %cst_350 : f32 to vector<2x128xf32>
    %754 = arith.addf %753, %752 : vector<2x128xf32>
    %755 = arith.divf %753, %754 : vector<2x128xf32>
    %756 = vector.extract_strided_slice %755 {offsets = [0, 0], sizes = [2, 32], strides = [1, 1]} : vector<2x128xf32> to vector<2x32xf32>
    %757 = vector.extract_strided_slice %755 {offsets = [0, 32], sizes = [2, 32], strides = [1, 1]} : vector<2x128xf32> to vector<2x32xf32>
    %758 = vector.extract_strided_slice %755 {offsets = [0, 96], sizes = [2, 32], strides = [1, 1]} : vector<2x128xf32> to vector<2x32xf32>
    %759 = vector.extract_strided_slice %750 {offsets = [0, 64], sizes = [2, 32], strides = [1, 1]} : vector<2x128xf32> to vector<2x32xf32>
    %760 = math.tanh %759 : vector<2x32xf32>
    %761 = arith.mulf %757, %740 : vector<2x32xf32>
    %762 = arith.mulf %756, %760 : vector<2x32xf32>
    %763 = arith.addf %761, %762 : vector<2x32xf32>
    %764 = math.tanh %763 : vector<2x32xf32>
    %765 = arith.mulf %758, %764 : vector<2x32xf32>
    %c0_351 = arith.constant 0 : index
    %c0_352 = arith.constant 0 : index
    %766 = vector.load %arg15[%c0_351, %c0_352] : memref<32x1xf32, #tpu.memory_space<vmem>>, vector<32x1xf32>
    %cst_353 = arith.constant dense<0.000000e+00> : vector<2x1xf32>
    %767 = tpu.matmul %765, %766, %cst_353 {dimension_numbers = #tpu.dot_dimension_numbers<[1], [0], [0], [1], [0, 0, 1, 1], [], []>} : vector<2x32xf32>, vector<32x1xf32>, vector<2x1xf32> -> vector<2x1xf32>
    %c0_354 = arith.constant 0 : index
    %c0_355 = arith.constant 0 : index
    %768 = vector.load %arg16[%c0_354, %c0_355] : memref<1x1xf32, #tpu.memory_space<vmem>>, vector<1x1xf32>
    %769 = vector.broadcast %768 : vector<1x1xf32> to vector<2x1xf32>
    %770 = arith.addf %767, %769 : vector<2x1xf32>
    %c0_356 = arith.constant 0 : index
    %c2_357 = arith.constant 2 : index
    %771 = vector.load %arg20[%c0_356, %c2_357] : memref<2x4xf32, #tpu.memory_space<vmem>>, vector<2x1xf32>
    tpu.vector_store %arg20[%c0_356, %c2_357], %770 {strides = array<i32>} : memref<2x4xf32, #tpu.memory_space<vmem>>, vector<2x1xf32>,
    %c3_358 = arith.constant 3 : index
    %c0_359 = arith.constant 0 : index
    %c0_360 = arith.constant 0 : index
    %772 = vector.load %arg17[%c3_358, %c0_359, %c0_360] : memref<4x32x16xf32, #tpu.memory_space<vmem>>, vector<1x32x16xf32>
    %773 = vector.shape_cast %772 : vector<1x32x16xf32> to vector<32x16xf32>
    %c3_361 = arith.constant 3 : index
    %c0_362 = arith.constant 0 : index
    %c0_363 = arith.constant 0 : index
    %774 = vector.load %arg18[%c3_361, %c0_362, %c0_363] : memref<4x32x16xf32, #tpu.memory_space<vmem>>, vector<1x32x16xf32>
    %775 = vector.shape_cast %774 : vector<1x32x16xf32> to vector<32x16xf32>
    %c3_364 = arith.constant 3 : index
    %c0_365 = arith.constant 0 : index
    %c0_366 = arith.constant 0 : index
    %776 = vector.load %arg19[%c3_364, %c0_365, %c0_366] : memref<4x16x1xf32, #tpu.memory_space<vmem>>, vector<1x16x1xf32>
    %777 = vector.shape_cast %776 : vector<1x16x1xf32> to vector<16x1xf32>
    %778 = vector.extract_strided_slice %765 {offsets = [0, 0], sizes = [1, 32], strides = [1, 1]} : vector<2x32xf32> to vector<1x32xf32>
    %c0_367 = arith.constant 0 : index
    %c10 = arith.constant 10 : index
    %c0_368 = arith.constant 0 : index
    %779 = vector.load %arg21[%c0_367, %c10, %c0_368] : memref<2x11x32xf32, #tpu.memory_space<vmem>>, vector<1x1x32xf32>
    %780 = vector.shape_cast %779 : vector<1x1x32xf32> to vector<1x32xf32>
    %781 = vector.shape_cast %778 : vector<1x32xf32> to vector<1x1x32xf32>
    tpu.vector_store %arg21[%c0_367, %c10, %c0_368], %781 {strides = array<i32>} : memref<2x11x32xf32, #tpu.memory_space<vmem>>, vector<1x1x32xf32>,
    %782 = vector.extract_strided_slice %765 {offsets = [1, 0], sizes = [1, 32], strides = [1, 1]} : vector<2x32xf32> to vector<1x32xf32>
    %c1_369 = arith.constant 1 : index
    %c10_370 = arith.constant 10 : index
    %c0_371 = arith.constant 0 : index
    %783 = vector.load %arg21[%c1_369, %c10_370, %c0_371] : memref<2x11x32xf32, #tpu.memory_space<vmem>>, vector<1x1x32xf32>
    %784 = vector.shape_cast %783 : vector<1x1x32xf32> to vector<1x32xf32>
    %785 = vector.shape_cast %782 : vector<1x32xf32> to vector<1x1x32xf32>
    tpu.vector_store %arg21[%c1_369, %c10_370, %c0_371], %785 {strides = array<i32>} : memref<2x11x32xf32, #tpu.memory_space<vmem>>, vector<1x1x32xf32>,
    %c0_372 = arith.constant 0 : index
    %c0_373 = arith.constant 0 : index
    %c0_374 = arith.constant 0 : index
    %786 = vector.load %arg21[%c0_372, %c0_373, %c0_374] : memref<2x11x32xf32, #tpu.memory_space<vmem>>, vector<1x11x32xf32>
    %787 = vector.shape_cast %786 : vector<1x11x32xf32> to vector<11x32xf32>
    %cst_375 = arith.constant dense<0.000000e+00> : vector<11x16xf32>
    %788 = tpu.matmul %787, %775, %cst_375 {dimension_numbers = #tpu.dot_dimension_numbers<[1], [0], [0], [1], [0, 0, 1, 1], [], []>} : vector<11x32xf32>, vector<32x16xf32>, vector<11x16xf32> -> vector<11x16xf32>
    %789 = vector.extract_strided_slice %765 {offsets = [0, 0], sizes = [1, 32], strides = [1, 1]} : vector<2x32xf32> to vector<1x32xf32>
    %cst_376 = arith.constant dense<0.000000e+00> : vector<1x16xf32>
    %790 = tpu.matmul %789, %773, %cst_376 {dimension_numbers = #tpu.dot_dimension_numbers<[1], [0], [0], [1], [0, 0, 1, 1], [], []>} : vector<1x32xf32>, vector<32x16xf32>, vector<1x16xf32> -> vector<1x16xf32>
    %791 = vector.extract_strided_slice %763 {offsets = [0, 0], sizes = [1, 32], strides = [1, 1]} : vector<2x32xf32> to vector<1x32xf32>
    %cst_377 = arith.constant dense<0.000000e+00> : vector<1x16xf32>
    %792 = tpu.matmul %791, %773, %cst_377 {dimension_numbers = #tpu.dot_dimension_numbers<[1], [0], [0], [1], [0, 0, 1, 1], [], []>} : vector<1x32xf32>, vector<32x16xf32>, vector<1x16xf32> -> vector<1x16xf32>
    %793 = vector.broadcast %790 : vector<1x16xf32> to vector<11x16xf32>
    %794 = arith.addf %788, %793 : vector<11x16xf32>
    %795 = math.tanh %794 : vector<11x16xf32>
    %cst_378 = arith.constant dense<0.000000e+00> : vector<11x1xf32>
    %796 = tpu.matmul %795, %777, %cst_378 {dimension_numbers = #tpu.dot_dimension_numbers<[1], [0], [0], [1], [0, 0, 1, 1], [], []>} : vector<11x16xf32>, vector<16x1xf32>, vector<11x1xf32> -> vector<11x1xf32>
    %797 = vector.broadcast %792 : vector<1x16xf32> to vector<11x16xf32>
    %798 = arith.addf %788, %797 : vector<11x16xf32>
    %799 = math.tanh %798 : vector<11x16xf32>
    %cst_379 = arith.constant dense<0.000000e+00> : vector<11x1xf32>
    %800 = tpu.matmul %799, %777, %cst_379 {dimension_numbers = #tpu.dot_dimension_numbers<[1], [0], [0], [1], [0, 0, 1, 1], [], []>} : vector<11x16xf32>, vector<16x1xf32>, vector<11x1xf32> -> vector<11x1xf32>
    %801 = arith.maximumf %796, %800 : vector<11x1xf32>
    %802 = arith.subf %796, %801 : vector<11x1xf32>
    %803 = math.exp %802 : vector<11x1xf32>
    %804 = arith.subf %800, %801 : vector<11x1xf32>
    %805 = math.exp %804 : vector<11x1xf32>
    %806 = arith.addf %803, %805 : vector<11x1xf32>
    %cst_380 = arith.constant 1.000000e+00 : f32
    %807 = vector.broadcast %cst_380 : f32 to vector<11x1xf32>
    %808 = arith.divf %807, %806 : vector<11x1xf32>
    %809 = arith.mulf %803, %808 : vector<11x1xf32>
    %810 = arith.mulf %805, %808 : vector<11x1xf32>
    %811 = vector.broadcast %809 : vector<11x1xf32> to vector<11x32xf32>
    %812 = arith.mulf %811, %787 : vector<11x32xf32>
    %cst_381 = arith.constant dense<0.000000e+00> : vector<32xf32>
    %813 = vector.multi_reduction <add>, %812, %cst_381 [0] : vector<11x32xf32> to vector<32xf32>
    %814 = vector.shape_cast %813 : vector<32xf32> to vector<1x32xf32>
    %815 = vector.broadcast %810 : vector<11x1xf32> to vector<11x32xf32>
    %816 = arith.mulf %815, %787 : vector<11x32xf32>
    %cst_382 = arith.constant dense<0.000000e+00> : vector<32xf32>
    %817 = vector.multi_reduction <add>, %816, %cst_382 [0] : vector<11x32xf32> to vector<32xf32>
    %818 = vector.shape_cast %817 : vector<32xf32> to vector<1x32xf32>
    %c1_383 = arith.constant 1 : index
    %c0_384 = arith.constant 0 : index
    %c0_385 = arith.constant 0 : index
    %819 = vector.load %arg21[%c1_383, %c0_384, %c0_385] : memref<2x11x32xf32, #tpu.memory_space<vmem>>, vector<1x11x32xf32>
    %820 = vector.shape_cast %819 : vector<1x11x32xf32> to vector<11x32xf32>
    %cst_386 = arith.constant dense<0.000000e+00> : vector<11x16xf32>
    %821 = tpu.matmul %820, %775, %cst_386 {dimension_numbers = #tpu.dot_dimension_numbers<[1], [0], [0], [1], [0, 0, 1, 1], [], []>} : vector<11x32xf32>, vector<32x16xf32>, vector<11x16xf32> -> vector<11x16xf32>
    %822 = vector.extract_strided_slice %765 {offsets = [1, 0], sizes = [1, 32], strides = [1, 1]} : vector<2x32xf32> to vector<1x32xf32>
    %cst_387 = arith.constant dense<0.000000e+00> : vector<1x16xf32>
    %823 = tpu.matmul %822, %773, %cst_387 {dimension_numbers = #tpu.dot_dimension_numbers<[1], [0], [0], [1], [0, 0, 1, 1], [], []>} : vector<1x32xf32>, vector<32x16xf32>, vector<1x16xf32> -> vector<1x16xf32>
    %824 = vector.extract_strided_slice %763 {offsets = [1, 0], sizes = [1, 32], strides = [1, 1]} : vector<2x32xf32> to vector<1x32xf32>
    %cst_388 = arith.constant dense<0.000000e+00> : vector<1x16xf32>
    %825 = tpu.matmul %824, %773, %cst_388 {dimension_numbers = #tpu.dot_dimension_numbers<[1], [0], [0], [1], [0, 0, 1, 1], [], []>} : vector<1x32xf32>, vector<32x16xf32>, vector<1x16xf32> -> vector<1x16xf32>
    %826 = vector.broadcast %823 : vector<1x16xf32> to vector<11x16xf32>
    %827 = arith.addf %821, %826 : vector<11x16xf32>
    %828 = math.tanh %827 : vector<11x16xf32>
    %cst_389 = arith.constant dense<0.000000e+00> : vector<11x1xf32>
    %829 = tpu.matmul %828, %777, %cst_389 {dimension_numbers = #tpu.dot_dimension_numbers<[1], [0], [0], [1], [0, 0, 1, 1], [], []>} : vector<11x16xf32>, vector<16x1xf32>, vector<11x1xf32> -> vector<11x1xf32>
    %830 = vector.broadcast %825 : vector<1x16xf32> to vector<11x16xf32>
    %831 = arith.addf %821, %830 : vector<11x16xf32>
    %832 = math.tanh %831 : vector<11x16xf32>
    %cst_390 = arith.constant dense<0.000000e+00> : vector<11x1xf32>
    %833 = tpu.matmul %832, %777, %cst_390 {dimension_numbers = #tpu.dot_dimension_numbers<[1], [0], [0], [1], [0, 0, 1, 1], [], []>} : vector<11x16xf32>, vector<16x1xf32>, vector<11x1xf32> -> vector<11x1xf32>
    %834 = arith.maximumf %829, %833 : vector<11x1xf32>
    %835 = arith.subf %829, %834 : vector<11x1xf32>
    %836 = math.exp %835 : vector<11x1xf32>
    %837 = arith.subf %833, %834 : vector<11x1xf32>
    %838 = math.exp %837 : vector<11x1xf32>
    %839 = arith.addf %836, %838 : vector<11x1xf32>
    %cst_391 = arith.constant 1.000000e+00 : f32
    %840 = vector.broadcast %cst_391 : f32 to vector<11x1xf32>
    %841 = arith.divf %840, %839 : vector<11x1xf32>
    %842 = arith.mulf %836, %841 : vector<11x1xf32>
    %843 = arith.mulf %838, %841 : vector<11x1xf32>
    %844 = vector.broadcast %842 : vector<11x1xf32> to vector<11x32xf32>
    %845 = arith.mulf %844, %820 : vector<11x32xf32>
    %cst_392 = arith.constant dense<0.000000e+00> : vector<32xf32>
    %846 = vector.multi_reduction <add>, %845, %cst_392 [0] : vector<11x32xf32> to vector<32xf32>
    %847 = vector.shape_cast %846 : vector<32xf32> to vector<1x32xf32>
    %848 = vector.broadcast %843 : vector<11x1xf32> to vector<11x32xf32>
    %849 = arith.mulf %848, %820 : vector<11x32xf32>
    %cst_393 = arith.constant dense<0.000000e+00> : vector<32xf32>
    %850 = vector.multi_reduction <add>, %849, %cst_393 [0] : vector<11x32xf32> to vector<32xf32>
    %851 = vector.shape_cast %850 : vector<32xf32> to vector<1x32xf32>
    %852 = tpu.concatenate %814, %847 in 0 : vector<1x32xf32>, vector<1x32xf32> -> vector<2x32xf32>
    %853 = tpu.concatenate %818, %851 in 0 : vector<1x32xf32>, vector<1x32xf32> -> vector<2x32xf32>
    %c0_394 = arith.constant 0 : index
    %c0_395 = arith.constant 0 : index
    %854 = vector.load %arg12[%c0_394, %c0_395] : memref<32x128xf32, #tpu.memory_space<vmem>>, vector<32x128xf32>
    %cst_396 = arith.constant dense<0.000000e+00> : vector<2x128xf32>
    %855 = tpu.matmul %852, %854, %cst_396 {dimension_numbers = #tpu.dot_dimension_numbers<[1], [0], [0], [1], [0, 0, 1, 1], [], []>} : vector<2x32xf32>, vector<32x128xf32>, vector<2x128xf32> -> vector<2x128xf32>
    %c0_397 = arith.constant 0 : index
    %c0_398 = arith.constant 0 : index
    %856 = vector.load %arg13[%c0_397, %c0_398] : memref<32x128xf32, #tpu.memory_space<vmem>>, vector<32x128xf32>
    %cst_399 = arith.constant dense<0.000000e+00> : vector<2x128xf32>
    %857 = tpu.matmul %765, %856, %cst_399 {dimension_numbers = #tpu.dot_dimension_numbers<[1], [0], [0], [1], [0, 0, 1, 1], [], []>} : vector<2x32xf32>, vector<32x128xf32>, vector<2x128xf32> -> vector<2x128xf32>
    %858 = arith.addf %855, %857 : vector<2x128xf32>
    %c0_400 = arith.constant 0 : index
    %c0_401 = arith.constant 0 : index
    %859 = vector.load %arg14[%c0_400, %c0_401] : memref<1x128xf32, #tpu.memory_space<vmem>>, vector<1x128xf32>
    %860 = vector.broadcast %859 : vector<1x128xf32> to vector<2x128xf32>
    %861 = arith.addf %858, %860 : vector<2x128xf32>
    %862 = arith.negf %861 : vector<2x128xf32>
    %863 = math.exp %862 : vector<2x128xf32>
    %cst_402 = arith.constant 1.000000e+00 : f32
    %864 = vector.broadcast %cst_402 : f32 to vector<2x128xf32>
    %865 = arith.addf %864, %863 : vector<2x128xf32>
    %866 = arith.divf %864, %865 : vector<2x128xf32>
    %867 = vector.extract_strided_slice %866 {offsets = [0, 0], sizes = [2, 32], strides = [1, 1]} : vector<2x128xf32> to vector<2x32xf32>
    %868 = vector.extract_strided_slice %866 {offsets = [0, 32], sizes = [2, 32], strides = [1, 1]} : vector<2x128xf32> to vector<2x32xf32>
    %869 = vector.extract_strided_slice %866 {offsets = [0, 96], sizes = [2, 32], strides = [1, 1]} : vector<2x128xf32> to vector<2x32xf32>
    %870 = vector.extract_strided_slice %861 {offsets = [0, 64], sizes = [2, 32], strides = [1, 1]} : vector<2x128xf32> to vector<2x32xf32>
    %871 = math.tanh %870 : vector<2x32xf32>
    %872 = arith.mulf %868, %763 : vector<2x32xf32>
    %873 = arith.mulf %867, %871 : vector<2x32xf32>
    %874 = arith.addf %872, %873 : vector<2x32xf32>
    %875 = math.tanh %874 : vector<2x32xf32>
    %876 = arith.mulf %869, %875 : vector<2x32xf32>
    %c0_403 = arith.constant 0 : index
    %c0_404 = arith.constant 0 : index
    %877 = vector.load %arg12[%c0_403, %c0_404] : memref<32x128xf32, #tpu.memory_space<vmem>>, vector<32x128xf32>
    %cst_405 = arith.constant dense<0.000000e+00> : vector<2x128xf32>
    %878 = tpu.matmul %853, %877, %cst_405 {dimension_numbers = #tpu.dot_dimension_numbers<[1], [0], [0], [1], [0, 0, 1, 1], [], []>} : vector<2x32xf32>, vector<32x128xf32>, vector<2x128xf32> -> vector<2x128xf32>
    %c0_406 = arith.constant 0 : index
    %c0_407 = arith.constant 0 : index
    %879 = vector.load %arg13[%c0_406, %c0_407] : memref<32x128xf32, #tpu.memory_space<vmem>>, vector<32x128xf32>
    %cst_408 = arith.constant dense<0.000000e+00> : vector<2x128xf32>
    %880 = tpu.matmul %876, %879, %cst_408 {dimension_numbers = #tpu.dot_dimension_numbers<[1], [0], [0], [1], [0, 0, 1, 1], [], []>} : vector<2x32xf32>, vector<32x128xf32>, vector<2x128xf32> -> vector<2x128xf32>
    %881 = arith.addf %878, %880 : vector<2x128xf32>
    %c0_409 = arith.constant 0 : index
    %c0_410 = arith.constant 0 : index
    %882 = vector.load %arg14[%c0_409, %c0_410] : memref<1x128xf32, #tpu.memory_space<vmem>>, vector<1x128xf32>
    %883 = vector.broadcast %882 : vector<1x128xf32> to vector<2x128xf32>
    %884 = arith.addf %881, %883 : vector<2x128xf32>
    %885 = arith.negf %884 : vector<2x128xf32>
    %886 = math.exp %885 : vector<2x128xf32>
    %cst_411 = arith.constant 1.000000e+00 : f32
    %887 = vector.broadcast %cst_411 : f32 to vector<2x128xf32>
    %888 = arith.addf %887, %886 : vector<2x128xf32>
    %889 = arith.divf %887, %888 : vector<2x128xf32>
    %890 = vector.extract_strided_slice %889 {offsets = [0, 0], sizes = [2, 32], strides = [1, 1]} : vector<2x128xf32> to vector<2x32xf32>
    %891 = vector.extract_strided_slice %889 {offsets = [0, 32], sizes = [2, 32], strides = [1, 1]} : vector<2x128xf32> to vector<2x32xf32>
    %892 = vector.extract_strided_slice %889 {offsets = [0, 96], sizes = [2, 32], strides = [1, 1]} : vector<2x128xf32> to vector<2x32xf32>
    %893 = vector.extract_strided_slice %884 {offsets = [0, 64], sizes = [2, 32], strides = [1, 1]} : vector<2x128xf32> to vector<2x32xf32>
    %894 = math.tanh %893 : vector<2x32xf32>
    %895 = arith.mulf %891, %874 : vector<2x32xf32>
    %896 = arith.mulf %890, %894 : vector<2x32xf32>
    %897 = arith.addf %895, %896 : vector<2x32xf32>
    %898 = math.tanh %897 : vector<2x32xf32>
    %899 = arith.mulf %892, %898 : vector<2x32xf32>
    %c0_412 = arith.constant 0 : index
    %c0_413 = arith.constant 0 : index
    %900 = vector.load %arg15[%c0_412, %c0_413] : memref<32x1xf32, #tpu.memory_space<vmem>>, vector<32x1xf32>
    %cst_414 = arith.constant dense<0.000000e+00> : vector<2x1xf32>
    %901 = tpu.matmul %899, %900, %cst_414 {dimension_numbers = #tpu.dot_dimension_numbers<[1], [0], [0], [1], [0, 0, 1, 1], [], []>} : vector<2x32xf32>, vector<32x1xf32>, vector<2x1xf32> -> vector<2x1xf32>
    %c0_415 = arith.constant 0 : index
    %c0_416 = arith.constant 0 : index
    %902 = vector.load %arg16[%c0_415, %c0_416] : memref<1x1xf32, #tpu.memory_space<vmem>>, vector<1x1xf32>
    %903 = vector.broadcast %902 : vector<1x1xf32> to vector<2x1xf32>
    %904 = arith.addf %901, %903 : vector<2x1xf32>
    %c0_417 = arith.constant 0 : index
    %c3_418 = arith.constant 3 : index
    %905 = vector.load %arg20[%c0_417, %c3_418] : memref<2x4xf32, #tpu.memory_space<vmem>>, vector<2x1xf32>
    tpu.vector_store %arg20[%c0_417, %c3_418], %904 {strides = array<i32>} : memref<2x4xf32, #tpu.memory_space<vmem>>, vector<2x1xf32>,
    return
  }
  func.func @transform_0(%arg0: i32) -> (i32, i32, i32) {
    %c0_i32 = arith.constant 0 : i32
    %c0_i32_0 = arith.constant 0 : i32
    %c0_i32_1 = arith.constant 0 : i32
    %c0_i32_2 = arith.constant 0 : i32
    return %c0_i32, %c0_i32_0, %c0_i32_1 : i32, i32, i32
  }
  func.func @transform_1(%arg0: i32) -> (i32, i32, i32) {
    %c0_i32 = arith.constant 0 : i32
    %c0_i32_0 = arith.constant 0 : i32
    %c0_i32_1 = arith.constant 0 : i32
    %c0_i32_2 = arith.constant 0 : i32
    return %c0_i32, %c0_i32_0, %c0_i32_1 : i32, i32, i32
  }
  func.func @transform_2(%arg0: i32) -> (i32, i32) {
    %c0_i32 = arith.constant 0 : i32
    %c0_i32_0 = arith.constant 0 : i32
    %c0_i32_1 = arith.constant 0 : i32
    return %c0_i32, %c0_i32_0 : i32, i32
  }
  func.func @transform_3(%arg0: i32) -> (i32, i32, i32) {
    %c0_i32 = arith.constant 0 : i32
    %c0_i32_0 = arith.constant 0 : i32
    %c0_i32_1 = arith.constant 0 : i32
    %c0_i32_2 = arith.constant 0 : i32
    return %c0_i32, %c0_i32_0, %c0_i32_1 : i32, i32, i32
  }
  func.func @transform_4(%arg0: i32) -> (i32, i32) {
    %c0_i32 = arith.constant 0 : i32
    %c0_i32_0 = arith.constant 0 : i32
    %c0_i32_1 = arith.constant 0 : i32
    return %c0_i32, %c0_i32_0 : i32, i32
  }
  func.func @transform_5(%arg0: i32) -> (i32, i32) {
    %c0_i32 = arith.constant 0 : i32
    %c0_i32_0 = arith.constant 0 : i32
    %c0_i32_1 = arith.constant 0 : i32
    return %c0_i32, %c0_i32_0 : i32, i32
  }
  func.func @transform_6(%arg0: i32) -> (i32, i32) {
    %c0_i32 = arith.constant 0 : i32
    %c0_i32_0 = arith.constant 0 : i32
    %c0_i32_1 = arith.constant 0 : i32
    return %c0_i32, %c0_i32_0 : i32, i32
  }
  func.func @transform_7(%arg0: i32) -> (i32, i32) {
    %c0_i32 = arith.constant 0 : i32
    %c0_i32_0 = arith.constant 0 : i32
    %c0_i32_1 = arith.constant 0 : i32
    return %c0_i32, %c0_i32_0 : i32, i32
  }
  func.func @transform_8(%arg0: i32) -> (i32, i32) {
    %c0_i32 = arith.constant 0 : i32
    %c0_i32_0 = arith.constant 0 : i32
    %c0_i32_1 = arith.constant 0 : i32
    return %c0_i32, %c0_i32_0 : i32, i32
  }
  func.func @transform_9(%arg0: i32) -> (i32, i32) {
    %c0_i32 = arith.constant 0 : i32
    %c0_i32_0 = arith.constant 0 : i32
    %c0_i32_1 = arith.constant 0 : i32
    return %c0_i32, %c0_i32_0 : i32, i32
  }
  func.func @transform_10(%arg0: i32) -> (i32, i32) {
    %c0_i32 = arith.constant 0 : i32
    %c0_i32_0 = arith.constant 0 : i32
    %c0_i32_1 = arith.constant 0 : i32
    return %c0_i32, %c0_i32_0 : i32, i32
  }
  func.func @transform_11(%arg0: i32) -> (i32, i32) {
    %c0_i32 = arith.constant 0 : i32
    %c0_i32_0 = arith.constant 0 : i32
    %c0_i32_1 = arith.constant 0 : i32
    return %c0_i32, %c0_i32_0 : i32, i32
  }
  func.func @transform_12(%arg0: i32) -> (i32, i32) {
    %c0_i32 = arith.constant 0 : i32
    %c0_i32_0 = arith.constant 0 : i32
    %c0_i32_1 = arith.constant 0 : i32
    return %c0_i32, %c0_i32_0 : i32, i32
  }
  func.func @transform_13(%arg0: i32) -> (i32, i32) {
    %c0_i32 = arith.constant 0 : i32
    %c0_i32_0 = arith.constant 0 : i32
    %c0_i32_1 = arith.constant 0 : i32
    return %c0_i32, %c0_i32_0 : i32, i32
  }
  func.func @transform_14(%arg0: i32) -> (i32, i32) {
    %c0_i32 = arith.constant 0 : i32
    %c0_i32_0 = arith.constant 0 : i32
    %c0_i32_1 = arith.constant 0 : i32
    return %c0_i32, %c0_i32_0 : i32, i32
  }
  func.func @transform_15(%arg0: i32) -> (i32, i32) {
    %c0_i32 = arith.constant 0 : i32
    %c0_i32_0 = arith.constant 0 : i32
    %c0_i32_1 = arith.constant 0 : i32
    return %c0_i32, %c0_i32_0 : i32, i32
  }
  func.func @transform_16(%arg0: i32) -> (i32, i32, i32) {
    %c0_i32 = arith.constant 0 : i32
    %c0_i32_0 = arith.constant 0 : i32
    %c0_i32_1 = arith.constant 0 : i32
    %c0_i32_2 = arith.constant 0 : i32
    return %c0_i32, %c0_i32_0, %c0_i32_1 : i32, i32, i32
  }
  func.func @transform_17(%arg0: i32) -> (i32, i32, i32) {
    %c0_i32 = arith.constant 0 : i32
    %c0_i32_0 = arith.constant 0 : i32
    %c0_i32_1 = arith.constant 0 : i32
    %c0_i32_2 = arith.constant 0 : i32
    return %c0_i32, %c0_i32_0, %c0_i32_1 : i32, i32, i32
  }
  func.func @transform_18(%arg0: i32) -> (i32, i32, i32) {
    %c0_i32 = arith.constant 0 : i32
    %c0_i32_0 = arith.constant 0 : i32
    %c0_i32_1 = arith.constant 0 : i32
    %c0_i32_2 = arith.constant 0 : i32
    return %c0_i32, %c0_i32_0, %c0_i32_1 : i32, i32, i32
  }
  func.func @transform_19(%arg0: i32) -> (i32, i32) {
    %c0_i32 = arith.constant 0 : i32
    %c0_i32_0 = arith.constant 0 : i32
    %c0_i32_1 = arith.constant 0 : i32
    return %c0_i32, %c0_i32_0 : i32, i32
  }
}

</mosaic_0001>

<llo_original>
// kernel: tpu_custom_call.1
$region0: #{tpu_custom_call.1}
  #allocation0 [shape = 'u32[]', space=smem, size = 0x4, offset = 0x4, fixed_abs, tag = 'smem constant byte address 0x4 - core index']
  #allocation1 [shape = 'u32[144,128]{1,0:T(1,128)}', space=vmem, size = 0x12000, scoped, tag = 'internal scratch']
  #allocation2 [shape = 'f32[2,11,32]{2,1,0:T(8,128)}', space=vmem, size = 0x4000, scoped, tag = 'scratch operand']
  #allocation3 [shape = 'f32[1,1]{1,0:T(1,128)S(1)}', space=vmem, size = 0x200, scoped, tag = 'scoped memory for tpu_custom_call.1']
  %s0 = inlined_call_operand.vmem [shape: f32[2,8,18], index: 0, kind: input, shape index: {}]
  %s1 = inlined_call_operand.vmem [shape: f32[3,8,8], index: 1, kind: input, shape index: {}]
  %s2 = inlined_call_operand.vmem [shape: f32[8,1], index: 2, kind: input, shape index: {}]
  %s3 = inlined_call_operand.vmem [shape: f32[3,8,8], index: 3, kind: input, shape index: {}]
  %s4 = inlined_call_operand.vmem [shape: f32[8,1], index: 4, kind: input, shape index: {}]
  %s5 = inlined_call_operand.vmem [shape: f32[12,3], index: 5, kind: input, shape index: {}]
  %s6 = inlined_call_operand.vmem [shape: f32[1,3], index: 6, kind: input, shape index: {}]
  %s7 = inlined_call_operand.vmem [shape: f32[3,128], index: 7, kind: input, shape index: {}]
  %s8 = inlined_call_operand.vmem [shape: f32[2,128], index: 8, kind: input, shape index: {}]
  %s9 = inlined_call_operand.vmem [shape: f32[32,128], index: 9, kind: input, shape index: {}]
  %s10 = inlined_call_operand.vmem [shape: f32[1,128], index: 10, kind: input, shape index: {}]
  %s11 = inlined_call_operand.vmem [shape: f32[32,128], index: 11, kind: input, shape index: {}]
  %s12 = inlined_call_operand.vmem [shape: f32[32,128], index: 12, kind: input, shape index: {}]
  %s13 = inlined_call_operand.vmem [shape: f32[1,128], index: 13, kind: input, shape index: {}]
  %s14 = inlined_call_operand.vmem [shape: f32[32,1], index: 14, kind: input, shape index: {}]
  %s15 = inlined_call_operand.<no memory space> [shape: f32[1,1], index: 15, kind: input, shape index: {}]
  %s16 = inlined_call_operand.vmem [shape: f32[4,32,16], index: 16, kind: input, shape index: {}]
  %s17 = inlined_call_operand.vmem [shape: f32[4,32,16], index: 17, kind: input, shape index: {}]
  %s18 = inlined_call_operand.vmem [shape: f32[4,16,1], index: 18, kind: input, shape index: {}]
  %s19 = inlined_call_operand.hbm [shape: f32[2,4], index: 19, kind: output, shape index: {}]
  %s20 = sld [smem:[#allocation0]]
  $region86: #{tpu_custom_call.1} parent=0
    _
  %s22 = ssub.s32 1, %s20
  %s23 = scalar_select 0, %s22, %s20
  %v24 = vstv %s15
  %25 = vst [vmem:[#allocation3] sm:$0x1] %v24
  $region1: #{tpu_custom_call.1} parent=0
    #allocation4 [shape = 'u8[1024]{0}', space=vmem, size = 0x400, scoped, tag = 'output window, operand 0, single buffered']
    #allocation5 [shape = 's32[1]{0}', space=sflag, size = 0x4, scoped, tag = 'scoped memory for tpu_custom_call.1']
    %26 = vsyncpa [#allocation5], 0
    // Predicated region
    $region2: #{tpu_custom_call.1} parent=1 // pred_check
      _
    $region3: #{tpu_custom_call.1} parent=1 // pred_check_branch
      %28 = sbr.rel (0) target = $region5
    $region4: #{tpu_custom_call.1} parent=1 // pred_region
      _
    $region5: #{tpu_custom_call.1} parent=1 // pred_fallthru
      _
    // Predicated region
    $region6: #{tpu_custom_call.1} parent=1 // pred_check
      _
    $region7: #{tpu_custom_call.1} parent=1 // pred_check_branch
      %30 = sbr.rel (0) target = $region9
    $region8: #{tpu_custom_call.1} parent=1 // pred_region
      _
    $region9: #{tpu_custom_call.1} parent=1 // pred_fallthru
      _
    // Predicated region
    $region10: #{tpu_custom_call.1} parent=1 // pred_check
      _
    $region11: #{tpu_custom_call.1} parent=1 // pred_check_branch
      %32 = sbr.rel (0) target = $region13
    $region12: #{tpu_custom_call.1} parent=1 // pred_region
      _
    $region13: #{tpu_custom_call.1} parent=1 // pred_fallthru
      _
    // Predicated region
    $region14: #{tpu_custom_call.1} parent=1 // pred_check
      _
    $region15: #{tpu_custom_call.1} parent=1 // pred_check_branch
      %34 = sbr.rel (0) target = $region17
    $region16: #{tpu_custom_call.1} parent=1 // pred_region
      _
    $region17: #{tpu_custom_call.1} parent=1 // pred_fallthru
      _
    // Predicated region
    $region18: #{tpu_custom_call.1} parent=1 // pred_check
      _
    $region19: #{tpu_custom_call.1} parent=1 // pred_check_branch
      %36 = sbr.rel (0) target = $region21
    $region20: #{tpu_custom_call.1} parent=1 // pred_region
      _
    $region21: #{tpu_custom_call.1} parent=1 // pred_fallthru
      _
    // Predicated region
    $region22: #{tpu_custom_call.1} parent=1 // pred_check
      _
    $region23: #{tpu_custom_call.1} parent=1 // pred_check_branch
      %38 = sbr.rel (0) target = $region25
    $region24: #{tpu_custom_call.1} parent=1 // pred_region
      _
    $region25: #{tpu_custom_call.1} parent=1 // pred_fallthru
      _
    // Predicated region
    $region26: #{tpu_custom_call.1} parent=1 // pred_check
      _
    $region27: #{tpu_custom_call.1} parent=1 // pred_check_branch
      %40 = sbr.rel (0) target = $region29
    $region28: #{tpu_custom_call.1} parent=1 // pred_region
      _
    $region29: #{tpu_custom_call.1} parent=1 // pred_fallthru
      _
    // Predicated region
    $region30: #{tpu_custom_call.1} parent=1 // pred_check
      _
    $region31: #{tpu_custom_call.1} parent=1 // pred_check_branch
      %42 = sbr.rel (0) target = $region33
    $region32: #{tpu_custom_call.1} parent=1 // pred_region
      _
    $region33: #{tpu_custom_call.1} parent=1 // pred_fallthru
      _
    // Predicated region
    $region34: #{tpu_custom_call.1} parent=1 // pred_check
      _
    $region35: #{tpu_custom_call.1} parent=1 // pred_check_branch
      %44 = sbr.rel (0) target = $region37
    $region36: #{tpu_custom_call.1} parent=1 // pred_region
      _
    $region37: #{tpu_custom_call.1} parent=1 // pred_fallthru
      _
    // Predicated region
    $region38: #{tpu_custom_call.1} parent=1 // pred_check
      _
    $region39: #{tpu_custom_call.1} parent=1 // pred_check_branch
      %46 = sbr.rel (0) target = $region41
    $region40: #{tpu_custom_call.1} parent=1 // pred_region
      _
    $region41: #{tpu_custom_call.1} parent=1 // pred_fallthru
      _
    // Predicated region
    $region42: #{tpu_custom_call.1} parent=1 // pred_check
      _
    $region43: #{tpu_custom_call.1} parent=1 // pred_check_branch
      %48 = sbr.rel (0) target = $region45
    $region44: #{tpu_custom_call.1} parent=1 // pred_region
      _
    $region45: #{tpu_custom_call.1} parent=1 // pred_fallthru
      _
    // Predicated region
    $region46: #{tpu_custom_call.1} parent=1 // pred_check
      _
    $region47: #{tpu_custom_call.1} parent=1 // pred_check_branch
      %50 = sbr.rel (0) target = $region49
    $region48: #{tpu_custom_call.1} parent=1 // pred_region
      _
    $region49: #{tpu_custom_call.1} parent=1 // pred_fallthru
      _
    // Predicated region
    $region50: #{tpu_custom_call.1} parent=1 // pred_check
      _
    $region51: #{tpu_custom_call.1} parent=1 // pred_check_branch
      %52 = sbr.rel (0) target = $region53
    $region52: #{tpu_custom_call.1} parent=1 // pred_region
      _
    $region53: #{tpu_custom_call.1} parent=1 // pred_fallthru
      _
    // Predicated region
    $region54: #{tpu_custom_call.1} parent=1 // pred_check
      _
    $region55: #{tpu_custom_call.1} parent=1 // pred_check_branch
      %54 = sbr.rel (0) target = $region57
    $region56: #{tpu_custom_call.1} parent=1 // pred_region
      _
    $region57: #{tpu_custom_call.1} parent=1 // pred_fallthru
      _
    // Predicated region
    $region58: #{tpu_custom_call.1} parent=1 // pred_check
      _
    $region59: #{tpu_custom_call.1} parent=1 // pred_check_branch
      %56 = sbr.rel (0) target = $region61
    $region60: #{tpu_custom_call.1} parent=1 // pred_region
      _
    $region61: #{tpu_custom_call.1} parent=1 // pred_fallthru
      _
    // Predicated region
    $region62: #{tpu_custom_call.1} parent=1 // pred_check
      _
    $region63: #{tpu_custom_call.1} parent=1 // pred_check_branch
      %58 = sbr.rel (0) target = $region65
    $region64: #{tpu_custom_call.1} parent=1 // pred_region
      _
    $region65: #{tpu_custom_call.1} parent=1 // pred_fallthru
      _
    // Predicated region
    $region66: #{tpu_custom_call.1} parent=1 // pred_check
      _
    $region67: #{tpu_custom_call.1} parent=1 // pred_check_branch
      %60 = sbr.rel (0) target = $region69
    $region68: #{tpu_custom_call.1} parent=1 // pred_region
      _
    $region69: #{tpu_custom_call.1} parent=1 // pred_fallthru
      _
    // Predicated region
    $region70: #{tpu_custom_call.1} parent=1 // pred_check
      _
    $region71: #{tpu_custom_call.1} parent=1 // pred_check_branch
      %62 = sbr.rel (0) target = $region73
    $region72: #{tpu_custom_call.1} parent=1 // pred_region
      _
    $region73: #{tpu_custom_call.1} parent=1 // pred_fallthru
      _
    // Predicated region
    $region74: #{tpu_custom_call.1} parent=1 // pred_check
      _
    $region75: #{tpu_custom_call.1} parent=1 // pred_check_branch
      %64 = sbr.rel (0) target = $region77
    $region76: #{tpu_custom_call.1} parent=1 // pred_region
      _
    $region77: #{tpu_custom_call.1} parent=1 // pred_fallthru
      _
    %vm65 = vcmask 261120
    %66 = vst.msk [vmem:[#allocation2] sm:$0xff] %vm65, 0.0
    %vm67 = vcmask 256000
    %68 = vst.msk [vmem:[#allocation2 + $0x8] sm:$0x7] %vm67, 0.0
    %69 = vst.msk [vmem:[#allocation2 + $0x10] sm:$0xff] %vm65, 0.0
    %70 = vst.msk [vmem:[#allocation2 + $0x18] sm:$0x7] %vm67, 0.0
    %v71 = vld [vmem:[%s0] sm:$0xff]
    %v72 = vld [vmem:[%s1] sm:$0xff]
    %s73 = scalar_lea.vmem %s1, 8
    %v74 = vld [vmem:[%s73] sm:$0xff]
    %76 = vrot.lane.b32.xlu0 %v71, 127
    %v77 = vpop.permute.xlu0 %76
    %vm79 = vcmask 64512
    %v81 = vsel %vm79, %v74, 0
    %83 = vmatprep.subr.mxu0 0.0
    %84 = vmatpush1.msra.mxu0 %v77
    %85 = vmatprep.subr.mxu0 0.0
    %86 = vmatpush1.msra.mxu0 0.0
    %87 = vmatprep.subr.mxu0 0.0
    %88 = vmatpush1.msra.mxu0 0.0
    %89 = vmatprep.subr.mxu0 0.0
    %90 = vmatpush1.msra.mxu0 0.0
    %91 = vmatprep.subr.mxu0 0.0
    %92 = vmatpush1.msra.mxu0 0.0
    %93 = vmatprep.subr.mxu0 0.0
    %94 = vmatpush1.msra.mxu0 0.0
    %95 = vmatprep.subr.mxu0 0.0
    %96 = vmatpush1.msra.mxu0 0.0
    %97 = vmatprep.subr.mxu0 0.0
    %98 = vmatpush1.msra.mxu0 0.0
    %99 = vmatprep.subr.mxu0 0.0
    %100 = vmatpush1.msra.mxu0 0.0
    %101 = vmatprep.subr.mxu0 0.0
    %102 = vmatpush1.msra.mxu0 0.0
    %103 = vmatprep.subr.mxu0 0.0
    %104 = vmatpush1.msra.mxu0 0.0
    %105 = vmatprep.subr.mxu0 0.0
    %106 = vmatpush1.msra.mxu0 0.0
    %107 = vmatprep.subr.mxu0 0.0
    %108 = vmatpush1.msra.mxu0 0.0
    %109 = vmatprep.subr.mxu0 0.0
    %110 = vmatpush1.msra.mxu0 0.0
    %111 = vmatprep.subr.mxu0 0.0
    %112 = vmatpush1.msra.mxu0 0.0
    %113 = vmatprep.subr.mxu0 0.0
    %114 = vmatpush1.msra.mxu0 0.0
    %115 = vmatprep.subr.mxu0 0.0
    %116 = vmatpush1.msra.mxu0 0.0
    %117 = vmatprep.subr.mxu0 0.0
    %118 = vmatpush1.msra.mxu0 0.0
    %119 = vmatprep.subr.mxu0 0.0
    %120 = vmatpush1.msra.mxu0 0.0
    %121 = vmatprep.subr.mxu0 0.0
    %122 = vmatpush1.msra.mxu0 0.0
    %123 = vmatprep.subr.mxu0 0.0
    %124 = vmatpush1.msra.mxu0 0.0
    %125 = vmatprep.subr.mxu0 0.0
    %126 = vmatpush1.msra.mxu0 0.0
    %127 = vmatprep.subr.mxu0 0.0
    %128 = vmatpush1.msra.mxu0 0.0
    %129 = vmatprep.subr.mxu0 0.0
    %130 = vmatpush1.msra.mxu0 0.0
    %131 = vmatprep.subr.mxu0 0.0
    %132 = vmatpush1.msra.mxu0 0.0
    %133 = vmatprep.subr.mxu0 0.0
    %134 = vmatpush1.msra.mxu0 0.0
    %135 = vmatprep.subr.mxu0 0.0
    %136 = vmatpush1.msra.mxu0 0.0
    %137 = vmatprep.subr.mxu0 0.0
    %138 = vmatpush1.msra.mxu0 0.0
    %139 = vmatprep.subr.mxu0 0.0
    %140 = vmatpush1.msra.mxu0 0.0
    %141 = vmatprep.subr.mxu0 0.0
    %142 = vmatpush1.msra.mxu0 0.0
    %143 = vmatprep.subr.mxu0 0.0
    %144 = vmatpush1.msra.mxu0 0.0
    %145 = vmatprep.subr.mxu0 0.0
    %146 = vmatpush1.msra.mxu0 0.0
    %147 = vmatprep.mubr.f32.mxu0 0.0
    %148 = vmatmul.mubr.f32.gmra.mrb[0].mxu0 %v81
    %v149 = vpop.f32.mrb[0].mxu0
    %v150 = vadd.f32 0.0, %v149
    %v151 = vpop.f32.mrb[0].mxu0
    %152 = vdwg.mxu0
    %v154 = vsel %vm79, %v72, 0
    %156 = vmatprep.subr.mxu0 0.0
    %157 = vmatpush1.msra.mxu0 %v71
    %158 = vmatprep.subr.mxu0 0.0
    %159 = vmatpush1.msra.mxu0 0.0
    %160 = vmatprep.subr.mxu0 0.0
    %161 = vmatpush1.msra.mxu0 0.0
    %162 = vmatprep.subr.mxu0 0.0
    %163 = vmatpush1.msra.mxu0 0.0
    %164 = vmatprep.subr.mxu0 0.0
    %165 = vmatpush1.msra.mxu0 0.0
    %166 = vmatprep.subr.mxu0 0.0
    %167 = vmatpush1.msra.mxu0 0.0
    %168 = vmatprep.subr.mxu0 0.0
    %169 = vmatpush1.msra.mxu0 0.0
    %170 = vmatprep.subr.mxu0 0.0
    %171 = vmatpush1.msra.mxu0 0.0
    %172 = vmatprep.subr.mxu0 0.0
    %173 = vmatpush1.msra.mxu0 0.0
    %174 = vmatprep.subr.mxu0 0.0
    %175 = vmatpush1.msra.mxu0 0.0
    %176 = vmatprep.subr.mxu0 0.0
    %177 = vmatpush1.msra.mxu0 0.0
    %178 = vmatprep.subr.mxu0 0.0
    %179 = vmatpush1.msra.mxu0 0.0
    %180 = vmatprep.subr.mxu0 0.0
    %181 = vmatpush1.msra.mxu0 0.0
    %182 = vmatprep.subr.mxu0 0.0
    %183 = vmatpush1.msra.mxu0 0.0
    %184 = vmatprep.subr.mxu0 0.0
    %185 = vmatpush1.msra.mxu0 0.0
    %186 = vmatprep.subr.mxu0 0.0
    %187 = vmatpush1.msra.mxu0 0.0
    %188 = vmatprep.subr.mxu0 0.0
    %189 = vmatpush1.msra.mxu0 0.0
    %190 = vmatprep.subr.mxu0 0.0
    %191 = vmatpush1.msra.mxu0 0.0
    %192 = vmatprep.subr.mxu0 0.0
    %193 = vmatpush1.msra.mxu0 0.0
    %194 = vmatprep.subr.mxu0 0.0
    %195 = vmatpush1.msra.mxu0 0.0
    %196 = vmatprep.subr.mxu0 0.0
    %197 = vmatpush1.msra.mxu0 0.0
    %198 = vmatprep.subr.mxu0 0.0
    %199 = vmatpush1.msra.mxu0 0.0
    %200 = vmatprep.subr.mxu0 0.0
    %201 = vmatpush1.msra.mxu0 0.0
    %202 = vmatprep.subr.mxu0 0.0
    %203 = vmatpush1.msra.mxu0 0.0
    %204 = vmatprep.subr.mxu0 0.0
    %205 = vmatpush1.msra.mxu0 0.0
    %206 = vmatprep.subr.mxu0 0.0
    %207 = vmatpush1.msra.mxu0 0.0
    %208 = vmatprep.subr.mxu0 0.0
    %209 = vmatpush1.msra.mxu0 0.0
    %210 = vmatprep.subr.mxu0 0.0
    %211 = vmatpush1.msra.mxu0 0.0
    %212 = vmatprep.subr.mxu0 0.0
    %213 = vmatpush1.msra.mxu0 0.0
    %214 = vmatprep.subr.mxu0 0.0
    %215 = vmatpush1.msra.mxu0 0.0
    %216 = vmatprep.subr.mxu0 0.0
    %217 = vmatpush1.msra.mxu0 0.0
    %218 = vmatprep.subr.mxu0 0.0
    %219 = vmatpush1.msra.mxu0 0.0
    %220 = vmatprep.mubr.f32.mxu0 0.0
    %221 = vmatmul.mubr.f32.gmra.mrb[0].mxu0 %v154
    %v222 = vpop.f32.mrb[0].mxu0
    %v223 = vadd.f32 %v150, %v222
    %v224 = vpop.f32.mrb[0].mxu0
    %225 = vdwg.mxu0
    %s226 = scalar_lea.vmem %s1, 16
    %v227 = vld [vmem:[%s226] sm:$0xff]
    %228 = vrot.lane.b32.xlu0 %v71, 126
    %v229 = vpop.permute.xlu0 %228
    %v232 = vsel %vm79, %v227, 0
    %234 = vmatprep.subr.mxu0 0.0
    %235 = vmatpush1.msra.mxu0 %v229
    %236 = vmatprep.subr.mxu0 0.0
    %237 = vmatpush1.msra.mxu0 0.0
    %238 = vmatprep.subr.mxu0 0.0
    %239 = vmatpush1.msra.mxu0 0.0
    %240 = vmatprep.subr.mxu0 0.0
    %241 = vmatpush1.msra.mxu0 0.0
    %242 = vmatprep.subr.mxu0 0.0
    %243 = vmatpush1.msra.mxu0 0.0
    %244 = vmatprep.subr.mxu0 0.0
    %245 = vmatpush1.msra.mxu0 0.0
    %246 = vmatprep.subr.mxu0 0.0
    %247 = vmatpush1.msra.mxu0 0.0
    %248 = vmatprep.subr.mxu0 0.0
    %249 = vmatpush1.msra.mxu0 0.0
    %250 = vmatprep.subr.mxu0 0.0
    %251 = vmatpush1.msra.mxu0 0.0
    %252 = vmatprep.subr.mxu0 0.0
    %253 = vmatpush1.msra.mxu0 0.0
    %254 = vmatprep.subr.mxu0 0.0
    %255 = vmatpush1.msra.mxu0 0.0
    %256 = vmatprep.subr.mxu0 0.0
    %257 = vmatpush1.msra.mxu0 0.0
    %258 = vmatprep.subr.mxu0 0.0
    %259 = vmatpush1.msra.mxu0 0.0
    %260 = vmatprep.subr.mxu0 0.0
    %261 = vmatpush1.msra.mxu0 0.0
    %262 = vmatprep.subr.mxu0 0.0
    %263 = vmatpush1.msra.mxu0 0.0
    %264 = vmatprep.subr.mxu0 0.0
    %265 = vmatpush1.msra.mxu0 0.0
    %266 = vmatprep.subr.mxu0 0.0
    %267 = vmatpush1.msra.mxu0 0.0
    %268 = vmatprep.subr.mxu0 0.0
    %269 = vmatpush1.msra.mxu0 0.0
    %270 = vmatprep.subr.mxu0 0.0
    %271 = vmatpush1.msra.mxu0 0.0
    %272 = vmatprep.subr.mxu0 0.0
    %273 = vmatpush1.msra.mxu0 0.0
    %274 = vmatprep.subr.mxu0 0.0
    %275 = vmatpush1.msra.mxu0 0.0
    %276 = vmatprep.subr.mxu0 0.0
    %277 = vmatpush1.msra.mxu0 0.0
    %278 = vmatprep.subr.mxu0 0.0
    %279 = vmatpush1.msra.mxu0 0.0
    %280 = vmatprep.subr.mxu0 0.0
    %281 = vmatpush1.msra.mxu0 0.0
    %282 = vmatprep.subr.mxu0 0.0
    %283 = vmatpush1.msra.mxu0 0.0
    %284 = vmatprep.subr.mxu0 0.0
    %285 = vmatpush1.msra.mxu0 0.0
    %286 = vmatprep.subr.mxu0 0.0
    %287 = vmatpush1.msra.mxu0 0.0
    %288 = vmatprep.subr.mxu0 0.0
    %289 = vmatpush1.msra.mxu0 0.0
    %290 = vmatprep.subr.mxu0 0.0
    %291 = vmatpush1.msra.mxu0 0.0
    %292 = vmatprep.subr.mxu0 0.0
    %293 = vmatpush1.msra.mxu0 0.0
    %294 = vmatprep.subr.mxu0 0.0
    %295 = vmatpush1.msra.mxu0 0.0
    %296 = vmatprep.subr.mxu0 0.0
    %297 = vmatpush1.msra.mxu0 0.0
    %298 = vmatprep.mubr.f32.mxu0 0.0
    %299 = vmatmul.mubr.f32.gmra.mrb[0].mxu0 %v232
    %v300 = vpop.f32.mrb[0].mxu0
    %v301 = vadd.f32 0.0, %v300
    %v302 = vpop.f32.mrb[0].mxu0
    %303 = vdwg.mxu0
    %v304 = vadd.f32 %v223, %v301
    %v305 = vld [vmem:[%s2] sm:$0xff]
    %307 = vset.pattern.permute.xlu0 0
    %308 = vperm.xlu0 %307, %v305
    %v309 = vpop.permute.xlu0 %308
    %v311 = vadd.f32 %v304, %v309
    %v312 = vmax.f32 %v311, 0.0
    %vm313 = vcmp.ne.f32.partialorder %v311, %v311
    %v314 = vadd.f32 %v311, 0.0
    %v315 = vand.u32 2147483647, %v311
    %v316 = vsub.f32 0.0, %v315
    %v317 = vmul.f32 %v316, 1.442695
    %v318 = vpow.pop %v317
    %v319 = vadd.f32 %v318, 1.0
    %v320 = vlog2.pop %v319
    %v321 = vmul.f32 %v320, 0.6931472
    %v322 = vmul.f32 -0.5, %v318
    %v323 = vadd.f32 %v322, 1.0
    %v324 = vmul.f32 %v323, %v318
    %v325 = vand.u32 2147483647, %v318
    %vm326 = vcmp.lt.f32.partialorder %v325, 0.0004427343
    %v327 = vsel %vm326, %v324, %v321
    %v328 = vadd.f32 %v312, %v327
    %v329 = vsel %vm313, %v314, %v328
    %v330 = vld [vmem:[%s3] sm:$0xff]
    %s331 = scalar_lea.vmem %s3, 8
    %v332 = vld [vmem:[%s331] sm:$0xff]
    %334 = vrot.lane.b32.xlu0 %v329, 127
    %v335 = vpop.permute.xlu0 %334
    %v338 = vsel %vm79, %v332, 0
    %340 = vmatprep.subr.mxu0 0.0
    %341 = vmatpush1.msra.mxu0 %v335
    %342 = vmatprep.subr.mxu0 0.0
    %343 = vmatpush1.msra.mxu0 0.0
    %344 = vmatprep.subr.mxu0 0.0
    %345 = vmatpush1.msra.mxu0 0.0
    %346 = vmatprep.subr.mxu0 0.0
    %347 = vmatpush1.msra.mxu0 0.0
    %348 = vmatprep.subr.mxu0 0.0
    %349 = vmatpush1.msra.mxu0 0.0
    %350 = vmatprep.subr.mxu0 0.0
    %351 = vmatpush1.msra.mxu0 0.0
    %352 = vmatprep.subr.mxu0 0.0
    %353 = vmatpush1.msra.mxu0 0.0
    %354 = vmatprep.subr.mxu0 0.0
    %355 = vmatpush1.msra.mxu0 0.0
    %356 = vmatprep.subr.mxu0 0.0
    %357 = vmatpush1.msra.mxu0 0.0
    %358 = vmatprep.subr.mxu0 0.0
    %359 = vmatpush1.msra.mxu0 0.0
    %360 = vmatprep.subr.mxu0 0.0
    %361 = vmatpush1.msra.mxu0 0.0
    %362 = vmatprep.subr.mxu0 0.0
    %363 = vmatpush1.msra.mxu0 0.0
    %364 = vmatprep.subr.mxu0 0.0
    %365 = vmatpush1.msra.mxu0 0.0
    %366 = vmatprep.subr.mxu0 0.0
    %367 = vmatpush1.msra.mxu0 0.0
    %368 = vmatprep.subr.mxu0 0.0
    %369 = vmatpush1.msra.mxu0 0.0
    %370 = vmatprep.subr.mxu0 0.0
    %371 = vmatpush1.msra.mxu0 0.0
    %372 = vmatprep.subr.mxu0 0.0
    %373 = vmatpush1.msra.mxu0 0.0
    %374 = vmatprep.subr.mxu0 0.0
    %375 = vmatpush1.msra.mxu0 0.0
    %376 = vmatprep.subr.mxu0 0.0
    %377 = vmatpush1.msra.mxu0 0.0
    %378 = vmatprep.subr.mxu0 0.0
    %379 = vmatpush1.msra.mxu0 0.0
    %380 = vmatprep.subr.mxu0 0.0
    %381 = vmatpush1.msra.mxu0 0.0
    %382 = vmatprep.subr.mxu0 0.0
    %383 = vmatpush1.msra.mxu0 0.0
    %384 = vmatprep.subr.mxu0 0.0
    %385 = vmatpush1.msra.mxu0 0.0
    %386 = vmatprep.subr.mxu0 0.0
    %387 = vmatpush1.msra.mxu0 0.0
    %388 = vmatprep.subr.mxu0 0.0
    %389 = vmatpush1.msra.mxu0 0.0
    %390 = vmatprep.subr.mxu0 0.0
    %391 = vmatpush1.msra.mxu0 0.0
    %392 = vmatprep.subr.mxu0 0.0
    %393 = vmatpush1.msra.mxu0 0.0
    %394 = vmatprep.subr.mxu0 0.0
    %395 = vmatpush1.msra.mxu0 0.0
    %396 = vmatprep.subr.mxu0 0.0
    %397 = vmatpush1.msra.mxu0 0.0
    %398 = vmatprep.subr.mxu0 0.0
    %399 = vmatpush1.msra.mxu0 0.0
    %400 = vmatprep.subr.mxu0 0.0
    %401 = vmatpush1.msra.mxu0 0.0
    %402 = vmatprep.subr.mxu0 0.0
    %403 = vmatpush1.msra.mxu0 0.0
    %404 = vmatprep.mubr.f32.mxu0 0.0
    %405 = vmatmul.mubr.f32.gmra.mrb[0].mxu0 %v338
    %v406 = vpop.f32.mrb[0].mxu0
    %v407 = vadd.f32 0.0, %v406
    %v408 = vpop.f32.mrb[0].mxu0
    %409 = vdwg.mxu0
    %v411 = vsel %vm79, %v330, 0
    %413 = vmatprep.subr.mxu0 0.0
    %414 = vmatpush1.msra.mxu0 %v329
    %415 = vmatprep.subr.mxu0 0.0
    %416 = vmatpush1.msra.mxu0 0.0
    %417 = vmatprep.subr.mxu0 0.0
    %418 = vmatpush1.msra.mxu0 0.0
    %419 = vmatprep.subr.mxu0 0.0
    %420 = vmatpush1.msra.mxu0 0.0
    %421 = vmatprep.subr.mxu0 0.0
    %422 = vmatpush1.msra.mxu0 0.0
    %423 = vmatprep.subr.mxu0 0.0
    %424 = vmatpush1.msra.mxu0 0.0
    %425 = vmatprep.subr.mxu0 0.0
    %426 = vmatpush1.msra.mxu0 0.0
    %427 = vmatprep.subr.mxu0 0.0
    %428 = vmatpush1.msra.mxu0 0.0
    %429 = vmatprep.subr.mxu0 0.0
    %430 = vmatpush1.msra.mxu0 0.0
    %431 = vmatprep.subr.mxu0 0.0
    %432 = vmatpush1.msra.mxu0 0.0
    %433 = vmatprep.subr.mxu0 0.0
    %434 = vmatpush1.msra.mxu0 0.0
    %435 = vmatprep.subr.mxu0 0.0
    %436 = vmatpush1.msra.mxu0 0.0
    %437 = vmatprep.subr.mxu0 0.0
    %438 = vmatpush1.msra.mxu0 0.0
    %439 = vmatprep.subr.mxu0 0.0
    %440 = vmatpush1.msra.mxu0 0.0
    %441 = vmatprep.subr.mxu0 0.0
    %442 = vmatpush1.msra.mxu0 0.0
    %443 = vmatprep.subr.mxu0 0.0
    %444 = vmatpush1.msra.mxu0 0.0
    %445 = vmatprep.subr.mxu0 0.0
    %446 = vmatpush1.msra.mxu0 0.0
    %447 = vmatprep.subr.mxu0 0.0
    %448 = vmatpush1.msra.mxu0 0.0
    %449 = vmatprep.subr.mxu0 0.0
    %450 = vmatpush1.msra.mxu0 0.0
    %451 = vmatprep.subr.mxu0 0.0
    %452 = vmatpush1.msra.mxu0 0.0
    %453 = vmatprep.subr.mxu0 0.0
    %454 = vmatpush1.msra.mxu0 0.0
    %455 = vmatprep.subr.mxu0 0.0
    %456 = vmatpush1.msra.mxu0 0.0
    %457 = vmatprep.subr.mxu0 0.0
    %458 = vmatpush1.msra.mxu0 0.0
    %459 = vmatprep.subr.mxu0 0.0
    %460 = vmatpush1.msra.mxu0 0.0
    %461 = vmatprep.subr.mxu0 0.0
    %462 = vmatpush1.msra.mxu0 0.0
    %463 = vmatprep.subr.mxu0 0.0
    %464 = vmatpush1.msra.mxu0 0.0
    %465 = vmatprep.subr.mxu0 0.0
    %466 = vmatpush1.msra.mxu0 0.0
    %467 = vmatprep.subr.mxu0 0.0
    %468 = vmatpush1.msra.mxu0 0.0
    %469 = vmatprep.subr.mxu0 0.0
    %470 = vmatpush1.msra.mxu0 0.0
    %471 = vmatprep.subr.mxu0 0.0
    %472 = vmatpush1.msra.mxu0 0.0
    %473 = vmatprep.subr.mxu0 0.0
    %474 = vmatpush1.msra.mxu0 0.0
    %475 = vmatprep.subr.mxu0 0.0
    %476 = vmatpush1.msra.mxu0 0.0
    %477 = vmatprep.mubr.f32.mxu0 0.0
    %478 = vmatmul.mubr.f32.gmra.mrb[0].mxu0 %v411
    %v479 = vpop.f32.mrb[0].mxu0
    %v480 = vadd.f32 %v407, %v479
    %v481 = vpop.f32.mrb[0].mxu0
    %482 = vdwg.mxu0
    %s483 = scalar_lea.vmem %s3, 16
    %v484 = vld [vmem:[%s483] sm:$0xff]
    %485 = vrot.lane.b32.xlu0 %v329, 126
    %v486 = vpop.permute.xlu0 %485
    %v489 = vsel %vm79, %v484, 0
    %491 = vmatprep.subr.mxu0 0.0
    %492 = vmatpush1.msra.mxu0 %v486
    %493 = vmatprep.subr.mxu0 0.0
    %494 = vmatpush1.msra.mxu0 0.0
    %495 = vmatprep.subr.mxu0 0.0
    %496 = vmatpush1.msra.mxu0 0.0
    %497 = vmatprep.subr.mxu0 0.0
    %498 = vmatpush1.msra.mxu0 0.0
    %499 = vmatprep.subr.mxu0 0.0
    %500 = vmatpush1.msra.mxu0 0.0
    %501 = vmatprep.subr.mxu0 0.0
    %502 = vmatpush1.msra.mxu0 0.0
    %503 = vmatprep.subr.mxu0 0.0
    %504 = vmatpush1.msra.mxu0 0.0
    %505 = vmatprep.subr.mxu0 0.0
    %506 = vmatpush1.msra.mxu0 0.0
    %507 = vmatprep.subr.mxu0 0.0
    %508 = vmatpush1.msra.mxu0 0.0
    %509 = vmatprep.subr.mxu0 0.0
    %510 = vmatpush1.msra.mxu0 0.0
    %511 = vmatprep.subr.mxu0 0.0
    %512 = vmatpush1.msra.mxu0 0.0
    %513 = vmatprep.subr.mxu0 0.0
    %514 = vmatpush1.msra.mxu0 0.0
    %515 = vmatprep.subr.mxu0 0.0
    %516 = vmatpush1.msra.mxu0 0.0
    %517 = vmatprep.subr.mxu0 0.0
    %518 = vmatpush1.msra.mxu0 0.0
    %519 = vmatprep.subr.mxu0 0.0
    %520 = vmatpush1.msra.mxu0 0.0
    %521 = vmatprep.subr.mxu0 0.0
    %522 = vmatpush1.msra.mxu0 0.0
    %523 = vmatprep.subr.mxu0 0.0
    %524 = vmatpush1.msra.mxu0 0.0
    %525 = vmatprep.subr.mxu0 0.0
    %526 = vmatpush1.msra.mxu0 0.0
    %527 = vmatprep.subr.mxu0 0.0
    %528 = vmatpush1.msra.mxu0 0.0
    %529 = vmatprep.subr.mxu0 0.0
    %530 = vmatpush1.msra.mxu0 0.0
    %531 = vmatprep.subr.mxu0 0.0
    %532 = vmatpush1.msra.mxu0 0.0
    %533 = vmatprep.subr.mxu0 0.0
    %534 = vmatpush1.msra.mxu0 0.0
    %535 = vmatprep.subr.mxu0 0.0
    %536 = vmatpush1.msra.mxu0 0.0
    %537 = vmatprep.subr.mxu0 0.0
    %538 = vmatpush1.msra.mxu0 0.0
    %539 = vmatprep.subr.mxu0 0.0
    %540 = vmatpush1.msra.mxu0 0.0
    %541 = vmatprep.subr.mxu0 0.0
    %542 = vmatpush1.msra.mxu0 0.0
    %543 = vmatprep.subr.mxu0 0.0
    %544 = vmatpush1.msra.mxu0 0.0
    %545 = vmatprep.subr.mxu0 0.0
    %546 = vmatpush1.msra.mxu0 0.0
    %547 = vmatprep.subr.mxu0 0.0
    %548 = vmatpush1.msra.mxu0 0.0
    %549 = vmatprep.subr.mxu0 0.0
    %550 = vmatpush1.msra.mxu0 0.0
    %551 = vmatprep.subr.mxu0 0.0
    %552 = vmatpush1.msra.mxu0 0.0
    %553 = vmatprep.subr.mxu0 0.0
    %554 = vmatpush1.msra.mxu0 0.0
    %555 = vmatprep.mubr.f32.mxu0 0.0
    %556 = vmatmul.mubr.f32.gmra.mrb[0].mxu0 %v489
    %v557 = vpop.f32.mrb[0].mxu0
    %v558 = vadd.f32 0.0, %v557
    %v559 = vpop.f32.mrb[0].mxu0
    %560 = vdwg.mxu0
    %v561 = vadd.f32 %v480, %v558
    %v562 = vld [vmem:[%s4] sm:$0xff]
    %564 = vset.pattern.permute.xlu0 0
    %565 = vperm.xlu0 %564, %v562
    %v566 = vpop.permute.xlu0 %565
    %v568 = vadd.f32 %v561, %v566
    %v569 = vmax.f32 %v568, 0.0
    %v570 = vld [vmem:[%s5] sm:$0xff]
    %v571 = vld [vmem:[%s5 + $0x8] sm:$0xf]
    %v572 = vld [vmem:[%s6] sm:$0x1]
    %v574 = vlaneseq
    %v575 = vshrl.u32 %v574, 7
    %v576 = vsub.s32 0, %v575
    %v577 = vrot.slane %v572, %v576
    %vm579 = vcmask 97280
    %v581 = vsel %vm579, %v569, 0
    %vm583 = vcmask 1043456
    %v585 = vsel %vm583, %v571, 0
    %587 = vmatprep.subr.mxu0 0.0
    %588 = vmatpush1.msra.mxu0 %v570
    %589 = vmatprep.subr.mxu0 0.0
    %590 = vmatpush1.msra.mxu0 %v585
    %591 = vmatprep.subr.mxu0 0.0
    %592 = vmatpush1.msra.mxu0 0.0
    %593 = vmatprep.subr.mxu0 0.0
    %594 = vmatpush1.msra.mxu0 0.0
    %595 = vmatprep.subr.mxu0 0.0
    %596 = vmatpush1.msra.mxu0 0.0
    %597 = vmatprep.subr.mxu0 0.0
    %598 = vmatpush1.msra.mxu0 0.0
    %599 = vmatprep.subr.mxu0 0.0
    %600 = vmatpush1.msra.mxu0 0.0
    %601 = vmatprep.subr.mxu0 0.0
    %602 = vmatpush1.msra.mxu0 0.0
    %603 = vmatprep.subr.mxu0 0.0
    %604 = vmatpush1.msra.mxu0 0.0
    %605 = vmatprep.subr.mxu0 0.0
    %606 = vmatpush1.msra.mxu0 0.0
    %607 = vmatprep.subr.mxu0 0.0
    %608 = vmatpush1.msra.mxu0 0.0
    %609 = vmatprep.subr.mxu0 0.0
    %610 = vmatpush1.msra.mxu0 0.0
    %611 = vmatprep.subr.mxu0 0.0
    %612 = vmatpush1.msra.mxu0 0.0
    %613 = vmatprep.subr.mxu0 0.0
    %614 = vmatpush1.msra.mxu0 0.0
    %615 = vmatprep.subr.mxu0 0.0
    %616 = vmatpush1.msra.mxu0 0.0
    %617 = vmatprep.subr.mxu0 0.0
    %618 = vmatpush1.msra.mxu0 0.0
    %619 = vmatprep.subr.mxu0 0.0
    %620 = vmatpush1.msra.mxu0 0.0
    %621 = vmatprep.subr.mxu0 0.0
    %622 = vmatpush1.msra.mxu0 0.0
    %623 = vmatprep.subr.mxu0 0.0
    %624 = vmatpush1.msra.mxu0 0.0
    %625 = vmatprep.subr.mxu0 0.0
    %626 = vmatpush1.msra.mxu0 0.0
    %627 = vmatprep.subr.mxu0 0.0
    %628 = vmatpush1.msra.mxu0 0.0
    %629 = vmatprep.subr.mxu0 0.0
    %630 = vmatpush1.msra.mxu0 0.0
    %631 = vmatprep.subr.mxu0 0.0
    %632 = vmatpush1.msra.mxu0 0.0
    %633 = vmatprep.subr.mxu0 0.0
    %634 = vmatpush1.msra.mxu0 0.0
    %635 = vmatprep.subr.mxu0 0.0
    %636 = vmatpush1.msra.mxu0 0.0
    %637 = vmatprep.subr.mxu0 0.0
    %638 = vmatpush1.msra.mxu0 0.0
    %639 = vmatprep.subr.mxu0 0.0
    %640 = vmatpush1.msra.mxu0 0.0
    %641 = vmatprep.subr.mxu0 0.0
    %642 = vmatpush1.msra.mxu0 0.0
    %643 = vmatprep.subr.mxu0 0.0
    %644 = vmatpush1.msra.mxu0 0.0
    %645 = vmatprep.subr.mxu0 0.0
    %646 = vmatpush1.msra.mxu0 0.0
    %647 = vmatprep.subr.mxu0 0.0
    %648 = vmatpush1.msra.mxu0 0.0
    %649 = vmatprep.subr.mxu0 0.0
    %650 = vmatpush1.msra.mxu0 0.0
    %651 = vmatprep.mubr.f32.mxu0 0.0
    %652 = vmatmul.mubr.f32.gmra.mrb[0].mxu0 %v581
    %v653 = vpop.f32.mrb[0].mxu0
    %v654 = vadd.f32 %v577, %v653
    %v655 = vpop.f32.mrb[0].mxu0
    %656 = vdwg.mxu0
    %v657 = vld [vmem:[%s7] sm:$0x7]
    %v658 = vld [vmem:[%s8] sm:$0x3]
    %659 = vrot.lane.b32.xlu0 %v71, 112
    %v660 = vpop.permute.xlu0 %659
    %vm661 = vcmask 15360
    %v662 = vsel %vm661, %v660, 0
    %vm664 = vcmask 1041408
    %v666 = vsel %vm664, %v658, 0
    %668 = vmatprep.subr.mxu0 0.0
    %669 = vmatpush1.msra.mxu0 %v666
    %670 = vmatprep.subr.mxu0 0.0
    %671 = vmatpush1.msra.mxu0 0.0
    %672 = vmatprep.subr.mxu0 0.0
    %673 = vmatpush1.msra.mxu0 0.0
    %674 = vmatprep.subr.mxu0 0.0
    %675 = vmatpush1.msra.mxu0 0.0
    %676 = vmatprep.subr.mxu0 0.0
    %677 = vmatpush1.msra.mxu0 0.0
    %678 = vmatprep.subr.mxu0 0.0
    %679 = vmatpush1.msra.mxu0 0.0
    %680 = vmatprep.subr.mxu0 0.0
    %681 = vmatpush1.msra.mxu0 0.0
    %682 = vmatprep.subr.mxu0 0.0
    %683 = vmatpush1.msra.mxu0 0.0
    %684 = vmatprep.subr.mxu0 0.0
    %685 = vmatpush1.msra.mxu0 0.0
    %686 = vmatprep.subr.mxu0 0.0
    %687 = vmatpush1.msra.mxu0 0.0
    %688 = vmatprep.subr.mxu0 0.0
    %689 = vmatpush1.msra.mxu0 0.0
    %690 = vmatprep.subr.mxu0 0.0
    %691 = vmatpush1.msra.mxu0 0.0
    %692 = vmatprep.subr.mxu0 0.0
    %693 = vmatpush1.msra.mxu0 0.0
    %694 = vmatprep.subr.mxu0 0.0
    %695 = vmatpush1.msra.mxu0 0.0
    %696 = vmatprep.subr.mxu0 0.0
    %697 = vmatpush1.msra.mxu0 0.0
    %698 = vmatprep.subr.mxu0 0.0
    %699 = vmatpush1.msra.mxu0 0.0
    %700 = vmatprep.subr.mxu0 0.0
    %701 = vmatpush1.msra.mxu0 0.0
    %702 = vmatprep.subr.mxu0 0.0
    %703 = vmatpush1.msra.mxu0 0.0
    %704 = vmatprep.subr.mxu0 0.0
    %705 = vmatpush1.msra.mxu0 0.0
    %706 = vmatprep.subr.mxu0 0.0
    %707 = vmatpush1.msra.mxu0 0.0
    %708 = vmatprep.subr.mxu0 0.0
    %709 = vmatpush1.msra.mxu0 0.0
    %710 = vmatprep.subr.mxu0 0.0
    %711 = vmatpush1.msra.mxu0 0.0
    %712 = vmatprep.subr.mxu0 0.0
    %713 = vmatpush1.msra.mxu0 0.0
    %714 = vmatprep.subr.mxu0 0.0
    %715 = vmatpush1.msra.mxu0 0.0
    %716 = vmatprep.subr.mxu0 0.0
    %717 = vmatpush1.msra.mxu0 0.0
    %718 = vmatprep.subr.mxu0 0.0
    %719 = vmatpush1.msra.mxu0 0.0
    %720 = vmatprep.subr.mxu0 0.0
    %721 = vmatpush1.msra.mxu0 0.0
    %722 = vmatprep.subr.mxu0 0.0
    %723 = vmatpush1.msra.mxu0 0.0
    %724 = vmatprep.subr.mxu0 0.0
    %725 = vmatpush1.msra.mxu0 0.0
    %726 = vmatprep.subr.mxu0 0.0
    %727 = vmatpush1.msra.mxu0 0.0
    %728 = vmatprep.subr.mxu0 0.0
    %729 = vmatpush1.msra.mxu0 0.0
    %730 = vmatprep.subr.mxu0 0.0
    %731 = vmatpush1.msra.mxu0 0.0
    %732 = vmatprep.mubr.f32.mxu0 0.0
    %733 = vmatmul.mubr.f32.gmra.mrb[0].mxu0 %v662
    %v734 = vpop.f32.mrb[0].mxu0
    %v735 = vadd.f32 0.0, %v734
    %v736 = vpop.f32.mrb[0].mxu0
    %737 = vdwg.mxu0
    %vm738 = vcmask 23552
    %v740 = vsel %vm738, %v654, 0
    %vm742 = vcmask 1042432
    %v744 = vsel %vm742, %v657, 0
    %746 = vmatprep.subr.mxu0 0.0
    %747 = vmatpush1.msra.mxu0 %v744
    %748 = vmatprep.subr.mxu0 0.0
    %749 = vmatpush1.msra.mxu0 0.0
    %750 = vmatprep.subr.mxu0 0.0
    %751 = vmatpush1.msra.mxu0 0.0
    %752 = vmatprep.subr.mxu0 0.0
    %753 = vmatpush1.msra.mxu0 0.0
    %754 = vmatprep.subr.mxu0 0.0
    %755 = vmatpush1.msra.mxu0 0.0
    %756 = vmatprep.subr.mxu0 0.0
    %757 = vmatpush1.msra.mxu0 0.0
    %758 = vmatprep.subr.mxu0 0.0
    %759 = vmatpush1.msra.mxu0 0.0
    %760 = vmatprep.subr.mxu0 0.0
    %761 = vmatpush1.msra.mxu0 0.0
    %762 = vmatprep.subr.mxu0 0.0
    %763 = vmatpush1.msra.mxu0 0.0
    %764 = vmatprep.subr.mxu0 0.0
    %765 = vmatpush1.msra.mxu0 0.0
    %766 = vmatprep.subr.mxu0 0.0
    %767 = vmatpush1.msra.mxu0 0.0
    %768 = vmatprep.subr.mxu0 0.0
    %769 = vmatpush1.msra.mxu0 0.0
    %770 = vmatprep.subr.mxu0 0.0
    %771 = vmatpush1.msra.mxu0 0.0
    %772 = vmatprep.subr.mxu0 0.0
    %773 = vmatpush1.msra.mxu0 0.0
    %774 = vmatprep.subr.mxu0 0.0
    %775 = vmatpush1.msra.mxu0 0.0
    %776 = vmatprep.subr.mxu0 0.0
    %777 = vmatpush1.msra.mxu0 0.0
    %778 = vmatprep.subr.mxu0 0.0
    %779 = vmatpush1.msra.mxu0 0.0
    %780 = vmatprep.subr.mxu0 0.0
    %781 = vmatpush1.msra.mxu0 0.0
    %782 = vmatprep.subr.mxu0 0.0
    %783 = vmatpush1.msra.mxu0 0.0
    %784 = vmatprep.subr.mxu0 0.0
    %785 = vmatpush1.msra.mxu0 0.0
    %786 = vmatprep.subr.mxu0 0.0
    %787 = vmatpush1.msra.mxu0 0.0
    %788 = vmatprep.subr.mxu0 0.0
    %789 = vmatpush1.msra.mxu0 0.0
    %790 = vmatprep.subr.mxu0 0.0
    %791 = vmatpush1.msra.mxu0 0.0
    %792 = vmatprep.subr.mxu0 0.0
    %793 = vmatpush1.msra.mxu0 0.0
    %794 = vmatprep.subr.mxu0 0.0
    %795 = vmatpush1.msra.mxu0 0.0
    %796 = vmatprep.subr.mxu0 0.0
    %797 = vmatpush1.msra.mxu0 0.0
    %798 = vmatprep.subr.mxu0 0.0
    %799 = vmatpush1.msra.mxu0 0.0
    %800 = vmatprep.subr.mxu0 0.0
    %801 = vmatpush1.msra.mxu0 0.0
    %802 = vmatprep.subr.mxu0 0.0
    %803 = vmatpush1.msra.mxu0 0.0
    %804 = vmatprep.subr.mxu0 0.0
    %805 = vmatpush1.msra.mxu0 0.0
    %806 = vmatprep.subr.mxu0 0.0
    %807 = vmatpush1.msra.mxu0 0.0
    %808 = vmatprep.subr.mxu0 0.0
    %809 = vmatpush1.msra.mxu0 0.0
    %810 = vmatprep.mubr.f32.mxu0 0.0
    %811 = vmatmul.mubr.f32.gmra.mrb[0].mxu0 %v740
    %v812 = vpop.f32.mrb[0].mxu0
    %v813 = vadd.f32 %v735, %v812
    %v814 = vpop.f32.mrb[0].mxu0
    %815 = vdwg.mxu0
    %v816 = vld [vmem:[%s10] sm:$0x1]
    %v818 = vlaneseq
    %v819 = vshrl.u32 %v818, 7
    %v820 = vsub.s32 0, %v819
    %v821 = vrot.slane %v816, %v820
    %v823 = vadd.f32 %v813, %v821
    %s824 = scalar_lea.vmem %s0, 8
    %v825 = vld [vmem:[%s824] sm:$0xff]
    %827 = vrot.lane.b32.xlu0 %v825, 127
    %v828 = vpop.permute.xlu0 %827
    %830 = vmatprep.subr.mxu0 0.0
    %831 = vmatpush1.msra.mxu0 %v828
    %832 = vmatprep.subr.mxu0 0.0
    %833 = vmatpush1.msra.mxu0 0.0
    %834 = vmatprep.subr.mxu0 0.0
    %835 = vmatpush1.msra.mxu0 0.0
    %836 = vmatprep.subr.mxu0 0.0
    %837 = vmatpush1.msra.mxu0 0.0
    %838 = vmatprep.subr.mxu0 0.0
    %839 = vmatpush1.msra.mxu0 0.0
    %840 = vmatprep.subr.mxu0 0.0
    %841 = vmatpush1.msra.mxu0 0.0
    %842 = vmatprep.subr.mxu0 0.0
    %843 = vmatpush1.msra.mxu0 0.0
    %844 = vmatprep.subr.mxu0 0.0
    %845 = vmatpush1.msra.mxu0 0.0
    %846 = vmatprep.subr.mxu0 0.0
    %847 = vmatpush1.msra.mxu0 0.0
    %848 = vmatprep.subr.mxu0 0.0
    %849 = vmatpush1.msra.mxu0 0.0
    %850 = vmatprep.subr.mxu0 0.0
    %851 = vmatpush1.msra.mxu0 0.0
    %852 = vmatprep.subr.mxu0 0.0
    %853 = vmatpush1.msra.mxu0 0.0
    %854 = vmatprep.subr.mxu0 0.0
    %855 = vmatpush1.msra.mxu0 0.0
    %856 = vmatprep.subr.mxu0 0.0
    %857 = vmatpush1.msra.mxu0 0.0
    %858 = vmatprep.subr.mxu0 0.0
    %859 = vmatpush1.msra.mxu0 0.0
    %860 = vmatprep.subr.mxu0 0.0
    %861 = vmatpush1.msra.mxu0 0.0
    %862 = vmatprep.subr.mxu0 0.0
    %863 = vmatpush1.msra.mxu0 0.0
    %864 = vmatprep.subr.mxu0 0.0
    %865 = vmatpush1.msra.mxu0 0.0
    %866 = vmatprep.subr.mxu0 0.0
    %867 = vmatpush1.msra.mxu0 0.0
    %868 = vmatprep.subr.mxu0 0.0
    %869 = vmatpush1.msra.mxu0 0.0
    %870 = vmatprep.subr.mxu0 0.0
    %871 = vmatpush1.msra.mxu0 0.0
    %872 = vmatprep.subr.mxu0 0.0
    %873 = vmatpush1.msra.mxu0 0.0
    %874 = vmatprep.subr.mxu0 0.0
    %875 = vmatpush1.msra.mxu0 0.0
    %876 = vmatprep.subr.mxu0 0.0
    %877 = vmatpush1.msra.mxu0 0.0
    %878 = vmatprep.subr.mxu0 0.0
    %879 = vmatpush1.msra.mxu0 0.0
    %880 = vmatprep.subr.mxu0 0.0
    %881 = vmatpush1.msra.mxu0 0.0
    %882 = vmatprep.subr.mxu0 0.0
    %883 = vmatpush1.msra.mxu0 0.0
    %884 = vmatprep.subr.mxu0 0.0
    %885 = vmatpush1.msra.mxu0 0.0
    %886 = vmatprep.subr.mxu0 0.0
    %887 = vmatpush1.msra.mxu0 0.0
    %888 = vmatprep.subr.mxu0 0.0
    %889 = vmatpush1.msra.mxu0 0.0
    %890 = vmatprep.subr.mxu0 0.0
    %891 = vmatpush1.msra.mxu0 0.0
    %892 = vmatprep.subr.mxu0 0.0
    %893 = vmatpush1.msra.mxu0 0.0
    %894 = vmatprep.mubr.f32.mxu0 0.0
    %895 = vmatmul.mubr.f32.gmra.mrb[0].mxu0 %v81
    %v896 = vpop.f32.mrb[0].mxu0
    %v897 = vadd.f32 0.0, %v896
    %v898 = vpop.f32.mrb[0].mxu0
    %899 = vdwg.mxu0
    %900 = vmatprep.subr.mxu0 0.0
    %901 = vmatpush1.msra.mxu0 %v825
    %902 = vmatprep.subr.mxu0 0.0
    %903 = vmatpush1.msra.mxu0 0.0
    %904 = vmatprep.subr.mxu0 0.0
    %905 = vmatpush1.msra.mxu0 0.0
    %906 = vmatprep.subr.mxu0 0.0
    %907 = vmatpush1.msra.mxu0 0.0
    %908 = vmatprep.subr.mxu0 0.0
    %909 = vmatpush1.msra.mxu0 0.0
    %910 = vmatprep.subr.mxu0 0.0
    %911 = vmatpush1.msra.mxu0 0.0
    %912 = vmatprep.subr.mxu0 0.0
    %913 = vmatpush1.msra.mxu0 0.0
    %914 = vmatprep.subr.mxu0 0.0
    %915 = vmatpush1.msra.mxu0 0.0
    %916 = vmatprep.subr.mxu0 0.0
    %917 = vmatpush1.msra.mxu0 0.0
    %918 = vmatprep.subr.mxu0 0.0
    %919 = vmatpush1.msra.mxu0 0.0
    %920 = vmatprep.subr.mxu0 0.0
    %921 = vmatpush1.msra.mxu0 0.0
    %922 = vmatprep.subr.mxu0 0.0
    %923 = vmatpush1.msra.mxu0 0.0
    %924 = vmatprep.subr.mxu0 0.0
    %925 = vmatpush1.msra.mxu0 0.0
    %926 = vmatprep.subr.mxu0 0.0
    %927 = vmatpush1.msra.mxu0 0.0
    %928 = vmatprep.subr.mxu0 0.0
    %929 = vmatpush1.msra.mxu0 0.0
    %930 = vmatprep.subr.mxu0 0.0
    %931 = vmatpush1.msra.mxu0 0.0
    %932 = vmatprep.subr.mxu0 0.0
    %933 = vmatpush1.msra.mxu0 0.0
    %934 = vmatprep.subr.mxu0 0.0
    %935 = vmatpush1.msra.mxu0 0.0
    %936 = vmatprep.subr.mxu0 0.0
    %937 = vmatpush1.msra.mxu0 0.0
    %938 = vmatprep.subr.mxu0 0.0
    %939 = vmatpush1.msra.mxu0 0.0
    %940 = vmatprep.subr.mxu0 0.0
    %941 = vmatpush1.msra.mxu0 0.0
    %942 = vmatprep.subr.mxu0 0.0
    %943 = vmatpush1.msra.mxu0 0.0
    %944 = vmatprep.subr.mxu0 0.0
    %945 = vmatpush1.msra.mxu0 0.0
    %946 = vmatprep.subr.mxu0 0.0
    %947 = vmatpush1.msra.mxu0 0.0
    %948 = vmatprep.subr.mxu0 0.0
    %949 = vmatpush1.msra.mxu0 0.0
    %950 = vmatprep.subr.mxu0 0.0
    %951 = vmatpush1.msra.mxu0 0.0
    %952 = vmatprep.subr.mxu0 0.0
    %953 = vmatpush1.msra.mxu0 0.0
    %954 = vmatprep.subr.mxu0 0.0
    %955 = vmatpush1.msra.mxu0 0.0
    %956 = vmatprep.subr.mxu0 0.0
    %957 = vmatpush1.msra.mxu0 0.0
    %958 = vmatprep.subr.mxu0 0.0
    %959 = vmatpush1.msra.mxu0 0.0
    %960 = vmatprep.subr.mxu0 0.0
    %961 = vmatpush1.msra.mxu0 0.0
    %962 = vmatprep.subr.mxu0 0.0
    %963 = vmatpush1.msra.mxu0 0.0
    %964 = vmatprep.mubr.f32.mxu0 0.0
    %965 = vmatmul.mubr.f32.gmra.mrb[0].mxu0 %v154
    %v966 = vpop.f32.mrb[0].mxu0
    %v967 = vadd.f32 %v897, %v966
    %v968 = vpop.f32.mrb[0].mxu0
    %969 = vdwg.mxu0
    %970 = vrot.lane.b32.xlu0 %v825, 126
    %v971 = vpop.permute.xlu0 %970
    %973 = vmatprep.subr.mxu0 0.0
    %974 = vmatpush1.msra.mxu0 %v971
    %975 = vmatprep.subr.mxu0 0.0
    %976 = vmatpush1.msra.mxu0 0.0
    %977 = vmatprep.subr.mxu0 0.0
    %978 = vmatpush1.msra.mxu0 0.0
    %979 = vmatprep.subr.mxu0 0.0
    %980 = vmatpush1.msra.mxu0 0.0
    %981 = vmatprep.subr.mxu0 0.0
    %982 = vmatpush1.msra.mxu0 0.0
    %983 = vmatprep.subr.mxu0 0.0
    %984 = vmatpush1.msra.mxu0 0.0
    %985 = vmatprep.subr.mxu0 0.0
    %986 = vmatpush1.msra.mxu0 0.0
    %987 = vmatprep.subr.mxu0 0.0
    %988 = vmatpush1.msra.mxu0 0.0
    %989 = vmatprep.subr.mxu0 0.0
    %990 = vmatpush1.msra.mxu0 0.0
    %991 = vmatprep.subr.mxu0 0.0
    %992 = vmatpush1.msra.mxu0 0.0
    %993 = vmatprep.subr.mxu0 0.0
    %994 = vmatpush1.msra.mxu0 0.0
    %995 = vmatprep.subr.mxu0 0.0
    %996 = vmatpush1.msra.mxu0 0.0
    %997 = vmatprep.subr.mxu0 0.0
    %998 = vmatpush1.msra.mxu0 0.0
    %999 = vmatprep.subr.mxu0 0.0
    %1000 = vmatpush1.msra.mxu0 0.0
    %1001 = vmatprep.subr.mxu0 0.0
    %1002 = vmatpush1.msra.mxu0 0.0
    %1003 = vmatprep.subr.mxu0 0.0
    %1004 = vmatpush1.msra.mxu0 0.0
    %1005 = vmatprep.subr.mxu0 0.0
    %1006 = vmatpush1.msra.mxu0 0.0
    %1007 = vmatprep.subr.mxu0 0.0
    %1008 = vmatpush1.msra.mxu0 0.0
    %1009 = vmatprep.subr.mxu0 0.0
    %1010 = vmatpush1.msra.mxu0 0.0
    %1011 = vmatprep.subr.mxu0 0.0
    %1012 = vmatpush1.msra.mxu0 0.0
    %1013 = vmatprep.subr.mxu0 0.0
    %1014 = vmatpush1.msra.mxu0 0.0
    %1015 = vmatprep.subr.mxu0 0.0
    %1016 = vmatpush1.msra.mxu0 0.0
    %1017 = vmatprep.subr.mxu0 0.0
    %1018 = vmatpush1.msra.mxu0 0.0
    %1019 = vmatprep.subr.mxu0 0.0
    %1020 = vmatpush1.msra.mxu0 0.0
    %1021 = vmatprep.subr.mxu0 0.0
    %1022 = vmatpush1.msra.mxu0 0.0
    %1023 = vmatprep.subr.mxu0 0.0
    %1024 = vmatpush1.msra.mxu0 0.0
    %1025 = vmatprep.subr.mxu0 0.0
    %1026 = vmatpush1.msra.mxu0 0.0
    %1027 = vmatprep.subr.mxu0 0.0
    %1028 = vmatpush1.msra.mxu0 0.0
    %1029 = vmatprep.subr.mxu0 0.0
    %1030 = vmatpush1.msra.mxu0 0.0
    %1031 = vmatprep.subr.mxu0 0.0
    %1032 = vmatpush1.msra.mxu0 0.0
    %1033 = vmatprep.subr.mxu0 0.0
    %1034 = vmatpush1.msra.mxu0 0.0
    %1035 = vmatprep.subr.mxu0 0.0
    %1036 = vmatpush1.msra.mxu0 0.0
    %1037 = vmatprep.mubr.f32.mxu0 0.0
    %1038 = vmatmul.mubr.f32.gmra.mrb[0].mxu0 %v232
    %v1039 = vpop.f32.mrb[0].mxu0
    %v1040 = vadd.f32 0.0, %v1039
    %v1041 = vpop.f32.mrb[0].mxu0
    %1042 = vdwg.mxu0
    %v1043 = vadd.f32 %v967, %v1040
    %v1044 = vadd.f32 %v1043, %v309
    %v1045 = vmax.f32 %v1044, 0.0
    %vm1046 = vcmp.ne.f32.partialorder %v1044, %v1044
    %v1047 = vadd.f32 %v1044, 0.0
    %v1048 = vand.u32 2147483647, %v1044
    %v1049 = vsub.f32 0.0, %v1048
    %v1050 = vmul.f32 %v1049, 1.442695
    %v1051 = vpow.pop %v1050
    %v1052 = vadd.f32 %v1051, 1.0
    %v1053 = vlog2.pop %v1052
    %v1054 = vmul.f32 %v1053, 0.6931472
    %v1055 = vmul.f32 -0.5, %v1051
    %v1056 = vadd.f32 %v1055, 1.0
    %v1057 = vmul.f32 %v1056, %v1051
    %v1058 = vand.u32 2147483647, %v1051
    %vm1059 = vcmp.lt.f32.partialorder %v1058, 0.0004427343
    %v1060 = vsel %vm1059, %v1057, %v1054
    %v1061 = vadd.f32 %v1045, %v1060
    %v1062 = vsel %vm1046, %v1047, %v1061
    %1064 = vrot.lane.b32.xlu0 %v1062, 127
    %v1065 = vpop.permute.xlu0 %1064
    %1067 = vmatprep.subr.mxu0 0.0
    %1068 = vmatpush1.msra.mxu0 %v1065
    %1069 = vmatprep.subr.mxu0 0.0
    %1070 = vmatpush1.msra.mxu0 0.0
    %1071 = vmatprep.subr.mxu0 0.0
    %1072 = vmatpush1.msra.mxu0 0.0
    %1073 = vmatprep.subr.mxu0 0.0
    %1074 = vmatpush1.msra.mxu0 0.0
    %1075 = vmatprep.subr.mxu0 0.0
    %1076 = vmatpush1.msra.mxu0 0.0
    %1077 = vmatprep.subr.mxu0 0.0
    %1078 = vmatpush1.msra.mxu0 0.0
    %1079 = vmatprep.subr.mxu0 0.0
    %1080 = vmatpush1.msra.mxu0 0.0
    %1081 = vmatprep.subr.mxu0 0.0
    %1082 = vmatpush1.msra.mxu0 0.0
    %1083 = vmatprep.subr.mxu0 0.0
    %1084 = vmatpush1.msra.mxu0 0.0
    %1085 = vmatprep.subr.mxu0 0.0
    %1086 = vmatpush1.msra.mxu0 0.0
    %1087 = vmatprep.subr.mxu0 0.0
    %1088 = vmatpush1.msra.mxu0 0.0
    %1089 = vmatprep.subr.mxu0 0.0
    %1090 = vmatpush1.msra.mxu0 0.0
    %1091 = vmatprep.subr.mxu0 0.0
    %1092 = vmatpush1.msra.mxu0 0.0
    %1093 = vmatprep.subr.mxu0 0.0
    %1094 = vmatpush1.msra.mxu0 0.0
    %1095 = vmatprep.subr.mxu0 0.0
    %1096 = vmatpush1.msra.mxu0 0.0
    %1097 = vmatprep.subr.mxu0 0.0
    %1098 = vmatpush1.msra.mxu0 0.0
    %1099 = vmatprep.subr.mxu0 0.0
    %1100 = vmatpush1.msra.mxu0 0.0
    %1101 = vmatprep.subr.mxu0 0.0
    %1102 = vmatpush1.msra.mxu0 0.0
    %1103 = vmatprep.subr.mxu0 0.0
    %1104 = vmatpush1.msra.mxu0 0.0
    %1105 = vmatprep.subr.mxu0 0.0
    %1106 = vmatpush1.msra.mxu0 0.0
    %1107 = vmatprep.subr.mxu0 0.0
    %1108 = vmatpush1.msra.mxu0 0.0
    %1109 = vmatprep.subr.mxu0 0.0
    %1110 = vmatpush1.msra.mxu0 0.0
    %1111 = vmatprep.subr.mxu0 0.0
    %1112 = vmatpush1.msra.mxu0 0.0
    %1113 = vmatprep.subr.mxu0 0.0
    %1114 = vmatpush1.msra.mxu0 0.0
    %1115 = vmatprep.subr.mxu0 0.0
    %1116 = vmatpush1.msra.mxu0 0.0
    %1117 = vmatprep.subr.mxu0 0.0
    %1118 = vmatpush1.msra.mxu0 0.0
    %1119 = vmatprep.subr.mxu0 0.0
    %1120 = vmatpush1.msra.mxu0 0.0
    %1121 = vmatprep.subr.mxu0 0.0
    %1122 = vmatpush1.msra.mxu0 0.0
    %1123 = vmatprep.subr.mxu0 0.0
    %1124 = vmatpush1.msra.mxu0 0.0
    %1125 = vmatprep.subr.mxu0 0.0
    %1126 = vmatpush1.msra.mxu0 0.0
    %1127 = vmatprep.subr.mxu0 0.0
    %1128 = vmatpush1.msra.mxu0 0.0
    %1129 = vmatprep.subr.mxu0 0.0
    %1130 = vmatpush1.msra.mxu0 0.0
    %1131 = vmatprep.mubr.f32.mxu0 0.0
    %1132 = vmatmul.mubr.f32.gmra.mrb[0].mxu0 %v338
    %v1133 = vpop.f32.mrb[0].mxu0
    %v1134 = vadd.f32 0.0, %v1133
    %v1135 = vpop.f32.mrb[0].mxu0
    %1136 = vdwg.mxu0
    %1137 = vmatprep.subr.mxu0 0.0
    %1138 = vmatpush1.msra.mxu0 %v1062
    %1139 = vmatprep.subr.mxu0 0.0
    %1140 = vmatpush1.msra.mxu0 0.0
    %1141 = vmatprep.subr.mxu0 0.0
    %1142 = vmatpush1.msra.mxu0 0.0
    %1143 = vmatprep.subr.mxu0 0.0
    %1144 = vmatpush1.msra.mxu0 0.0
    %1145 = vmatprep.subr.mxu0 0.0
    %1146 = vmatpush1.msra.mxu0 0.0
    %1147 = vmatprep.subr.mxu0 0.0
    %1148 = vmatpush1.msra.mxu0 0.0
    %1149 = vmatprep.subr.mxu0 0.0
    %1150 = vmatpush1.msra.mxu0 0.0
    %1151 = vmatprep.subr.mxu0 0.0
    %1152 = vmatpush1.msra.mxu0 0.0
    %1153 = vmatprep.subr.mxu0 0.0
    %1154 = vmatpush1.msra.mxu0 0.0
    %1155 = vmatprep.subr.mxu0 0.0
    %1156 = vmatpush1.msra.mxu0 0.0
    %1157 = vmatprep.subr.mxu0 0.0
    %1158 = vmatpush1.msra.mxu0 0.0
    %1159 = vmatprep.subr.mxu0 0.0
    %1160 = vmatpush1.msra.mxu0 0.0
    %1161 = vmatprep.subr.mxu0 0.0
    %1162 = vmatpush1.msra.mxu0 0.0
    %1163 = vmatprep.subr.mxu0 0.0
    %1164 = vmatpush1.msra.mxu0 0.0
    %1165 = vmatprep.subr.mxu0 0.0
    %1166 = vmatpush1.msra.mxu0 0.0
    %1167 = vmatprep.subr.mxu0 0.0
    %1168 = vmatpush1.msra.mxu0 0.0
    %1169 = vmatprep.subr.mxu0 0.0
    %1170 = vmatpush1.msra.mxu0 0.0
    %1171 = vmatprep.subr.mxu0 0.0
    %1172 = vmatpush1.msra.mxu0 0.0
    %1173 = vmatprep.subr.mxu0 0.0
    %1174 = vmatpush1.msra.mxu0 0.0
    %1175 = vmatprep.subr.mxu0 0.0
    %1176 = vmatpush1.msra.mxu0 0.0
    %1177 = vmatprep.subr.mxu0 0.0
    %1178 = vmatpush1.msra.mxu0 0.0
    %1179 = vmatprep.subr.mxu0 0.0
    %1180 = vmatpush1.msra.mxu0 0.0
    %1181 = vmatprep.subr.mxu0 0.0
    %1182 = vmatpush1.msra.mxu0 0.0
    %1183 = vmatprep.subr.mxu0 0.0
    %1184 = vmatpush1.msra.mxu0 0.0
    %1185 = vmatprep.subr.mxu0 0.0
    %1186 = vmatpush1.msra.mxu0 0.0
    %1187 = vmatprep.subr.mxu0 0.0
    %1188 = vmatpush1.msra.mxu0 0.0
    %1189 = vmatprep.subr.mxu0 0.0
    %1190 = vmatpush1.msra.mxu0 0.0
    %1191 = vmatprep.subr.mxu0 0.0
    %1192 = vmatpush1.msra.mxu0 0.0
    %1193 = vmatprep.subr.mxu0 0.0
    %1194 = vmatpush1.msra.mxu0 0.0
    %1195 = vmatprep.subr.mxu0 0.0
    %1196 = vmatpush1.msra.mxu0 0.0
    %1197 = vmatprep.subr.mxu0 0.0
    %1198 = vmatpush1.msra.mxu0 0.0
    %1199 = vmatprep.subr.mxu0 0.0
    %1200 = vmatpush1.msra.mxu0 0.0
    %1201 = vmatprep.mubr.f32.mxu0 0.0
    %1202 = vmatmul.mubr.f32.gmra.mrb[0].mxu0 %v411
    %v1203 = vpop.f32.mrb[0].mxu0
    %v1204 = vadd.f32 %v1134, %v1203
    %v1205 = vpop.f32.mrb[0].mxu0
    %1206 = vdwg.mxu0
    %1207 = vrot.lane.b32.xlu0 %v1062, 126
    %v1208 = vpop.permute.xlu0 %1207
    %1210 = vmatprep.subr.mxu0 0.0
    %1211 = vmatpush1.msra.mxu0 %v1208
    %1212 = vmatprep.subr.mxu0 0.0
    %1213 = vmatpush1.msra.mxu0 0.0
    %1214 = vmatprep.subr.mxu0 0.0
    %1215 = vmatpush1.msra.mxu0 0.0
    %1216 = vmatprep.subr.mxu0 0.0
    %1217 = vmatpush1.msra.mxu0 0.0
    %1218 = vmatprep.subr.mxu0 0.0
    %1219 = vmatpush1.msra.mxu0 0.0
    %1220 = vmatprep.subr.mxu0 0.0
    %1221 = vmatpush1.msra.mxu0 0.0
    %1222 = vmatprep.subr.mxu0 0.0
    %1223 = vmatpush1.msra.mxu0 0.0
    %1224 = vmatprep.subr.mxu0 0.0
    %1225 = vmatpush1.msra.mxu0 0.0
    %1226 = vmatprep.subr.mxu0 0.0
    %1227 = vmatpush1.msra.mxu0 0.0
    %1228 = vmatprep.subr.mxu0 0.0
    %1229 = vmatpush1.msra.mxu0 0.0
    %1230 = vmatprep.subr.mxu0 0.0
    %1231 = vmatpush1.msra.mxu0 0.0
    %1232 = vmatprep.subr.mxu0 0.0
    %1233 = vmatpush1.msra.mxu0 0.0
    %1234 = vmatprep.subr.mxu0 0.0
    %1235 = vmatpush1.msra.mxu0 0.0
    %1236 = vmatprep.subr.mxu0 0.0
    %1237 = vmatpush1.msra.mxu0 0.0
    %1238 = vmatprep.subr.mxu0 0.0
    %1239 = vmatpush1.msra.mxu0 0.0
    %1240 = vmatprep.subr.mxu0 0.0
    %1241 = vmatpush1.msra.mxu0 0.0
    %1242 = vmatprep.subr.mxu0 0.0
    %1243 = vmatpush1.msra.mxu0 0.0
    %1244 = vmatprep.subr.mxu0 0.0
    %1245 = vmatpush1.msra.mxu0 0.0
    %1246 = vmatprep.subr.mxu0 0.0
    %1247 = vmatpush1.msra.mxu0 0.0
    %1248 = vmatprep.subr.mxu0 0.0
    %1249 = vmatpush1.msra.mxu0 0.0
    %1250 = vmatprep.subr.mxu0 0.0
    %1251 = vmatpush1.msra.mxu0 0.0
    %1252 = vmatprep.subr.mxu0 0.0
    %1253 = vmatpush1.msra.mxu0 0.0
    %1254 = vmatprep.subr.mxu0 0.0
    %1255 = vmatpush1.msra.mxu0 0.0
    %1256 = vmatprep.subr.mxu0 0.0
    %1257 = vmatpush1.msra.mxu0 0.0
    %1258 = vmatprep.subr.mxu0 0.0
    %1259 = vmatpush1.msra.mxu0 0.0
    %1260 = vmatprep.subr.mxu0 0.0
    %1261 = vmatpush1.msra.mxu0 0.0
    %1262 = vmatprep.subr.mxu0 0.0
    %1263 = vmatpush1.msra.mxu0 0.0
    %1264 = vmatprep.subr.mxu0 0.0
    %1265 = vmatpush1.msra.mxu0 0.0
    %1266 = vmatprep.subr.mxu0 0.0
    %1267 = vmatpush1.msra.mxu0 0.0
    %1268 = vmatprep.subr.mxu0 0.0
    %1269 = vmatpush1.msra.mxu0 0.0
    %1270 = vmatprep.subr.mxu0 0.0
    %1271 = vmatpush1.msra.mxu0 0.0
    %1272 = vmatprep.subr.mxu0 0.0
    %1273 = vmatpush1.msra.mxu0 0.0
    %1274 = vmatprep.mubr.f32.mxu0 0.0
    %1275 = vmatmul.mubr.f32.gmra.mrb[0].mxu0 %v489
    %v1276 = vpop.f32.mrb[0].mxu0
    %v1277 = vadd.f32 0.0, %v1276
    %v1278 = vpop.f32.mrb[0].mxu0
    %1279 = vdwg.mxu0
    %v1280 = vadd.f32 %v1204, %v1277
    %v1281 = vadd.f32 %v1280, %v566
    %v1282 = vmax.f32 %v1281, 0.0
    %v1284 = vsel %vm579, %v1282, 0
    %1286 = vmatprep.subr.mxu0 0.0
    %1287 = vmatpush1.msra.mxu0 %v570
    %1288 = vmatprep.subr.mxu0 0.0
    %1289 = vmatpush1.msra.mxu0 %v585
    %1290 = vmatprep.subr.mxu0 0.0
    %1291 = vmatpush1.msra.mxu0 0.0
    %1292 = vmatprep.subr.mxu0 0.0
    %1293 = vmatpush1.msra.mxu0 0.0
    %1294 = vmatprep.subr.mxu0 0.0
    %1295 = vmatpush1.msra.mxu0 0.0
    %1296 = vmatprep.subr.mxu0 0.0
    %1297 = vmatpush1.msra.mxu0 0.0
    %1298 = vmatprep.subr.mxu0 0.0
    %1299 = vmatpush1.msra.mxu0 0.0
    %1300 = vmatprep.subr.mxu0 0.0
    %1301 = vmatpush1.msra.mxu0 0.0
    %1302 = vmatprep.subr.mxu0 0.0
    %1303 = vmatpush1.msra.mxu0 0.0
    %1304 = vmatprep.subr.mxu0 0.0
    %1305 = vmatpush1.msra.mxu0 0.0
    %1306 = vmatprep.subr.mxu0 0.0
    %1307 = vmatpush1.msra.mxu0 0.0
    %1308 = vmatprep.subr.mxu0 0.0
    %1309 = vmatpush1.msra.mxu0 0.0
    %1310 = vmatprep.subr.mxu0 0.0
    %1311 = vmatpush1.msra.mxu0 0.0
    %1312 = vmatprep.subr.mxu0 0.0
    %1313 = vmatpush1.msra.mxu0 0.0
    %1314 = vmatprep.subr.mxu0 0.0
    %1315 = vmatpush1.msra.mxu0 0.0
    %1316 = vmatprep.subr.mxu0 0.0
    %1317 = vmatpush1.msra.mxu0 0.0
    %1318 = vmatprep.subr.mxu0 0.0
    %1319 = vmatpush1.msra.mxu0 0.0
    %1320 = vmatprep.subr.mxu0 0.0
    %1321 = vmatpush1.msra.mxu0 0.0
    %1322 = vmatprep.subr.mxu0 0.0
    %1323 = vmatpush1.msra.mxu0 0.0
    %1324 = vmatprep.subr.mxu0 0.0
    %1325 = vmatpush1.msra.mxu0 0.0
    %1326 = vmatprep.subr.mxu0 0.0
    %1327 = vmatpush1.msra.mxu0 0.0
    %1328 = vmatprep.subr.mxu0 0.0
    %1329 = vmatpush1.msra.mxu0 0.0
    %1330 = vmatprep.subr.mxu0 0.0
    %1331 = vmatpush1.msra.mxu0 0.0
    %1332 = vmatprep.subr.mxu0 0.0
    %1333 = vmatpush1.msra.mxu0 0.0
    %1334 = vmatprep.subr.mxu0 0.0
    %1335 = vmatpush1.msra.mxu0 0.0
    %1336 = vmatprep.subr.mxu0 0.0
    %1337 = vmatpush1.msra.mxu0 0.0
    %1338 = vmatprep.subr.mxu0 0.0
    %1339 = vmatpush1.msra.mxu0 0.0
    %1340 = vmatprep.subr.mxu0 0.0
    %1341 = vmatpush1.msra.mxu0 0.0
    %1342 = vmatprep.subr.mxu0 0.0
    %1343 = vmatpush1.msra.mxu0 0.0
    %1344 = vmatprep.subr.mxu0 0.0
    %1345 = vmatpush1.msra.mxu0 0.0
    %1346 = vmatprep.subr.mxu0 0.0
    %1347 = vmatpush1.msra.mxu0 0.0
    %1348 = vmatprep.subr.mxu0 0.0
    %1349 = vmatpush1.msra.mxu0 0.0
    %1350 = vmatprep.mubr.f32.mxu0 0.0
    %1351 = vmatmul.mubr.f32.gmra.mrb[0].mxu0 %v1284
    %v1352 = vpop.f32.mrb[0].mxu0
    %v1353 = vadd.f32 %v577, %v1352
    %v1354 = vpop.f32.mrb[0].mxu0
    %1355 = vdwg.mxu0
    %1356 = vrot.lane.b32.xlu0 %v825, 112
    %v1357 = vpop.permute.xlu0 %1356
    %v1358 = vsel %vm661, %v1357, 0
    %1360 = vmatprep.subr.mxu0 0.0
    %1361 = vmatpush1.msra.mxu0 %v666
    %1362 = vmatprep.subr.mxu0 0.0
    %1363 = vmatpush1.msra.mxu0 0.0
    %1364 = vmatprep.subr.mxu0 0.0
    %1365 = vmatpush1.msra.mxu0 0.0
    %1366 = vmatprep.subr.mxu0 0.0
    %1367 = vmatpush1.msra.mxu0 0.0
    %1368 = vmatprep.subr.mxu0 0.0
    %1369 = vmatpush1.msra.mxu0 0.0
    %1370 = vmatprep.subr.mxu0 0.0
    %1371 = vmatpush1.msra.mxu0 0.0
    %1372 = vmatprep.subr.mxu0 0.0
    %1373 = vmatpush1.msra.mxu0 0.0
    %1374 = vmatprep.subr.mxu0 0.0
    %1375 = vmatpush1.msra.mxu0 0.0
    %1376 = vmatprep.subr.mxu0 0.0
    %1377 = vmatpush1.msra.mxu0 0.0
    %1378 = vmatprep.subr.mxu0 0.0
    %1379 = vmatpush1.msra.mxu0 0.0
    %1380 = vmatprep.subr.mxu0 0.0
    %1381 = vmatpush1.msra.mxu0 0.0
    %1382 = vmatprep.subr.mxu0 0.0
    %1383 = vmatpush1.msra.mxu0 0.0
    %1384 = vmatprep.subr.mxu0 0.0
    %1385 = vmatpush1.msra.mxu0 0.0
    %1386 = vmatprep.subr.mxu0 0.0
    %1387 = vmatpush1.msra.mxu0 0.0
    %1388 = vmatprep.subr.mxu0 0.0
    %1389 = vmatpush1.msra.mxu0 0.0
    %1390 = vmatprep.subr.mxu0 0.0
    %1391 = vmatpush1.msra.mxu0 0.0
    %1392 = vmatprep.subr.mxu0 0.0
    %1393 = vmatpush1.msra.mxu0 0.0
    %1394 = vmatprep.subr.mxu0 0.0
    %1395 = vmatpush1.msra.mxu0 0.0
    %1396 = vmatprep.subr.mxu0 0.0
    %1397 = vmatpush1.msra.mxu0 0.0
    %1398 = vmatprep.subr.mxu0 0.0
    %1399 = vmatpush1.msra.mxu0 0.0
    %1400 = vmatprep.subr.mxu0 0.0
    %1401 = vmatpush1.msra.mxu0 0.0
    %1402 = vmatprep.subr.mxu0 0.0
    %1403 = vmatpush1.msra.mxu0 0.0
    %1404 = vmatprep.subr.mxu0 0.0
    %1405 = vmatpush1.msra.mxu0 0.0
    %1406 = vmatprep.subr.mxu0 0.0
    %1407 = vmatpush1.msra.mxu0 0.0
    %1408 = vmatprep.subr.mxu0 0.0
    %1409 = vmatpush1.msra.mxu0 0.0
    %1410 = vmatprep.subr.mxu0 0.0
    %1411 = vmatpush1.msra.mxu0 0.0
    %1412 = vmatprep.subr.mxu0 0.0
    %1413 = vmatpush1.msra.mxu0 0.0
    %1414 = vmatprep.subr.mxu0 0.0
    %1415 = vmatpush1.msra.mxu0 0.0
    %1416 = vmatprep.subr.mxu0 0.0
    %1417 = vmatpush1.msra.mxu0 0.0
    %1418 = vmatprep.subr.mxu0 0.0
    %1419 = vmatpush1.msra.mxu0 0.0
    %1420 = vmatprep.subr.mxu0 0.0
    %1421 = vmatpush1.msra.mxu0 0.0
    %1422 = vmatprep.subr.mxu0 0.0
    %1423 = vmatpush1.msra.mxu0 0.0
    %1424 = vmatprep.mubr.f32.mxu0 0.0
    %1425 = vmatmul.mubr.f32.gmra.mrb[0].mxu0 %v1358
    %v1426 = vpop.f32.mrb[0].mxu0
    %v1427 = vadd.f32 0.0, %v1426
    %v1428 = vpop.f32.mrb[0].mxu0
    %1429 = vdwg.mxu0
    %v1431 = vsel %vm738, %v1353, 0
    %1433 = vmatprep.subr.mxu0 0.0
    %1434 = vmatpush1.msra.mxu0 %v744
    %1435 = vmatprep.subr.mxu0 0.0
    %1436 = vmatpush1.msra.mxu0 0.0
    %1437 = vmatprep.subr.mxu0 0.0
    %1438 = vmatpush1.msra.mxu0 0.0
    %1439 = vmatprep.subr.mxu0 0.0
    %1440 = vmatpush1.msra.mxu0 0.0
    %1441 = vmatprep.subr.mxu0 0.0
    %1442 = vmatpush1.msra.mxu0 0.0
    %1443 = vmatprep.subr.mxu0 0.0
    %1444 = vmatpush1.msra.mxu0 0.0
    %1445 = vmatprep.subr.mxu0 0.0
    %1446 = vmatpush1.msra.mxu0 0.0
    %1447 = vmatprep.subr.mxu0 0.0
    %1448 = vmatpush1.msra.mxu0 0.0
    %1449 = vmatprep.subr.mxu0 0.0
    %1450 = vmatpush1.msra.mxu0 0.0
    %1451 = vmatprep.subr.mxu0 0.0
    %1452 = vmatpush1.msra.mxu0 0.0
    %1453 = vmatprep.subr.mxu0 0.0
    %1454 = vmatpush1.msra.mxu0 0.0
    %1455 = vmatprep.subr.mxu0 0.0
    %1456 = vmatpush1.msra.mxu0 0.0
    %1457 = vmatprep.subr.mxu0 0.0
    %1458 = vmatpush1.msra.mxu0 0.0
    %1459 = vmatprep.subr.mxu0 0.0
    %1460 = vmatpush1.msra.mxu0 0.0
    %1461 = vmatprep.subr.mxu0 0.0
    %1462 = vmatpush1.msra.mxu0 0.0
    %1463 = vmatprep.subr.mxu0 0.0
    %1464 = vmatpush1.msra.mxu0 0.0
    %1465 = vmatprep.subr.mxu0 0.0
    %1466 = vmatpush1.msra.mxu0 0.0
    %1467 = vmatprep.subr.mxu0 0.0
    %1468 = vmatpush1.msra.mxu0 0.0
    %1469 = vmatprep.subr.mxu0 0.0
    %1470 = vmatpush1.msra.mxu0 0.0
    %1471 = vmatprep.subr.mxu0 0.0
    %1472 = vmatpush1.msra.mxu0 0.0
    %1473 = vmatprep.subr.mxu0 0.0
    %1474 = vmatpush1.msra.mxu0 0.0
    %1475 = vmatprep.subr.mxu0 0.0
    %1476 = vmatpush1.msra.mxu0 0.0
    %1477 = vmatprep.subr.mxu0 0.0
    %1478 = vmatpush1.msra.mxu0 0.0
    %1479 = vmatprep.subr.mxu0 0.0
    %1480 = vmatpush1.msra.mxu0 0.0
    %1481 = vmatprep.subr.mxu0 0.0
    %1482 = vmatpush1.msra.mxu0 0.0
    %1483 = vmatprep.subr.mxu0 0.0
    %1484 = vmatpush1.msra.mxu0 0.0
    %1485 = vmatprep.subr.mxu0 0.0
    %1486 = vmatpush1.msra.mxu0 0.0
    %1487 = vmatprep.subr.mxu0 0.0
    %1488 = vmatpush1.msra.mxu0 0.0
    %1489 = vmatprep.subr.mxu0 0.0
    %1490 = vmatpush1.msra.mxu0 0.0
    %1491 = vmatprep.subr.mxu0 0.0
    %1492 = vmatpush1.msra.mxu0 0.0
    %1493 = vmatprep.subr.mxu0 0.0
    %1494 = vmatpush1.msra.mxu0 0.0
    %1495 = vmatprep.subr.mxu0 0.0
    %1496 = vmatpush1.msra.mxu0 0.0
    %1497 = vmatprep.mubr.f32.mxu0 0.0
    %1498 = vmatmul.mubr.f32.gmra.mrb[0].mxu0 %v1431
    %v1499 = vpop.f32.mrb[0].mxu0
    %v1500 = vadd.f32 %v1427, %v1499
    %v1501 = vpop.f32.mrb[0].mxu0
    %1502 = vdwg.mxu0
    %v1503 = vadd.f32 %v1500, %v821
    %v1505 = vrot.slane %v1503, 7
    %vm1507 = vcmask 1040384
    %v1508 = vsel %vm1507, %v823, %v1505
    %v1509 = vld [vmem:[%s9] sm:$0xff]
    %v1510 = vld [vmem:[%s9 + $0x8] sm:$0xff]
    %v1511 = vld [vmem:[%s9 + $0x10] sm:$0xff]
    %v1512 = vld [vmem:[%s9 + $0x18] sm:$0xff]
    %v1514 = vsel %vm65, 0.0, 0
    %1516 = vmatprep.subr.mxu0 0.0
    %1517 = vmatpush1.msra.mxu0 %v1509
    %1518 = vmatprep.subr.mxu0 0.0
    %1519 = vmatpush1.msra.mxu0 %v1510
    %1520 = vmatprep.subr.mxu0 0.0
    %1521 = vmatpush1.msra.mxu0 %v1511
    %1522 = vmatprep.subr.mxu0 0.0
    %1523 = vmatpush1.msra.mxu0 %v1512
    %1524 = vmatprep.subr.mxu0 0.0
    %1525 = vmatpush1.msra.mxu0 0.0
    %1526 = vmatprep.subr.mxu0 0.0
    %1527 = vmatpush1.msra.mxu0 0.0
    %1528 = vmatprep.subr.mxu0 0.0
    %1529 = vmatpush1.msra.mxu0 0.0
    %1530 = vmatprep.subr.mxu0 0.0
    %1531 = vmatpush1.msra.mxu0 0.0
    %1532 = vmatprep.subr.mxu0 0.0
    %1533 = vmatpush1.msra.mxu0 0.0
    %1534 = vmatprep.subr.mxu0 0.0
    %1535 = vmatpush1.msra.mxu0 0.0
    %1536 = vmatprep.subr.mxu0 0.0
    %1537 = vmatpush1.msra.mxu0 0.0
    %1538 = vmatprep.subr.mxu0 0.0
    %1539 = vmatpush1.msra.mxu0 0.0
    %1540 = vmatprep.subr.mxu0 0.0
    %1541 = vmatpush1.msra.mxu0 0.0
    %1542 = vmatprep.subr.mxu0 0.0
    %1543 = vmatpush1.msra.mxu0 0.0
    %1544 = vmatprep.subr.mxu0 0.0
    %1545 = vmatpush1.msra.mxu0 0.0
    %1546 = vmatprep.subr.mxu0 0.0
    %1547 = vmatpush1.msra.mxu0 0.0
    %1548 = vmatprep.subr.mxu0 0.0
    %1549 = vmatpush1.msra.mxu0 0.0
    %1550 = vmatprep.subr.mxu0 0.0
    %1551 = vmatpush1.msra.mxu0 0.0
    %1552 = vmatprep.subr.mxu0 0.0
    %1553 = vmatpush1.msra.mxu0 0.0
    %1554 = vmatprep.subr.mxu0 0.0
    %1555 = vmatpush1.msra.mxu0 0.0
    %1556 = vmatprep.subr.mxu0 0.0
    %1557 = vmatpush1.msra.mxu0 0.0
    %1558 = vmatprep.subr.mxu0 0.0
    %1559 = vmatpush1.msra.mxu0 0.0
    %1560 = vmatprep.subr.mxu0 0.0
    %1561 = vmatpush1.msra.mxu0 0.0
    %1562 = vmatprep.subr.mxu0 0.0
    %1563 = vmatpush1.msra.mxu0 0.0
    %1564 = vmatprep.subr.mxu0 0.0
    %1565 = vmatpush1.msra.mxu0 0.0
    %1566 = vmatprep.subr.mxu0 0.0
    %1567 = vmatpush1.msra.mxu0 0.0
    %1568 = vmatprep.subr.mxu0 0.0
    %1569 = vmatpush1.msra.mxu0 0.0
    %1570 = vmatprep.subr.mxu0 0.0
    %1571 = vmatpush1.msra.mxu0 0.0
    %1572 = vmatprep.subr.mxu0 0.0
    %1573 = vmatpush1.msra.mxu0 0.0
    %1574 = vmatprep.subr.mxu0 0.0
    %1575 = vmatpush1.msra.mxu0 0.0
    %1576 = vmatprep.subr.mxu0 0.0
    %1577 = vmatpush1.msra.mxu0 0.0
    %1578 = vmatprep.subr.mxu0 0.0
    %1579 = vmatpush1.msra.mxu0 0.0
    %1580 = vmatprep.mubr.f32.mxu0 0.0
    %1581 = vmatmul.mubr.f32.gmra.mrb[0].mxu0 %v1514
    %v1582 = vpop.f32.mrb[0].mxu0
    %v1583 = vadd.f32 0.0, %v1582
    %v1584 = vpop.f32.mrb[0].mxu0
    %1585 = vdwg.mxu0
    %v1586 = vadd.f32 %v1508, %v1583
    %v1587 = vxor.u32 %v1586, 2147483648
    %v1588 = vmul.f32 %v1587, 1.442695
    %v1589 = vpow.pop %v1588
    %v1590 = vadd.f32 %v1589, 1.0
    %v1591 = vrcp.pop %v1590
    %v1592 = vmul.f32 1.0, %v1591
    %v1593 = vtanh.pop %v1586
    %v1594 = vmul.f32 %v1592, 0.0
    %1596 = vrot.lane.b32.xlu0 %v1593, 64
    %v1597 = vpop.permute.xlu0 %1596
    %v1599 = vmul.f32 %v1592, %v1597
    %1601 = vrot.lane.b32.xlu0 %v1599, 32
    %v1602 = vpop.permute.xlu0 %1601
    %v1604 = vadd.f32 %v1594, %v1602
    %v1605 = vtanh.pop %v1604
    %1607 = vrot.lane.b32.xlu0 %v1605, 64
    %v1608 = vpop.permute.xlu0 %1607
    %v1610 = vmul.f32 %v1592, %v1608
    %1612 = vrot.lane.b32.xlu0 %v1610, 32
    %v1613 = vpop.permute.xlu0 %1612
    %vm1615 = vcmask 253952
    %1616 = vst.msk [vmem:[#allocation2] sm:$0x1] %vm1615, %v1613
    %s1617 = scalar_lea.vmem [#allocation2], 16
    %vm1618 = vcmask 254977
    %1619 = vst.msk [vmem:[%s1617 - $0x1] sm:$0x2] %vm1618, %v1613
    %v1621 = vrot.slane %v823, 1
    %v1623 = vsel %vm1507, %v1621, %v1503
    %v1624 = vld [vmem:[%s9] sm:$0xff]
    %v1625 = vld [vmem:[%s9 + $0x8] sm:$0xff]
    %v1626 = vld [vmem:[%s9 + $0x10] sm:$0xff]
    %v1627 = vld [vmem:[%s9 + $0x18] sm:$0xff]
    %v1628 = vsel %vm65, %v1613, 0
    %1630 = vmatprep.subr.mxu0 0.0
    %1631 = vmatpush1.msra.mxu0 %v1624
    %1632 = vmatprep.subr.mxu0 0.0
    %1633 = vmatpush1.msra.mxu0 %v1625
    %1634 = vmatprep.subr.mxu0 0.0
    %1635 = vmatpush1.msra.mxu0 %v1626
    %1636 = vmatprep.subr.mxu0 0.0
    %1637 = vmatpush1.msra.mxu0 %v1627
    %1638 = vmatprep.subr.mxu0 0.0
    %1639 = vmatpush1.msra.mxu0 0.0
    %1640 = vmatprep.subr.mxu0 0.0
    %1641 = vmatpush1.msra.mxu0 0.0
    %1642 = vmatprep.subr.mxu0 0.0
    %1643 = vmatpush1.msra.mxu0 0.0
    %1644 = vmatprep.subr.mxu0 0.0
    %1645 = vmatpush1.msra.mxu0 0.0
    %1646 = vmatprep.subr.mxu0 0.0
    %1647 = vmatpush1.msra.mxu0 0.0
    %1648 = vmatprep.subr.mxu0 0.0
    %1649 = vmatpush1.msra.mxu0 0.0
    %1650 = vmatprep.subr.mxu0 0.0
    %1651 = vmatpush1.msra.mxu0 0.0
    %1652 = vmatprep.subr.mxu0 0.0
    %1653 = vmatpush1.msra.mxu0 0.0
    %1654 = vmatprep.subr.mxu0 0.0
    %1655 = vmatpush1.msra.mxu0 0.0
    %1656 = vmatprep.subr.mxu0 0.0
    %1657 = vmatpush1.msra.mxu0 0.0
    %1658 = vmatprep.subr.mxu0 0.0
    %1659 = vmatpush1.msra.mxu0 0.0
    %1660 = vmatprep.subr.mxu0 0.0
    %1661 = vmatpush1.msra.mxu0 0.0
    %1662 = vmatprep.subr.mxu0 0.0
    %1663 = vmatpush1.msra.mxu0 0.0
    %1664 = vmatprep.subr.mxu0 0.0
    %1665 = vmatpush1.msra.mxu0 0.0
    %1666 = vmatprep.subr.mxu0 0.0
    %1667 = vmatpush1.msra.mxu0 0.0
    %1668 = vmatprep.subr.mxu0 0.0
    %1669 = vmatpush1.msra.mxu0 0.0
    %1670 = vmatprep.subr.mxu0 0.0
    %1671 = vmatpush1.msra.mxu0 0.0
    %1672 = vmatprep.subr.mxu0 0.0
    %1673 = vmatpush1.msra.mxu0 0.0
    %1674 = vmatprep.subr.mxu0 0.0
    %1675 = vmatpush1.msra.mxu0 0.0
    %1676 = vmatprep.subr.mxu0 0.0
    %1677 = vmatpush1.msra.mxu0 0.0
    %1678 = vmatprep.subr.mxu0 0.0
    %1679 = vmatpush1.msra.mxu0 0.0
    %1680 = vmatprep.subr.mxu0 0.0
    %1681 = vmatpush1.msra.mxu0 0.0
    %1682 = vmatprep.subr.mxu0 0.0
    %1683 = vmatpush1.msra.mxu0 0.0
    %1684 = vmatprep.subr.mxu0 0.0
    %1685 = vmatpush1.msra.mxu0 0.0
    %1686 = vmatprep.subr.mxu0 0.0
    %1687 = vmatpush1.msra.mxu0 0.0
    %1688 = vmatprep.subr.mxu0 0.0
    %1689 = vmatpush1.msra.mxu0 0.0
    %1690 = vmatprep.subr.mxu0 0.0
    %1691 = vmatpush1.msra.mxu0 0.0
    %1692 = vmatprep.subr.mxu0 0.0
    %1693 = vmatpush1.msra.mxu0 0.0
    %1694 = vmatprep.mubr.f32.mxu0 0.0
    %1695 = vmatmul.mubr.f32.gmra.mrb[0].mxu0 %v1628
    %v1696 = vpop.f32.mrb[0].mxu0
    %v1697 = vadd.f32 0.0, %v1696
    %v1698 = vpop.f32.mrb[0].mxu0
    %1699 = vdwg.mxu0
    %v1700 = vadd.f32 %v1623, %v1697
    %v1701 = vxor.u32 %v1700, 2147483648
    %v1702 = vmul.f32 %v1701, 1.442695
    %v1703 = vpow.pop %v1702
    %v1704 = vadd.f32 %v1703, 1.0
    %v1705 = vrcp.pop %v1704
    %v1706 = vmul.f32 1.0, %v1705
    %v1707 = vtanh.pop %v1700
    %v1708 = vmul.f32 %v1706, %v1604
    %1710 = vrot.lane.b32.xlu0 %v1707, 64
    %v1711 = vpop.permute.xlu0 %1710
    %v1713 = vmul.f32 %v1706, %v1711
    %1715 = vrot.lane.b32.xlu0 %v1713, 32
    %v1716 = vpop.permute.xlu0 %1715
    %v1718 = vadd.f32 %v1708, %v1716
    %v1719 = vtanh.pop %v1718
    %1721 = vrot.lane.b32.xlu0 %v1719, 64
    %v1722 = vpop.permute.xlu0 %1721
    %v1724 = vmul.f32 %v1706, %v1722
    %1726 = vrot.lane.b32.xlu0 %v1724, 32
    %v1727 = vpop.permute.xlu0 %1726
    %1729 = vst.msk [vmem:[#allocation2 + $0x1] sm:$0x1] %vm1615, %v1727
    %1730 = vst.msk [vmem:[%s1617] sm:$0x2] %vm1618, %v1727
    %v1731 = vrot.slane %v823, 2
    %v1733 = vrot.slane %v1503, 1
    %v1735 = vsel %vm1507, %v1731, %v1733
    %v1736 = vld [vmem:[%s9] sm:$0xff]
    %v1737 = vld [vmem:[%s9 + $0x8] sm:$0xff]
    %v1738 = vld [vmem:[%s9 + $0x10] sm:$0xff]
    %v1739 = vld [vmem:[%s9 + $0x18] sm:$0xff]
    %v1740 = vsel %vm65, %v1727, 0
    %1742 = vmatprep.subr.mxu0 0.0
    %1743 = vmatpush1.msra.mxu0 %v1736
    %1744 = vmatprep.subr.mxu0 0.0
    %1745 = vmatpush1.msra.mxu0 %v1737
    %1746 = vmatprep.subr.mxu0 0.0
    %1747 = vmatpush1.msra.mxu0 %v1738
    %1748 = vmatprep.subr.mxu0 0.0
    %1749 = vmatpush1.msra.mxu0 %v1739
    %1750 = vmatprep.subr.mxu0 0.0
    %1751 = vmatpush1.msra.mxu0 0.0
    %1752 = vmatprep.subr.mxu0 0.0
    %1753 = vmatpush1.msra.mxu0 0.0
    %1754 = vmatprep.subr.mxu0 0.0
    %1755 = vmatpush1.msra.mxu0 0.0
    %1756 = vmatprep.subr.mxu0 0.0
    %1757 = vmatpush1.msra.mxu0 0.0
    %1758 = vmatprep.subr.mxu0 0.0
    %1759 = vmatpush1.msra.mxu0 0.0
    %1760 = vmatprep.subr.mxu0 0.0
    %1761 = vmatpush1.msra.mxu0 0.0
    %1762 = vmatprep.subr.mxu0 0.0
    %1763 = vmatpush1.msra.mxu0 0.0
    %1764 = vmatprep.subr.mxu0 0.0
    %1765 = vmatpush1.msra.mxu0 0.0
    %1766 = vmatprep.subr.mxu0 0.0
    %1767 = vmatpush1.msra.mxu0 0.0
    %1768 = vmatprep.subr.mxu0 0.0
    %1769 = vmatpush1.msra.mxu0 0.0
    %1770 = vmatprep.subr.mxu0 0.0
    %1771 = vmatpush1.msra.mxu0 0.0
    %1772 = vmatprep.subr.mxu0 0.0
    %1773 = vmatpush1.msra.mxu0 0.0
    %1774 = vmatprep.subr.mxu0 0.0
    %1775 = vmatpush1.msra.mxu0 0.0
    %1776 = vmatprep.subr.mxu0 0.0
    %1777 = vmatpush1.msra.mxu0 0.0
    %1778 = vmatprep.subr.mxu0 0.0
    %1779 = vmatpush1.msra.mxu0 0.0
    %1780 = vmatprep.subr.mxu0 0.0
    %1781 = vmatpush1.msra.mxu0 0.0
    %1782 = vmatprep.subr.mxu0 0.0
    %1783 = vmatpush1.msra.mxu0 0.0
    %1784 = vmatprep.subr.mxu0 0.0
    %1785 = vmatpush1.msra.mxu0 0.0
    %1786 = vmatprep.subr.mxu0 0.0
    %1787 = vmatpush1.msra.mxu0 0.0
    %1788 = vmatprep.subr.mxu0 0.0
    %1789 = vmatpush1.msra.mxu0 0.0
    %1790 = vmatprep.subr.mxu0 0.0
    %1791 = vmatpush1.msra.mxu0 0.0
    %1792 = vmatprep.subr.mxu0 0.0
    %1793 = vmatpush1.msra.mxu0 0.0
    %1794 = vmatprep.subr.mxu0 0.0
    %1795 = vmatpush1.msra.mxu0 0.0
    %1796 = vmatprep.subr.mxu0 0.0
    %1797 = vmatpush1.msra.mxu0 0.0
    %1798 = vmatprep.subr.mxu0 0.0
    %1799 = vmatpush1.msra.mxu0 0.0
    %1800 = vmatprep.subr.mxu0 0.0
    %1801 = vmatpush1.msra.mxu0 0.0
    %1802 = vmatprep.subr.mxu0 0.0
    %1803 = vmatpush1.msra.mxu0 0.0
    %1804 = vmatprep.subr.mxu0 0.0
    %1805 = vmatpush1.msra.mxu0 0.0
    %1806 = vmatprep.mubr.f32.mxu0 0.0
    %1807 = vmatmul.mubr.f32.gmra.mrb[0].mxu0 %v1740
    %v1808 = vpop.f32.mrb[0].mxu0
    %v1809 = vadd.f32 0.0, %v1808
    %v1810 = vpop.f32.mrb[0].mxu0
    %1811 = vdwg.mxu0
    %v1812 = vadd.f32 %v1735, %v1809
    %v1813 = vxor.u32 %v1812, 2147483648
    %v1814 = vmul.f32 %v1813, 1.442695
    %v1815 = vpow.pop %v1814
    %v1816 = vadd.f32 %v1815, 1.0
    %v1817 = vrcp.pop %v1816
    %v1818 = vmul.f32 1.0, %v1817
    %v1819 = vtanh.pop %v1812
    %v1820 = vmul.f32 %v1818, %v1718
    %1822 = vrot.lane.b32.xlu0 %v1819, 64
    %v1823 = vpop.permute.xlu0 %1822
    %v1825 = vmul.f32 %v1818, %v1823
    %1827 = vrot.lane.b32.xlu0 %v1825, 32
    %v1828 = vpop.permute.xlu0 %1827
    %v1830 = vadd.f32 %v1820, %v1828
    %v1831 = vtanh.pop %v1830
    %1833 = vrot.lane.b32.xlu0 %v1831, 64
    %v1834 = vpop.permute.xlu0 %1833
    %v1836 = vmul.f32 %v1818, %v1834
    %1838 = vrot.lane.b32.xlu0 %v1836, 32
    %v1839 = vpop.permute.xlu0 %1838
    %1841 = vst.msk [vmem:[#allocation2 + $0x2] sm:$0x1] %vm1615, %v1839
    %1842 = vst.msk [vmem:[%s1617 + $0x1] sm:$0x2] %vm1618, %v1839
    %v1843 = vrot.slane %v823, 3
    %v1845 = vrot.slane %v1503, 2
    %v1847 = vsel %vm1507, %v1843, %v1845
    %v1848 = vld [vmem:[%s9] sm:$0xff]
    %v1849 = vld [vmem:[%s9 + $0x8] sm:$0xff]
    %v1850 = vld [vmem:[%s9 + $0x10] sm:$0xff]
    %v1851 = vld [vmem:[%s9 + $0x18] sm:$0xff]
    %v1852 = vsel %vm65, %v1839, 0
    %1854 = vmatprep.subr.mxu0 0.0
    %1855 = vmatpush1.msra.mxu0 %v1848
    %1856 = vmatprep.subr.mxu0 0.0
    %1857 = vmatpush1.msra.mxu0 %v1849
    %1858 = vmatprep.subr.mxu0 0.0
    %1859 = vmatpush1.msra.mxu0 %v1850
    %1860 = vmatprep.subr.mxu0 0.0
    %1861 = vmatpush1.msra.mxu0 %v1851
    %1862 = vmatprep.subr.mxu0 0.0
    %1863 = vmatpush1.msra.mxu0 0.0
    %1864 = vmatprep.subr.mxu0 0.0
    %1865 = vmatpush1.msra.mxu0 0.0
    %1866 = vmatprep.subr.mxu0 0.0
    %1867 = vmatpush1.msra.mxu0 0.0
    %1868 = vmatprep.subr.mxu0 0.0
    %1869 = vmatpush1.msra.mxu0 0.0
    %1870 = vmatprep.subr.mxu0 0.0
    %1871 = vmatpush1.msra.mxu0 0.0
    %1872 = vmatprep.subr.mxu0 0.0
    %1873 = vmatpush1.msra.mxu0 0.0
    %1874 = vmatprep.subr.mxu0 0.0
    %1875 = vmatpush1.msra.mxu0 0.0
    %1876 = vmatprep.subr.mxu0 0.0
    %1877 = vmatpush1.msra.mxu0 0.0
    %1878 = vmatprep.subr.mxu0 0.0
    %1879 = vmatpush1.msra.mxu0 0.0
    %1880 = vmatprep.subr.mxu0 0.0
    %1881 = vmatpush1.msra.mxu0 0.0
    %1882 = vmatprep.subr.mxu0 0.0
    %1883 = vmatpush1.msra.mxu0 0.0
    %1884 = vmatprep.subr.mxu0 0.0
    %1885 = vmatpush1.msra.mxu0 0.0
    %1886 = vmatprep.subr.mxu0 0.0
    %1887 = vmatpush1.msra.mxu0 0.0
    %1888 = vmatprep.subr.mxu0 0.0
    %1889 = vmatpush1.msra.mxu0 0.0
    %1890 = vmatprep.subr.mxu0 0.0
    %1891 = vmatpush1.msra.mxu0 0.0
    %1892 = vmatprep.subr.mxu0 0.0
    %1893 = vmatpush1.msra.mxu0 0.0
    %1894 = vmatprep.subr.mxu0 0.0
    %1895 = vmatpush1.msra.mxu0 0.0
    %1896 = vmatprep.subr.mxu0 0.0
    %1897 = vmatpush1.msra.mxu0 0.0
    %1898 = vmatprep.subr.mxu0 0.0
    %1899 = vmatpush1.msra.mxu0 0.0
    %1900 = vmatprep.subr.mxu0 0.0
    %1901 = vmatpush1.msra.mxu0 0.0
    %1902 = vmatprep.subr.mxu0 0.0
    %1903 = vmatpush1.msra.mxu0 0.0
    %1904 = vmatprep.subr.mxu0 0.0
    %1905 = vmatpush1.msra.mxu0 0.0
    %1906 = vmatprep.subr.mxu0 0.0
    %1907 = vmatpush1.msra.mxu0 0.0
    %1908 = vmatprep.subr.mxu0 0.0
    %1909 = vmatpush1.msra.mxu0 0.0
    %1910 = vmatprep.subr.mxu0 0.0
    %1911 = vmatpush1.msra.mxu0 0.0
    %1912 = vmatprep.subr.mxu0 0.0
    %1913 = vmatpush1.msra.mxu0 0.0
    %1914 = vmatprep.subr.mxu0 0.0
    %1915 = vmatpush1.msra.mxu0 0.0
    %1916 = vmatprep.subr.mxu0 0.0
    %1917 = vmatpush1.msra.mxu0 0.0
    %1918 = vmatprep.mubr.f32.mxu0 0.0
    %1919 = vmatmul.mubr.f32.gmra.mrb[0].mxu0 %v1852
    %v1920 = vpop.f32.mrb[0].mxu0
    %v1921 = vadd.f32 0.0, %v1920
    %v1922 = vpop.f32.mrb[0].mxu0
    %1923 = vdwg.mxu0
    %v1924 = vadd.f32 %v1847, %v1921
    %v1925 = vxor.u32 %v1924, 2147483648
    %v1926 = vmul.f32 %v1925, 1.442695
    %v1927 = vpow.pop %v1926
    %v1928 = vadd.f32 %v1927, 1.0
    %v1929 = vrcp.pop %v1928
    %v1930 = vmul.f32 1.0, %v1929
    %v1931 = vtanh.pop %v1924
    %v1932 = vmul.f32 %v1930, %v1830
    %1934 = vrot.lane.b32.xlu0 %v1931, 64
    %v1935 = vpop.permute.xlu0 %1934
    %v1937 = vmul.f32 %v1930, %v1935
    %1939 = vrot.lane.b32.xlu0 %v1937, 32
    %v1940 = vpop.permute.xlu0 %1939
    %v1942 = vadd.f32 %v1932, %v1940
    %v1943 = vtanh.pop %v1942
    %1945 = vrot.lane.b32.xlu0 %v1943, 64
    %v1946 = vpop.permute.xlu0 %1945
    %v1948 = vmul.f32 %v1930, %v1946
    %1950 = vrot.lane.b32.xlu0 %v1948, 32
    %v1951 = vpop.permute.xlu0 %1950
    %1953 = vst.msk [vmem:[#allocation2 + $0x3] sm:$0x1] %vm1615, %v1951
    %1954 = vst.msk [vmem:[%s1617 + $0x2] sm:$0x2] %vm1618, %v1951
    %v1955 = vrot.slane %v823, 4
    %v1957 = vrot.slane %v1503, 3
    %v1959 = vsel %vm1507, %v1955, %v1957
    %v1960 = vld [vmem:[%s9] sm:$0xff]
    %v1961 = vld [vmem:[%s9 + $0x8] sm:$0xff]
    %v1962 = vld [vmem:[%s9 + $0x10] sm:$0xff]
    %v1963 = vld [vmem:[%s9 + $0x18] sm:$0xff]
    %v1964 = vsel %vm65, %v1951, 0
    %1966 = vmatprep.subr.mxu0 0.0
    %1967 = vmatpush1.msra.mxu0 %v1960
    %1968 = vmatprep.subr.mxu0 0.0
    %1969 = vmatpush1.msra.mxu0 %v1961
    %1970 = vmatprep.subr.mxu0 0.0
    %1971 = vmatpush1.msra.mxu0 %v1962
    %1972 = vmatprep.subr.mxu0 0.0
    %1973 = vmatpush1.msra.mxu0 %v1963
    %1974 = vmatprep.subr.mxu0 0.0
    %1975 = vmatpush1.msra.mxu0 0.0
    %1976 = vmatprep.subr.mxu0 0.0
    %1977 = vmatpush1.msra.mxu0 0.0
    %1978 = vmatprep.subr.mxu0 0.0
    %1979 = vmatpush1.msra.mxu0 0.0
    %1980 = vmatprep.subr.mxu0 0.0
    %1981 = vmatpush1.msra.mxu0 0.0
    %1982 = vmatprep.subr.mxu0 0.0
    %1983 = vmatpush1.msra.mxu0 0.0
    %1984 = vmatprep.subr.mxu0 0.0
    %1985 = vmatpush1.msra.mxu0 0.0
    %1986 = vmatprep.subr.mxu0 0.0
    %1987 = vmatpush1.msra.mxu0 0.0
    %1988 = vmatprep.subr.mxu0 0.0
    %1989 = vmatpush1.msra.mxu0 0.0
    %1990 = vmatprep.subr.mxu0 0.0
    %1991 = vmatpush1.msra.mxu0 0.0
    %1992 = vmatprep.subr.mxu0 0.0
    %1993 = vmatpush1.msra.mxu0 0.0
    %1994 = vmatprep.subr.mxu0 0.0
    %1995 = vmatpush1.msra.mxu0 0.0
    %1996 = vmatprep.subr.mxu0 0.0
    %1997 = vmatpush1.msra.mxu0 0.0
    %1998 = vmatprep.subr.mxu0 0.0
    %1999 = vmatpush1.msra.mxu0 0.0
    %2000 = vmatprep.subr.mxu0 0.0
    %2001 = vmatpush1.msra.mxu0 0.0
    %2002 = vmatprep.subr.mxu0 0.0
    %2003 = vmatpush1.msra.mxu0 0.0
    %2004 = vmatprep.subr.mxu0 0.0
    %2005 = vmatpush1.msra.mxu0 0.0
    %2006 = vmatprep.subr.mxu0 0.0
    %2007 = vmatpush1.msra.mxu0 0.0
    %2008 = vmatprep.subr.mxu0 0.0
    %2009 = vmatpush1.msra.mxu0 0.0
    %2010 = vmatprep.subr.mxu0 0.0
    %2011 = vmatpush1.msra.mxu0 0.0
    %2012 = vmatprep.subr.mxu0 0.0
    %2013 = vmatpush1.msra.mxu0 0.0
    %2014 = vmatprep.subr.mxu0 0.0
    %2015 = vmatpush1.msra.mxu0 0.0
    %2016 = vmatprep.subr.mxu0 0.0
    %2017 = vmatpush1.msra.mxu0 0.0
    %2018 = vmatprep.subr.mxu0 0.0
    %2019 = vmatpush1.msra.mxu0 0.0
    %2020 = vmatprep.subr.mxu0 0.0
    %2021 = vmatpush1.msra.mxu0 0.0
    %2022 = vmatprep.subr.mxu0 0.0
    %2023 = vmatpush1.msra.mxu0 0.0
    %2024 = vmatprep.subr.mxu0 0.0
    %2025 = vmatpush1.msra.mxu0 0.0
    %2026 = vmatprep.subr.mxu0 0.0
    %2027 = vmatpush1.msra.mxu0 0.0
    %2028 = vmatprep.subr.mxu0 0.0
    %2029 = vmatpush1.msra.mxu0 0.0
    %2030 = vmatprep.mubr.f32.mxu0 0.0
    %2031 = vmatmul.mubr.f32.gmra.mrb[0].mxu0 %v1964
    %v2032 = vpop.f32.mrb[0].mxu0
    %v2033 = vadd.f32 0.0, %v2032
    %v2034 = vpop.f32.mrb[0].mxu0
    %2035 = vdwg.mxu0
    %v2036 = vadd.f32 %v1959, %v2033
    %v2037 = vxor.u32 %v2036, 2147483648
    %v2038 = vmul.f32 %v2037, 1.442695
    %v2039 = vpow.pop %v2038
    %v2040 = vadd.f32 %v2039, 1.0
    %v2041 = vrcp.pop %v2040
    %v2042 = vmul.f32 1.0, %v2041
    %v2043 = vtanh.pop %v2036
    %v2044 = vmul.f32 %v2042, %v1942
    %2046 = vrot.lane.b32.xlu0 %v2043, 64
    %v2047 = vpop.permute.xlu0 %2046
    %v2049 = vmul.f32 %v2042, %v2047
    %2051 = vrot.lane.b32.xlu0 %v2049, 32
    %v2052 = vpop.permute.xlu0 %2051
    %v2054 = vadd.f32 %v2044, %v2052
    %v2055 = vtanh.pop %v2054
    %2057 = vrot.lane.b32.xlu0 %v2055, 64
    %v2058 = vpop.permute.xlu0 %2057
    %v2060 = vmul.f32 %v2042, %v2058
    %2062 = vrot.lane.b32.xlu0 %v2060, 32
    %v2063 = vpop.permute.xlu0 %2062
    %2065 = vst.msk [vmem:[#allocation2 + $0x4] sm:$0x1] %vm1615, %v2063
    %2066 = vst.msk [vmem:[%s1617 + $0x3] sm:$0x2] %vm1618, %v2063
    %v2067 = vrot.slane %v823, 5
    %v2069 = vrot.slane %v1503, 4
    %v2071 = vsel %vm1507, %v2067, %v2069
    %v2072 = vld [vmem:[%s9] sm:$0xff]
    %v2073 = vld [vmem:[%s9 + $0x8] sm:$0xff]
    %v2074 = vld [vmem:[%s9 + $0x10] sm:$0xff]
    %v2075 = vld [vmem:[%s9 + $0x18] sm:$0xff]
    %v2076 = vsel %vm65, %v2063, 0
    %2078 = vmatprep.subr.mxu0 0.0
    %2079 = vmatpush1.msra.mxu0 %v2072
    %2080 = vmatprep.subr.mxu0 0.0
    %2081 = vmatpush1.msra.mxu0 %v2073
    %2082 = vmatprep.subr.mxu0 0.0
    %2083 = vmatpush1.msra.mxu0 %v2074
    %2084 = vmatprep.subr.mxu0 0.0
    %2085 = vmatpush1.msra.mxu0 %v2075
    %2086 = vmatprep.subr.mxu0 0.0
    %2087 = vmatpush1.msra.mxu0 0.0
    %2088 = vmatprep.subr.mxu0 0.0
    %2089 = vmatpush1.msra.mxu0 0.0
    %2090 = vmatprep.subr.mxu0 0.0
    %2091 = vmatpush1.msra.mxu0 0.0
    %2092 = vmatprep.subr.mxu0 0.0
    %2093 = vmatpush1.msra.mxu0 0.0
    %2094 = vmatprep.subr.mxu0 0.0
    %2095 = vmatpush1.msra.mxu0 0.0
    %2096 = vmatprep.subr.mxu0 0.0
    %2097 = vmatpush1.msra.mxu0 0.0
    %2098 = vmatprep.subr.mxu0 0.0
    %2099 = vmatpush1.msra.mxu0 0.0
    %2100 = vmatprep.subr.mxu0 0.0
    %2101 = vmatpush1.msra.mxu0 0.0
    %2102 = vmatprep.subr.mxu0 0.0
    %2103 = vmatpush1.msra.mxu0 0.0
    %2104 = vmatprep.subr.mxu0 0.0
    %2105 = vmatpush1.msra.mxu0 0.0
    %2106 = vmatprep.subr.mxu0 0.0
    %2107 = vmatpush1.msra.mxu0 0.0
    %2108 = vmatprep.subr.mxu0 0.0
    %2109 = vmatpush1.msra.mxu0 0.0
    %2110 = vmatprep.subr.mxu0 0.0
    %2111 = vmatpush1.msra.mxu0 0.0
    %2112 = vmatprep.subr.mxu0 0.0
    %2113 = vmatpush1.msra.mxu0 0.0
    %2114 = vmatprep.subr.mxu0 0.0
    %2115 = vmatpush1.msra.mxu0 0.0
    %2116 = vmatprep.subr.mxu0 0.0
    %2117 = vmatpush1.msra.mxu0 0.0
    %2118 = vmatprep.subr.mxu0 0.0
    %2119 = vmatpush1.msra.mxu0 0.0
    %2120 = vmatprep.subr.mxu0 0.0
    %2121 = vmatpush1.msra.mxu0 0.0
    %2122 = vmatprep.subr.mxu0 0.0
    %2123 = vmatpush1.msra.mxu0 0.0
    %2124 = vmatprep.subr.mxu0 0.0
    %2125 = vmatpush1.msra.mxu0 0.0
    %2126 = vmatprep.subr.mxu0 0.0
    %2127 = vmatpush1.msra.mxu0 0.0
    %2128 = vmatprep.subr.mxu0 0.0
    %2129 = vmatpush1.msra.mxu0 0.0
    %2130 = vmatprep.subr.mxu0 0.0
    %2131 = vmatpush1.msra.mxu0 0.0
    %2132 = vmatprep.subr.mxu0 0.0
    %2133 = vmatpush1.msra.mxu0 0.0
    %2134 = vmatprep.subr.mxu0 0.0
    %2135 = vmatpush1.msra.mxu0 0.0
    %2136 = vmatprep.subr.mxu0 0.0
    %2137 = vmatpush1.msra.mxu0 0.0
    %2138 = vmatprep.subr.mxu0 0.0
    %2139 = vmatpush1.msra.mxu0 0.0
    %2140 = vmatprep.subr.mxu0 0.0
    %2141 = vmatpush1.msra.mxu0 0.0
    %2142 = vmatprep.mubr.f32.mxu0 0.0
    %2143 = vmatmul.mubr.f32.gmra.mrb[0].mxu0 %v2076
    %v2144 = vpop.f32.mrb[0].mxu0
    %v2145 = vadd.f32 0.0, %v2144
    %v2146 = vpop.f32.mrb[0].mxu0
    %2147 = vdwg.mxu0
    %v2148 = vadd.f32 %v2071, %v2145
    %v2149 = vxor.u32 %v2148, 2147483648
    %v2150 = vmul.f32 %v2149, 1.442695
    %v2151 = vpow.pop %v2150
    %v2152 = vadd.f32 %v2151, 1.0
    %v2153 = vrcp.pop %v2152
    %v2154 = vmul.f32 1.0, %v2153
    %v2155 = vtanh.pop %v2148
    %v2156 = vmul.f32 %v2154, %v2054
    %2158 = vrot.lane.b32.xlu0 %v2155, 64
    %v2159 = vpop.permute.xlu0 %2158
    %v2161 = vmul.f32 %v2154, %v2159
    %2163 = vrot.lane.b32.xlu0 %v2161, 32
    %v2164 = vpop.permute.xlu0 %2163
    %v2166 = vadd.f32 %v2156, %v2164
    %v2167 = vtanh.pop %v2166
    %2169 = vrot.lane.b32.xlu0 %v2167, 64
    %v2170 = vpop.permute.xlu0 %2169
    %v2172 = vmul.f32 %v2154, %v2170
    %2174 = vrot.lane.b32.xlu0 %v2172, 32
    %v2175 = vpop.permute.xlu0 %2174
    %2177 = vst.msk [vmem:[#allocation2 + $0x5] sm:$0x1] %vm1615, %v2175
    %2178 = vst.msk [vmem:[%s1617 + $0x4] sm:$0x2] %vm1618, %v2175
    %v2179 = vrot.slane %v823, 6
    %v2181 = vrot.slane %v1503, 5
    %v2183 = vsel %vm1507, %v2179, %v2181
    %v2184 = vld [vmem:[%s9] sm:$0xff]
    %v2185 = vld [vmem:[%s9 + $0x8] sm:$0xff]
    %v2186 = vld [vmem:[%s9 + $0x10] sm:$0xff]
    %v2187 = vld [vmem:[%s9 + $0x18] sm:$0xff]
    %v2188 = vsel %vm65, %v2175, 0
    %2190 = vmatprep.subr.mxu0 0.0
    %2191 = vmatpush1.msra.mxu0 %v2184
    %2192 = vmatprep.subr.mxu0 0.0
    %2193 = vmatpush1.msra.mxu0 %v2185
    %2194 = vmatprep.subr.mxu0 0.0
    %2195 = vmatpush1.msra.mxu0 %v2186
    %2196 = vmatprep.subr.mxu0 0.0
    %2197 = vmatpush1.msra.mxu0 %v2187
    %2198 = vmatprep.subr.mxu0 0.0
    %2199 = vmatpush1.msra.mxu0 0.0
    %2200 = vmatprep.subr.mxu0 0.0
    %2201 = vmatpush1.msra.mxu0 0.0
    %2202 = vmatprep.subr.mxu0 0.0
    %2203 = vmatpush1.msra.mxu0 0.0
    %2204 = vmatprep.subr.mxu0 0.0
    %2205 = vmatpush1.msra.mxu0 0.0
    %2206 = vmatprep.subr.mxu0 0.0
    %2207 = vmatpush1.msra.mxu0 0.0
    %2208 = vmatprep.subr.mxu0 0.0
    %2209 = vmatpush1.msra.mxu0 0.0
    %2210 = vmatprep.subr.mxu0 0.0
    %2211 = vmatpush1.msra.mxu0 0.0
    %2212 = vmatprep.subr.mxu0 0.0
    %2213 = vmatpush1.msra.mxu0 0.0
    %2214 = vmatprep.subr.mxu0 0.0
    %2215 = vmatpush1.msra.mxu0 0.0
    %2216 = vmatprep.subr.mxu0 0.0
    %2217 = vmatpush1.msra.mxu0 0.0
    %2218 = vmatprep.subr.mxu0 0.0
    %2219 = vmatpush1.msra.mxu0 0.0
    %2220 = vmatprep.subr.mxu0 0.0
    %2221 = vmatpush1.msra.mxu0 0.0
    %2222 = vmatprep.subr.mxu0 0.0
    %2223 = vmatpush1.msra.mxu0 0.0
    %2224 = vmatprep.subr.mxu0 0.0
    %2225 = vmatpush1.msra.mxu0 0.0
    %2226 = vmatprep.subr.mxu0 0.0
    %2227 = vmatpush1.msra.mxu0 0.0
    %2228 = vmatprep.subr.mxu0 0.0
    %2229 = vmatpush1.msra.mxu0 0.0
    %2230 = vmatprep.subr.mxu0 0.0
    %2231 = vmatpush1.msra.mxu0 0.0
    %2232 = vmatprep.subr.mxu0 0.0
    %2233 = vmatpush1.msra.mxu0 0.0
    %2234 = vmatprep.subr.mxu0 0.0
    %2235 = vmatpush1.msra.mxu0 0.0
    %2236 = vmatprep.subr.mxu0 0.0
    %2237 = vmatpush1.msra.mxu0 0.0
    %2238 = vmatprep.subr.mxu0 0.0
    %2239 = vmatpush1.msra.mxu0 0.0
    %2240 = vmatprep.subr.mxu0 0.0
    %2241 = vmatpush1.msra.mxu0 0.0
    %2242 = vmatprep.subr.mxu0 0.0
    %2243 = vmatpush1.msra.mxu0 0.0
    %2244 = vmatprep.subr.mxu0 0.0
    %2245 = vmatpush1.msra.mxu0 0.0
    %2246 = vmatprep.subr.mxu0 0.0
    %2247 = vmatpush1.msra.mxu0 0.0
    %2248 = vmatprep.subr.mxu0 0.0
    %2249 = vmatpush1.msra.mxu0 0.0
    %2250 = vmatprep.subr.mxu0 0.0
    %2251 = vmatpush1.msra.mxu0 0.0
    %2252 = vmatprep.subr.mxu0 0.0
    %2253 = vmatpush1.msra.mxu0 0.0
    %2254 = vmatprep.mubr.f32.mxu0 0.0
    %2255 = vmatmul.mubr.f32.gmra.mrb[0].mxu0 %v2188
    %v2256 = vpop.f32.mrb[0].mxu0
    %v2257 = vadd.f32 0.0, %v2256
    %v2258 = vpop.f32.mrb[0].mxu0
    %2259 = vdwg.mxu0
    %v2260 = vadd.f32 %v2183, %v2257
    %v2261 = vxor.u32 %v2260, 2147483648
    %v2262 = vmul.f32 %v2261, 1.442695
    %v2263 = vpow.pop %v2262
    %v2264 = vadd.f32 %v2263, 1.0
    %v2265 = vrcp.pop %v2264
    %v2266 = vmul.f32 1.0, %v2265
    %v2267 = vtanh.pop %v2260
    %v2268 = vmul.f32 %v2266, %v2166
    %2270 = vrot.lane.b32.xlu0 %v2267, 64
    %v2271 = vpop.permute.xlu0 %2270
    %v2273 = vmul.f32 %v2266, %v2271
    %2275 = vrot.lane.b32.xlu0 %v2273, 32
    %v2276 = vpop.permute.xlu0 %2275
    %v2278 = vadd.f32 %v2268, %v2276
    %v2279 = vtanh.pop %v2278
    %2281 = vrot.lane.b32.xlu0 %v2279, 64
    %v2282 = vpop.permute.xlu0 %2281
    %v2284 = vmul.f32 %v2266, %v2282
    %2286 = vrot.lane.b32.xlu0 %v2284, 32
    %v2287 = vpop.permute.xlu0 %2286
    %2289 = vst.msk [vmem:[#allocation2 + $0x6] sm:$0x1] %vm1615, %v2287
    %2290 = vst.msk [vmem:[%s1617 + $0x5] sm:$0x2] %vm1618, %v2287
    %v2291 = vrot.slane %v823, 7
    %v2293 = vrot.slane %v1503, 6
    %v2295 = vsel %vm1507, %v2291, %v2293
    %v2296 = vld [vmem:[%s9] sm:$0xff]
    %v2297 = vld [vmem:[%s9 + $0x8] sm:$0xff]
    %v2298 = vld [vmem:[%s9 + $0x10] sm:$0xff]
    %v2299 = vld [vmem:[%s9 + $0x18] sm:$0xff]
    %v2300 = vsel %vm65, %v2287, 0
    %2302 = vmatprep.subr.mxu0 0.0
    %2303 = vmatpush1.msra.mxu0 %v2296
    %2304 = vmatprep.subr.mxu0 0.0
    %2305 = vmatpush1.msra.mxu0 %v2297
    %2306 = vmatprep.subr.mxu0 0.0
    %2307 = vmatpush1.msra.mxu0 %v2298
    %2308 = vmatprep.subr.mxu0 0.0
    %2309 = vmatpush1.msra.mxu0 %v2299
    %2310 = vmatprep.subr.mxu0 0.0
    %2311 = vmatpush1.msra.mxu0 0.0
    %2312 = vmatprep.subr.mxu0 0.0
    %2313 = vmatpush1.msra.mxu0 0.0
    %2314 = vmatprep.subr.mxu0 0.0
    %2315 = vmatpush1.msra.mxu0 0.0
    %2316 = vmatprep.subr.mxu0 0.0
    %2317 = vmatpush1.msra.mxu0 0.0
    %2318 = vmatprep.subr.mxu0 0.0
    %2319 = vmatpush1.msra.mxu0 0.0
    %2320 = vmatprep.subr.mxu0 0.0
    %2321 = vmatpush1.msra.mxu0 0.0
    %2322 = vmatprep.subr.mxu0 0.0
    %2323 = vmatpush1.msra.mxu0 0.0
    %2324 = vmatprep.subr.mxu0 0.0
    %2325 = vmatpush1.msra.mxu0 0.0
    %2326 = vmatprep.subr.mxu0 0.0
    %2327 = vmatpush1.msra.mxu0 0.0
    %2328 = vmatprep.subr.mxu0 0.0
    %2329 = vmatpush1.msra.mxu0 0.0
    %2330 = vmatprep.subr.mxu0 0.0
    %2331 = vmatpush1.msra.mxu0 0.0
    %2332 = vmatprep.subr.mxu0 0.0
    %2333 = vmatpush1.msra.mxu0 0.0
    %2334 = vmatprep.subr.mxu0 0.0
    %2335 = vmatpush1.msra.mxu0 0.0
    %2336 = vmatprep.subr.mxu0 0.0
    %2337 = vmatpush1.msra.mxu0 0.0
    %2338 = vmatprep.subr.mxu0 0.0
    %2339 = vmatpush1.msra.mxu0 0.0
    %2340 = vmatprep.subr.mxu0 0.0
    %2341 = vmatpush1.msra.mxu0 0.0
    %2342 = vmatprep.subr.mxu0 0.0
    %2343 = vmatpush1.msra.mxu0 0.0
    %2344 = vmatprep.subr.mxu0 0.0
    %2345 = vmatpush1.msra.mxu0 0.0
    %2346 = vmatprep.subr.mxu0 0.0
    %2347 = vmatpush1.msra.mxu0 0.0
    %2348 = vmatprep.subr.mxu0 0.0
    %2349 = vmatpush1.msra.mxu0 0.0
    %2350 = vmatprep.subr.mxu0 0.0
    %2351 = vmatpush1.msra.mxu0 0.0
    %2352 = vmatprep.subr.mxu0 0.0
    %2353 = vmatpush1.msra.mxu0 0.0
    %2354 = vmatprep.subr.mxu0 0.0
    %2355 = vmatpush1.msra.mxu0 0.0
    %2356 = vmatprep.subr.mxu0 0.0
    %2357 = vmatpush1.msra.mxu0 0.0
    %2358 = vmatprep.subr.mxu0 0.0
    %2359 = vmatpush1.msra.mxu0 0.0
    %2360 = vmatprep.subr.mxu0 0.0
    %2361 = vmatpush1.msra.mxu0 0.0
    %2362 = vmatprep.subr.mxu0 0.0
    %2363 = vmatpush1.msra.mxu0 0.0
    %2364 = vmatprep.subr.mxu0 0.0
    %2365 = vmatpush1.msra.mxu0 0.0
    %2366 = vmatprep.mubr.f32.mxu0 0.0
    %2367 = vmatmul.mubr.f32.gmra.mrb[0].mxu0 %v2300
    %v2368 = vpop.f32.mrb[0].mxu0
    %v2369 = vadd.f32 0.0, %v2368
    %v2370 = vpop.f32.mrb[0].mxu0
    %2371 = vdwg.mxu0
    %v2372 = vadd.f32 %v2295, %v2369
    %v2373 = vxor.u32 %v2372, 2147483648
    %v2374 = vmul.f32 %v2373, 1.442695
    %v2375 = vpow.pop %v2374
    %v2376 = vadd.f32 %v2375, 1.0
    %v2377 = vrcp.pop %v2376
    %v2378 = vmul.f32 1.0, %v2377
    %v2379 = vtanh.pop %v2372
    %v2380 = vmul.f32 %v2378, %v2278
    %2382 = vrot.lane.b32.xlu0 %v2379, 64
    %v2383 = vpop.permute.xlu0 %2382
    %v2385 = vmul.f32 %v2378, %v2383
    %2387 = vrot.lane.b32.xlu0 %v2385, 32
    %v2388 = vpop.permute.xlu0 %2387
    %v2390 = vadd.f32 %v2380, %v2388
    %v2391 = vtanh.pop %v2390
    %2393 = vrot.lane.b32.xlu0 %v2391, 64
    %v2394 = vpop.permute.xlu0 %2393
    %v2396 = vmul.f32 %v2378, %v2394
    %v2397 = vld [vmem:[%s16] sm:$0xff]
    %v2398 = vld [vmem:[%s16 + $0x8] sm:$0xff]
    %v2399 = vld [vmem:[%s16 + $0x10] sm:$0xff]
    %v2400 = vld [vmem:[%s16 + $0x18] sm:$0xff]
    %v2401 = vld [vmem:[%s17] sm:$0xff]
    %v2402 = vld [vmem:[%s17 + $0x8] sm:$0xff]
    %v2403 = vld [vmem:[%s17 + $0x10] sm:$0xff]
    %v2404 = vld [vmem:[%s17 + $0x18] sm:$0xff]
    %v2405 = vld [vmem:[%s18] sm:$0xff]
    %v2406 = vld [vmem:[%s18 + $0x8] sm:$0xff]
    %2408 = vrot.lane.b32.xlu0 %v2396, 32
    %v2409 = vpop.permute.xlu0 %2408
    %2411 = vst.msk [vmem:[#allocation2 + $0x7] sm:$0x1] %vm1615, %v2409
    %2412 = vst.msk [vmem:[%s1617 + $0x6] sm:$0x2] %vm1618, %v2409
    %v2413 = vld [vmem:[#allocation2] sm:$0xff]
    %v2414 = vld [vmem:[#allocation2 + $0x8] sm:$0x7]
    %v2416 = vsel %vm65, %v2413, 0
    %v2419 = vsel %vm65, %v2414, 0
    %2421 = vmatprep.subr.mxu0 0.0
    %2422 = vmatpush1.msra.mxu0 %v2401
    %2423 = vmatprep.subr.mxu0 0.0
    %2424 = vmatpush1.msra.mxu0 %v2402
    %2425 = vmatprep.subr.mxu0 0.0
    %2426 = vmatpush1.msra.mxu0 %v2403
    %2427 = vmatprep.subr.mxu0 0.0
    %2428 = vmatpush1.msra.mxu0 %v2404
    %2429 = vmatprep.subr.mxu0 0.0
    %2430 = vmatpush1.msra.mxu0 0.0
    %2431 = vmatprep.subr.mxu0 0.0
    %2432 = vmatpush1.msra.mxu0 0.0
    %2433 = vmatprep.subr.mxu0 0.0
    %2434 = vmatpush1.msra.mxu0 0.0
    %2435 = vmatprep.subr.mxu0 0.0
    %2436 = vmatpush1.msra.mxu0 0.0
    %2437 = vmatprep.subr.mxu0 0.0
    %2438 = vmatpush1.msra.mxu0 0.0
    %2439 = vmatprep.subr.mxu0 0.0
    %2440 = vmatpush1.msra.mxu0 0.0
    %2441 = vmatprep.subr.mxu0 0.0
    %2442 = vmatpush1.msra.mxu0 0.0
    %2443 = vmatprep.subr.mxu0 0.0
    %2444 = vmatpush1.msra.mxu0 0.0
    %2445 = vmatprep.subr.mxu0 0.0
    %2446 = vmatpush1.msra.mxu0 0.0
    %2447 = vmatprep.subr.mxu0 0.0
    %2448 = vmatpush1.msra.mxu0 0.0
    %2449 = vmatprep.subr.mxu0 0.0
    %2450 = vmatpush1.msra.mxu0 0.0
    %2451 = vmatprep.subr.mxu0 0.0
    %2452 = vmatpush1.msra.mxu0 0.0
    %2453 = vmatprep.subr.mxu0 0.0
    %2454 = vmatpush1.msra.mxu0 0.0
    %2455 = vmatprep.subr.mxu0 0.0
    %2456 = vmatpush1.msra.mxu0 0.0
    %2457 = vmatprep.subr.mxu0 0.0
    %2458 = vmatpush1.msra.mxu0 0.0
    %2459 = vmatprep.subr.mxu0 0.0
    %2460 = vmatpush1.msra.mxu0 0.0
    %2461 = vmatprep.subr.mxu0 0.0
    %2462 = vmatpush1.msra.mxu0 0.0
    %2463 = vmatprep.subr.mxu0 0.0
    %2464 = vmatpush1.msra.mxu0 0.0
    %2465 = vmatprep.subr.mxu0 0.0
    %2466 = vmatpush1.msra.mxu0 0.0
    %2467 = vmatprep.subr.mxu0 0.0
    %2468 = vmatpush1.msra.mxu0 0.0
    %2469 = vmatprep.subr.mxu0 0.0
    %2470 = vmatpush1.msra.mxu0 0.0
    %2471 = vmatprep.subr.mxu0 0.0
    %2472 = vmatpush1.msra.mxu0 0.0
    %2473 = vmatprep.subr.mxu0 0.0
    %2474 = vmatpush1.msra.mxu0 0.0
    %2475 = vmatprep.subr.mxu0 0.0
    %2476 = vmatpush1.msra.mxu0 0.0
    %2477 = vmatprep.subr.mxu0 0.0
    %2478 = vmatpush1.msra.mxu0 0.0
    %2479 = vmatprep.subr.mxu0 0.0
    %2480 = vmatpush1.msra.mxu0 0.0
    %2481 = vmatprep.subr.mxu0 0.0
    %2482 = vmatpush1.msra.mxu0 0.0
    %2483 = vmatprep.subr.mxu0 0.0
    %2484 = vmatpush1.msra.mxu0 0.0
    %2485 = vmatprep.mubr.f32.mxu0 0.0
    %2486 = vmatmul.mubr.f32.gmra.mrb[0].mxu0 %v2416
    %v2487 = vpop.f32.mrb[0].mxu0
    %v2488 = vadd.f32 0.0, %v2487
    %v2489 = vpop.f32.mrb[0].mxu0
    %2490 = vmatprep.mubr.f32.mxu0 0.0
    %2491 = vmatmul.mubr.f32.gmra.mrb[0].mxu0 %v2419
    %v2492 = vpop.f32.mrb[0].mxu0
    %v2493 = vadd.f32 0.0, %v2492
    %v2494 = vpop.f32.mrb[0].mxu0
    %2495 = vdwg.mxu0
    %v2496 = vsel %vm65, %v2409, 0
    %2498 = vmatprep.subr.mxu0 0.0
    %2499 = vmatpush1.msra.mxu0 %v2397
    %2500 = vmatprep.subr.mxu0 0.0
    %2501 = vmatpush1.msra.mxu0 %v2398
    %2502 = vmatprep.subr.mxu0 0.0
    %2503 = vmatpush1.msra.mxu0 %v2399
    %2504 = vmatprep.subr.mxu0 0.0
    %2505 = vmatpush1.msra.mxu0 %v2400
    %2506 = vmatprep.subr.mxu0 0.0
    %2507 = vmatpush1.msra.mxu0 0.0
    %2508 = vmatprep.subr.mxu0 0.0
    %2509 = vmatpush1.msra.mxu0 0.0
    %2510 = vmatprep.subr.mxu0 0.0
    %2511 = vmatpush1.msra.mxu0 0.0
    %2512 = vmatprep.subr.mxu0 0.0
    %2513 = vmatpush1.msra.mxu0 0.0
    %2514 = vmatprep.subr.mxu0 0.0
    %2515 = vmatpush1.msra.mxu0 0.0
    %2516 = vmatprep.subr.mxu0 0.0
    %2517 = vmatpush1.msra.mxu0 0.0
    %2518 = vmatprep.subr.mxu0 0.0
    %2519 = vmatpush1.msra.mxu0 0.0
    %2520 = vmatprep.subr.mxu0 0.0
    %2521 = vmatpush1.msra.mxu0 0.0
    %2522 = vmatprep.subr.mxu0 0.0
    %2523 = vmatpush1.msra.mxu0 0.0
    %2524 = vmatprep.subr.mxu0 0.0
    %2525 = vmatpush1.msra.mxu0 0.0
    %2526 = vmatprep.subr.mxu0 0.0
    %2527 = vmatpush1.msra.mxu0 0.0
    %2528 = vmatprep.subr.mxu0 0.0
    %2529 = vmatpush1.msra.mxu0 0.0
    %2530 = vmatprep.subr.mxu0 0.0
    %2531 = vmatpush1.msra.mxu0 0.0
    %2532 = vmatprep.subr.mxu0 0.0
    %2533 = vmatpush1.msra.mxu0 0.0
    %2534 = vmatprep.subr.mxu0 0.0
    %2535 = vmatpush1.msra.mxu0 0.0
    %2536 = vmatprep.subr.mxu0 0.0
    %2537 = vmatpush1.msra.mxu0 0.0
    %2538 = vmatprep.subr.mxu0 0.0
    %2539 = vmatpush1.msra.mxu0 0.0
    %2540 = vmatprep.subr.mxu0 0.0
    %2541 = vmatpush1.msra.mxu0 0.0
    %2542 = vmatprep.subr.mxu0 0.0
    %2543 = vmatpush1.msra.mxu0 0.0
    %2544 = vmatprep.subr.mxu0 0.0
    %2545 = vmatpush1.msra.mxu0 0.0
    %2546 = vmatprep.subr.mxu0 0.0
    %2547 = vmatpush1.msra.mxu0 0.0
    %2548 = vmatprep.subr.mxu0 0.0
    %2549 = vmatpush1.msra.mxu0 0.0
    %2550 = vmatprep.subr.mxu0 0.0
    %2551 = vmatpush1.msra.mxu0 0.0
    %2552 = vmatprep.subr.mxu0 0.0
    %2553 = vmatpush1.msra.mxu0 0.0
    %2554 = vmatprep.subr.mxu0 0.0
    %2555 = vmatpush1.msra.mxu0 0.0
    %2556 = vmatprep.subr.mxu0 0.0
    %2557 = vmatpush1.msra.mxu0 0.0
    %2558 = vmatprep.subr.mxu0 0.0
    %2559 = vmatpush1.msra.mxu0 0.0
    %2560 = vmatprep.subr.mxu0 0.0
    %2561 = vmatpush1.msra.mxu0 0.0
    %2562 = vmatprep.mubr.f32.mxu0 0.0
    %2563 = vmatmul.mubr.f32.gmra.mrb[0].mxu0 %v2496
    %v2564 = vpop.f32.mrb[0].mxu0
    %v2565 = vadd.f32 0.0, %v2564
    %v2566 = vpop.f32.mrb[0].mxu0
    %2567 = vdwg.mxu0
    %2569 = vrot.lane.b32.xlu0 %v2390, 96
    %v2570 = vpop.permute.xlu0 %2569
    %v2571 = vsel %vm65, %v2570, 0
    %2573 = vmatprep.subr.mxu0 0.0
    %2574 = vmatpush1.msra.mxu0 %v2397
    %2575 = vmatprep.subr.mxu0 0.0
    %2576 = vmatpush1.msra.mxu0 %v2398
    %2577 = vmatprep.subr.mxu0 0.0
    %2578 = vmatpush1.msra.mxu0 %v2399
    %2579 = vmatprep.subr.mxu0 0.0
    %2580 = vmatpush1.msra.mxu0 %v2400
    %2581 = vmatprep.subr.mxu0 0.0
    %2582 = vmatpush1.msra.mxu0 0.0
    %2583 = vmatprep.subr.mxu0 0.0
    %2584 = vmatpush1.msra.mxu0 0.0
    %2585 = vmatprep.subr.mxu0 0.0
    %2586 = vmatpush1.msra.mxu0 0.0
    %2587 = vmatprep.subr.mxu0 0.0
    %2588 = vmatpush1.msra.mxu0 0.0
    %2589 = vmatprep.subr.mxu0 0.0
    %2590 = vmatpush1.msra.mxu0 0.0
    %2591 = vmatprep.subr.mxu0 0.0
    %2592 = vmatpush1.msra.mxu0 0.0
    %2593 = vmatprep.subr.mxu0 0.0
    %2594 = vmatpush1.msra.mxu0 0.0
    %2595 = vmatprep.subr.mxu0 0.0
    %2596 = vmatpush1.msra.mxu0 0.0
    %2597 = vmatprep.subr.mxu0 0.0
    %2598 = vmatpush1.msra.mxu0 0.0
    %2599 = vmatprep.subr.mxu0 0.0
    %2600 = vmatpush1.msra.mxu0 0.0
    %2601 = vmatprep.subr.mxu0 0.0
    %2602 = vmatpush1.msra.mxu0 0.0
    %2603 = vmatprep.subr.mxu0 0.0
    %2604 = vmatpush1.msra.mxu0 0.0
    %2605 = vmatprep.subr.mxu0 0.0
    %2606 = vmatpush1.msra.mxu0 0.0
    %2607 = vmatprep.subr.mxu0 0.0
    %2608 = vmatpush1.msra.mxu0 0.0
    %2609 = vmatprep.subr.mxu0 0.0
    %2610 = vmatpush1.msra.mxu0 0.0
    %2611 = vmatprep.subr.mxu0 0.0
    %2612 = vmatpush1.msra.mxu0 0.0
    %2613 = vmatprep.subr.mxu0 0.0
    %2614 = vmatpush1.msra.mxu0 0.0
    %2615 = vmatprep.subr.mxu0 0.0
    %2616 = vmatpush1.msra.mxu0 0.0
    %2617 = vmatprep.subr.mxu0 0.0
    %2618 = vmatpush1.msra.mxu0 0.0
    %2619 = vmatprep.subr.mxu0 0.0
    %2620 = vmatpush1.msra.mxu0 0.0
    %2621 = vmatprep.subr.mxu0 0.0
    %2622 = vmatpush1.msra.mxu0 0.0
    %2623 = vmatprep.subr.mxu0 0.0
    %2624 = vmatpush1.msra.mxu0 0.0
    %2625 = vmatprep.subr.mxu0 0.0
    %2626 = vmatpush1.msra.mxu0 0.0
    %2627 = vmatprep.subr.mxu0 0.0
    %2628 = vmatpush1.msra.mxu0 0.0
    %2629 = vmatprep.subr.mxu0 0.0
    %2630 = vmatpush1.msra.mxu0 0.0
    %2631 = vmatprep.subr.mxu0 0.0
    %2632 = vmatpush1.msra.mxu0 0.0
    %2633 = vmatprep.subr.mxu0 0.0
    %2634 = vmatpush1.msra.mxu0 0.0
    %2635 = vmatprep.subr.mxu0 0.0
    %2636 = vmatpush1.msra.mxu0 0.0
    %2637 = vmatprep.mubr.f32.mxu0 0.0
    %2638 = vmatmul.mubr.f32.gmra.mrb[0].mxu0 %v2571
    %v2639 = vpop.f32.mrb[0].mxu0
    %v2640 = vadd.f32 0.0, %v2639
    %v2641 = vpop.f32.mrb[0].mxu0
    %2642 = vdwg.mxu0
    %v2643 = vlaneseq
    %v2644 = vshrl.u32 %v2643, 7
    %v2645 = vsub.s32 0, %v2644
    %v2646 = vrot.slane %v2565, %v2645
    %v2647 = vadd.f32 %v2488, %v2646
    %v2648 = vadd.f32 %v2493, %v2646
    %v2649 = vtanh.pop %v2647
    %v2650 = vtanh.pop %v2648
    %vm2651 = vcmask 130048
    %v2653 = vsel %vm2651, %v2649, 0
    %v2656 = vsel %vm2651, %v2650, 0
    %2658 = vmatprep.subr.mxu0 0.0
    %2659 = vmatpush1.msra.mxu0 %v2405
    %2660 = vmatprep.subr.mxu0 0.0
    %2661 = vmatpush1.msra.mxu0 %v2406
    %2662 = vmatprep.subr.mxu0 0.0
    %2663 = vmatpush1.msra.mxu0 0.0
    %2664 = vmatprep.subr.mxu0 0.0
    %2665 = vmatpush1.msra.mxu0 0.0
    %2666 = vmatprep.subr.mxu0 0.0
    %2667 = vmatpush1.msra.mxu0 0.0
    %2668 = vmatprep.subr.mxu0 0.0
    %2669 = vmatpush1.msra.mxu0 0.0
    %2670 = vmatprep.subr.mxu0 0.0
    %2671 = vmatpush1.msra.mxu0 0.0
    %2672 = vmatprep.subr.mxu0 0.0
    %2673 = vmatpush1.msra.mxu0 0.0
    %2674 = vmatprep.subr.mxu0 0.0
    %2675 = vmatpush1.msra.mxu0 0.0
    %2676 = vmatprep.subr.mxu0 0.0
    %2677 = vmatpush1.msra.mxu0 0.0
    %2678 = vmatprep.subr.mxu0 0.0
    %2679 = vmatpush1.msra.mxu0 0.0
    %2680 = vmatprep.subr.mxu0 0.0
    %2681 = vmatpush1.msra.mxu0 0.0
    %2682 = vmatprep.subr.mxu0 0.0
    %2683 = vmatpush1.msra.mxu0 0.0
    %2684 = vmatprep.subr.mxu0 0.0
    %2685 = vmatpush1.msra.mxu0 0.0
    %2686 = vmatprep.subr.mxu0 0.0
    %2687 = vmatpush1.msra.mxu0 0.0
    %2688 = vmatprep.subr.mxu0 0.0
    %2689 = vmatpush1.msra.mxu0 0.0
    %2690 = vmatprep.subr.mxu0 0.0
    %2691 = vmatpush1.msra.mxu0 0.0
    %2692 = vmatprep.subr.mxu0 0.0
    %2693 = vmatpush1.msra.mxu0 0.0
    %2694 = vmatprep.subr.mxu0 0.0
    %2695 = vmatpush1.msra.mxu0 0.0
    %2696 = vmatprep.subr.mxu0 0.0
    %2697 = vmatpush1.msra.mxu0 0.0
    %2698 = vmatprep.subr.mxu0 0.0
    %2699 = vmatpush1.msra.mxu0 0.0
    %2700 = vmatprep.subr.mxu0 0.0
    %2701 = vmatpush1.msra.mxu0 0.0
    %2702 = vmatprep.subr.mxu0 0.0
    %2703 = vmatpush1.msra.mxu0 0.0
    %2704 = vmatprep.subr.mxu0 0.0
    %2705 = vmatpush1.msra.mxu0 0.0
    %2706 = vmatprep.subr.mxu0 0.0
    %2707 = vmatpush1.msra.mxu0 0.0
    %2708 = vmatprep.subr.mxu0 0.0
    %2709 = vmatpush1.msra.mxu0 0.0
    %2710 = vmatprep.subr.mxu0 0.0
    %2711 = vmatpush1.msra.mxu0 0.0
    %2712 = vmatprep.subr.mxu0 0.0
    %2713 = vmatpush1.msra.mxu0 0.0
    %2714 = vmatprep.subr.mxu0 0.0
    %2715 = vmatpush1.msra.mxu0 0.0
    %2716 = vmatprep.subr.mxu0 0.0
    %2717 = vmatpush1.msra.mxu0 0.0
    %2718 = vmatprep.subr.mxu0 0.0
    %2719 = vmatpush1.msra.mxu0 0.0
    %2720 = vmatprep.subr.mxu0 0.0
    %2721 = vmatpush1.msra.mxu0 0.0
    %2722 = vmatprep.mubr.f32.mxu0 0.0
    %2723 = vmatmul.mubr.f32.gmra.mrb[0].mxu0 %v2653
    %v2724 = vpop.f32.mrb[0].mxu0
    %v2725 = vadd.f32 0.0, %v2724
    %v2726 = vpop.f32.mrb[0].mxu0
    %2727 = vmatprep.mubr.f32.mxu0 0.0
    %2728 = vmatmul.mubr.f32.gmra.mrb[0].mxu0 %v2656
    %v2729 = vpop.f32.mrb[0].mxu0
    %v2730 = vadd.f32 0.0, %v2729
    %v2731 = vpop.f32.mrb[0].mxu0
    %2732 = vdwg.mxu0
    %v2733 = vlaneseq
    %v2734 = vshrl.u32 %v2733, 7
    %v2735 = vsub.s32 0, %v2734
    %v2736 = vrot.slane %v2640, %v2735
    %v2737 = vadd.f32 %v2488, %v2736
    %v2738 = vadd.f32 %v2493, %v2736
    %v2739 = vtanh.pop %v2737
    %v2740 = vtanh.pop %v2738
    %v2742 = vsel %vm2651, %v2739, 0
    %v2745 = vsel %vm2651, %v2740, 0
    %2747 = vmatprep.subr.mxu0 0.0
    %2748 = vmatpush1.msra.mxu0 %v2405
    %2749 = vmatprep.subr.mxu0 0.0
    %2750 = vmatpush1.msra.mxu0 %v2406
    %2751 = vmatprep.subr.mxu0 0.0
    %2752 = vmatpush1.msra.mxu0 0.0
    %2753 = vmatprep.subr.mxu0 0.0
    %2754 = vmatpush1.msra.mxu0 0.0
    %2755 = vmatprep.subr.mxu0 0.0
    %2756 = vmatpush1.msra.mxu0 0.0
    %2757 = vmatprep.subr.mxu0 0.0
    %2758 = vmatpush1.msra.mxu0 0.0
    %2759 = vmatprep.subr.mxu0 0.0
    %2760 = vmatpush1.msra.mxu0 0.0
    %2761 = vmatprep.subr.mxu0 0.0
    %2762 = vmatpush1.msra.mxu0 0.0
    %2763 = vmatprep.subr.mxu0 0.0
    %2764 = vmatpush1.msra.mxu0 0.0
    %2765 = vmatprep.subr.mxu0 0.0
    %2766 = vmatpush1.msra.mxu0 0.0
    %2767 = vmatprep.subr.mxu0 0.0
    %2768 = vmatpush1.msra.mxu0 0.0
    %2769 = vmatprep.subr.mxu0 0.0
    %2770 = vmatpush1.msra.mxu0 0.0
    %2771 = vmatprep.subr.mxu0 0.0
    %2772 = vmatpush1.msra.mxu0 0.0
    %2773 = vmatprep.subr.mxu0 0.0
    %2774 = vmatpush1.msra.mxu0 0.0
    %2775 = vmatprep.subr.mxu0 0.0
    %2776 = vmatpush1.msra.mxu0 0.0
    %2777 = vmatprep.subr.mxu0 0.0
    %2778 = vmatpush1.msra.mxu0 0.0
    %2779 = vmatprep.subr.mxu0 0.0
    %2780 = vmatpush1.msra.mxu0 0.0
    %2781 = vmatprep.subr.mxu0 0.0
    %2782 = vmatpush1.msra.mxu0 0.0
    %2783 = vmatprep.subr.mxu0 0.0
    %2784 = vmatpush1.msra.mxu0 0.0
    %2785 = vmatprep.subr.mxu0 0.0
    %2786 = vmatpush1.msra.mxu0 0.0
    %2787 = vmatprep.subr.mxu0 0.0
    %2788 = vmatpush1.msra.mxu0 0.0
    %2789 = vmatprep.subr.mxu0 0.0
    %2790 = vmatpush1.msra.mxu0 0.0
    %2791 = vmatprep.subr.mxu0 0.0
    %2792 = vmatpush1.msra.mxu0 0.0
    %2793 = vmatprep.subr.mxu0 0.0
    %2794 = vmatpush1.msra.mxu0 0.0
    %2795 = vmatprep.subr.mxu0 0.0
    %2796 = vmatpush1.msra.mxu0 0.0
    %2797 = vmatprep.subr.mxu0 0.0
    %2798 = vmatpush1.msra.mxu0 0.0
    %2799 = vmatprep.subr.mxu0 0.0
    %2800 = vmatpush1.msra.mxu0 0.0
    %2801 = vmatprep.subr.mxu0 0.0
    %2802 = vmatpush1.msra.mxu0 0.0
    %2803 = vmatprep.subr.mxu0 0.0
    %2804 = vmatpush1.msra.mxu0 0.0
    %2805 = vmatprep.subr.mxu0 0.0
    %2806 = vmatpush1.msra.mxu0 0.0
    %2807 = vmatprep.subr.mxu0 0.0
    %2808 = vmatpush1.msra.mxu0 0.0
    %2809 = vmatprep.subr.mxu0 0.0
    %2810 = vmatpush1.msra.mxu0 0.0
    %2811 = vmatprep.mubr.f32.mxu0 0.0
    %2812 = vmatmul.mubr.f32.gmra.mrb[0].mxu0 %v2742
    %v2813 = vpop.f32.mrb[0].mxu0
    %v2814 = vadd.f32 0.0, %v2813
    %v2815 = vpop.f32.mrb[0].mxu0
    %2816 = vmatprep.mubr.f32.mxu0 0.0
    %2817 = vmatmul.mubr.f32.gmra.mrb[0].mxu0 %v2745
    %v2818 = vpop.f32.mrb[0].mxu0
    %v2819 = vadd.f32 0.0, %v2818
    %v2820 = vpop.f32.mrb[0].mxu0
    %2821 = vdwg.mxu0
    %v2822 = vmax.f32 %v2725, %v2814
    %v2823 = vmax.f32 %v2730, %v2819
    %v2824 = vsub.f32 %v2725, %v2822
    %v2825 = vsub.f32 %v2730, %v2823
    %v2826 = vmul.f32 %v2824, 1.442695
    %v2827 = vpow.pop %v2826
    %v2828 = vmul.f32 %v2825, 1.442695
    %v2829 = vpow.pop %v2828
    %v2830 = vsub.f32 %v2814, %v2822
    %v2831 = vsub.f32 %v2819, %v2823
    %v2832 = vmul.f32 %v2830, 1.442695
    %v2833 = vpow.pop %v2832
    %v2834 = vmul.f32 %v2831, 1.442695
    %v2835 = vpow.pop %v2834
    %v2836 = vadd.f32 %v2827, %v2833
    %v2837 = vadd.f32 %v2829, %v2835
    %v2838 = vrcp.pop %v2836
    %v2839 = vmul.f32 1.0, %v2838
    %v2840 = vrcp.pop %v2837
    %v2841 = vmul.f32 1.0, %v2840
    %v2842 = vmul.f32 %v2827, %v2839
    %v2843 = vmul.f32 %v2829, %v2841
    %v2844 = vmul.f32 %v2833, %v2839
    %v2845 = vmul.f32 %v2835, %v2841
    %2847 = vset.pattern.permute.xlu0 0
    %2848 = vperm.xlu0 %2847, %v2842
    %v2849 = vpop.permute.xlu0 %2848
    %2852 = vset.pattern.permute.xlu0 0
    %2853 = vperm.xlu0 %2852, %v2843
    %v2854 = vpop.permute.xlu0 %2853
    %v2856 = vmul.f32 %v2849, %v2413
    %v2857 = vmul.f32 %v2854, %v2414
    %v2858 = vsel %vm65, %v2856, 0.0
    %v2859 = vsel %vm67, %v2857, 0.0
    %v2860 = vadd.f32 %v2858, %v2859
    %v2861 = vrot.slane %v2860, 4
    %v2862 = vadd.f32 %v2860, %v2861
    %v2863 = vrot.slane %v2862, 2
    %v2864 = vadd.f32 %v2862, %v2863
    %v2865 = vrot.slane %v2864, 1
    %v2866 = vadd.f32 %v2864, %v2865
    %2868 = vset.pattern.permute.xlu0 0
    %2869 = vperm.xlu0 %2868, %v2844
    %v2870 = vpop.permute.xlu0 %2869
    %2873 = vset.pattern.permute.xlu0 0
    %2874 = vperm.xlu0 %2873, %v2845
    %v2875 = vpop.permute.xlu0 %2874
    %v2877 = vmul.f32 %v2870, %v2413
    %v2878 = vmul.f32 %v2875, %v2414
    %v2879 = vsel %vm65, %v2877, 0.0
    %v2880 = vsel %vm67, %v2878, 0.0
    %v2881 = vadd.f32 %v2879, %v2880
    %v2882 = vrot.slane %v2881, 4
    %v2883 = vadd.f32 %v2881, %v2882
    %v2884 = vrot.slane %v2883, 2
    %v2885 = vadd.f32 %v2883, %v2884
    %v2886 = vrot.slane %v2885, 1
    %v2887 = vadd.f32 %v2885, %v2886
    %v2888 = vld [vmem:[%s1617] sm:$0xff]
    %v2889 = vld [vmem:[%s1617 + $0x8] sm:$0x7]
    %v2891 = vsel %vm65, %v2888, 0
    %v2894 = vsel %vm65, %v2889, 0
    %2896 = vmatprep.subr.mxu0 0.0
    %2897 = vmatpush1.msra.mxu0 %v2401
    %2898 = vmatprep.subr.mxu0 0.0
    %2899 = vmatpush1.msra.mxu0 %v2402
    %2900 = vmatprep.subr.mxu0 0.0
    %2901 = vmatpush1.msra.mxu0 %v2403
    %2902 = vmatprep.subr.mxu0 0.0
    %2903 = vmatpush1.msra.mxu0 %v2404
    %2904 = vmatprep.subr.mxu0 0.0
    %2905 = vmatpush1.msra.mxu0 0.0
    %2906 = vmatprep.subr.mxu0 0.0
    %2907 = vmatpush1.msra.mxu0 0.0
    %2908 = vmatprep.subr.mxu0 0.0
    %2909 = vmatpush1.msra.mxu0 0.0
    %2910 = vmatprep.subr.mxu0 0.0
    %2911 = vmatpush1.msra.mxu0 0.0
    %2912 = vmatprep.subr.mxu0 0.0
    %2913 = vmatpush1.msra.mxu0 0.0
    %2914 = vmatprep.subr.mxu0 0.0
    %2915 = vmatpush1.msra.mxu0 0.0
    %2916 = vmatprep.subr.mxu0 0.0
    %2917 = vmatpush1.msra.mxu0 0.0
    %2918 = vmatprep.subr.mxu0 0.0
    %2919 = vmatpush1.msra.mxu0 0.0
    %2920 = vmatprep.subr.mxu0 0.0
    %2921 = vmatpush1.msra.mxu0 0.0
    %2922 = vmatprep.subr.mxu0 0.0
    %2923 = vmatpush1.msra.mxu0 0.0
    %2924 = vmatprep.subr.mxu0 0.0
    %2925 = vmatpush1.msra.mxu0 0.0
    %2926 = vmatprep.subr.mxu0 0.0
    %2927 = vmatpush1.msra.mxu0 0.0
    %2928 = vmatprep.subr.mxu0 0.0
    %2929 = vmatpush1.msra.mxu0 0.0
    %2930 = vmatprep.subr.mxu0 0.0
    %2931 = vmatpush1.msra.mxu0 0.0
    %2932 = vmatprep.subr.mxu0 0.0
    %2933 = vmatpush1.msra.mxu0 0.0
    %2934 = vmatprep.subr.mxu0 0.0
    %2935 = vmatpush1.msra.mxu0 0.0
    %2936 = vmatprep.subr.mxu0 0.0
    %2937 = vmatpush1.msra.mxu0 0.0
    %2938 = vmatprep.subr.mxu0 0.0
    %2939 = vmatpush1.msra.mxu0 0.0
    %2940 = vmatprep.subr.mxu0 0.0
    %2941 = vmatpush1.msra.mxu0 0.0
    %2942 = vmatprep.subr.mxu0 0.0
    %2943 = vmatpush1.msra.mxu0 0.0
    %2944 = vmatprep.subr.mxu0 0.0
    %2945 = vmatpush1.msra.mxu0 0.0
    %2946 = vmatprep.subr.mxu0 0.0
    %2947 = vmatpush1.msra.mxu0 0.0
    %2948 = vmatprep.subr.mxu0 0.0
    %2949 = vmatpush1.msra.mxu0 0.0
    %2950 = vmatprep.subr.mxu0 0.0
    %2951 = vmatpush1.msra.mxu0 0.0
    %2952 = vmatprep.subr.mxu0 0.0
    %2953 = vmatpush1.msra.mxu0 0.0
    %2954 = vmatprep.subr.mxu0 0.0
    %2955 = vmatpush1.msra.mxu0 0.0
    %2956 = vmatprep.subr.mxu0 0.0
    %2957 = vmatpush1.msra.mxu0 0.0
    %2958 = vmatprep.subr.mxu0 0.0
    %2959 = vmatpush1.msra.mxu0 0.0
    %2960 = vmatprep.mubr.f32.mxu0 0.0
    %2961 = vmatmul.mubr.f32.gmra.mrb[0].mxu0 %v2891
    %v2962 = vpop.f32.mrb[0].mxu0
    %v2963 = vadd.f32 0.0, %v2962
    %v2964 = vpop.f32.mrb[0].mxu0
    %2965 = vmatprep.mubr.f32.mxu0 0.0
    %2966 = vmatmul.mubr.f32.gmra.mrb[0].mxu0 %v2894
    %v2967 = vpop.f32.mrb[0].mxu0
    %v2968 = vadd.f32 0.0, %v2967
    %v2969 = vpop.f32.mrb[0].mxu0
    %2970 = vdwg.mxu0
    %v2971 = vrot.slane %v2396, 1
    %2972 = vrot.lane.b32.xlu0 %v2971, 32
    %v2973 = vpop.permute.xlu0 %2972
    %v2974 = vsel %vm65, %v2973, 0
    %2976 = vmatprep.subr.mxu0 0.0
    %2977 = vmatpush1.msra.mxu0 %v2397
    %2978 = vmatprep.subr.mxu0 0.0
    %2979 = vmatpush1.msra.mxu0 %v2398
    %2980 = vmatprep.subr.mxu0 0.0
    %2981 = vmatpush1.msra.mxu0 %v2399
    %2982 = vmatprep.subr.mxu0 0.0
    %2983 = vmatpush1.msra.mxu0 %v2400
    %2984 = vmatprep.subr.mxu0 0.0
    %2985 = vmatpush1.msra.mxu0 0.0
    %2986 = vmatprep.subr.mxu0 0.0
    %2987 = vmatpush1.msra.mxu0 0.0
    %2988 = vmatprep.subr.mxu0 0.0
    %2989 = vmatpush1.msra.mxu0 0.0
    %2990 = vmatprep.subr.mxu0 0.0
    %2991 = vmatpush1.msra.mxu0 0.0
    %2992 = vmatprep.subr.mxu0 0.0
    %2993 = vmatpush1.msra.mxu0 0.0
    %2994 = vmatprep.subr.mxu0 0.0
    %2995 = vmatpush1.msra.mxu0 0.0
    %2996 = vmatprep.subr.mxu0 0.0
    %2997 = vmatpush1.msra.mxu0 0.0
    %2998 = vmatprep.subr.mxu0 0.0
    %2999 = vmatpush1.msra.mxu0 0.0
    %3000 = vmatprep.subr.mxu0 0.0
    %3001 = vmatpush1.msra.mxu0 0.0
    %3002 = vmatprep.subr.mxu0 0.0
    %3003 = vmatpush1.msra.mxu0 0.0
    %3004 = vmatprep.subr.mxu0 0.0
    %3005 = vmatpush1.msra.mxu0 0.0
    %3006 = vmatprep.subr.mxu0 0.0
    %3007 = vmatpush1.msra.mxu0 0.0
    %3008 = vmatprep.subr.mxu0 0.0
    %3009 = vmatpush1.msra.mxu0 0.0
    %3010 = vmatprep.subr.mxu0 0.0
    %3011 = vmatpush1.msra.mxu0 0.0
    %3012 = vmatprep.subr.mxu0 0.0
    %3013 = vmatpush1.msra.mxu0 0.0
    %3014 = vmatprep.subr.mxu0 0.0
    %3015 = vmatpush1.msra.mxu0 0.0
    %3016 = vmatprep.subr.mxu0 0.0
    %3017 = vmatpush1.msra.mxu0 0.0
    %3018 = vmatprep.subr.mxu0 0.0
    %3019 = vmatpush1.msra.mxu0 0.0
    %3020 = vmatprep.subr.mxu0 0.0
    %3021 = vmatpush1.msra.mxu0 0.0
    %3022 = vmatprep.subr.mxu0 0.0
    %3023 = vmatpush1.msra.mxu0 0.0
    %3024 = vmatprep.subr.mxu0 0.0
    %3025 = vmatpush1.msra.mxu0 0.0
    %3026 = vmatprep.subr.mxu0 0.0
    %3027 = vmatpush1.msra.mxu0 0.0
    %3028 = vmatprep.subr.mxu0 0.0
    %3029 = vmatpush1.msra.mxu0 0.0
    %3030 = vmatprep.subr.mxu0 0.0
    %3031 = vmatpush1.msra.mxu0 0.0
    %3032 = vmatprep.subr.mxu0 0.0
    %3033 = vmatpush1.msra.mxu0 0.0
    %3034 = vmatprep.subr.mxu0 0.0
    %3035 = vmatpush1.msra.mxu0 0.0
    %3036 = vmatprep.subr.mxu0 0.0
    %3037 = vmatpush1.msra.mxu0 0.0
    %3038 = vmatprep.subr.mxu0 0.0
    %3039 = vmatpush1.msra.mxu0 0.0
    %3040 = vmatprep.mubr.f32.mxu0 0.0
    %3041 = vmatmul.mubr.f32.gmra.mrb[0].mxu0 %v2974
    %v3042 = vpop.f32.mrb[0].mxu0
    %v3043 = vadd.f32 0.0, %v3042
    %v3044 = vpop.f32.mrb[0].mxu0
    %3045 = vdwg.mxu0
    %v3046 = vrot.slane %v2390, 1
    %3047 = vrot.lane.b32.xlu0 %v3046, 96
    %v3048 = vpop.permute.xlu0 %3047
    %v3049 = vsel %vm65, %v3048, 0
    %3051 = vmatprep.subr.mxu0 0.0
    %3052 = vmatpush1.msra.mxu0 %v2397
    %3053 = vmatprep.subr.mxu0 0.0
    %3054 = vmatpush1.msra.mxu0 %v2398
    %3055 = vmatprep.subr.mxu0 0.0
    %3056 = vmatpush1.msra.mxu0 %v2399
    %3057 = vmatprep.subr.mxu0 0.0
    %3058 = vmatpush1.msra.mxu0 %v2400
    %3059 = vmatprep.subr.mxu0 0.0
    %3060 = vmatpush1.msra.mxu0 0.0
    %3061 = vmatprep.subr.mxu0 0.0
    %3062 = vmatpush1.msra.mxu0 0.0
    %3063 = vmatprep.subr.mxu0 0.0
    %3064 = vmatpush1.msra.mxu0 0.0
    %3065 = vmatprep.subr.mxu0 0.0
    %3066 = vmatpush1.msra.mxu0 0.0
    %3067 = vmatprep.subr.mxu0 0.0
    %3068 = vmatpush1.msra.mxu0 0.0
    %3069 = vmatprep.subr.mxu0 0.0
    %3070 = vmatpush1.msra.mxu0 0.0
    %3071 = vmatprep.subr.mxu0 0.0
    %3072 = vmatpush1.msra.mxu0 0.0
    %3073 = vmatprep.subr.mxu0 0.0
    %3074 = vmatpush1.msra.mxu0 0.0
    %3075 = vmatprep.subr.mxu0 0.0
    %3076 = vmatpush1.msra.mxu0 0.0
    %3077 = vmatprep.subr.mxu0 0.0
    %3078 = vmatpush1.msra.mxu0 0.0
    %3079 = vmatprep.subr.mxu0 0.0
    %3080 = vmatpush1.msra.mxu0 0.0
    %3081 = vmatprep.subr.mxu0 0.0
    %3082 = vmatpush1.msra.mxu0 0.0
    %3083 = vmatprep.subr.mxu0 0.0
    %3084 = vmatpush1.msra.mxu0 0.0
    %3085 = vmatprep.subr.mxu0 0.0
    %3086 = vmatpush1.msra.mxu0 0.0
    %3087 = vmatprep.subr.mxu0 0.0
    %3088 = vmatpush1.msra.mxu0 0.0
    %3089 = vmatprep.subr.mxu0 0.0
    %3090 = vmatpush1.msra.mxu0 0.0
    %3091 = vmatprep.subr.mxu0 0.0
    %3092 = vmatpush1.msra.mxu0 0.0
    %3093 = vmatprep.subr.mxu0 0.0
    %3094 = vmatpush1.msra.mxu0 0.0
    %3095 = vmatprep.subr.mxu0 0.0
    %3096 = vmatpush1.msra.mxu0 0.0
    %3097 = vmatprep.subr.mxu0 0.0
    %3098 = vmatpush1.msra.mxu0 0.0
    %3099 = vmatprep.subr.mxu0 0.0
    %3100 = vmatpush1.msra.mxu0 0.0
    %3101 = vmatprep.subr.mxu0 0.0
    %3102 = vmatpush1.msra.mxu0 0.0
    %3103 = vmatprep.subr.mxu0 0.0
    %3104 = vmatpush1.msra.mxu0 0.0
    %3105 = vmatprep.subr.mxu0 0.0
    %3106 = vmatpush1.msra.mxu0 0.0
    %3107 = vmatprep.subr.mxu0 0.0
    %3108 = vmatpush1.msra.mxu0 0.0
    %3109 = vmatprep.subr.mxu0 0.0
    %3110 = vmatpush1.msra.mxu0 0.0
    %3111 = vmatprep.subr.mxu0 0.0
    %3112 = vmatpush1.msra.mxu0 0.0
    %3113 = vmatprep.subr.mxu0 0.0
    %3114 = vmatpush1.msra.mxu0 0.0
    %3115 = vmatprep.mubr.f32.mxu0 0.0
    %3116 = vmatmul.mubr.f32.gmra.mrb[0].mxu0 %v3049
    %v3117 = vpop.f32.mrb[0].mxu0
    %v3118 = vadd.f32 0.0, %v3117
    %v3119 = vpop.f32.mrb[0].mxu0
    %3120 = vdwg.mxu0
    %v3121 = vlaneseq
    %v3122 = vshrl.u32 %v3121, 7
    %v3123 = vsub.s32 0, %v3122
    %v3124 = vrot.slane %v3043, %v3123
    %v3125 = vadd.f32 %v2963, %v3124
    %v3126 = vadd.f32 %v2968, %v3124
    %v3127 = vtanh.pop %v3125
    %v3128 = vtanh.pop %v3126
    %v3130 = vsel %vm2651, %v3127, 0
    %v3133 = vsel %vm2651, %v3128, 0
    %3135 = vmatprep.subr.mxu0 0.0
    %3136 = vmatpush1.msra.mxu0 %v2405
    %3137 = vmatprep.subr.mxu0 0.0
    %3138 = vmatpush1.msra.mxu0 %v2406
    %3139 = vmatprep.subr.mxu0 0.0
    %3140 = vmatpush1.msra.mxu0 0.0
    %3141 = vmatprep.subr.mxu0 0.0
    %3142 = vmatpush1.msra.mxu0 0.0
    %3143 = vmatprep.subr.mxu0 0.0
    %3144 = vmatpush1.msra.mxu0 0.0
    %3145 = vmatprep.subr.mxu0 0.0
    %3146 = vmatpush1.msra.mxu0 0.0
    %3147 = vmatprep.subr.mxu0 0.0
    %3148 = vmatpush1.msra.mxu0 0.0
    %3149 = vmatprep.subr.mxu0 0.0
    %3150 = vmatpush1.msra.mxu0 0.0
    %3151 = vmatprep.subr.mxu0 0.0
    %3152 = vmatpush1.msra.mxu0 0.0
    %3153 = vmatprep.subr.mxu0 0.0
    %3154 = vmatpush1.msra.mxu0 0.0
    %3155 = vmatprep.subr.mxu0 0.0
    %3156 = vmatpush1.msra.mxu0 0.0
    %3157 = vmatprep.subr.mxu0 0.0
    %3158 = vmatpush1.msra.mxu0 0.0
    %3159 = vmatprep.subr.mxu0 0.0
    %3160 = vmatpush1.msra.mxu0 0.0
    %3161 = vmatprep.subr.mxu0 0.0
    %3162 = vmatpush1.msra.mxu0 0.0
    %3163 = vmatprep.subr.mxu0 0.0
    %3164 = vmatpush1.msra.mxu0 0.0
    %3165 = vmatprep.subr.mxu0 0.0
    %3166 = vmatpush1.msra.mxu0 0.0
    %3167 = vmatprep.subr.mxu0 0.0
    %3168 = vmatpush1.msra.mxu0 0.0
    %3169 = vmatprep.subr.mxu0 0.0
    %3170 = vmatpush1.msra.mxu0 0.0
    %3171 = vmatprep.subr.mxu0 0.0
    %3172 = vmatpush1.msra.mxu0 0.0
    %3173 = vmatprep.subr.mxu0 0.0
    %3174 = vmatpush1.msra.mxu0 0.0
    %3175 = vmatprep.subr.mxu0 0.0
    %3176 = vmatpush1.msra.mxu0 0.0
    %3177 = vmatprep.subr.mxu0 0.0
    %3178 = vmatpush1.msra.mxu0 0.0
    %3179 = vmatprep.subr.mxu0 0.0
    %3180 = vmatpush1.msra.mxu0 0.0
    %3181 = vmatprep.subr.mxu0 0.0
    %3182 = vmatpush1.msra.mxu0 0.0
    %3183 = vmatprep.subr.mxu0 0.0
    %3184 = vmatpush1.msra.mxu0 0.0
    %3185 = vmatprep.subr.mxu0 0.0
    %3186 = vmatpush1.msra.mxu0 0.0
    %3187 = vmatprep.subr.mxu0 0.0
    %3188 = vmatpush1.msra.mxu0 0.0
    %3189 = vmatprep.subr.mxu0 0.0
    %3190 = vmatpush1.msra.mxu0 0.0
    %3191 = vmatprep.subr.mxu0 0.0
    %3192 = vmatpush1.msra.mxu0 0.0
    %3193 = vmatprep.subr.mxu0 0.0
    %3194 = vmatpush1.msra.mxu0 0.0
    %3195 = vmatprep.subr.mxu0 0.0
    %3196 = vmatpush1.msra.mxu0 0.0
    %3197 = vmatprep.subr.mxu0 0.0
    %3198 = vmatpush1.msra.mxu0 0.0
    %3199 = vmatprep.mubr.f32.mxu0 0.0
    %3200 = vmatmul.mubr.f32.gmra.mrb[0].mxu0 %v3130
    %v3201 = vpop.f32.mrb[0].mxu0
    %v3202 = vadd.f32 0.0, %v3201
    %v3203 = vpop.f32.mrb[0].mxu0
    %3204 = vmatprep.mubr.f32.mxu0 0.0
    %3205 = vmatmul.mubr.f32.gmra.mrb[0].mxu0 %v3133
    %v3206 = vpop.f32.mrb[0].mxu0
    %v3207 = vadd.f32 0.0, %v3206
    %v3208 = vpop.f32.mrb[0].mxu0
    %3209 = vdwg.mxu0
    %v3210 = vlaneseq
    %v3211 = vshrl.u32 %v3210, 7
    %v3212 = vsub.s32 0, %v3211
    %v3213 = vrot.slane %v3118, %v3212
    %v3214 = vadd.f32 %v2963, %v3213
    %v3215 = vadd.f32 %v2968, %v3213
    %v3216 = vtanh.pop %v3214
    %v3217 = vtanh.pop %v3215
    %v3219 = vsel %vm2651, %v3216, 0
    %v3222 = vsel %vm2651, %v3217, 0
    %3224 = vmatprep.subr.mxu0 0.0
    %3225 = vmatpush1.msra.mxu0 %v2405
    %3226 = vmatprep.subr.mxu0 0.0
    %3227 = vmatpush1.msra.mxu0 %v2406
    %3228 = vmatprep.subr.mxu0 0.0
    %3229 = vmatpush1.msra.mxu0 0.0
    %3230 = vmatprep.subr.mxu0 0.0
    %3231 = vmatpush1.msra.mxu0 0.0
    %3232 = vmatprep.subr.mxu0 0.0
    %3233 = vmatpush1.msra.mxu0 0.0
    %3234 = vmatprep.subr.mxu0 0.0
    %3235 = vmatpush1.msra.mxu0 0.0
    %3236 = vmatprep.subr.mxu0 0.0
    %3237 = vmatpush1.msra.mxu0 0.0
    %3238 = vmatprep.subr.mxu0 0.0
    %3239 = vmatpush1.msra.mxu0 0.0
    %3240 = vmatprep.subr.mxu0 0.0
    %3241 = vmatpush1.msra.mxu0 0.0
    %3242 = vmatprep.subr.mxu0 0.0
    %3243 = vmatpush1.msra.mxu0 0.0
    %3244 = vmatprep.subr.mxu0 0.0
    %3245 = vmatpush1.msra.mxu0 0.0
    %3246 = vmatprep.subr.mxu0 0.0
    %3247 = vmatpush1.msra.mxu0 0.0
    %3248 = vmatprep.subr.mxu0 0.0
    %3249 = vmatpush1.msra.mxu0 0.0
    %3250 = vmatprep.subr.mxu0 0.0
    %3251 = vmatpush1.msra.mxu0 0.0
    %3252 = vmatprep.subr.mxu0 0.0
    %3253 = vmatpush1.msra.mxu0 0.0
    %3254 = vmatprep.subr.mxu0 0.0
    %3255 = vmatpush1.msra.mxu0 0.0
    %3256 = vmatprep.subr.mxu0 0.0
    %3257 = vmatpush1.msra.mxu0 0.0
    %3258 = vmatprep.subr.mxu0 0.0
    %3259 = vmatpush1.msra.mxu0 0.0
    %3260 = vmatprep.subr.mxu0 0.0
    %3261 = vmatpush1.msra.mxu0 0.0
    %3262 = vmatprep.subr.mxu0 0.0
    %3263 = vmatpush1.msra.mxu0 0.0
    %3264 = vmatprep.subr.mxu0 0.0
    %3265 = vmatpush1.msra.mxu0 0.0
    %3266 = vmatprep.subr.mxu0 0.0
    %3267 = vmatpush1.msra.mxu0 0.0
    %3268 = vmatprep.subr.mxu0 0.0
    %3269 = vmatpush1.msra.mxu0 0.0
    %3270 = vmatprep.subr.mxu0 0.0
    %3271 = vmatpush1.msra.mxu0 0.0
    %3272 = vmatprep.subr.mxu0 0.0
    %3273 = vmatpush1.msra.mxu0 0.0
    %3274 = vmatprep.subr.mxu0 0.0
    %3275 = vmatpush1.msra.mxu0 0.0
    %3276 = vmatprep.subr.mxu0 0.0
    %3277 = vmatpush1.msra.mxu0 0.0
    %3278 = vmatprep.subr.mxu0 0.0
    %3279 = vmatpush1.msra.mxu0 0.0
    %3280 = vmatprep.subr.mxu0 0.0
    %3281 = vmatpush1.msra.mxu0 0.0
    %3282 = vmatprep.subr.mxu0 0.0
    %3283 = vmatpush1.msra.mxu0 0.0
    %3284 = vmatprep.subr.mxu0 0.0
    %3285 = vmatpush1.msra.mxu0 0.0
    %3286 = vmatprep.subr.mxu0 0.0
    %3287 = vmatpush1.msra.mxu0 0.0
    %3288 = vmatprep.mubr.f32.mxu0 0.0
    %3289 = vmatmul.mubr.f32.gmra.mrb[0].mxu0 %v3219
    %v3290 = vpop.f32.mrb[0].mxu0
    %v3291 = vadd.f32 0.0, %v3290
    %v3292 = vpop.f32.mrb[0].mxu0
    %3293 = vmatprep.mubr.f32.mxu0 0.0
    %3294 = vmatmul.mubr.f32.gmra.mrb[0].mxu0 %v3222
    %v3295 = vpop.f32.mrb[0].mxu0
    %v3296 = vadd.f32 0.0, %v3295
    %v3297 = vpop.f32.mrb[0].mxu0
    %3298 = vdwg.mxu0
    %v3299 = vmax.f32 %v3202, %v3291
    %v3300 = vmax.f32 %v3207, %v3296
    %v3301 = vsub.f32 %v3202, %v3299
    %v3302 = vsub.f32 %v3207, %v3300
    %v3303 = vmul.f32 %v3301, 1.442695
    %v3304 = vpow.pop %v3303
    %v3305 = vmul.f32 %v3302, 1.442695
    %v3306 = vpow.pop %v3305
    %v3307 = vsub.f32 %v3291, %v3299
    %v3308 = vsub.f32 %v3296, %v3300
    %v3309 = vmul.f32 %v3307, 1.442695
    %v3310 = vpow.pop %v3309
    %v3311 = vmul.f32 %v3308, 1.442695
    %v3312 = vpow.pop %v3311
    %v3313 = vadd.f32 %v3304, %v3310
    %v3314 = vadd.f32 %v3306, %v3312
    %v3315 = vrcp.pop %v3313
    %v3316 = vmul.f32 1.0, %v3315
    %v3317 = vrcp.pop %v3314
    %v3318 = vmul.f32 1.0, %v3317
    %v3319 = vmul.f32 %v3304, %v3316
    %v3320 = vmul.f32 %v3306, %v3318
    %v3321 = vmul.f32 %v3310, %v3316
    %v3322 = vmul.f32 %v3312, %v3318
    %3324 = vset.pattern.permute.xlu0 0
    %3325 = vperm.xlu0 %3324, %v3319
    %v3326 = vpop.permute.xlu0 %3325
    %3329 = vset.pattern.permute.xlu0 0
    %3330 = vperm.xlu0 %3329, %v3320
    %v3331 = vpop.permute.xlu0 %3330
    %v3333 = vmul.f32 %v3326, %v2888
    %v3334 = vmul.f32 %v3331, %v2889
    %v3335 = vsel %vm65, %v3333, 0.0
    %v3336 = vsel %vm67, %v3334, 0.0
    %v3337 = vadd.f32 %v3335, %v3336
    %v3338 = vrot.slane %v3337, 4
    %v3339 = vadd.f32 %v3337, %v3338
    %v3340 = vrot.slane %v3339, 2
    %v3341 = vadd.f32 %v3339, %v3340
    %v3342 = vrot.slane %v3341, 1
    %v3343 = vadd.f32 %v3341, %v3342
    %3345 = vset.pattern.permute.xlu0 0
    %3346 = vperm.xlu0 %3345, %v3321
    %v3347 = vpop.permute.xlu0 %3346
    %3350 = vset.pattern.permute.xlu0 0
    %3351 = vperm.xlu0 %3350, %v3322
    %v3352 = vpop.permute.xlu0 %3351
    %v3354 = vmul.f32 %v3347, %v2888
    %v3355 = vmul.f32 %v3352, %v2889
    %v3356 = vsel %vm65, %v3354, 0.0
    %v3357 = vsel %vm67, %v3355, 0.0
    %v3358 = vadd.f32 %v3356, %v3357
    %v3359 = vrot.slane %v3358, 4
    %v3360 = vadd.f32 %v3358, %v3359
    %v3361 = vrot.slane %v3360, 2
    %v3362 = vadd.f32 %v3360, %v3361
    %v3363 = vrot.slane %v3362, 1
    %v3364 = vadd.f32 %v3362, %v3363
    %v3365 = vsel %vm1507, %v2866, %v3343
    %v3366 = vsel %vm1507, %v2887, %v3364
    %v3367 = vld [vmem:[%s11] sm:$0xff]
    %v3368 = vld [vmem:[%s11 + $0x8] sm:$0xff]
    %v3369 = vld [vmem:[%s11 + $0x10] sm:$0xff]
    %v3370 = vld [vmem:[%s11 + $0x18] sm:$0xff]
    %v3371 = vld [vmem:[%s12] sm:$0xff]
    %v3372 = vld [vmem:[%s12 + $0x8] sm:$0xff]
    %v3373 = vld [vmem:[%s12 + $0x10] sm:$0xff]
    %v3374 = vld [vmem:[%s12 + $0x18] sm:$0xff]
    %3375 = vmatprep.subr.mxu0 0.0
    %3376 = vmatpush1.msra.mxu0 %v3371
    %3377 = vmatprep.subr.mxu0 0.0
    %3378 = vmatpush1.msra.mxu0 %v3372
    %3379 = vmatprep.subr.mxu0 0.0
    %3380 = vmatpush1.msra.mxu0 %v3373
    %3381 = vmatprep.subr.mxu0 0.0
    %3382 = vmatpush1.msra.mxu0 %v3374
    %3383 = vmatprep.subr.mxu0 0.0
    %3384 = vmatpush1.msra.mxu0 0.0
    %3385 = vmatprep.subr.mxu0 0.0
    %3386 = vmatpush1.msra.mxu0 0.0
    %3387 = vmatprep.subr.mxu0 0.0
    %3388 = vmatpush1.msra.mxu0 0.0
    %3389 = vmatprep.subr.mxu0 0.0
    %3390 = vmatpush1.msra.mxu0 0.0
    %3391 = vmatprep.subr.mxu0 0.0
    %3392 = vmatpush1.msra.mxu0 0.0
    %3393 = vmatprep.subr.mxu0 0.0
    %3394 = vmatpush1.msra.mxu0 0.0
    %3395 = vmatprep.subr.mxu0 0.0
    %3396 = vmatpush1.msra.mxu0 0.0
    %3397 = vmatprep.subr.mxu0 0.0
    %3398 = vmatpush1.msra.mxu0 0.0
    %3399 = vmatprep.subr.mxu0 0.0
    %3400 = vmatpush1.msra.mxu0 0.0
    %3401 = vmatprep.subr.mxu0 0.0
    %3402 = vmatpush1.msra.mxu0 0.0
    %3403 = vmatprep.subr.mxu0 0.0
    %3404 = vmatpush1.msra.mxu0 0.0
    %3405 = vmatprep.subr.mxu0 0.0
    %3406 = vmatpush1.msra.mxu0 0.0
    %3407 = vmatprep.subr.mxu0 0.0
    %3408 = vmatpush1.msra.mxu0 0.0
    %3409 = vmatprep.subr.mxu0 0.0
    %3410 = vmatpush1.msra.mxu0 0.0
    %3411 = vmatprep.subr.mxu0 0.0
    %3412 = vmatpush1.msra.mxu0 0.0
    %3413 = vmatprep.subr.mxu0 0.0
    %3414 = vmatpush1.msra.mxu0 0.0
    %3415 = vmatprep.subr.mxu0 0.0
    %3416 = vmatpush1.msra.mxu0 0.0
    %3417 = vmatprep.subr.mxu0 0.0
    %3418 = vmatpush1.msra.mxu0 0.0
    %3419 = vmatprep.subr.mxu0 0.0
    %3420 = vmatpush1.msra.mxu0 0.0
    %3421 = vmatprep.subr.mxu0 0.0
    %3422 = vmatpush1.msra.mxu0 0.0
    %3423 = vmatprep.subr.mxu0 0.0
    %3424 = vmatpush1.msra.mxu0 0.0
    %3425 = vmatprep.subr.mxu0 0.0
    %3426 = vmatpush1.msra.mxu0 0.0
    %3427 = vmatprep.subr.mxu0 0.0
    %3428 = vmatpush1.msra.mxu0 0.0
    %3429 = vmatprep.subr.mxu0 0.0
    %3430 = vmatpush1.msra.mxu0 0.0
    %3431 = vmatprep.subr.mxu0 0.0
    %3432 = vmatpush1.msra.mxu0 0.0
    %3433 = vmatprep.subr.mxu0 0.0
    %3434 = vmatpush1.msra.mxu0 0.0
    %3435 = vmatprep.subr.mxu0 0.0
    %3436 = vmatpush1.msra.mxu0 0.0
    %3437 = vmatprep.subr.mxu0 0.0
    %3438 = vmatpush1.msra.mxu0 0.0
    %3439 = vmatprep.mubr.f32.mxu0 0.0
    %3440 = vmatmul.mubr.f32.gmra.mrb[0].mxu0 %v2496
    %v3441 = vpop.f32.mrb[0].mxu0
    %v3442 = vadd.f32 0.0, %v3441
    %v3443 = vpop.f32.mrb[0].mxu0
    %3444 = vdwg.mxu0
    %v3446 = vsel %vm65, %v3365, 0
    %3448 = vmatprep.subr.mxu0 0.0
    %3449 = vmatpush1.msra.mxu0 %v3367
    %3450 = vmatprep.subr.mxu0 0.0
    %3451 = vmatpush1.msra.mxu0 %v3368
    %3452 = vmatprep.subr.mxu0 0.0
    %3453 = vmatpush1.msra.mxu0 %v3369
    %3454 = vmatprep.subr.mxu0 0.0
    %3455 = vmatpush1.msra.mxu0 %v3370
    %3456 = vmatprep.subr.mxu0 0.0
    %3457 = vmatpush1.msra.mxu0 0.0
    %3458 = vmatprep.subr.mxu0 0.0
    %3459 = vmatpush1.msra.mxu0 0.0
    %3460 = vmatprep.subr.mxu0 0.0
    %3461 = vmatpush1.msra.mxu0 0.0
    %3462 = vmatprep.subr.mxu0 0.0
    %3463 = vmatpush1.msra.mxu0 0.0
    %3464 = vmatprep.subr.mxu0 0.0
    %3465 = vmatpush1.msra.mxu0 0.0
    %3466 = vmatprep.subr.mxu0 0.0
    %3467 = vmatpush1.msra.mxu0 0.0
    %3468 = vmatprep.subr.mxu0 0.0
    %3469 = vmatpush1.msra.mxu0 0.0
    %3470 = vmatprep.subr.mxu0 0.0
    %3471 = vmatpush1.msra.mxu0 0.0
    %3472 = vmatprep.subr.mxu0 0.0
    %3473 = vmatpush1.msra.mxu0 0.0
    %3474 = vmatprep.subr.mxu0 0.0
    %3475 = vmatpush1.msra.mxu0 0.0
    %3476 = vmatprep.subr.mxu0 0.0
    %3477 = vmatpush1.msra.mxu0 0.0
    %3478 = vmatprep.subr.mxu0 0.0
    %3479 = vmatpush1.msra.mxu0 0.0
    %3480 = vmatprep.subr.mxu0 0.0
    %3481 = vmatpush1.msra.mxu0 0.0
    %3482 = vmatprep.subr.mxu0 0.0
    %3483 = vmatpush1.msra.mxu0 0.0
    %3484 = vmatprep.subr.mxu0 0.0
    %3485 = vmatpush1.msra.mxu0 0.0
    %3486 = vmatprep.subr.mxu0 0.0
    %3487 = vmatpush1.msra.mxu0 0.0
    %3488 = vmatprep.subr.mxu0 0.0
    %3489 = vmatpush1.msra.mxu0 0.0
    %3490 = vmatprep.subr.mxu0 0.0
    %3491 = vmatpush1.msra.mxu0 0.0
    %3492 = vmatprep.subr.mxu0 0.0
    %3493 = vmatpush1.msra.mxu0 0.0
    %3494 = vmatprep.subr.mxu0 0.0
    %3495 = vmatpush1.msra.mxu0 0.0
    %3496 = vmatprep.subr.mxu0 0.0
    %3497 = vmatpush1.msra.mxu0 0.0
    %3498 = vmatprep.subr.mxu0 0.0
    %3499 = vmatpush1.msra.mxu0 0.0
    %3500 = vmatprep.subr.mxu0 0.0
    %3501 = vmatpush1.msra.mxu0 0.0
    %3502 = vmatprep.subr.mxu0 0.0
    %3503 = vmatpush1.msra.mxu0 0.0
    %3504 = vmatprep.subr.mxu0 0.0
    %3505 = vmatpush1.msra.mxu0 0.0
    %3506 = vmatprep.subr.mxu0 0.0
    %3507 = vmatpush1.msra.mxu0 0.0
    %3508 = vmatprep.subr.mxu0 0.0
    %3509 = vmatpush1.msra.mxu0 0.0
    %3510 = vmatprep.subr.mxu0 0.0
    %3511 = vmatpush1.msra.mxu0 0.0
    %3512 = vmatprep.mubr.f32.mxu0 0.0
    %3513 = vmatmul.mubr.f32.gmra.mrb[0].mxu0 %v3446
    %v3514 = vpop.f32.mrb[0].mxu0
    %v3515 = vadd.f32 %v3442, %v3514
    %v3516 = vpop.f32.mrb[0].mxu0
    %3517 = vdwg.mxu0
    %v3518 = vld [vmem:[%s13] sm:$0x1]
    %v3520 = vlaneseq
    %v3521 = vshrl.u32 %v3520, 7
    %v3522 = vsub.s32 0, %v3521
    %v3523 = vrot.slane %v3518, %v3522
    %v3525 = vadd.f32 %v3515, %v3523
    %v3526 = vxor.u32 %v3525, 2147483648
    %v3527 = vmul.f32 %v3526, 1.442695
    %v3528 = vpow.pop %v3527
    %v3529 = vadd.f32 %v3528, 1.0
    %v3530 = vrcp.pop %v3529
    %v3531 = vmul.f32 1.0, %v3530
    %v3532 = vtanh.pop %v3525
    %v3533 = vmul.f32 %v3531, %v2390
    %3535 = vrot.lane.b32.xlu0 %v3532, 64
    %v3536 = vpop.permute.xlu0 %3535
    %v3538 = vmul.f32 %v3531, %v3536
    %3540 = vrot.lane.b32.xlu0 %v3538, 32
    %v3541 = vpop.permute.xlu0 %3540
    %v3543 = vadd.f32 %v3533, %v3541
    %v3544 = vtanh.pop %v3543
    %3546 = vrot.lane.b32.xlu0 %v3544, 64
    %v3547 = vpop.permute.xlu0 %3546
    %v3549 = vmul.f32 %v3531, %v3547
    %3551 = vrot.lane.b32.xlu0 %v3549, 32
    %v3552 = vpop.permute.xlu0 %3551
    %v3553 = vsel %vm65, %v3552, 0
    %3555 = vmatprep.subr.mxu0 0.0
    %3556 = vmatpush1.msra.mxu0 %v3371
    %3557 = vmatprep.subr.mxu0 0.0
    %3558 = vmatpush1.msra.mxu0 %v3372
    %3559 = vmatprep.subr.mxu0 0.0
    %3560 = vmatpush1.msra.mxu0 %v3373
    %3561 = vmatprep.subr.mxu0 0.0
    %3562 = vmatpush1.msra.mxu0 %v3374
    %3563 = vmatprep.subr.mxu0 0.0
    %3564 = vmatpush1.msra.mxu0 0.0
    %3565 = vmatprep.subr.mxu0 0.0
    %3566 = vmatpush1.msra.mxu0 0.0
    %3567 = vmatprep.subr.mxu0 0.0
    %3568 = vmatpush1.msra.mxu0 0.0
    %3569 = vmatprep.subr.mxu0 0.0
    %3570 = vmatpush1.msra.mxu0 0.0
    %3571 = vmatprep.subr.mxu0 0.0
    %3572 = vmatpush1.msra.mxu0 0.0
    %3573 = vmatprep.subr.mxu0 0.0
    %3574 = vmatpush1.msra.mxu0 0.0
    %3575 = vmatprep.subr.mxu0 0.0
    %3576 = vmatpush1.msra.mxu0 0.0
    %3577 = vmatprep.subr.mxu0 0.0
    %3578 = vmatpush1.msra.mxu0 0.0
    %3579 = vmatprep.subr.mxu0 0.0
    %3580 = vmatpush1.msra.mxu0 0.0
    %3581 = vmatprep.subr.mxu0 0.0
    %3582 = vmatpush1.msra.mxu0 0.0
    %3583 = vmatprep.subr.mxu0 0.0
    %3584 = vmatpush1.msra.mxu0 0.0
    %3585 = vmatprep.subr.mxu0 0.0
    %3586 = vmatpush1.msra.mxu0 0.0
    %3587 = vmatprep.subr.mxu0 0.0
    %3588 = vmatpush1.msra.mxu0 0.0
    %3589 = vmatprep.subr.mxu0 0.0
    %3590 = vmatpush1.msra.mxu0 0.0
    %3591 = vmatprep.subr.mxu0 0.0
    %3592 = vmatpush1.msra.mxu0 0.0
    %3593 = vmatprep.subr.mxu0 0.0
    %3594 = vmatpush1.msra.mxu0 0.0
    %3595 = vmatprep.subr.mxu0 0.0
    %3596 = vmatpush1.msra.mxu0 0.0
    %3597 = vmatprep.subr.mxu0 0.0
    %3598 = vmatpush1.msra.mxu0 0.0
    %3599 = vmatprep.subr.mxu0 0.0
    %3600 = vmatpush1.msra.mxu0 0.0
    %3601 = vmatprep.subr.mxu0 0.0
    %3602 = vmatpush1.msra.mxu0 0.0
    %3603 = vmatprep.subr.mxu0 0.0
    %3604 = vmatpush1.msra.mxu0 0.0
    %3605 = vmatprep.subr.mxu0 0.0
    %3606 = vmatpush1.msra.mxu0 0.0
    %3607 = vmatprep.subr.mxu0 0.0
    %3608 = vmatpush1.msra.mxu0 0.0
    %3609 = vmatprep.subr.mxu0 0.0
    %3610 = vmatpush1.msra.mxu0 0.0
    %3611 = vmatprep.subr.mxu0 0.0
    %3612 = vmatpush1.msra.mxu0 0.0
    %3613 = vmatprep.subr.mxu0 0.0
    %3614 = vmatpush1.msra.mxu0 0.0
    %3615 = vmatprep.subr.mxu0 0.0
    %3616 = vmatpush1.msra.mxu0 0.0
    %3617 = vmatprep.subr.mxu0 0.0
    %3618 = vmatpush1.msra.mxu0 0.0
    %3619 = vmatprep.mubr.f32.mxu0 0.0
    %3620 = vmatmul.mubr.f32.gmra.mrb[0].mxu0 %v3553
    %v3621 = vpop.f32.mrb[0].mxu0
    %v3622 = vadd.f32 0.0, %v3621
    %v3623 = vpop.f32.mrb[0].mxu0
    %3624 = vdwg.mxu0
    %v3626 = vsel %vm65, %v3366, 0
    %3628 = vmatprep.subr.mxu0 0.0
    %3629 = vmatpush1.msra.mxu0 %v3367
    %3630 = vmatprep.subr.mxu0 0.0
    %3631 = vmatpush1.msra.mxu0 %v3368
    %3632 = vmatprep.subr.mxu0 0.0
    %3633 = vmatpush1.msra.mxu0 %v3369
    %3634 = vmatprep.subr.mxu0 0.0
    %3635 = vmatpush1.msra.mxu0 %v3370
    %3636 = vmatprep.subr.mxu0 0.0
    %3637 = vmatpush1.msra.mxu0 0.0
    %3638 = vmatprep.subr.mxu0 0.0
    %3639 = vmatpush1.msra.mxu0 0.0
    %3640 = vmatprep.subr.mxu0 0.0
    %3641 = vmatpush1.msra.mxu0 0.0
    %3642 = vmatprep.subr.mxu0 0.0
    %3643 = vmatpush1.msra.mxu0 0.0
    %3644 = vmatprep.subr.mxu0 0.0
    %3645 = vmatpush1.msra.mxu0 0.0
    %3646 = vmatprep.subr.mxu0 0.0
    %3647 = vmatpush1.msra.mxu0 0.0
    %3648 = vmatprep.subr.mxu0 0.0
    %3649 = vmatpush1.msra.mxu0 0.0
    %3650 = vmatprep.subr.mxu0 0.0
    %3651 = vmatpush1.msra.mxu0 0.0
    %3652 = vmatprep.subr.mxu0 0.0
    %3653 = vmatpush1.msra.mxu0 0.0
    %3654 = vmatprep.subr.mxu0 0.0
    %3655 = vmatpush1.msra.mxu0 0.0
    %3656 = vmatprep.subr.mxu0 0.0
    %3657 = vmatpush1.msra.mxu0 0.0
    %3658 = vmatprep.subr.mxu0 0.0
    %3659 = vmatpush1.msra.mxu0 0.0
    %3660 = vmatprep.subr.mxu0 0.0
    %3661 = vmatpush1.msra.mxu0 0.0
    %3662 = vmatprep.subr.mxu0 0.0
    %3663 = vmatpush1.msra.mxu0 0.0
    %3664 = vmatprep.subr.mxu0 0.0
    %3665 = vmatpush1.msra.mxu0 0.0
    %3666 = vmatprep.subr.mxu0 0.0
    %3667 = vmatpush1.msra.mxu0 0.0
    %3668 = vmatprep.subr.mxu0 0.0
    %3669 = vmatpush1.msra.mxu0 0.0
    %3670 = vmatprep.subr.mxu0 0.0
    %3671 = vmatpush1.msra.mxu0 0.0
    %3672 = vmatprep.subr.mxu0 0.0
    %3673 = vmatpush1.msra.mxu0 0.0
    %3674 = vmatprep.subr.mxu0 0.0
    %3675 = vmatpush1.msra.mxu0 0.0
    %3676 = vmatprep.subr.mxu0 0.0
    %3677 = vmatpush1.msra.mxu0 0.0
    %3678 = vmatprep.subr.mxu0 0.0
    %3679 = vmatpush1.msra.mxu0 0.0
    %3680 = vmatprep.subr.mxu0 0.0
    %3681 = vmatpush1.msra.mxu0 0.0
    %3682 = vmatprep.subr.mxu0 0.0
    %3683 = vmatpush1.msra.mxu0 0.0
    %3684 = vmatprep.subr.mxu0 0.0
    %3685 = vmatpush1.msra.mxu0 0.0
    %3686 = vmatprep.subr.mxu0 0.0
    %3687 = vmatpush1.msra.mxu0 0.0
    %3688 = vmatprep.subr.mxu0 0.0
    %3689 = vmatpush1.msra.mxu0 0.0
    %3690 = vmatprep.subr.mxu0 0.0
    %3691 = vmatpush1.msra.mxu0 0.0
    %3692 = vmatprep.mubr.f32.mxu0 0.0
    %3693 = vmatmul.mubr.f32.gmra.mrb[0].mxu0 %v3626
    %v3694 = vpop.f32.mrb[0].mxu0
    %v3695 = vadd.f32 %v3622, %v3694
    %v3696 = vpop.f32.mrb[0].mxu0
    %3697 = vdwg.mxu0
    %v3698 = vadd.f32 %v3695, %v3523
    %v3699 = vxor.u32 %v3698, 2147483648
    %v3700 = vmul.f32 %v3699, 1.442695
    %v3701 = vpow.pop %v3700
    %v3702 = vadd.f32 %v3701, 1.0
    %v3703 = vrcp.pop %v3702
    %v3704 = vmul.f32 1.0, %v3703
    %v3705 = vtanh.pop %v3698
    %v3706 = vmul.f32 %v3704, %v3543
    %3708 = vrot.lane.b32.xlu0 %v3705, 64
    %v3709 = vpop.permute.xlu0 %3708
    %v3711 = vmul.f32 %v3704, %v3709
    %3713 = vrot.lane.b32.xlu0 %v3711, 32
    %v3714 = vpop.permute.xlu0 %3713
    %v3716 = vadd.f32 %v3706, %v3714
    %v3717 = vtanh.pop %v3716
    %3719 = vrot.lane.b32.xlu0 %v3717, 64
    %v3720 = vpop.permute.xlu0 %3719
    %v3722 = vmul.f32 %v3704, %v3720
    %v3723 = vld [vmem:[%s14] sm:$0xff]
    %v3724 = vld [vmem:[%s14 + $0x8] sm:$0xff]
    %v3725 = vld [vmem:[%s14 + $0x10] sm:$0xff]
    %v3726 = vld [vmem:[%s14 + $0x18] sm:$0xff]
    %v3727 = vld [vmem:[#allocation3] sm:$0x1]
    %v3729 = vlaneseq
    %v3730 = vshrl.u32 %v3729, 7
    %v3731 = vsub.s32 0, %v3730
    %v3732 = vrot.slane %v3727, %v3731
    %3735 = vrot.lane.b32.xlu0 %v3722, 32
    %v3736 = vpop.permute.xlu0 %3735
    %v3737 = vsel %vm65, %v3736, 0
    %3739 = vmatprep.subr.mxu0 0.0
    %3740 = vmatpush1.msra.mxu0 %v3723
    %3741 = vmatprep.subr.mxu0 0.0
    %3742 = vmatpush1.msra.mxu0 %v3724
    %3743 = vmatprep.subr.mxu0 0.0
    %3744 = vmatpush1.msra.mxu0 %v3725
    %3745 = vmatprep.subr.mxu0 0.0
    %3746 = vmatpush1.msra.mxu0 %v3726
    %3747 = vmatprep.subr.mxu0 0.0
    %3748 = vmatpush1.msra.mxu0 0.0
    %3749 = vmatprep.subr.mxu0 0.0
    %3750 = vmatpush1.msra.mxu0 0.0
    %3751 = vmatprep.subr.mxu0 0.0
    %3752 = vmatpush1.msra.mxu0 0.0
    %3753 = vmatprep.subr.mxu0 0.0
    %3754 = vmatpush1.msra.mxu0 0.0
    %3755 = vmatprep.subr.mxu0 0.0
    %3756 = vmatpush1.msra.mxu0 0.0
    %3757 = vmatprep.subr.mxu0 0.0
    %3758 = vmatpush1.msra.mxu0 0.0
    %3759 = vmatprep.subr.mxu0 0.0
    %3760 = vmatpush1.msra.mxu0 0.0
    %3761 = vmatprep.subr.mxu0 0.0
    %3762 = vmatpush1.msra.mxu0 0.0
    %3763 = vmatprep.subr.mxu0 0.0
    %3764 = vmatpush1.msra.mxu0 0.0
    %3765 = vmatprep.subr.mxu0 0.0
    %3766 = vmatpush1.msra.mxu0 0.0
    %3767 = vmatprep.subr.mxu0 0.0
    %3768 = vmatpush1.msra.mxu0 0.0
    %3769 = vmatprep.subr.mxu0 0.0
    %3770 = vmatpush1.msra.mxu0 0.0
    %3771 = vmatprep.subr.mxu0 0.0
    %3772 = vmatpush1.msra.mxu0 0.0
    %3773 = vmatprep.subr.mxu0 0.0
    %3774 = vmatpush1.msra.mxu0 0.0
    %3775 = vmatprep.subr.mxu0 0.0
    %3776 = vmatpush1.msra.mxu0 0.0
    %3777 = vmatprep.subr.mxu0 0.0
    %3778 = vmatpush1.msra.mxu0 0.0
    %3779 = vmatprep.subr.mxu0 0.0
    %3780 = vmatpush1.msra.mxu0 0.0
    %3781 = vmatprep.subr.mxu0 0.0
    %3782 = vmatpush1.msra.mxu0 0.0
    %3783 = vmatprep.subr.mxu0 0.0
    %3784 = vmatpush1.msra.mxu0 0.0
    %3785 = vmatprep.subr.mxu0 0.0
    %3786 = vmatpush1.msra.mxu0 0.0
    %3787 = vmatprep.subr.mxu0 0.0
    %3788 = vmatpush1.msra.mxu0 0.0
    %3789 = vmatprep.subr.mxu0 0.0
    %3790 = vmatpush1.msra.mxu0 0.0
    %3791 = vmatprep.subr.mxu0 0.0
    %3792 = vmatpush1.msra.mxu0 0.0
    %3793 = vmatprep.subr.mxu0 0.0
    %3794 = vmatpush1.msra.mxu0 0.0
    %3795 = vmatprep.subr.mxu0 0.0
    %3796 = vmatpush1.msra.mxu0 0.0
    %3797 = vmatprep.subr.mxu0 0.0
    %3798 = vmatpush1.msra.mxu0 0.0
    %3799 = vmatprep.subr.mxu0 0.0
    %3800 = vmatpush1.msra.mxu0 0.0
    %3801 = vmatprep.subr.mxu0 0.0
    %3802 = vmatpush1.msra.mxu0 0.0
    %3803 = vmatprep.mubr.f32.mxu0 0.0
    %3804 = vmatmul.mubr.f32.gmra.mrb[0].mxu0 %v3737
    %v3805 = vpop.f32.mrb[0].mxu0
    %v3806 = vadd.f32 %v3732, %v3805
    %v3807 = vpop.f32.mrb[0].mxu0
    %3808 = vdwg.mxu0
    %vm3809 = vcmask 1024
    %3810 = vst.msk [vmem:[#allocation4] sm:$0x3] %vm3809, %v3806
    %s3811 = scalar_lea.vmem %s16, 32
    %v3812 = vld [vmem:[%s3811] sm:$0xff]
    %v3813 = vld [vmem:[%s3811 + $0x8] sm:$0xff]
    %v3814 = vld [vmem:[%s3811 + $0x10] sm:$0xff]
    %v3815 = vld [vmem:[%s3811 + $0x18] sm:$0xff]
    %s3816 = scalar_lea.vmem %s17, 32
    %v3817 = vld [vmem:[%s3816] sm:$0xff]
    %v3818 = vld [vmem:[%s3816 + $0x8] sm:$0xff]
    %v3819 = vld [vmem:[%s3816 + $0x10] sm:$0xff]
    %v3820 = vld [vmem:[%s3816 + $0x18] sm:$0xff]
    %s3821 = scalar_lea.vmem %s18, 16
    %v3822 = vld [vmem:[%s3821] sm:$0xff]
    %v3823 = vld [vmem:[%s3821 + $0x8] sm:$0xff]
    %3825 = vst.msk [vmem:[#allocation2 + $0x8] sm:$0x1] %vm1615, %v3736
    %3826 = vst.msk [vmem:[%s1617 + $0x7] sm:$0x2] %vm1618, %v3736
    %v3827 = vld [vmem:[#allocation2] sm:$0xff]
    %v3828 = vld [vmem:[#allocation2 + $0x8] sm:$0x7]
    %v3830 = vsel %vm65, %v3827, 0
    %v3833 = vsel %vm65, %v3828, 0
    %3835 = vmatprep.subr.mxu0 0.0
    %3836 = vmatpush1.msra.mxu0 %v3817
    %3837 = vmatprep.subr.mxu0 0.0
    %3838 = vmatpush1.msra.mxu0 %v3818
    %3839 = vmatprep.subr.mxu0 0.0
    %3840 = vmatpush1.msra.mxu0 %v3819
    %3841 = vmatprep.subr.mxu0 0.0
    %3842 = vmatpush1.msra.mxu0 %v3820
    %3843 = vmatprep.subr.mxu0 0.0
    %3844 = vmatpush1.msra.mxu0 0.0
    %3845 = vmatprep.subr.mxu0 0.0
    %3846 = vmatpush1.msra.mxu0 0.0
    %3847 = vmatprep.subr.mxu0 0.0
    %3848 = vmatpush1.msra.mxu0 0.0
    %3849 = vmatprep.subr.mxu0 0.0
    %3850 = vmatpush1.msra.mxu0 0.0
    %3851 = vmatprep.subr.mxu0 0.0
    %3852 = vmatpush1.msra.mxu0 0.0
    %3853 = vmatprep.subr.mxu0 0.0
    %3854 = vmatpush1.msra.mxu0 0.0
    %3855 = vmatprep.subr.mxu0 0.0
    %3856 = vmatpush1.msra.mxu0 0.0
    %3857 = vmatprep.subr.mxu0 0.0
    %3858 = vmatpush1.msra.mxu0 0.0
    %3859 = vmatprep.subr.mxu0 0.0
    %3860 = vmatpush1.msra.mxu0 0.0
    %3861 = vmatprep.subr.mxu0 0.0
    %3862 = vmatpush1.msra.mxu0 0.0
    %3863 = vmatprep.subr.mxu0 0.0
    %3864 = vmatpush1.msra.mxu0 0.0
    %3865 = vmatprep.subr.mxu0 0.0
    %3866 = vmatpush1.msra.mxu0 0.0
    %3867 = vmatprep.subr.mxu0 0.0
    %3868 = vmatpush1.msra.mxu0 0.0
    %3869 = vmatprep.subr.mxu0 0.0
    %3870 = vmatpush1.msra.mxu0 0.0
    %3871 = vmatprep.subr.mxu0 0.0
    %3872 = vmatpush1.msra.mxu0 0.0
    %3873 = vmatprep.subr.mxu0 0.0
    %3874 = vmatpush1.msra.mxu0 0.0
    %3875 = vmatprep.subr.mxu0 0.0
    %3876 = vmatpush1.msra.mxu0 0.0
    %3877 = vmatprep.subr.mxu0 0.0
    %3878 = vmatpush1.msra.mxu0 0.0
    %3879 = vmatprep.subr.mxu0 0.0
    %3880 = vmatpush1.msra.mxu0 0.0
    %3881 = vmatprep.subr.mxu0 0.0
    %3882 = vmatpush1.msra.mxu0 0.0
    %3883 = vmatprep.subr.mxu0 0.0
    %3884 = vmatpush1.msra.mxu0 0.0
    %3885 = vmatprep.subr.mxu0 0.0
    %3886 = vmatpush1.msra.mxu0 0.0
    %3887 = vmatprep.subr.mxu0 0.0
    %3888 = vmatpush1.msra.mxu0 0.0
    %3889 = vmatprep.subr.mxu0 0.0
    %3890 = vmatpush1.msra.mxu0 0.0
    %3891 = vmatprep.subr.mxu0 0.0
    %3892 = vmatpush1.msra.mxu0 0.0
    %3893 = vmatprep.subr.mxu0 0.0
    %3894 = vmatpush1.msra.mxu0 0.0
    %3895 = vmatprep.subr.mxu0 0.0
    %3896 = vmatpush1.msra.mxu0 0.0
    %3897 = vmatprep.subr.mxu0 0.0
    %3898 = vmatpush1.msra.mxu0 0.0
    %3899 = vmatprep.mubr.f32.mxu0 0.0
    %3900 = vmatmul.mubr.f32.gmra.mrb[0].mxu0 %v3830
    %v3901 = vpop.f32.mrb[0].mxu0
    %v3902 = vadd.f32 0.0, %v3901
    %v3903 = vpop.f32.mrb[0].mxu0
    %3904 = vmatprep.mubr.f32.mxu0 0.0
    %3905 = vmatmul.mubr.f32.gmra.mrb[0].mxu0 %v3833
    %v3906 = vpop.f32.mrb[0].mxu0
    %v3907 = vadd.f32 0.0, %v3906
    %v3908 = vpop.f32.mrb[0].mxu0
    %3909 = vdwg.mxu0
    %3910 = vmatprep.subr.mxu0 0.0
    %3911 = vmatpush1.msra.mxu0 %v3812
    %3912 = vmatprep.subr.mxu0 0.0
    %3913 = vmatpush1.msra.mxu0 %v3813
    %3914 = vmatprep.subr.mxu0 0.0
    %3915 = vmatpush1.msra.mxu0 %v3814
    %3916 = vmatprep.subr.mxu0 0.0
    %3917 = vmatpush1.msra.mxu0 %v3815
    %3918 = vmatprep.subr.mxu0 0.0
    %3919 = vmatpush1.msra.mxu0 0.0
    %3920 = vmatprep.subr.mxu0 0.0
    %3921 = vmatpush1.msra.mxu0 0.0
    %3922 = vmatprep.subr.mxu0 0.0
    %3923 = vmatpush1.msra.mxu0 0.0
    %3924 = vmatprep.subr.mxu0 0.0
    %3925 = vmatpush1.msra.mxu0 0.0
    %3926 = vmatprep.subr.mxu0 0.0
    %3927 = vmatpush1.msra.mxu0 0.0
    %3928 = vmatprep.subr.mxu0 0.0
    %3929 = vmatpush1.msra.mxu0 0.0
    %3930 = vmatprep.subr.mxu0 0.0
    %3931 = vmatpush1.msra.mxu0 0.0
    %3932 = vmatprep.subr.mxu0 0.0
    %3933 = vmatpush1.msra.mxu0 0.0
    %3934 = vmatprep.subr.mxu0 0.0
    %3935 = vmatpush1.msra.mxu0 0.0
    %3936 = vmatprep.subr.mxu0 0.0
    %3937 = vmatpush1.msra.mxu0 0.0
    %3938 = vmatprep.subr.mxu0 0.0
    %3939 = vmatpush1.msra.mxu0 0.0
    %3940 = vmatprep.subr.mxu0 0.0
    %3941 = vmatpush1.msra.mxu0 0.0
    %3942 = vmatprep.subr.mxu0 0.0
    %3943 = vmatpush1.msra.mxu0 0.0
    %3944 = vmatprep.subr.mxu0 0.0
    %3945 = vmatpush1.msra.mxu0 0.0
    %3946 = vmatprep.subr.mxu0 0.0
    %3947 = vmatpush1.msra.mxu0 0.0
    %3948 = vmatprep.subr.mxu0 0.0
    %3949 = vmatpush1.msra.mxu0 0.0
    %3950 = vmatprep.subr.mxu0 0.0
    %3951 = vmatpush1.msra.mxu0 0.0
    %3952 = vmatprep.subr.mxu0 0.0
    %3953 = vmatpush1.msra.mxu0 0.0
    %3954 = vmatprep.subr.mxu0 0.0
    %3955 = vmatpush1.msra.mxu0 0.0
    %3956 = vmatprep.subr.mxu0 0.0
    %3957 = vmatpush1.msra.mxu0 0.0
    %3958 = vmatprep.subr.mxu0 0.0
    %3959 = vmatpush1.msra.mxu0 0.0
    %3960 = vmatprep.subr.mxu0 0.0
    %3961 = vmatpush1.msra.mxu0 0.0
    %3962 = vmatprep.subr.mxu0 0.0
    %3963 = vmatpush1.msra.mxu0 0.0
    %3964 = vmatprep.subr.mxu0 0.0
    %3965 = vmatpush1.msra.mxu0 0.0
    %3966 = vmatprep.subr.mxu0 0.0
    %3967 = vmatpush1.msra.mxu0 0.0
    %3968 = vmatprep.subr.mxu0 0.0
    %3969 = vmatpush1.msra.mxu0 0.0
    %3970 = vmatprep.subr.mxu0 0.0
    %3971 = vmatpush1.msra.mxu0 0.0
    %3972 = vmatprep.subr.mxu0 0.0
    %3973 = vmatpush1.msra.mxu0 0.0
    %3974 = vmatprep.mubr.f32.mxu0 0.0
    %3975 = vmatmul.mubr.f32.gmra.mrb[0].mxu0 %v3737
    %v3976 = vpop.f32.mrb[0].mxu0
    %v3977 = vadd.f32 0.0, %v3976
    %v3978 = vpop.f32.mrb[0].mxu0
    %3979 = vdwg.mxu0
    %3981 = vrot.lane.b32.xlu0 %v3716, 96
    %v3982 = vpop.permute.xlu0 %3981
    %v3983 = vsel %vm65, %v3982, 0
    %3985 = vmatprep.subr.mxu0 0.0
    %3986 = vmatpush1.msra.mxu0 %v3812
    %3987 = vmatprep.subr.mxu0 0.0
    %3988 = vmatpush1.msra.mxu0 %v3813
    %3989 = vmatprep.subr.mxu0 0.0
    %3990 = vmatpush1.msra.mxu0 %v3814
    %3991 = vmatprep.subr.mxu0 0.0
    %3992 = vmatpush1.msra.mxu0 %v3815
    %3993 = vmatprep.subr.mxu0 0.0
    %3994 = vmatpush1.msra.mxu0 0.0
    %3995 = vmatprep.subr.mxu0 0.0
    %3996 = vmatpush1.msra.mxu0 0.0
    %3997 = vmatprep.subr.mxu0 0.0
    %3998 = vmatpush1.msra.mxu0 0.0
    %3999 = vmatprep.subr.mxu0 0.0
    %4000 = vmatpush1.msra.mxu0 0.0
    %4001 = vmatprep.subr.mxu0 0.0
    %4002 = vmatpush1.msra.mxu0 0.0
    %4003 = vmatprep.subr.mxu0 0.0
    %4004 = vmatpush1.msra.mxu0 0.0
    %4005 = vmatprep.subr.mxu0 0.0
    %4006 = vmatpush1.msra.mxu0 0.0
    %4007 = vmatprep.subr.mxu0 0.0
    %4008 = vmatpush1.msra.mxu0 0.0
    %4009 = vmatprep.subr.mxu0 0.0
    %4010 = vmatpush1.msra.mxu0 0.0
    %4011 = vmatprep.subr.mxu0 0.0
    %4012 = vmatpush1.msra.mxu0 0.0
    %4013 = vmatprep.subr.mxu0 0.0
    %4014 = vmatpush1.msra.mxu0 0.0
    %4015 = vmatprep.subr.mxu0 0.0
    %4016 = vmatpush1.msra.mxu0 0.0
    %4017 = vmatprep.subr.mxu0 0.0
    %4018 = vmatpush1.msra.mxu0 0.0
    %4019 = vmatprep.subr.mxu0 0.0
    %4020 = vmatpush1.msra.mxu0 0.0
    %4021 = vmatprep.subr.mxu0 0.0
    %4022 = vmatpush1.msra.mxu0 0.0
    %4023 = vmatprep.subr.mxu0 0.0
    %4024 = vmatpush1.msra.mxu0 0.0
    %4025 = vmatprep.subr.mxu0 0.0
    %4026 = vmatpush1.msra.mxu0 0.0
    %4027 = vmatprep.subr.mxu0 0.0
    %4028 = vmatpush1.msra.mxu0 0.0
    %4029 = vmatprep.subr.mxu0 0.0
    %4030 = vmatpush1.msra.mxu0 0.0
    %4031 = vmatprep.subr.mxu0 0.0
    %4032 = vmatpush1.msra.mxu0 0.0
    %4033 = vmatprep.subr.mxu0 0.0
    %4034 = vmatpush1.msra.mxu0 0.0
    %4035 = vmatprep.subr.mxu0 0.0
    %4036 = vmatpush1.msra.mxu0 0.0
    %4037 = vmatprep.subr.mxu0 0.0
    %4038 = vmatpush1.msra.mxu0 0.0
    %4039 = vmatprep.subr.mxu0 0.0
    %4040 = vmatpush1.msra.mxu0 0.0
    %4041 = vmatprep.subr.mxu0 0.0
    %4042 = vmatpush1.msra.mxu0 0.0
    %4043 = vmatprep.subr.mxu0 0.0
    %4044 = vmatpush1.msra.mxu0 0.0
    %4045 = vmatprep.subr.mxu0 0.0
    %4046 = vmatpush1.msra.mxu0 0.0
    %4047 = vmatprep.subr.mxu0 0.0
    %4048 = vmatpush1.msra.mxu0 0.0
    %4049 = vmatprep.mubr.f32.mxu0 0.0
    %4050 = vmatmul.mubr.f32.gmra.mrb[0].mxu0 %v3983
    %v4051 = vpop.f32.mrb[0].mxu0
    %v4052 = vadd.f32 0.0, %v4051
    %v4053 = vpop.f32.mrb[0].mxu0
    %4054 = vdwg.mxu0
    %v4055 = vlaneseq
    %v4056 = vshrl.u32 %v4055, 7
    %v4057 = vsub.s32 0, %v4056
    %v4058 = vrot.slane %v3977, %v4057
    %v4059 = vadd.f32 %v3902, %v4058
    %v4060 = vadd.f32 %v3907, %v4058
    %v4061 = vtanh.pop %v4059
    %v4062 = vtanh.pop %v4060
    %v4064 = vsel %vm2651, %v4061, 0
    %v4067 = vsel %vm2651, %v4062, 0
    %4069 = vmatprep.subr.mxu0 0.0
    %4070 = vmatpush1.msra.mxu0 %v3822
    %4071 = vmatprep.subr.mxu0 0.0
    %4072 = vmatpush1.msra.mxu0 %v3823
    %4073 = vmatprep.subr.mxu0 0.0
    %4074 = vmatpush1.msra.mxu0 0.0
    %4075 = vmatprep.subr.mxu0 0.0
    %4076 = vmatpush1.msra.mxu0 0.0
    %4077 = vmatprep.subr.mxu0 0.0
    %4078 = vmatpush1.msra.mxu0 0.0
    %4079 = vmatprep.subr.mxu0 0.0
    %4080 = vmatpush1.msra.mxu0 0.0
    %4081 = vmatprep.subr.mxu0 0.0
    %4082 = vmatpush1.msra.mxu0 0.0
    %4083 = vmatprep.subr.mxu0 0.0
    %4084 = vmatpush1.msra.mxu0 0.0
    %4085 = vmatprep.subr.mxu0 0.0
    %4086 = vmatpush1.msra.mxu0 0.0
    %4087 = vmatprep.subr.mxu0 0.0
    %4088 = vmatpush1.msra.mxu0 0.0
    %4089 = vmatprep.subr.mxu0 0.0
    %4090 = vmatpush1.msra.mxu0 0.0
    %4091 = vmatprep.subr.mxu0 0.0
    %4092 = vmatpush1.msra.mxu0 0.0
    %4093 = vmatprep.subr.mxu0 0.0
    %4094 = vmatpush1.msra.mxu0 0.0
    %4095 = vmatprep.subr.mxu0 0.0
    %4096 = vmatpush1.msra.mxu0 0.0
    %4097 = vmatprep.subr.mxu0 0.0
    %4098 = vmatpush1.msra.mxu0 0.0
    %4099 = vmatprep.subr.mxu0 0.0
    %4100 = vmatpush1.msra.mxu0 0.0
    %4101 = vmatprep.subr.mxu0 0.0
    %4102 = vmatpush1.msra.mxu0 0.0
    %4103 = vmatprep.subr.mxu0 0.0
    %4104 = vmatpush1.msra.mxu0 0.0
    %4105 = vmatprep.subr.mxu0 0.0
    %4106 = vmatpush1.msra.mxu0 0.0
    %4107 = vmatprep.subr.mxu0 0.0
    %4108 = vmatpush1.msra.mxu0 0.0
    %4109 = vmatprep.subr.mxu0 0.0
    %4110 = vmatpush1.msra.mxu0 0.0
    %4111 = vmatprep.subr.mxu0 0.0
    %4112 = vmatpush1.msra.mxu0 0.0
    %4113 = vmatprep.subr.mxu0 0.0
    %4114 = vmatpush1.msra.mxu0 0.0
    %4115 = vmatprep.subr.mxu0 0.0
    %4116 = vmatpush1.msra.mxu0 0.0
    %4117 = vmatprep.subr.mxu0 0.0
    %4118 = vmatpush1.msra.mxu0 0.0
    %4119 = vmatprep.subr.mxu0 0.0
    %4120 = vmatpush1.msra.mxu0 0.0
    %4121 = vmatprep.subr.mxu0 0.0
    %4122 = vmatpush1.msra.mxu0 0.0
    %4123 = vmatprep.subr.mxu0 0.0
    %4124 = vmatpush1.msra.mxu0 0.0
    %4125 = vmatprep.subr.mxu0 0.0
    %4126 = vmatpush1.msra.mxu0 0.0
    %4127 = vmatprep.subr.mxu0 0.0
    %4128 = vmatpush1.msra.mxu0 0.0
    %4129 = vmatprep.subr.mxu0 0.0
    %4130 = vmatpush1.msra.mxu0 0.0
    %4131 = vmatprep.subr.mxu0 0.0
    %4132 = vmatpush1.msra.mxu0 0.0
    %4133 = vmatprep.mubr.f32.mxu0 0.0
    %4134 = vmatmul.mubr.f32.gmra.mrb[0].mxu0 %v4064
    %v4135 = vpop.f32.mrb[0].mxu0
    %v4136 = vadd.f32 0.0, %v4135
    %v4137 = vpop.f32.mrb[0].mxu0
    %4138 = vmatprep.mubr.f32.mxu0 0.0
    %4139 = vmatmul.mubr.f32.gmra.mrb[0].mxu0 %v4067
    %v4140 = vpop.f32.mrb[0].mxu0
    %v4141 = vadd.f32 0.0, %v4140
    %v4142 = vpop.f32.mrb[0].mxu0
    %4143 = vdwg.mxu0
    %v4144 = vlaneseq
    %v4145 = vshrl.u32 %v4144, 7
    %v4146 = vsub.s32 0, %v4145
    %v4147 = vrot.slane %v4052, %v4146
    %v4148 = vadd.f32 %v3902, %v4147
    %v4149 = vadd.f32 %v3907, %v4147
    %v4150 = vtanh.pop %v4148
    %v4151 = vtanh.pop %v4149
    %v4153 = vsel %vm2651, %v4150, 0
    %v4156 = vsel %vm2651, %v4151, 0
    %4158 = vmatprep.subr.mxu0 0.0
    %4159 = vmatpush1.msra.mxu0 %v3822
    %4160 = vmatprep.subr.mxu0 0.0
    %4161 = vmatpush1.msra.mxu0 %v3823
    %4162 = vmatprep.subr.mxu0 0.0
    %4163 = vmatpush1.msra.mxu0 0.0
    %4164 = vmatprep.subr.mxu0 0.0
    %4165 = vmatpush1.msra.mxu0 0.0
    %4166 = vmatprep.subr.mxu0 0.0
    %4167 = vmatpush1.msra.mxu0 0.0
    %4168 = vmatprep.subr.mxu0 0.0
    %4169 = vmatpush1.msra.mxu0 0.0
    %4170 = vmatprep.subr.mxu0 0.0
    %4171 = vmatpush1.msra.mxu0 0.0
    %4172 = vmatprep.subr.mxu0 0.0
    %4173 = vmatpush1.msra.mxu0 0.0
    %4174 = vmatprep.subr.mxu0 0.0
    %4175 = vmatpush1.msra.mxu0 0.0
    %4176 = vmatprep.subr.mxu0 0.0
    %4177 = vmatpush1.msra.mxu0 0.0
    %4178 = vmatprep.subr.mxu0 0.0
    %4179 = vmatpush1.msra.mxu0 0.0
    %4180 = vmatprep.subr.mxu0 0.0
    %4181 = vmatpush1.msra.mxu0 0.0
    %4182 = vmatprep.subr.mxu0 0.0
    %4183 = vmatpush1.msra.mxu0 0.0
    %4184 = vmatprep.subr.mxu0 0.0
    %4185 = vmatpush1.msra.mxu0 0.0
    %4186 = vmatprep.subr.mxu0 0.0
    %4187 = vmatpush1.msra.mxu0 0.0
    %4188 = vmatprep.subr.mxu0 0.0
    %4189 = vmatpush1.msra.mxu0 0.0
    %4190 = vmatprep.subr.mxu0 0.0
    %4191 = vmatpush1.msra.mxu0 0.0
    %4192 = vmatprep.subr.mxu0 0.0
    %4193 = vmatpush1.msra.mxu0 0.0
    %4194 = vmatprep.subr.mxu0 0.0
    %4195 = vmatpush1.msra.mxu0 0.0
    %4196 = vmatprep.subr.mxu0 0.0
    %4197 = vmatpush1.msra.mxu0 0.0
    %4198 = vmatprep.subr.mxu0 0.0
    %4199 = vmatpush1.msra.mxu0 0.0
    %4200 = vmatprep.subr.mxu0 0.0
    %4201 = vmatpush1.msra.mxu0 0.0
    %4202 = vmatprep.subr.mxu0 0.0
    %4203 = vmatpush1.msra.mxu0 0.0
    %4204 = vmatprep.subr.mxu0 0.0
    %4205 = vmatpush1.msra.mxu0 0.0
    %4206 = vmatprep.subr.mxu0 0.0
    %4207 = vmatpush1.msra.mxu0 0.0
    %4208 = vmatprep.subr.mxu0 0.0
    %4209 = vmatpush1.msra.mxu0 0.0
    %4210 = vmatprep.subr.mxu0 0.0
    %4211 = vmatpush1.msra.mxu0 0.0
    %4212 = vmatprep.subr.mxu0 0.0
    %4213 = vmatpush1.msra.mxu0 0.0
    %4214 = vmatprep.subr.mxu0 0.0
    %4215 = vmatpush1.msra.mxu0 0.0
    %4216 = vmatprep.subr.mxu0 0.0
    %4217 = vmatpush1.msra.mxu0 0.0
    %4218 = vmatprep.subr.mxu0 0.0
    %4219 = vmatpush1.msra.mxu0 0.0
    %4220 = vmatprep.subr.mxu0 0.0
    %4221 = vmatpush1.msra.mxu0 0.0
    %4222 = vmatprep.mubr.f32.mxu0 0.0
    %4223 = vmatmul.mubr.f32.gmra.mrb[0].mxu0 %v4153
    %v4224 = vpop.f32.mrb[0].mxu0
    %v4225 = vadd.f32 0.0, %v4224
    %v4226 = vpop.f32.mrb[0].mxu0
    %4227 = vmatprep.mubr.f32.mxu0 0.0
    %4228 = vmatmul.mubr.f32.gmra.mrb[0].mxu0 %v4156
    %v4229 = vpop.f32.mrb[0].mxu0
    %v4230 = vadd.f32 0.0, %v4229
    %v4231 = vpop.f32.mrb[0].mxu0
    %4232 = vdwg.mxu0
    %v4233 = vmax.f32 %v4136, %v4225
    %v4234 = vmax.f32 %v4141, %v4230
    %v4235 = vsub.f32 %v4136, %v4233
    %v4236 = vsub.f32 %v4141, %v4234
    %v4237 = vmul.f32 %v4235, 1.442695
    %v4238 = vpow.pop %v4237
    %v4239 = vmul.f32 %v4236, 1.442695
    %v4240 = vpow.pop %v4239
    %v4241 = vsub.f32 %v4225, %v4233
    %v4242 = vsub.f32 %v4230, %v4234
    %v4243 = vmul.f32 %v4241, 1.442695
    %v4244 = vpow.pop %v4243
    %v4245 = vmul.f32 %v4242, 1.442695
    %v4246 = vpow.pop %v4245
    %v4247 = vadd.f32 %v4238, %v4244
    %v4248 = vadd.f32 %v4240, %v4246
    %v4249 = vrcp.pop %v4247
    %v4250 = vmul.f32 1.0, %v4249
    %v4251 = vrcp.pop %v4248
    %v4252 = vmul.f32 1.0, %v4251
    %v4253 = vmul.f32 %v4238, %v4250
    %v4254 = vmul.f32 %v4240, %v4252
    %v4255 = vmul.f32 %v4244, %v4250
    %v4256 = vmul.f32 %v4246, %v4252
    %4258 = vset.pattern.permute.xlu0 0
    %4259 = vperm.xlu0 %4258, %v4253
    %v4260 = vpop.permute.xlu0 %4259
    %4263 = vset.pattern.permute.xlu0 0
    %4264 = vperm.xlu0 %4263, %v4254
    %v4265 = vpop.permute.xlu0 %4264
    %v4267 = vmul.f32 %v4260, %v3827
    %v4268 = vmul.f32 %v4265, %v3828
    %v4269 = vsel %vm65, %v4267, 0.0
    %v4270 = vsel %vm67, %v4268, 0.0
    %v4271 = vadd.f32 %v4269, %v4270
    %v4272 = vrot.slane %v4271, 4
    %v4273 = vadd.f32 %v4271, %v4272
    %v4274 = vrot.slane %v4273, 2
    %v4275 = vadd.f32 %v4273, %v4274
    %v4276 = vrot.slane %v4275, 1
    %v4277 = vadd.f32 %v4275, %v4276
    %4279 = vset.pattern.permute.xlu0 0
    %4280 = vperm.xlu0 %4279, %v4255
    %v4281 = vpop.permute.xlu0 %4280
    %4284 = vset.pattern.permute.xlu0 0
    %4285 = vperm.xlu0 %4284, %v4256
    %v4286 = vpop.permute.xlu0 %4285
    %v4288 = vmul.f32 %v4281, %v3827
    %v4289 = vmul.f32 %v4286, %v3828
    %v4290 = vsel %vm65, %v4288, 0.0
    %v4291 = vsel %vm67, %v4289, 0.0
    %v4292 = vadd.f32 %v4290, %v4291
    %v4293 = vrot.slane %v4292, 4
    %v4294 = vadd.f32 %v4292, %v4293
    %v4295 = vrot.slane %v4294, 2
    %v4296 = vadd.f32 %v4294, %v4295
    %v4297 = vrot.slane %v4296, 1
    %v4298 = vadd.f32 %v4296, %v4297
    %v4299 = vld [vmem:[%s1617] sm:$0xff]
    %v4300 = vld [vmem:[%s1617 + $0x8] sm:$0x7]
    %v4302 = vsel %vm65, %v4299, 0
    %v4305 = vsel %vm65, %v4300, 0
    %4307 = vmatprep.subr.mxu0 0.0
    %4308 = vmatpush1.msra.mxu0 %v3817
    %4309 = vmatprep.subr.mxu0 0.0
    %4310 = vmatpush1.msra.mxu0 %v3818
    %4311 = vmatprep.subr.mxu0 0.0
    %4312 = vmatpush1.msra.mxu0 %v3819
    %4313 = vmatprep.subr.mxu0 0.0
    %4314 = vmatpush1.msra.mxu0 %v3820
    %4315 = vmatprep.subr.mxu0 0.0
    %4316 = vmatpush1.msra.mxu0 0.0
    %4317 = vmatprep.subr.mxu0 0.0
    %4318 = vmatpush1.msra.mxu0 0.0
    %4319 = vmatprep.subr.mxu0 0.0
    %4320 = vmatpush1.msra.mxu0 0.0
    %4321 = vmatprep.subr.mxu0 0.0
    %4322 = vmatpush1.msra.mxu0 0.0
    %4323 = vmatprep.subr.mxu0 0.0
    %4324 = vmatpush1.msra.mxu0 0.0
    %4325 = vmatprep.subr.mxu0 0.0
    %4326 = vmatpush1.msra.mxu0 0.0
    %4327 = vmatprep.subr.mxu0 0.0
    %4328 = vmatpush1.msra.mxu0 0.0
    %4329 = vmatprep.subr.mxu0 0.0
    %4330 = vmatpush1.msra.mxu0 0.0
    %4331 = vmatprep.subr.mxu0 0.0
    %4332 = vmatpush1.msra.mxu0 0.0
    %4333 = vmatprep.subr.mxu0 0.0
    %4334 = vmatpush1.msra.mxu0 0.0
    %4335 = vmatprep.subr.mxu0 0.0
    %4336 = vmatpush1.msra.mxu0 0.0
    %4337 = vmatprep.subr.mxu0 0.0
    %4338 = vmatpush1.msra.mxu0 0.0
    %4339 = vmatprep.subr.mxu0 0.0
    %4340 = vmatpush1.msra.mxu0 0.0
    %4341 = vmatprep.subr.mxu0 0.0
    %4342 = vmatpush1.msra.mxu0 0.0
    %4343 = vmatprep.subr.mxu0 0.0
    %4344 = vmatpush1.msra.mxu0 0.0
    %4345 = vmatprep.subr.mxu0 0.0
    %4346 = vmatpush1.msra.mxu0 0.0
    %4347 = vmatprep.subr.mxu0 0.0
    %4348 = vmatpush1.msra.mxu0 0.0
    %4349 = vmatprep.subr.mxu0 0.0
    %4350 = vmatpush1.msra.mxu0 0.0
    %4351 = vmatprep.subr.mxu0 0.0
    %4352 = vmatpush1.msra.mxu0 0.0
    %4353 = vmatprep.subr.mxu0 0.0
    %4354 = vmatpush1.msra.mxu0 0.0
    %4355 = vmatprep.subr.mxu0 0.0
    %4356 = vmatpush1.msra.mxu0 0.0
    %4357 = vmatprep.subr.mxu0 0.0
    %4358 = vmatpush1.msra.mxu0 0.0
    %4359 = vmatprep.subr.mxu0 0.0
    %4360 = vmatpush1.msra.mxu0 0.0
    %4361 = vmatprep.subr.mxu0 0.0
    %4362 = vmatpush1.msra.mxu0 0.0
    %4363 = vmatprep.subr.mxu0 0.0
    %4364 = vmatpush1.msra.mxu0 0.0
    %4365 = vmatprep.subr.mxu0 0.0
    %4366 = vmatpush1.msra.mxu0 0.0
    %4367 = vmatprep.subr.mxu0 0.0
    %4368 = vmatpush1.msra.mxu0 0.0
    %4369 = vmatprep.subr.mxu0 0.0
    %4370 = vmatpush1.msra.mxu0 0.0
    %4371 = vmatprep.mubr.f32.mxu0 0.0
    %4372 = vmatmul.mubr.f32.gmra.mrb[0].mxu0 %v4302
    %v4373 = vpop.f32.mrb[0].mxu0
    %v4374 = vadd.f32 0.0, %v4373
    %v4375 = vpop.f32.mrb[0].mxu0
    %4376 = vmatprep.mubr.f32.mxu0 0.0
    %4377 = vmatmul.mubr.f32.gmra.mrb[0].mxu0 %v4305
    %v4378 = vpop.f32.mrb[0].mxu0
    %v4379 = vadd.f32 0.0, %v4378
    %v4380 = vpop.f32.mrb[0].mxu0
    %4381 = vdwg.mxu0
    %v4382 = vrot.slane %v3722, 1
    %4383 = vrot.lane.b32.xlu0 %v4382, 32
    %v4384 = vpop.permute.xlu0 %4383
    %v4385 = vsel %vm65, %v4384, 0
    %4387 = vmatprep.subr.mxu0 0.0
    %4388 = vmatpush1.msra.mxu0 %v3812
    %4389 = vmatprep.subr.mxu0 0.0
    %4390 = vmatpush1.msra.mxu0 %v3813
    %4391 = vmatprep.subr.mxu0 0.0
    %4392 = vmatpush1.msra.mxu0 %v3814
    %4393 = vmatprep.subr.mxu0 0.0
    %4394 = vmatpush1.msra.mxu0 %v3815
    %4395 = vmatprep.subr.mxu0 0.0
    %4396 = vmatpush1.msra.mxu0 0.0
    %4397 = vmatprep.subr.mxu0 0.0
    %4398 = vmatpush1.msra.mxu0 0.0
    %4399 = vmatprep.subr.mxu0 0.0
    %4400 = vmatpush1.msra.mxu0 0.0
    %4401 = vmatprep.subr.mxu0 0.0
    %4402 = vmatpush1.msra.mxu0 0.0
    %4403 = vmatprep.subr.mxu0 0.0
    %4404 = vmatpush1.msra.mxu0 0.0
    %4405 = vmatprep.subr.mxu0 0.0
    %4406 = vmatpush1.msra.mxu0 0.0
    %4407 = vmatprep.subr.mxu0 0.0
    %4408 = vmatpush1.msra.mxu0 0.0
    %4409 = vmatprep.subr.mxu0 0.0
    %4410 = vmatpush1.msra.mxu0 0.0
    %4411 = vmatprep.subr.mxu0 0.0
    %4412 = vmatpush1.msra.mxu0 0.0
    %4413 = vmatprep.subr.mxu0 0.0
    %4414 = vmatpush1.msra.mxu0 0.0
    %4415 = vmatprep.subr.mxu0 0.0
    %4416 = vmatpush1.msra.mxu0 0.0
    %4417 = vmatprep.subr.mxu0 0.0
    %4418 = vmatpush1.msra.mxu0 0.0
    %4419 = vmatprep.subr.mxu0 0.0
    %4420 = vmatpush1.msra.mxu0 0.0
    %4421 = vmatprep.subr.mxu0 0.0
    %4422 = vmatpush1.msra.mxu0 0.0
    %4423 = vmatprep.subr.mxu0 0.0
    %4424 = vmatpush1.msra.mxu0 0.0
    %4425 = vmatprep.subr.mxu0 0.0
    %4426 = vmatpush1.msra.mxu0 0.0
    %4427 = vmatprep.subr.mxu0 0.0
    %4428 = vmatpush1.msra.mxu0 0.0
    %4429 = vmatprep.subr.mxu0 0.0
    %4430 = vmatpush1.msra.mxu0 0.0
    %4431 = vmatprep.subr.mxu0 0.0
    %4432 = vmatpush1.msra.mxu0 0.0
    %4433 = vmatprep.subr.mxu0 0.0
    %4434 = vmatpush1.msra.mxu0 0.0
    %4435 = vmatprep.subr.mxu0 0.0
    %4436 = vmatpush1.msra.mxu0 0.0
    %4437 = vmatprep.subr.mxu0 0.0
    %4438 = vmatpush1.msra.mxu0 0.0
    %4439 = vmatprep.subr.mxu0 0.0
    %4440 = vmatpush1.msra.mxu0 0.0
    %4441 = vmatprep.subr.mxu0 0.0
    %4442 = vmatpush1.msra.mxu0 0.0
    %4443 = vmatprep.subr.mxu0 0.0
    %4444 = vmatpush1.msra.mxu0 0.0
    %4445 = vmatprep.subr.mxu0 0.0
    %4446 = vmatpush1.msra.mxu0 0.0
    %4447 = vmatprep.subr.mxu0 0.0
    %4448 = vmatpush1.msra.mxu0 0.0
    %4449 = vmatprep.subr.mxu0 0.0
    %4450 = vmatpush1.msra.mxu0 0.0
    %4451 = vmatprep.mubr.f32.mxu0 0.0
    %4452 = vmatmul.mubr.f32.gmra.mrb[0].mxu0 %v4385
    %v4453 = vpop.f32.mrb[0].mxu0
    %v4454 = vadd.f32 0.0, %v4453
    %v4455 = vpop.f32.mrb[0].mxu0
    %4456 = vdwg.mxu0
    %v4457 = vrot.slane %v3716, 1
    %4458 = vrot.lane.b32.xlu0 %v4457, 96
    %v4459 = vpop.permute.xlu0 %4458
    %v4460 = vsel %vm65, %v4459, 0
    %4462 = vmatprep.subr.mxu0 0.0
    %4463 = vmatpush1.msra.mxu0 %v3812
    %4464 = vmatprep.subr.mxu0 0.0
    %4465 = vmatpush1.msra.mxu0 %v3813
    %4466 = vmatprep.subr.mxu0 0.0
    %4467 = vmatpush1.msra.mxu0 %v3814
    %4468 = vmatprep.subr.mxu0 0.0
    %4469 = vmatpush1.msra.mxu0 %v3815
    %4470 = vmatprep.subr.mxu0 0.0
    %4471 = vmatpush1.msra.mxu0 0.0
    %4472 = vmatprep.subr.mxu0 0.0
    %4473 = vmatpush1.msra.mxu0 0.0
    %4474 = vmatprep.subr.mxu0 0.0
    %4475 = vmatpush1.msra.mxu0 0.0
    %4476 = vmatprep.subr.mxu0 0.0
    %4477 = vmatpush1.msra.mxu0 0.0
    %4478 = vmatprep.subr.mxu0 0.0
    %4479 = vmatpush1.msra.mxu0 0.0
    %4480 = vmatprep.subr.mxu0 0.0
    %4481 = vmatpush1.msra.mxu0 0.0
    %4482 = vmatprep.subr.mxu0 0.0
    %4483 = vmatpush1.msra.mxu0 0.0
    %4484 = vmatprep.subr.mxu0 0.0
    %4485 = vmatpush1.msra.mxu0 0.0
    %4486 = vmatprep.subr.mxu0 0.0
    %4487 = vmatpush1.msra.mxu0 0.0
    %4488 = vmatprep.subr.mxu0 0.0
    %4489 = vmatpush1.msra.mxu0 0.0
    %4490 = vmatprep.subr.mxu0 0.0
    %4491 = vmatpush1.msra.mxu0 0.0
    %4492 = vmatprep.subr.mxu0 0.0
    %4493 = vmatpush1.msra.mxu0 0.0
    %4494 = vmatprep.subr.mxu0 0.0
    %4495 = vmatpush1.msra.mxu0 0.0
    %4496 = vmatprep.subr.mxu0 0.0
    %4497 = vmatpush1.msra.mxu0 0.0
    %4498 = vmatprep.subr.mxu0 0.0
    %4499 = vmatpush1.msra.mxu0 0.0
    %4500 = vmatprep.subr.mxu0 0.0
    %4501 = vmatpush1.msra.mxu0 0.0
    %4502 = vmatprep.subr.mxu0 0.0
    %4503 = vmatpush1.msra.mxu0 0.0
    %4504 = vmatprep.subr.mxu0 0.0
    %4505 = vmatpush1.msra.mxu0 0.0
    %4506 = vmatprep.subr.mxu0 0.0
    %4507 = vmatpush1.msra.mxu0 0.0
    %4508 = vmatprep.subr.mxu0 0.0
    %4509 = vmatpush1.msra.mxu0 0.0
    %4510 = vmatprep.subr.mxu0 0.0
    %4511 = vmatpush1.msra.mxu0 0.0
    %4512 = vmatprep.subr.mxu0 0.0
    %4513 = vmatpush1.msra.mxu0 0.0
    %4514 = vmatprep.subr.mxu0 0.0
    %4515 = vmatpush1.msra.mxu0 0.0
    %4516 = vmatprep.subr.mxu0 0.0
    %4517 = vmatpush1.msra.mxu0 0.0
    %4518 = vmatprep.subr.mxu0 0.0
    %4519 = vmatpush1.msra.mxu0 0.0
    %4520 = vmatprep.subr.mxu0 0.0
    %4521 = vmatpush1.msra.mxu0 0.0
    %4522 = vmatprep.subr.mxu0 0.0
    %4523 = vmatpush1.msra.mxu0 0.0
    %4524 = vmatprep.subr.mxu0 0.0
    %4525 = vmatpush1.msra.mxu0 0.0
    %4526 = vmatprep.mubr.f32.mxu0 0.0
    %4527 = vmatmul.mubr.f32.gmra.mrb[0].mxu0 %v4460
    %v4528 = vpop.f32.mrb[0].mxu0
    %v4529 = vadd.f32 0.0, %v4528
    %v4530 = vpop.f32.mrb[0].mxu0
    %4531 = vdwg.mxu0
    %v4532 = vlaneseq
    %v4533 = vshrl.u32 %v4532, 7
    %v4534 = vsub.s32 0, %v4533
    %v4535 = vrot.slane %v4454, %v4534
    %v4536 = vadd.f32 %v4374, %v4535
    %v4537 = vadd.f32 %v4379, %v4535
    %v4538 = vtanh.pop %v4536
    %v4539 = vtanh.pop %v4537
    %v4541 = vsel %vm2651, %v4538, 0
    %v4544 = vsel %vm2651, %v4539, 0
    %4546 = vmatprep.subr.mxu0 0.0
    %4547 = vmatpush1.msra.mxu0 %v3822
    %4548 = vmatprep.subr.mxu0 0.0
    %4549 = vmatpush1.msra.mxu0 %v3823
    %4550 = vmatprep.subr.mxu0 0.0
    %4551 = vmatpush1.msra.mxu0 0.0
    %4552 = vmatprep.subr.mxu0 0.0
    %4553 = vmatpush1.msra.mxu0 0.0
    %4554 = vmatprep.subr.mxu0 0.0
    %4555 = vmatpush1.msra.mxu0 0.0
    %4556 = vmatprep.subr.mxu0 0.0
    %4557 = vmatpush1.msra.mxu0 0.0
    %4558 = vmatprep.subr.mxu0 0.0
    %4559 = vmatpush1.msra.mxu0 0.0
    %4560 = vmatprep.subr.mxu0 0.0
    %4561 = vmatpush1.msra.mxu0 0.0
    %4562 = vmatprep.subr.mxu0 0.0
    %4563 = vmatpush1.msra.mxu0 0.0
    %4564 = vmatprep.subr.mxu0 0.0
    %4565 = vmatpush1.msra.mxu0 0.0
    %4566 = vmatprep.subr.mxu0 0.0
    %4567 = vmatpush1.msra.mxu0 0.0
    %4568 = vmatprep.subr.mxu0 0.0
    %4569 = vmatpush1.msra.mxu0 0.0
    %4570 = vmatprep.subr.mxu0 0.0
    %4571 = vmatpush1.msra.mxu0 0.0
    %4572 = vmatprep.subr.mxu0 0.0
    %4573 = vmatpush1.msra.mxu0 0.0
    %4574 = vmatprep.subr.mxu0 0.0
    %4575 = vmatpush1.msra.mxu0 0.0
    %4576 = vmatprep.subr.mxu0 0.0
    %4577 = vmatpush1.msra.mxu0 0.0
    %4578 = vmatprep.subr.mxu0 0.0
    %4579 = vmatpush1.msra.mxu0 0.0
    %4580 = vmatprep.subr.mxu0 0.0
    %4581 = vmatpush1.msra.mxu0 0.0
    %4582 = vmatprep.subr.mxu0 0.0
    %4583 = vmatpush1.msra.mxu0 0.0
    %4584 = vmatprep.subr.mxu0 0.0
    %4585 = vmatpush1.msra.mxu0 0.0
    %4586 = vmatprep.subr.mxu0 0.0
    %4587 = vmatpush1.msra.mxu0 0.0
    %4588 = vmatprep.subr.mxu0 0.0
    %4589 = vmatpush1.msra.mxu0 0.0
    %4590 = vmatprep.subr.mxu0 0.0
    %4591 = vmatpush1.msra.mxu0 0.0
    %4592 = vmatprep.subr.mxu0 0.0
    %4593 = vmatpush1.msra.mxu0 0.0
    %4594 = vmatprep.subr.mxu0 0.0
    %4595 = vmatpush1.msra.mxu0 0.0
    %4596 = vmatprep.subr.mxu0 0.0
    %4597 = vmatpush1.msra.mxu0 0.0
    %4598 = vmatprep.subr.mxu0 0.0
    %4599 = vmatpush1.msra.mxu0 0.0
    %4600 = vmatprep.subr.mxu0 0.0
    %4601 = vmatpush1.msra.mxu0 0.0
    %4602 = vmatprep.subr.mxu0 0.0
    %4603 = vmatpush1.msra.mxu0 0.0
    %4604 = vmatprep.subr.mxu0 0.0
    %4605 = vmatpush1.msra.mxu0 0.0
    %4606 = vmatprep.subr.mxu0 0.0
    %4607 = vmatpush1.msra.mxu0 0.0
    %4608 = vmatprep.subr.mxu0 0.0
    %4609 = vmatpush1.msra.mxu0 0.0
    %4610 = vmatprep.mubr.f32.mxu0 0.0
    %4611 = vmatmul.mubr.f32.gmra.mrb[0].mxu0 %v4541
    %v4612 = vpop.f32.mrb[0].mxu0
    %v4613 = vadd.f32 0.0, %v4612
    %v4614 = vpop.f32.mrb[0].mxu0
    %4615 = vmatprep.mubr.f32.mxu0 0.0
    %4616 = vmatmul.mubr.f32.gmra.mrb[0].mxu0 %v4544
    %v4617 = vpop.f32.mrb[0].mxu0
    %v4618 = vadd.f32 0.0, %v4617
    %v4619 = vpop.f32.mrb[0].mxu0
    %4620 = vdwg.mxu0
    %v4621 = vlaneseq
    %v4622 = vshrl.u32 %v4621, 7
    %v4623 = vsub.s32 0, %v4622
    %v4624 = vrot.slane %v4529, %v4623
    %v4625 = vadd.f32 %v4374, %v4624
    %v4626 = vadd.f32 %v4379, %v4624
    %v4627 = vtanh.pop %v4625
    %v4628 = vtanh.pop %v4626
    %v4630 = vsel %vm2651, %v4627, 0
    %v4633 = vsel %vm2651, %v4628, 0
    %4635 = vmatprep.subr.mxu0 0.0
    %4636 = vmatpush1.msra.mxu0 %v3822
    %4637 = vmatprep.subr.mxu0 0.0
    %4638 = vmatpush1.msra.mxu0 %v3823
    %4639 = vmatprep.subr.mxu0 0.0
    %4640 = vmatpush1.msra.mxu0 0.0
    %4641 = vmatprep.subr.mxu0 0.0
    %4642 = vmatpush1.msra.mxu0 0.0
    %4643 = vmatprep.subr.mxu0 0.0
    %4644 = vmatpush1.msra.mxu0 0.0
    %4645 = vmatprep.subr.mxu0 0.0
    %4646 = vmatpush1.msra.mxu0 0.0
    %4647 = vmatprep.subr.mxu0 0.0
    %4648 = vmatpush1.msra.mxu0 0.0
    %4649 = vmatprep.subr.mxu0 0.0
    %4650 = vmatpush1.msra.mxu0 0.0
    %4651 = vmatprep.subr.mxu0 0.0
    %4652 = vmatpush1.msra.mxu0 0.0
    %4653 = vmatprep.subr.mxu0 0.0
    %4654 = vmatpush1.msra.mxu0 0.0
    %4655 = vmatprep.subr.mxu0 0.0
    %4656 = vmatpush1.msra.mxu0 0.0
    %4657 = vmatprep.subr.mxu0 0.0
    %4658 = vmatpush1.msra.mxu0 0.0
    %4659 = vmatprep.subr.mxu0 0.0
    %4660 = vmatpush1.msra.mxu0 0.0
    %4661 = vmatprep.subr.mxu0 0.0
    %4662 = vmatpush1.msra.mxu0 0.0
    %4663 = vmatprep.subr.mxu0 0.0
    %4664 = vmatpush1.msra.mxu0 0.0
    %4665 = vmatprep.subr.mxu0 0.0
    %4666 = vmatpush1.msra.mxu0 0.0
    %4667 = vmatprep.subr.mxu0 0.0
    %4668 = vmatpush1.msra.mxu0 0.0
    %4669 = vmatprep.subr.mxu0 0.0
    %4670 = vmatpush1.msra.mxu0 0.0
    %4671 = vmatprep.subr.mxu0 0.0
    %4672 = vmatpush1.msra.mxu0 0.0
    %4673 = vmatprep.subr.mxu0 0.0
    %4674 = vmatpush1.msra.mxu0 0.0
    %4675 = vmatprep.subr.mxu0 0.0
    %4676 = vmatpush1.msra.mxu0 0.0
    %4677 = vmatprep.subr.mxu0 0.0
    %4678 = vmatpush1.msra.mxu0 0.0
    %4679 = vmatprep.subr.mxu0 0.0
    %4680 = vmatpush1.msra.mxu0 0.0
    %4681 = vmatprep.subr.mxu0 0.0
    %4682 = vmatpush1.msra.mxu0 0.0
    %4683 = vmatprep.subr.mxu0 0.0
    %4684 = vmatpush1.msra.mxu0 0.0
    %4685 = vmatprep.subr.mxu0 0.0
    %4686 = vmatpush1.msra.mxu0 0.0
    %4687 = vmatprep.subr.mxu0 0.0
    %4688 = vmatpush1.msra.mxu0 0.0
    %4689 = vmatprep.subr.mxu0 0.0
    %4690 = vmatpush1.msra.mxu0 0.0
    %4691 = vmatprep.subr.mxu0 0.0
    %4692 = vmatpush1.msra.mxu0 0.0
    %4693 = vmatprep.subr.mxu0 0.0
    %4694 = vmatpush1.msra.mxu0 0.0
    %4695 = vmatprep.subr.mxu0 0.0
    %4696 = vmatpush1.msra.mxu0 0.0
    %4697 = vmatprep.subr.mxu0 0.0
    %4698 = vmatpush1.msra.mxu0 0.0
    %4699 = vmatprep.mubr.f32.mxu0 0.0
    %4700 = vmatmul.mubr.f32.gmra.mrb[0].mxu0 %v4630
    %v4701 = vpop.f32.mrb[0].mxu0
    %v4702 = vadd.f32 0.0, %v4701
    %v4703 = vpop.f32.mrb[0].mxu0
    %4704 = vmatprep.mubr.f32.mxu0 0.0
    %4705 = vmatmul.mubr.f32.gmra.mrb[0].mxu0 %v4633
    %v4706 = vpop.f32.mrb[0].mxu0
    %v4707 = vadd.f32 0.0, %v4706
    %v4708 = vpop.f32.mrb[0].mxu0
    %4709 = vdwg.mxu0
    %v4710 = vmax.f32 %v4613, %v4702
    %v4711 = vmax.f32 %v4618, %v4707
    %v4712 = vsub.f32 %v4613, %v4710
    %v4713 = vsub.f32 %v4618, %v4711
    %v4714 = vmul.f32 %v4712, 1.442695
    %v4715 = vpow.pop %v4714
    %v4716 = vmul.f32 %v4713, 1.442695
    %v4717 = vpow.pop %v4716
    %v4718 = vsub.f32 %v4702, %v4710
    %v4719 = vsub.f32 %v4707, %v4711
    %v4720 = vmul.f32 %v4718, 1.442695
    %v4721 = vpow.pop %v4720
    %v4722 = vmul.f32 %v4719, 1.442695
    %v4723 = vpow.pop %v4722
    %v4724 = vadd.f32 %v4715, %v4721
    %v4725 = vadd.f32 %v4717, %v4723
    %v4726 = vrcp.pop %v4724
    %v4727 = vmul.f32 1.0, %v4726
    %v4728 = vrcp.pop %v4725
    %v4729 = vmul.f32 1.0, %v4728
    %v4730 = vmul.f32 %v4715, %v4727
    %v4731 = vmul.f32 %v4717, %v4729
    %v4732 = vmul.f32 %v4721, %v4727
    %v4733 = vmul.f32 %v4723, %v4729
    %4735 = vset.pattern.permute.xlu0 0
    %4736 = vperm.xlu0 %4735, %v4730
    %v4737 = vpop.permute.xlu0 %4736
    %4740 = vset.pattern.permute.xlu0 0
    %4741 = vperm.xlu0 %4740, %v4731
    %v4742 = vpop.permute.xlu0 %4741
    %v4744 = vmul.f32 %v4737, %v4299
    %v4745 = vmul.f32 %v4742, %v4300
    %v4746 = vsel %vm65, %v4744, 0.0
    %v4747 = vsel %vm67, %v4745, 0.0
    %v4748 = vadd.f32 %v4746, %v4747
    %v4749 = vrot.slane %v4748, 4
    %v4750 = vadd.f32 %v4748, %v4749
    %v4751 = vrot.slane %v4750, 2
    %v4752 = vadd.f32 %v4750, %v4751
    %v4753 = vrot.slane %v4752, 1
    %v4754 = vadd.f32 %v4752, %v4753
    %4756 = vset.pattern.permute.xlu0 0
    %4757 = vperm.xlu0 %4756, %v4732
    %v4758 = vpop.permute.xlu0 %4757
    %4761 = vset.pattern.permute.xlu0 0
    %4762 = vperm.xlu0 %4761, %v4733
    %v4763 = vpop.permute.xlu0 %4762
    %v4765 = vmul.f32 %v4758, %v4299
    %v4766 = vmul.f32 %v4763, %v4300
    %v4767 = vsel %vm65, %v4765, 0.0
    %v4768 = vsel %vm67, %v4766, 0.0
    %v4769 = vadd.f32 %v4767, %v4768
    %v4770 = vrot.slane %v4769, 4
    %v4771 = vadd.f32 %v4769, %v4770
    %v4772 = vrot.slane %v4771, 2
    %v4773 = vadd.f32 %v4771, %v4772
    %v4774 = vrot.slane %v4773, 1
    %v4775 = vadd.f32 %v4773, %v4774
    %v4776 = vsel %vm1507, %v4277, %v4754
    %v4777 = vsel %vm1507, %v4298, %v4775
    %v4778 = vld [vmem:[%s11] sm:$0xff]
    %v4779 = vld [vmem:[%s11 + $0x8] sm:$0xff]
    %v4780 = vld [vmem:[%s11 + $0x10] sm:$0xff]
    %v4781 = vld [vmem:[%s11 + $0x18] sm:$0xff]
    %v4782 = vld [vmem:[%s12] sm:$0xff]
    %v4783 = vld [vmem:[%s12 + $0x8] sm:$0xff]
    %v4784 = vld [vmem:[%s12 + $0x10] sm:$0xff]
    %v4785 = vld [vmem:[%s12 + $0x18] sm:$0xff]
    %4786 = vmatprep.subr.mxu0 0.0
    %4787 = vmatpush1.msra.mxu0 %v4782
    %4788 = vmatprep.subr.mxu0 0.0
    %4789 = vmatpush1.msra.mxu0 %v4783
    %4790 = vmatprep.subr.mxu0 0.0
    %4791 = vmatpush1.msra.mxu0 %v4784
    %4792 = vmatprep.subr.mxu0 0.0
    %4793 = vmatpush1.msra.mxu0 %v4785
    %4794 = vmatprep.subr.mxu0 0.0
    %4795 = vmatpush1.msra.mxu0 0.0
    %4796 = vmatprep.subr.mxu0 0.0
    %4797 = vmatpush1.msra.mxu0 0.0
    %4798 = vmatprep.subr.mxu0 0.0
    %4799 = vmatpush1.msra.mxu0 0.0
    %4800 = vmatprep.subr.mxu0 0.0
    %4801 = vmatpush1.msra.mxu0 0.0
    %4802 = vmatprep.subr.mxu0 0.0
    %4803 = vmatpush1.msra.mxu0 0.0
    %4804 = vmatprep.subr.mxu0 0.0
    %4805 = vmatpush1.msra.mxu0 0.0
    %4806 = vmatprep.subr.mxu0 0.0
    %4807 = vmatpush1.msra.mxu0 0.0
    %4808 = vmatprep.subr.mxu0 0.0
    %4809 = vmatpush1.msra.mxu0 0.0
    %4810 = vmatprep.subr.mxu0 0.0
    %4811 = vmatpush1.msra.mxu0 0.0
    %4812 = vmatprep.subr.mxu0 0.0
    %4813 = vmatpush1.msra.mxu0 0.0
    %4814 = vmatprep.subr.mxu0 0.0
    %4815 = vmatpush1.msra.mxu0 0.0
    %4816 = vmatprep.subr.mxu0 0.0
    %4817 = vmatpush1.msra.mxu0 0.0
    %4818 = vmatprep.subr.mxu0 0.0
    %4819 = vmatpush1.msra.mxu0 0.0
    %4820 = vmatprep.subr.mxu0 0.0
    %4821 = vmatpush1.msra.mxu0 0.0
    %4822 = vmatprep.subr.mxu0 0.0
    %4823 = vmatpush1.msra.mxu0 0.0
    %4824 = vmatprep.subr.mxu0 0.0
    %4825 = vmatpush1.msra.mxu0 0.0
    %4826 = vmatprep.subr.mxu0 0.0
    %4827 = vmatpush1.msra.mxu0 0.0
    %4828 = vmatprep.subr.mxu0 0.0
    %4829 = vmatpush1.msra.mxu0 0.0
    %4830 = vmatprep.subr.mxu0 0.0
    %4831 = vmatpush1.msra.mxu0 0.0
    %4832 = vmatprep.subr.mxu0 0.0
    %4833 = vmatpush1.msra.mxu0 0.0
    %4834 = vmatprep.subr.mxu0 0.0
    %4835 = vmatpush1.msra.mxu0 0.0
    %4836 = vmatprep.subr.mxu0 0.0
    %4837 = vmatpush1.msra.mxu0 0.0
    %4838 = vmatprep.subr.mxu0 0.0
    %4839 = vmatpush1.msra.mxu0 0.0
    %4840 = vmatprep.subr.mxu0 0.0
    %4841 = vmatpush1.msra.mxu0 0.0
    %4842 = vmatprep.subr.mxu0 0.0
    %4843 = vmatpush1.msra.mxu0 0.0
    %4844 = vmatprep.subr.mxu0 0.0
    %4845 = vmatpush1.msra.mxu0 0.0
    %4846 = vmatprep.subr.mxu0 0.0
    %4847 = vmatpush1.msra.mxu0 0.0
    %4848 = vmatprep.subr.mxu0 0.0
    %4849 = vmatpush1.msra.mxu0 0.0
    %4850 = vmatprep.mubr.f32.mxu0 0.0
    %4851 = vmatmul.mubr.f32.gmra.mrb[0].mxu0 %v3737
    %v4852 = vpop.f32.mrb[0].mxu0
    %v4853 = vadd.f32 0.0, %v4852
    %v4854 = vpop.f32.mrb[0].mxu0
    %4855 = vdwg.mxu0
    %v4857 = vsel %vm65, %v4776, 0
    %4859 = vmatprep.subr.mxu0 0.0
    %4860 = vmatpush1.msra.mxu0 %v4778
    %4861 = vmatprep.subr.mxu0 0.0
    %4862 = vmatpush1.msra.mxu0 %v4779
    %4863 = vmatprep.subr.mxu0 0.0
    %4864 = vmatpush1.msra.mxu0 %v4780
    %4865 = vmatprep.subr.mxu0 0.0
    %4866 = vmatpush1.msra.mxu0 %v4781
    %4867 = vmatprep.subr.mxu0 0.0
    %4868 = vmatpush1.msra.mxu0 0.0
    %4869 = vmatprep.subr.mxu0 0.0
    %4870 = vmatpush1.msra.mxu0 0.0
    %4871 = vmatprep.subr.mxu0 0.0
    %4872 = vmatpush1.msra.mxu0 0.0
    %4873 = vmatprep.subr.mxu0 0.0
    %4874 = vmatpush1.msra.mxu0 0.0
    %4875 = vmatprep.subr.mxu0 0.0
    %4876 = vmatpush1.msra.mxu0 0.0
    %4877 = vmatprep.subr.mxu0 0.0
    %4878 = vmatpush1.msra.mxu0 0.0
    %4879 = vmatprep.subr.mxu0 0.0
    %4880 = vmatpush1.msra.mxu0 0.0
    %4881 = vmatprep.subr.mxu0 0.0
    %4882 = vmatpush1.msra.mxu0 0.0
    %4883 = vmatprep.subr.mxu0 0.0
    %4884 = vmatpush1.msra.mxu0 0.0
    %4885 = vmatprep.subr.mxu0 0.0
    %4886 = vmatpush1.msra.mxu0 0.0
    %4887 = vmatprep.subr.mxu0 0.0
    %4888 = vmatpush1.msra.mxu0 0.0
    %4889 = vmatprep.subr.mxu0 0.0
    %4890 = vmatpush1.msra.mxu0 0.0
    %4891 = vmatprep.subr.mxu0 0.0
    %4892 = vmatpush1.msra.mxu0 0.0
    %4893 = vmatprep.subr.mxu0 0.0
    %4894 = vmatpush1.msra.mxu0 0.0
    %4895 = vmatprep.subr.mxu0 0.0
    %4896 = vmatpush1.msra.mxu0 0.0
    %4897 = vmatprep.subr.mxu0 0.0
    %4898 = vmatpush1.msra.mxu0 0.0
    %4899 = vmatprep.subr.mxu0 0.0
    %4900 = vmatpush1.msra.mxu0 0.0
    %4901 = vmatprep.subr.mxu0 0.0
    %4902 = vmatpush1.msra.mxu0 0.0
    %4903 = vmatprep.subr.mxu0 0.0
    %4904 = vmatpush1.msra.mxu0 0.0
    %4905 = vmatprep.subr.mxu0 0.0
    %4906 = vmatpush1.msra.mxu0 0.0
    %4907 = vmatprep.subr.mxu0 0.0
    %4908 = vmatpush1.msra.mxu0 0.0
    %4909 = vmatprep.subr.mxu0 0.0
    %4910 = vmatpush1.msra.mxu0 0.0
    %4911 = vmatprep.subr.mxu0 0.0
    %4912 = vmatpush1.msra.mxu0 0.0
    %4913 = vmatprep.subr.mxu0 0.0
    %4914 = vmatpush1.msra.mxu0 0.0
    %4915 = vmatprep.subr.mxu0 0.0
    %4916 = vmatpush1.msra.mxu0 0.0
    %4917 = vmatprep.subr.mxu0 0.0
    %4918 = vmatpush1.msra.mxu0 0.0
    %4919 = vmatprep.subr.mxu0 0.0
    %4920 = vmatpush1.msra.mxu0 0.0
    %4921 = vmatprep.subr.mxu0 0.0
    %4922 = vmatpush1.msra.mxu0 0.0
    %4923 = vmatprep.mubr.f32.mxu0 0.0
    %4924 = vmatmul.mubr.f32.gmra.mrb[0].mxu0 %v4857
    %v4925 = vpop.f32.mrb[0].mxu0
    %v4926 = vadd.f32 %v4853, %v4925
    %v4927 = vpop.f32.mrb[0].mxu0
    %4928 = vdwg.mxu0
    %v4929 = vld [vmem:[%s13] sm:$0x1]
    %v4931 = vlaneseq
    %v4932 = vshrl.u32 %v4931, 7
    %v4933 = vsub.s32 0, %v4932
    %v4934 = vrot.slane %v4929, %v4933
    %v4936 = vadd.f32 %v4926, %v4934
    %v4937 = vxor.u32 %v4936, 2147483648
    %v4938 = vmul.f32 %v4937, 1.442695
    %v4939 = vpow.pop %v4938
    %v4940 = vadd.f32 %v4939, 1.0
    %v4941 = vrcp.pop %v4940
    %v4942 = vmul.f32 1.0, %v4941
    %v4943 = vtanh.pop %v4936
    %v4944 = vmul.f32 %v4942, %v3716
    %4946 = vrot.lane.b32.xlu0 %v4943, 64
    %v4947 = vpop.permute.xlu0 %4946
    %v4949 = vmul.f32 %v4942, %v4947
    %4951 = vrot.lane.b32.xlu0 %v4949, 32
    %v4952 = vpop.permute.xlu0 %4951
    %v4954 = vadd.f32 %v4944, %v4952
    %v4955 = vtanh.pop %v4954
    %4957 = vrot.lane.b32.xlu0 %v4955, 64
    %v4958 = vpop.permute.xlu0 %4957
    %v4960 = vmul.f32 %v4942, %v4958
    %4962 = vrot.lane.b32.xlu0 %v4960, 32
    %v4963 = vpop.permute.xlu0 %4962
    %v4964 = vsel %vm65, %v4963, 0
    %4966 = vmatprep.subr.mxu0 0.0
    %4967 = vmatpush1.msra.mxu0 %v4782
    %4968 = vmatprep.subr.mxu0 0.0
    %4969 = vmatpush1.msra.mxu0 %v4783
    %4970 = vmatprep.subr.mxu0 0.0
    %4971 = vmatpush1.msra.mxu0 %v4784
    %4972 = vmatprep.subr.mxu0 0.0
    %4973 = vmatpush1.msra.mxu0 %v4785
    %4974 = vmatprep.subr.mxu0 0.0
    %4975 = vmatpush1.msra.mxu0 0.0
    %4976 = vmatprep.subr.mxu0 0.0
    %4977 = vmatpush1.msra.mxu0 0.0
    %4978 = vmatprep.subr.mxu0 0.0
    %4979 = vmatpush1.msra.mxu0 0.0
    %4980 = vmatprep.subr.mxu0 0.0
    %4981 = vmatpush1.msra.mxu0 0.0
    %4982 = vmatprep.subr.mxu0 0.0
    %4983 = vmatpush1.msra.mxu0 0.0
    %4984 = vmatprep.subr.mxu0 0.0
    %4985 = vmatpush1.msra.mxu0 0.0
    %4986 = vmatprep.subr.mxu0 0.0
    %4987 = vmatpush1.msra.mxu0 0.0
    %4988 = vmatprep.subr.mxu0 0.0
    %4989 = vmatpush1.msra.mxu0 0.0
    %4990 = vmatprep.subr.mxu0 0.0
    %4991 = vmatpush1.msra.mxu0 0.0
    %4992 = vmatprep.subr.mxu0 0.0
    %4993 = vmatpush1.msra.mxu0 0.0
    %4994 = vmatprep.subr.mxu0 0.0
    %4995 = vmatpush1.msra.mxu0 0.0
    %4996 = vmatprep.subr.mxu0 0.0
    %4997 = vmatpush1.msra.mxu0 0.0
    %4998 = vmatprep.subr.mxu0 0.0
    %4999 = vmatpush1.msra.mxu0 0.0
    %5000 = vmatprep.subr.mxu0 0.0
    %5001 = vmatpush1.msra.mxu0 0.0
    %5002 = vmatprep.subr.mxu0 0.0
    %5003 = vmatpush1.msra.mxu0 0.0
    %5004 = vmatprep.subr.mxu0 0.0
    %5005 = vmatpush1.msra.mxu0 0.0
    %5006 = vmatprep.subr.mxu0 0.0
    %5007 = vmatpush1.msra.mxu0 0.0
    %5008 = vmatprep.subr.mxu0 0.0
    %5009 = vmatpush1.msra.mxu0 0.0
    %5010 = vmatprep.subr.mxu0 0.0
    %5011 = vmatpush1.msra.mxu0 0.0
    %5012 = vmatprep.subr.mxu0 0.0
    %5013 = vmatpush1.msra.mxu0 0.0
    %5014 = vmatprep.subr.mxu0 0.0
    %5015 = vmatpush1.msra.mxu0 0.0
    %5016 = vmatprep.subr.mxu0 0.0
    %5017 = vmatpush1.msra.mxu0 0.0
    %5018 = vmatprep.subr.mxu0 0.0
    %5019 = vmatpush1.msra.mxu0 0.0
    %5020 = vmatprep.subr.mxu0 0.0
    %5021 = vmatpush1.msra.mxu0 0.0
    %5022 = vmatprep.subr.mxu0 0.0
    %5023 = vmatpush1.msra.mxu0 0.0
    %5024 = vmatprep.subr.mxu0 0.0
    %5025 = vmatpush1.msra.mxu0 0.0
    %5026 = vmatprep.subr.mxu0 0.0
    %5027 = vmatpush1.msra.mxu0 0.0
    %5028 = vmatprep.subr.mxu0 0.0
    %5029 = vmatpush1.msra.mxu0 0.0
    %5030 = vmatprep.mubr.f32.mxu0 0.0
    %5031 = vmatmul.mubr.f32.gmra.mrb[0].mxu0 %v4964
    %v5032 = vpop.f32.mrb[0].mxu0
    %v5033 = vadd.f32 0.0, %v5032
    %v5034 = vpop.f32.mrb[0].mxu0
    %5035 = vdwg.mxu0
    %v5037 = vsel %vm65, %v4777, 0
    %5039 = vmatprep.subr.mxu0 0.0
    %5040 = vmatpush1.msra.mxu0 %v4778
    %5041 = vmatprep.subr.mxu0 0.0
    %5042 = vmatpush1.msra.mxu0 %v4779
    %5043 = vmatprep.subr.mxu0 0.0
    %5044 = vmatpush1.msra.mxu0 %v4780
    %5045 = vmatprep.subr.mxu0 0.0
    %5046 = vmatpush1.msra.mxu0 %v4781
    %5047 = vmatprep.subr.mxu0 0.0
    %5048 = vmatpush1.msra.mxu0 0.0
    %5049 = vmatprep.subr.mxu0 0.0
    %5050 = vmatpush1.msra.mxu0 0.0
    %5051 = vmatprep.subr.mxu0 0.0
    %5052 = vmatpush1.msra.mxu0 0.0
    %5053 = vmatprep.subr.mxu0 0.0
    %5054 = vmatpush1.msra.mxu0 0.0
    %5055 = vmatprep.subr.mxu0 0.0
    %5056 = vmatpush1.msra.mxu0 0.0
    %5057 = vmatprep.subr.mxu0 0.0
    %5058 = vmatpush1.msra.mxu0 0.0
    %5059 = vmatprep.subr.mxu0 0.0
    %5060 = vmatpush1.msra.mxu0 0.0
    %5061 = vmatprep.subr.mxu0 0.0
    %5062 = vmatpush1.msra.mxu0 0.0
    %5063 = vmatprep.subr.mxu0 0.0
    %5064 = vmatpush1.msra.mxu0 0.0
    %5065 = vmatprep.subr.mxu0 0.0
    %5066 = vmatpush1.msra.mxu0 0.0
    %5067 = vmatprep.subr.mxu0 0.0
    %5068 = vmatpush1.msra.mxu0 0.0
    %5069 = vmatprep.subr.mxu0 0.0
    %5070 = vmatpush1.msra.mxu0 0.0
    %5071 = vmatprep.subr.mxu0 0.0
    %5072 = vmatpush1.msra.mxu0 0.0
    %5073 = vmatprep.subr.mxu0 0.0
    %5074 = vmatpush1.msra.mxu0 0.0
    %5075 = vmatprep.subr.mxu0 0.0
    %5076 = vmatpush1.msra.mxu0 0.0
    %5077 = vmatprep.subr.mxu0 0.0
    %5078 = vmatpush1.msra.mxu0 0.0
    %5079 = vmatprep.subr.mxu0 0.0
    %5080 = vmatpush1.msra.mxu0 0.0
    %5081 = vmatprep.subr.mxu0 0.0
    %5082 = vmatpush1.msra.mxu0 0.0
    %5083 = vmatprep.subr.mxu0 0.0
    %5084 = vmatpush1.msra.mxu0 0.0
    %5085 = vmatprep.subr.mxu0 0.0
    %5086 = vmatpush1.msra.mxu0 0.0
    %5087 = vmatprep.subr.mxu0 0.0
    %5088 = vmatpush1.msra.mxu0 0.0
    %5089 = vmatprep.subr.mxu0 0.0
    %5090 = vmatpush1.msra.mxu0 0.0
    %5091 = vmatprep.subr.mxu0 0.0
    %5092 = vmatpush1.msra.mxu0 0.0
    %5093 = vmatprep.subr.mxu0 0.0
    %5094 = vmatpush1.msra.mxu0 0.0
    %5095 = vmatprep.subr.mxu0 0.0
    %5096 = vmatpush1.msra.mxu0 0.0
    %5097 = vmatprep.subr.mxu0 0.0
    %5098 = vmatpush1.msra.mxu0 0.0
    %5099 = vmatprep.subr.mxu0 0.0
    %5100 = vmatpush1.msra.mxu0 0.0
    %5101 = vmatprep.subr.mxu0 0.0
    %5102 = vmatpush1.msra.mxu0 0.0
    %5103 = vmatprep.mubr.f32.mxu0 0.0
    %5104 = vmatmul.mubr.f32.gmra.mrb[0].mxu0 %v5037
    %v5105 = vpop.f32.mrb[0].mxu0
    %v5106 = vadd.f32 %v5033, %v5105
    %v5107 = vpop.f32.mrb[0].mxu0
    %5108 = vdwg.mxu0
    %v5109 = vadd.f32 %v5106, %v4934
    %v5110 = vxor.u32 %v5109, 2147483648
    %v5111 = vmul.f32 %v5110, 1.442695
    %v5112 = vpow.pop %v5111
    %v5113 = vadd.f32 %v5112, 1.0
    %v5114 = vrcp.pop %v5113
    %v5115 = vmul.f32 1.0, %v5114
    %v5116 = vtanh.pop %v5109
    %v5117 = vmul.f32 %v5115, %v4954
    %5119 = vrot.lane.b32.xlu0 %v5116, 64
    %v5120 = vpop.permute.xlu0 %5119
    %v5122 = vmul.f32 %v5115, %v5120
    %5124 = vrot.lane.b32.xlu0 %v5122, 32
    %v5125 = vpop.permute.xlu0 %5124
    %v5127 = vadd.f32 %v5117, %v5125
    %v5128 = vtanh.pop %v5127
    %5130 = vrot.lane.b32.xlu0 %v5128, 64
    %v5131 = vpop.permute.xlu0 %5130
    %v5133 = vmul.f32 %v5115, %v5131
    %v5134 = vld [vmem:[%s14] sm:$0xff]
    %v5135 = vld [vmem:[%s14 + $0x8] sm:$0xff]
    %v5136 = vld [vmem:[%s14 + $0x10] sm:$0xff]
    %v5137 = vld [vmem:[%s14 + $0x18] sm:$0xff]
    %v5138 = vld [vmem:[#allocation3] sm:$0x1]
    %v5140 = vlaneseq
    %v5141 = vshrl.u32 %v5140, 7
    %v5142 = vsub.s32 0, %v5141
    %v5143 = vrot.slane %v5138, %v5142
    %5146 = vrot.lane.b32.xlu0 %v5133, 32
    %v5147 = vpop.permute.xlu0 %5146
    %v5148 = vsel %vm65, %v5147, 0
    %5150 = vmatprep.subr.mxu0 0.0
    %5151 = vmatpush1.msra.mxu0 %v5134
    %5152 = vmatprep.subr.mxu0 0.0
    %5153 = vmatpush1.msra.mxu0 %v5135
    %5154 = vmatprep.subr.mxu0 0.0
    %5155 = vmatpush1.msra.mxu0 %v5136
    %5156 = vmatprep.subr.mxu0 0.0
    %5157 = vmatpush1.msra.mxu0 %v5137
    %5158 = vmatprep.subr.mxu0 0.0
    %5159 = vmatpush1.msra.mxu0 0.0
    %5160 = vmatprep.subr.mxu0 0.0
    %5161 = vmatpush1.msra.mxu0 0.0
    %5162 = vmatprep.subr.mxu0 0.0
    %5163 = vmatpush1.msra.mxu0 0.0
    %5164 = vmatprep.subr.mxu0 0.0
    %5165 = vmatpush1.msra.mxu0 0.0
    %5166 = vmatprep.subr.mxu0 0.0
    %5167 = vmatpush1.msra.mxu0 0.0
    %5168 = vmatprep.subr.mxu0 0.0
    %5169 = vmatpush1.msra.mxu0 0.0
    %5170 = vmatprep.subr.mxu0 0.0
    %5171 = vmatpush1.msra.mxu0 0.0
    %5172 = vmatprep.subr.mxu0 0.0
    %5173 = vmatpush1.msra.mxu0 0.0
    %5174 = vmatprep.subr.mxu0 0.0
    %5175 = vmatpush1.msra.mxu0 0.0
    %5176 = vmatprep.subr.mxu0 0.0
    %5177 = vmatpush1.msra.mxu0 0.0
    %5178 = vmatprep.subr.mxu0 0.0
    %5179 = vmatpush1.msra.mxu0 0.0
    %5180 = vmatprep.subr.mxu0 0.0
    %5181 = vmatpush1.msra.mxu0 0.0
    %5182 = vmatprep.subr.mxu0 0.0
    %5183 = vmatpush1.msra.mxu0 0.0
    %5184 = vmatprep.subr.mxu0 0.0
    %5185 = vmatpush1.msra.mxu0 0.0
    %5186 = vmatprep.subr.mxu0 0.0
    %5187 = vmatpush1.msra.mxu0 0.0
    %5188 = vmatprep.subr.mxu0 0.0
    %5189 = vmatpush1.msra.mxu0 0.0
    %5190 = vmatprep.subr.mxu0 0.0
    %5191 = vmatpush1.msra.mxu0 0.0
    %5192 = vmatprep.subr.mxu0 0.0
    %5193 = vmatpush1.msra.mxu0 0.0
    %5194 = vmatprep.subr.mxu0 0.0
    %5195 = vmatpush1.msra.mxu0 0.0
    %5196 = vmatprep.subr.mxu0 0.0
    %5197 = vmatpush1.msra.mxu0 0.0
    %5198 = vmatprep.subr.mxu0 0.0
    %5199 = vmatpush1.msra.mxu0 0.0
    %5200 = vmatprep.subr.mxu0 0.0
    %5201 = vmatpush1.msra.mxu0 0.0
    %5202 = vmatprep.subr.mxu0 0.0
    %5203 = vmatpush1.msra.mxu0 0.0
    %5204 = vmatprep.subr.mxu0 0.0
    %5205 = vmatpush1.msra.mxu0 0.0
    %5206 = vmatprep.subr.mxu0 0.0
    %5207 = vmatpush1.msra.mxu0 0.0
    %5208 = vmatprep.subr.mxu0 0.0
    %5209 = vmatpush1.msra.mxu0 0.0
    %5210 = vmatprep.subr.mxu0 0.0
    %5211 = vmatpush1.msra.mxu0 0.0
    %5212 = vmatprep.subr.mxu0 0.0
    %5213 = vmatpush1.msra.mxu0 0.0
    %5214 = vmatprep.mubr.f32.mxu0 0.0
    %5215 = vmatmul.mubr.f32.gmra.mrb[0].mxu0 %v5148
    %v5216 = vpop.f32.mrb[0].mxu0
    %v5217 = vadd.f32 %v5143, %v5216
    %v5218 = vpop.f32.mrb[0].mxu0
    %5219 = vdwg.mxu0
    %5221 = vrot.lane.b32.xlu0 %v5217, 1
    %v5222 = vpop.permute.xlu0 %5221
    %vm5224 = vcmask 9224
    %5225 = vst.msk [vmem:[#allocation4] sm:$0x3] %vm5224, %v5222
    %s5226 = scalar_lea.vmem %s16, 64
    %v5227 = vld [vmem:[%s5226] sm:$0xff]
    %v5228 = vld [vmem:[%s5226 + $0x8] sm:$0xff]
    %v5229 = vld [vmem:[%s5226 + $0x10] sm:$0xff]
    %v5230 = vld [vmem:[%s5226 + $0x18] sm:$0xff]
    %s5231 = scalar_lea.vmem %s17, 64
    %v5232 = vld [vmem:[%s5231] sm:$0xff]
    %v5233 = vld [vmem:[%s5231 + $0x8] sm:$0xff]
    %v5234 = vld [vmem:[%s5231 + $0x10] sm:$0xff]
    %v5235 = vld [vmem:[%s5231 + $0x18] sm:$0xff]
    %s5236 = scalar_lea.vmem %s18, 32
    %v5237 = vld [vmem:[%s5236] sm:$0xff]
    %v5238 = vld [vmem:[%s5236 + $0x8] sm:$0xff]
    %5240 = vst.msk [vmem:[#allocation2 + $0x9] sm:$0x1] %vm1615, %v5147
    %5241 = vst.msk [vmem:[%s1617 + $0x8] sm:$0x2] %vm1618, %v5147
    %v5242 = vld [vmem:[#allocation2] sm:$0xff]
    %v5243 = vld [vmem:[#allocation2 + $0x8] sm:$0x7]
    %v5245 = vsel %vm65, %v5242, 0
    %v5248 = vsel %vm65, %v5243, 0
    %5250 = vmatprep.subr.mxu0 0.0
    %5251 = vmatpush1.msra.mxu0 %v5232
    %5252 = vmatprep.subr.mxu0 0.0
    %5253 = vmatpush1.msra.mxu0 %v5233
    %5254 = vmatprep.subr.mxu0 0.0
    %5255 = vmatpush1.msra.mxu0 %v5234
    %5256 = vmatprep.subr.mxu0 0.0
    %5257 = vmatpush1.msra.mxu0 %v5235
    %5258 = vmatprep.subr.mxu0 0.0
    %5259 = vmatpush1.msra.mxu0 0.0
    %5260 = vmatprep.subr.mxu0 0.0
    %5261 = vmatpush1.msra.mxu0 0.0
    %5262 = vmatprep.subr.mxu0 0.0
    %5263 = vmatpush1.msra.mxu0 0.0
    %5264 = vmatprep.subr.mxu0 0.0
    %5265 = vmatpush1.msra.mxu0 0.0
    %5266 = vmatprep.subr.mxu0 0.0
    %5267 = vmatpush1.msra.mxu0 0.0
    %5268 = vmatprep.subr.mxu0 0.0
    %5269 = vmatpush1.msra.mxu0 0.0
    %5270 = vmatprep.subr.mxu0 0.0
    %5271 = vmatpush1.msra.mxu0 0.0
    %5272 = vmatprep.subr.mxu0 0.0
    %5273 = vmatpush1.msra.mxu0 0.0
    %5274 = vmatprep.subr.mxu0 0.0
    %5275 = vmatpush1.msra.mxu0 0.0
    %5276 = vmatprep.subr.mxu0 0.0
    %5277 = vmatpush1.msra.mxu0 0.0
    %5278 = vmatprep.subr.mxu0 0.0
    %5279 = vmatpush1.msra.mxu0 0.0
    %5280 = vmatprep.subr.mxu0 0.0
    %5281 = vmatpush1.msra.mxu0 0.0
    %5282 = vmatprep.subr.mxu0 0.0
    %5283 = vmatpush1.msra.mxu0 0.0
    %5284 = vmatprep.subr.mxu0 0.0
    %5285 = vmatpush1.msra.mxu0 0.0
    %5286 = vmatprep.subr.mxu0 0.0
    %5287 = vmatpush1.msra.mxu0 0.0
    %5288 = vmatprep.subr.mxu0 0.0
    %5289 = vmatpush1.msra.mxu0 0.0
    %5290 = vmatprep.subr.mxu0 0.0
    %5291 = vmatpush1.msra.mxu0 0.0
    %5292 = vmatprep.subr.mxu0 0.0
    %5293 = vmatpush1.msra.mxu0 0.0
    %5294 = vmatprep.subr.mxu0 0.0
    %5295 = vmatpush1.msra.mxu0 0.0
    %5296 = vmatprep.subr.mxu0 0.0
    %5297 = vmatpush1.msra.mxu0 0.0
    %5298 = vmatprep.subr.mxu0 0.0
    %5299 = vmatpush1.msra.mxu0 0.0
    %5300 = vmatprep.subr.mxu0 0.0
    %5301 = vmatpush1.msra.mxu0 0.0
    %5302 = vmatprep.subr.mxu0 0.0
    %5303 = vmatpush1.msra.mxu0 0.0
    %5304 = vmatprep.subr.mxu0 0.0
    %5305 = vmatpush1.msra.mxu0 0.0
    %5306 = vmatprep.subr.mxu0 0.0
    %5307 = vmatpush1.msra.mxu0 0.0
    %5308 = vmatprep.subr.mxu0 0.0
    %5309 = vmatpush1.msra.mxu0 0.0
    %5310 = vmatprep.subr.mxu0 0.0
    %5311 = vmatpush1.msra.mxu0 0.0
    %5312 = vmatprep.subr.mxu0 0.0
    %5313 = vmatpush1.msra.mxu0 0.0
    %5314 = vmatprep.mubr.f32.mxu0 0.0
    %5315 = vmatmul.mubr.f32.gmra.mrb[0].mxu0 %v5245
    %v5316 = vpop.f32.mrb[0].mxu0
    %v5317 = vadd.f32 0.0, %v5316
    %v5318 = vpop.f32.mrb[0].mxu0
    %5319 = vmatprep.mubr.f32.mxu0 0.0
    %5320 = vmatmul.mubr.f32.gmra.mrb[0].mxu0 %v5248
    %v5321 = vpop.f32.mrb[0].mxu0
    %v5322 = vadd.f32 0.0, %v5321
    %v5323 = vpop.f32.mrb[0].mxu0
    %5324 = vdwg.mxu0
    %5325 = vmatprep.subr.mxu0 0.0
    %5326 = vmatpush1.msra.mxu0 %v5227
    %5327 = vmatprep.subr.mxu0 0.0
    %5328 = vmatpush1.msra.mxu0 %v5228
    %5329 = vmatprep.subr.mxu0 0.0
    %5330 = vmatpush1.msra.mxu0 %v5229
    %5331 = vmatprep.subr.mxu0 0.0
    %5332 = vmatpush1.msra.mxu0 %v5230
    %5333 = vmatprep.subr.mxu0 0.0
    %5334 = vmatpush1.msra.mxu0 0.0
    %5335 = vmatprep.subr.mxu0 0.0
    %5336 = vmatpush1.msra.mxu0 0.0
    %5337 = vmatprep.subr.mxu0 0.0
    %5338 = vmatpush1.msra.mxu0 0.0
    %5339 = vmatprep.subr.mxu0 0.0
    %5340 = vmatpush1.msra.mxu0 0.0
    %5341 = vmatprep.subr.mxu0 0.0
    %5342 = vmatpush1.msra.mxu0 0.0
    %5343 = vmatprep.subr.mxu0 0.0
    %5344 = vmatpush1.msra.mxu0 0.0
    %5345 = vmatprep.subr.mxu0 0.0
    %5346 = vmatpush1.msra.mxu0 0.0
    %5347 = vmatprep.subr.mxu0 0.0
    %5348 = vmatpush1.msra.mxu0 0.0
    %5349 = vmatprep.subr.mxu0 0.0
    %5350 = vmatpush1.msra.mxu0 0.0
    %5351 = vmatprep.subr.mxu0 0.0
    %5352 = vmatpush1.msra.mxu0 0.0
    %5353 = vmatprep.subr.mxu0 0.0
    %5354 = vmatpush1.msra.mxu0 0.0
    %5355 = vmatprep.subr.mxu0 0.0
    %5356 = vmatpush1.msra.mxu0 0.0
    %5357 = vmatprep.subr.mxu0 0.0
    %5358 = vmatpush1.msra.mxu0 0.0
    %5359 = vmatprep.subr.mxu0 0.0
    %5360 = vmatpush1.msra.mxu0 0.0
    %5361 = vmatprep.subr.mxu0 0.0
    %5362 = vmatpush1.msra.mxu0 0.0
    %5363 = vmatprep.subr.mxu0 0.0
    %5364 = vmatpush1.msra.mxu0 0.0
    %5365 = vmatprep.subr.mxu0 0.0
    %5366 = vmatpush1.msra.mxu0 0.0
    %5367 = vmatprep.subr.mxu0 0.0
    %5368 = vmatpush1.msra.mxu0 0.0
    %5369 = vmatprep.subr.mxu0 0.0
    %5370 = vmatpush1.msra.mxu0 0.0
    %5371 = vmatprep.subr.mxu0 0.0
    %5372 = vmatpush1.msra.mxu0 0.0
    %5373 = vmatprep.subr.mxu0 0.0
    %5374 = vmatpush1.msra.mxu0 0.0
    %5375 = vmatprep.subr.mxu0 0.0
    %5376 = vmatpush1.msra.mxu0 0.0
    %5377 = vmatprep.subr.mxu0 0.0
    %5378 = vmatpush1.msra.mxu0 0.0
    %5379 = vmatprep.subr.mxu0 0.0
    %5380 = vmatpush1.msra.mxu0 0.0
    %5381 = vmatprep.subr.mxu0 0.0
    %5382 = vmatpush1.msra.mxu0 0.0
    %5383 = vmatprep.subr.mxu0 0.0
    %5384 = vmatpush1.msra.mxu0 0.0
    %5385 = vmatprep.subr.mxu0 0.0
    %5386 = vmatpush1.msra.mxu0 0.0
    %5387 = vmatprep.subr.mxu0 0.0
    %5388 = vmatpush1.msra.mxu0 0.0
    %5389 = vmatprep.mubr.f32.mxu0 0.0
    %5390 = vmatmul.mubr.f32.gmra.mrb[0].mxu0 %v5148
    %v5391 = vpop.f32.mrb[0].mxu0
    %v5392 = vadd.f32 0.0, %v5391
    %v5393 = vpop.f32.mrb[0].mxu0
    %5394 = vdwg.mxu0
    %5396 = vrot.lane.b32.xlu0 %v5127, 96
    %v5397 = vpop.permute.xlu0 %5396
    %v5398 = vsel %vm65, %v5397, 0
    %5400 = vmatprep.subr.mxu0 0.0
    %5401 = vmatpush1.msra.mxu0 %v5227
    %5402 = vmatprep.subr.mxu0 0.0
    %5403 = vmatpush1.msra.mxu0 %v5228
    %5404 = vmatprep.subr.mxu0 0.0
    %5405 = vmatpush1.msra.mxu0 %v5229
    %5406 = vmatprep.subr.mxu0 0.0
    %5407 = vmatpush1.msra.mxu0 %v5230
    %5408 = vmatprep.subr.mxu0 0.0
    %5409 = vmatpush1.msra.mxu0 0.0
    %5410 = vmatprep.subr.mxu0 0.0
    %5411 = vmatpush1.msra.mxu0 0.0
    %5412 = vmatprep.subr.mxu0 0.0
    %5413 = vmatpush1.msra.mxu0 0.0
    %5414 = vmatprep.subr.mxu0 0.0
    %5415 = vmatpush1.msra.mxu0 0.0
    %5416 = vmatprep.subr.mxu0 0.0
    %5417 = vmatpush1.msra.mxu0 0.0
    %5418 = vmatprep.subr.mxu0 0.0
    %5419 = vmatpush1.msra.mxu0 0.0
    %5420 = vmatprep.subr.mxu0 0.0
    %5421 = vmatpush1.msra.mxu0 0.0
    %5422 = vmatprep.subr.mxu0 0.0
    %5423 = vmatpush1.msra.mxu0 0.0
    %5424 = vmatprep.subr.mxu0 0.0
    %5425 = vmatpush1.msra.mxu0 0.0
    %5426 = vmatprep.subr.mxu0 0.0
    %5427 = vmatpush1.msra.mxu0 0.0
    %5428 = vmatprep.subr.mxu0 0.0
    %5429 = vmatpush1.msra.mxu0 0.0
    %5430 = vmatprep.subr.mxu0 0.0
    %5431 = vmatpush1.msra.mxu0 0.0
    %5432 = vmatprep.subr.mxu0 0.0
    %5433 = vmatpush1.msra.mxu0 0.0
    %5434 = vmatprep.subr.mxu0 0.0
    %5435 = vmatpush1.msra.mxu0 0.0
    %5436 = vmatprep.subr.mxu0 0.0
    %5437 = vmatpush1.msra.mxu0 0.0
    %5438 = vmatprep.subr.mxu0 0.0
    %5439 = vmatpush1.msra.mxu0 0.0
    %5440 = vmatprep.subr.mxu0 0.0
    %5441 = vmatpush1.msra.mxu0 0.0
    %5442 = vmatprep.subr.mxu0 0.0
    %5443 = vmatpush1.msra.mxu0 0.0
    %5444 = vmatprep.subr.mxu0 0.0
    %5445 = vmatpush1.msra.mxu0 0.0
    %5446 = vmatprep.subr.mxu0 0.0
    %5447 = vmatpush1.msra.mxu0 0.0
    %5448 = vmatprep.subr.mxu0 0.0
    %5449 = vmatpush1.msra.mxu0 0.0
    %5450 = vmatprep.subr.mxu0 0.0
    %5451 = vmatpush1.msra.mxu0 0.0
    %5452 = vmatprep.subr.mxu0 0.0
    %5453 = vmatpush1.msra.mxu0 0.0
    %5454 = vmatprep.subr.mxu0 0.0
    %5455 = vmatpush1.msra.mxu0 0.0
    %5456 = vmatprep.subr.mxu0 0.0
    %5457 = vmatpush1.msra.mxu0 0.0
    %5458 = vmatprep.subr.mxu0 0.0
    %5459 = vmatpush1.msra.mxu0 0.0
    %5460 = vmatprep.subr.mxu0 0.0
    %5461 = vmatpush1.msra.mxu0 0.0
    %5462 = vmatprep.subr.mxu0 0.0
    %5463 = vmatpush1.msra.mxu0 0.0
    %5464 = vmatprep.mubr.f32.mxu0 0.0
    %5465 = vmatmul.mubr.f32.gmra.mrb[0].mxu0 %v5398
    %v5466 = vpop.f32.mrb[0].mxu0
    %v5467 = vadd.f32 0.0, %v5466
    %v5468 = vpop.f32.mrb[0].mxu0
    %5469 = vdwg.mxu0
    %v5470 = vlaneseq
    %v5471 = vshrl.u32 %v5470, 7
    %v5472 = vsub.s32 0, %v5471
    %v5473 = vrot.slane %v5392, %v5472
    %v5474 = vadd.f32 %v5317, %v5473
    %v5475 = vadd.f32 %v5322, %v5473
    %v5476 = vtanh.pop %v5474
    %v5477 = vtanh.pop %v5475
    %v5479 = vsel %vm2651, %v5476, 0
    %v5482 = vsel %vm2651, %v5477, 0
    %5484 = vmatprep.subr.mxu0 0.0
    %5485 = vmatpush1.msra.mxu0 %v5237
    %5486 = vmatprep.subr.mxu0 0.0
    %5487 = vmatpush1.msra.mxu0 %v5238
    %5488 = vmatprep.subr.mxu0 0.0
    %5489 = vmatpush1.msra.mxu0 0.0
    %5490 = vmatprep.subr.mxu0 0.0
    %5491 = vmatpush1.msra.mxu0 0.0
    %5492 = vmatprep.subr.mxu0 0.0
    %5493 = vmatpush1.msra.mxu0 0.0
    %5494 = vmatprep.subr.mxu0 0.0
    %5495 = vmatpush1.msra.mxu0 0.0
    %5496 = vmatprep.subr.mxu0 0.0
    %5497 = vmatpush1.msra.mxu0 0.0
    %5498 = vmatprep.subr.mxu0 0.0
    %5499 = vmatpush1.msra.mxu0 0.0
    %5500 = vmatprep.subr.mxu0 0.0
    %5501 = vmatpush1.msra.mxu0 0.0
    %5502 = vmatprep.subr.mxu0 0.0
    %5503 = vmatpush1.msra.mxu0 0.0
    %5504 = vmatprep.subr.mxu0 0.0
    %5505 = vmatpush1.msra.mxu0 0.0
    %5506 = vmatprep.subr.mxu0 0.0
    %5507 = vmatpush1.msra.mxu0 0.0
    %5508 = vmatprep.subr.mxu0 0.0
    %5509 = vmatpush1.msra.mxu0 0.0
    %5510 = vmatprep.subr.mxu0 0.0
    %5511 = vmatpush1.msra.mxu0 0.0
    %5512 = vmatprep.subr.mxu0 0.0
    %5513 = vmatpush1.msra.mxu0 0.0
    %5514 = vmatprep.subr.mxu0 0.0
    %5515 = vmatpush1.msra.mxu0 0.0
    %5516 = vmatprep.subr.mxu0 0.0
    %5517 = vmatpush1.msra.mxu0 0.0
    %5518 = vmatprep.subr.mxu0 0.0
    %5519 = vmatpush1.msra.mxu0 0.0
    %5520 = vmatprep.subr.mxu0 0.0
    %5521 = vmatpush1.msra.mxu0 0.0
    %5522 = vmatprep.subr.mxu0 0.0
    %5523 = vmatpush1.msra.mxu0 0.0
    %5524 = vmatprep.subr.mxu0 0.0
    %5525 = vmatpush1.msra.mxu0 0.0
    %5526 = vmatprep.subr.mxu0 0.0
    %5527 = vmatpush1.msra.mxu0 0.0
    %5528 = vmatprep.subr.mxu0 0.0
    %5529 = vmatpush1.msra.mxu0 0.0
    %5530 = vmatprep.subr.mxu0 0.0
    %5531 = vmatpush1.msra.mxu0 0.0
    %5532 = vmatprep.subr.mxu0 0.0
    %5533 = vmatpush1.msra.mxu0 0.0
    %5534 = vmatprep.subr.mxu0 0.0
    %5535 = vmatpush1.msra.mxu0 0.0
    %5536 = vmatprep.subr.mxu0 0.0
    %5537 = vmatpush1.msra.mxu0 0.0
    %5538 = vmatprep.subr.mxu0 0.0
    %5539 = vmatpush1.msra.mxu0 0.0
    %5540 = vmatprep.subr.mxu0 0.0
    %5541 = vmatpush1.msra.mxu0 0.0
    %5542 = vmatprep.subr.mxu0 0.0
    %5543 = vmatpush1.msra.mxu0 0.0
    %5544 = vmatprep.subr.mxu0 0.0
    %5545 = vmatpush1.msra.mxu0 0.0
    %5546 = vmatprep.subr.mxu0 0.0
    %5547 = vmatpush1.msra.mxu0 0.0
    %5548 = vmatprep.mubr.f32.mxu0 0.0
    %5549 = vmatmul.mubr.f32.gmra.mrb[0].mxu0 %v5479
    %v5550 = vpop.f32.mrb[0].mxu0
    %v5551 = vadd.f32 0.0, %v5550
    %v5552 = vpop.f32.mrb[0].mxu0
    %5553 = vmatprep.mubr.f32.mxu0 0.0
    %5554 = vmatmul.mubr.f32.gmra.mrb[0].mxu0 %v5482
    %v5555 = vpop.f32.mrb[0].mxu0
    %v5556 = vadd.f32 0.0, %v5555
    %v5557 = vpop.f32.mrb[0].mxu0
    %5558 = vdwg.mxu0
    %v5559 = vlaneseq
    %v5560 = vshrl.u32 %v5559, 7
    %v5561 = vsub.s32 0, %v5560
    %v5562 = vrot.slane %v5467, %v5561
    %v5563 = vadd.f32 %v5317, %v5562
    %v5564 = vadd.f32 %v5322, %v5562
    %v5565 = vtanh.pop %v5563
    %v5566 = vtanh.pop %v5564
    %v5568 = vsel %vm2651, %v5565, 0
    %v5571 = vsel %vm2651, %v5566, 0
    %5573 = vmatprep.subr.mxu0 0.0
    %5574 = vmatpush1.msra.mxu0 %v5237
    %5575 = vmatprep.subr.mxu0 0.0
    %5576 = vmatpush1.msra.mxu0 %v5238
    %5577 = vmatprep.subr.mxu0 0.0
    %5578 = vmatpush1.msra.mxu0 0.0
    %5579 = vmatprep.subr.mxu0 0.0
    %5580 = vmatpush1.msra.mxu0 0.0
    %5581 = vmatprep.subr.mxu0 0.0
    %5582 = vmatpush1.msra.mxu0 0.0
    %5583 = vmatprep.subr.mxu0 0.0
    %5584 = vmatpush1.msra.mxu0 0.0
    %5585 = vmatprep.subr.mxu0 0.0
    %5586 = vmatpush1.msra.mxu0 0.0
    %5587 = vmatprep.subr.mxu0 0.0
    %5588 = vmatpush1.msra.mxu0 0.0
    %5589 = vmatprep.subr.mxu0 0.0
    %5590 = vmatpush1.msra.mxu0 0.0
    %5591 = vmatprep.subr.mxu0 0.0
    %5592 = vmatpush1.msra.mxu0 0.0
    %5593 = vmatprep.subr.mxu0 0.0
    %5594 = vmatpush1.msra.mxu0 0.0
    %5595 = vmatprep.subr.mxu0 0.0
    %5596 = vmatpush1.msra.mxu0 0.0
    %5597 = vmatprep.subr.mxu0 0.0
    %5598 = vmatpush1.msra.mxu0 0.0
    %5599 = vmatprep.subr.mxu0 0.0
    %5600 = vmatpush1.msra.mxu0 0.0
    %5601 = vmatprep.subr.mxu0 0.0
    %5602 = vmatpush1.msra.mxu0 0.0
    %5603 = vmatprep.subr.mxu0 0.0
    %5604 = vmatpush1.msra.mxu0 0.0
    %5605 = vmatprep.subr.mxu0 0.0
    %5606 = vmatpush1.msra.mxu0 0.0
    %5607 = vmatprep.subr.mxu0 0.0
    %5608 = vmatpush1.msra.mxu0 0.0
    %5609 = vmatprep.subr.mxu0 0.0
    %5610 = vmatpush1.msra.mxu0 0.0
    %5611 = vmatprep.subr.mxu0 0.0
    %5612 = vmatpush1.msra.mxu0 0.0
    %5613 = vmatprep.subr.mxu0 0.0
    %5614 = vmatpush1.msra.mxu0 0.0
    %5615 = vmatprep.subr.mxu0 0.0
    %5616 = vmatpush1.msra.mxu0 0.0
    %5617 = vmatprep.subr.mxu0 0.0
    %5618 = vmatpush1.msra.mxu0 0.0
    %5619 = vmatprep.subr.mxu0 0.0
    %5620 = vmatpush1.msra.mxu0 0.0
    %5621 = vmatprep.subr.mxu0 0.0
    %5622 = vmatpush1.msra.mxu0 0.0
    %5623 = vmatprep.subr.mxu0 0.0
    %5624 = vmatpush1.msra.mxu0 0.0
    %5625 = vmatprep.subr.mxu0 0.0
    %5626 = vmatpush1.msra.mxu0 0.0
    %5627 = vmatprep.subr.mxu0 0.0
    %5628 = vmatpush1.msra.mxu0 0.0
    %5629 = vmatprep.subr.mxu0 0.0
    %5630 = vmatpush1.msra.mxu0 0.0
    %5631 = vmatprep.subr.mxu0 0.0
    %5632 = vmatpush1.msra.mxu0 0.0
    %5633 = vmatprep.subr.mxu0 0.0
    %5634 = vmatpush1.msra.mxu0 0.0
    %5635 = vmatprep.subr.mxu0 0.0
    %5636 = vmatpush1.msra.mxu0 0.0
    %5637 = vmatprep.mubr.f32.mxu0 0.0
    %5638 = vmatmul.mubr.f32.gmra.mrb[0].mxu0 %v5568
    %v5639 = vpop.f32.mrb[0].mxu0
    %v5640 = vadd.f32 0.0, %v5639
    %v5641 = vpop.f32.mrb[0].mxu0
    %5642 = vmatprep.mubr.f32.mxu0 0.0
    %5643 = vmatmul.mubr.f32.gmra.mrb[0].mxu0 %v5571
    %v5644 = vpop.f32.mrb[0].mxu0
    %v5645 = vadd.f32 0.0, %v5644
    %v5646 = vpop.f32.mrb[0].mxu0
    %5647 = vdwg.mxu0
    %v5648 = vmax.f32 %v5551, %v5640
    %v5649 = vmax.f32 %v5556, %v5645
    %v5650 = vsub.f32 %v5551, %v5648
    %v5651 = vsub.f32 %v5556, %v5649
    %v5652 = vmul.f32 %v5650, 1.442695
    %v5653 = vpow.pop %v5652
    %v5654 = vmul.f32 %v5651, 1.442695
    %v5655 = vpow.pop %v5654
    %v5656 = vsub.f32 %v5640, %v5648
    %v5657 = vsub.f32 %v5645, %v5649
    %v5658 = vmul.f32 %v5656, 1.442695
    %v5659 = vpow.pop %v5658
    %v5660 = vmul.f32 %v5657, 1.442695
    %v5661 = vpow.pop %v5660
    %v5662 = vadd.f32 %v5653, %v5659
    %v5663 = vadd.f32 %v5655, %v5661
    %v5664 = vrcp.pop %v5662
    %v5665 = vmul.f32 1.0, %v5664
    %v5666 = vrcp.pop %v5663
    %v5667 = vmul.f32 1.0, %v5666
    %v5668 = vmul.f32 %v5653, %v5665
    %v5669 = vmul.f32 %v5655, %v5667
    %v5670 = vmul.f32 %v5659, %v5665
    %v5671 = vmul.f32 %v5661, %v5667
    %5673 = vset.pattern.permute.xlu0 0
    %5674 = vperm.xlu0 %5673, %v5668
    %v5675 = vpop.permute.xlu0 %5674
    %5678 = vset.pattern.permute.xlu0 0
    %5679 = vperm.xlu0 %5678, %v5669
    %v5680 = vpop.permute.xlu0 %5679
    %v5682 = vmul.f32 %v5675, %v5242
    %v5683 = vmul.f32 %v5680, %v5243
    %v5684 = vsel %vm65, %v5682, 0.0
    %v5685 = vsel %vm67, %v5683, 0.0
    %v5686 = vadd.f32 %v5684, %v5685
    %v5687 = vrot.slane %v5686, 4
    %v5688 = vadd.f32 %v5686, %v5687
    %v5689 = vrot.slane %v5688, 2
    %v5690 = vadd.f32 %v5688, %v5689
    %v5691 = vrot.slane %v5690, 1
    %v5692 = vadd.f32 %v5690, %v5691
    %5694 = vset.pattern.permute.xlu0 0
    %5695 = vperm.xlu0 %5694, %v5670
    %v5696 = vpop.permute.xlu0 %5695
    %5699 = vset.pattern.permute.xlu0 0
    %5700 = vperm.xlu0 %5699, %v5671
    %v5701 = vpop.permute.xlu0 %5700
    %v5703 = vmul.f32 %v5696, %v5242
    %v5704 = vmul.f32 %v5701, %v5243
    %v5705 = vsel %vm65, %v5703, 0.0
    %v5706 = vsel %vm67, %v5704, 0.0
    %v5707 = vadd.f32 %v5705, %v5706
    %v5708 = vrot.slane %v5707, 4
    %v5709 = vadd.f32 %v5707, %v5708
    %v5710 = vrot.slane %v5709, 2
    %v5711 = vadd.f32 %v5709, %v5710
    %v5712 = vrot.slane %v5711, 1
    %v5713 = vadd.f32 %v5711, %v5712
    %v5714 = vld [vmem:[%s1617] sm:$0xff]
    %v5715 = vld [vmem:[%s1617 + $0x8] sm:$0x7]
    %v5717 = vsel %vm65, %v5714, 0
    %v5720 = vsel %vm65, %v5715, 0
    %5722 = vmatprep.subr.mxu0 0.0
    %5723 = vmatpush1.msra.mxu0 %v5232
    %5724 = vmatprep.subr.mxu0 0.0
    %5725 = vmatpush1.msra.mxu0 %v5233
    %5726 = vmatprep.subr.mxu0 0.0
    %5727 = vmatpush1.msra.mxu0 %v5234
    %5728 = vmatprep.subr.mxu0 0.0
    %5729 = vmatpush1.msra.mxu0 %v5235
    %5730 = vmatprep.subr.mxu0 0.0
    %5731 = vmatpush1.msra.mxu0 0.0
    %5732 = vmatprep.subr.mxu0 0.0
    %5733 = vmatpush1.msra.mxu0 0.0
    %5734 = vmatprep.subr.mxu0 0.0
    %5735 = vmatpush1.msra.mxu0 0.0
    %5736 = vmatprep.subr.mxu0 0.0
    %5737 = vmatpush1.msra.mxu0 0.0
    %5738 = vmatprep.subr.mxu0 0.0
    %5739 = vmatpush1.msra.mxu0 0.0
    %5740 = vmatprep.subr.mxu0 0.0
    %5741 = vmatpush1.msra.mxu0 0.0
    %5742 = vmatprep.subr.mxu0 0.0
    %5743 = vmatpush1.msra.mxu0 0.0
    %5744 = vmatprep.subr.mxu0 0.0
    %5745 = vmatpush1.msra.mxu0 0.0
    %5746 = vmatprep.subr.mxu0 0.0
    %5747 = vmatpush1.msra.mxu0 0.0
    %5748 = vmatprep.subr.mxu0 0.0
    %5749 = vmatpush1.msra.mxu0 0.0
    %5750 = vmatprep.subr.mxu0 0.0
    %5751 = vmatpush1.msra.mxu0 0.0
    %5752 = vmatprep.subr.mxu0 0.0
    %5753 = vmatpush1.msra.mxu0 0.0
    %5754 = vmatprep.subr.mxu0 0.0
    %5755 = vmatpush1.msra.mxu0 0.0
    %5756 = vmatprep.subr.mxu0 0.0
    %5757 = vmatpush1.msra.mxu0 0.0
    %5758 = vmatprep.subr.mxu0 0.0
    %5759 = vmatpush1.msra.mxu0 0.0
    %5760 = vmatprep.subr.mxu0 0.0
    %5761 = vmatpush1.msra.mxu0 0.0
    %5762 = vmatprep.subr.mxu0 0.0
    %5763 = vmatpush1.msra.mxu0 0.0
    %5764 = vmatprep.subr.mxu0 0.0
    %5765 = vmatpush1.msra.mxu0 0.0
    %5766 = vmatprep.subr.mxu0 0.0
    %5767 = vmatpush1.msra.mxu0 0.0
    %5768 = vmatprep.subr.mxu0 0.0
    %5769 = vmatpush1.msra.mxu0 0.0
    %5770 = vmatprep.subr.mxu0 0.0
    %5771 = vmatpush1.msra.mxu0 0.0
    %5772 = vmatprep.subr.mxu0 0.0
    %5773 = vmatpush1.msra.mxu0 0.0
    %5774 = vmatprep.subr.mxu0 0.0
    %5775 = vmatpush1.msra.mxu0 0.0
    %5776 = vmatprep.subr.mxu0 0.0
    %5777 = vmatpush1.msra.mxu0 0.0
    %5778 = vmatprep.subr.mxu0 0.0
    %5779 = vmatpush1.msra.mxu0 0.0
    %5780 = vmatprep.subr.mxu0 0.0
    %5781 = vmatpush1.msra.mxu0 0.0
    %5782 = vmatprep.subr.mxu0 0.0
    %5783 = vmatpush1.msra.mxu0 0.0
    %5784 = vmatprep.subr.mxu0 0.0
    %5785 = vmatpush1.msra.mxu0 0.0
    %5786 = vmatprep.mubr.f32.mxu0 0.0
    %5787 = vmatmul.mubr.f32.gmra.mrb[0].mxu0 %v5717
    %v5788 = vpop.f32.mrb[0].mxu0
    %v5789 = vadd.f32 0.0, %v5788
    %v5790 = vpop.f32.mrb[0].mxu0
    %5791 = vmatprep.mubr.f32.mxu0 0.0
    %5792 = vmatmul.mubr.f32.gmra.mrb[0].mxu0 %v5720
    %v5793 = vpop.f32.mrb[0].mxu0
    %v5794 = vadd.f32 0.0, %v5793
    %v5795 = vpop.f32.mrb[0].mxu0
    %5796 = vdwg.mxu0
    %v5797 = vrot.slane %v5133, 1
    %5798 = vrot.lane.b32.xlu0 %v5797, 32
    %v5799 = vpop.permute.xlu0 %5798
    %v5800 = vsel %vm65, %v5799, 0
    %5802 = vmatprep.subr.mxu0 0.0
    %5803 = vmatpush1.msra.mxu0 %v5227
    %5804 = vmatprep.subr.mxu0 0.0
    %5805 = vmatpush1.msra.mxu0 %v5228
    %5806 = vmatprep.subr.mxu0 0.0
    %5807 = vmatpush1.msra.mxu0 %v5229
    %5808 = vmatprep.subr.mxu0 0.0
    %5809 = vmatpush1.msra.mxu0 %v5230
    %5810 = vmatprep.subr.mxu0 0.0
    %5811 = vmatpush1.msra.mxu0 0.0
    %5812 = vmatprep.subr.mxu0 0.0
    %5813 = vmatpush1.msra.mxu0 0.0
    %5814 = vmatprep.subr.mxu0 0.0
    %5815 = vmatpush1.msra.mxu0 0.0
    %5816 = vmatprep.subr.mxu0 0.0
    %5817 = vmatpush1.msra.mxu0 0.0
    %5818 = vmatprep.subr.mxu0 0.0
    %5819 = vmatpush1.msra.mxu0 0.0
    %5820 = vmatprep.subr.mxu0 0.0
    %5821 = vmatpush1.msra.mxu0 0.0
    %5822 = vmatprep.subr.mxu0 0.0
    %5823 = vmatpush1.msra.mxu0 0.0
    %5824 = vmatprep.subr.mxu0 0.0
    %5825 = vmatpush1.msra.mxu0 0.0
    %5826 = vmatprep.subr.mxu0 0.0
    %5827 = vmatpush1.msra.mxu0 0.0
    %5828 = vmatprep.subr.mxu0 0.0
    %5829 = vmatpush1.msra.mxu0 0.0
    %5830 = vmatprep.subr.mxu0 0.0
    %5831 = vmatpush1.msra.mxu0 0.0
    %5832 = vmatprep.subr.mxu0 0.0
    %5833 = vmatpush1.msra.mxu0 0.0
    %5834 = vmatprep.subr.mxu0 0.0
    %5835 = vmatpush1.msra.mxu0 0.0
    %5836 = vmatprep.subr.mxu0 0.0
    %5837 = vmatpush1.msra.mxu0 0.0
    %5838 = vmatprep.subr.mxu0 0.0
    %5839 = vmatpush1.msra.mxu0 0.0
    %5840 = vmatprep.subr.mxu0 0.0
    %5841 = vmatpush1.msra.mxu0 0.0
    %5842 = vmatprep.subr.mxu0 0.0
    %5843 = vmatpush1.msra.mxu0 0.0
    %5844 = vmatprep.subr.mxu0 0.0
    %5845 = vmatpush1.msra.mxu0 0.0
    %5846 = vmatprep.subr.mxu0 0.0
    %5847 = vmatpush1.msra.mxu0 0.0
    %5848 = vmatprep.subr.mxu0 0.0
    %5849 = vmatpush1.msra.mxu0 0.0
    %5850 = vmatprep.subr.mxu0 0.0
    %5851 = vmatpush1.msra.mxu0 0.0
    %5852 = vmatprep.subr.mxu0 0.0
    %5853 = vmatpush1.msra.mxu0 0.0
    %5854 = vmatprep.subr.mxu0 0.0
    %5855 = vmatpush1.msra.mxu0 0.0
    %5856 = vmatprep.subr.mxu0 0.0
    %5857 = vmatpush1.msra.mxu0 0.0
    %5858 = vmatprep.subr.mxu0 0.0
    %5859 = vmatpush1.msra.mxu0 0.0
    %5860 = vmatprep.subr.mxu0 0.0
    %5861 = vmatpush1.msra.mxu0 0.0
    %5862 = vmatprep.subr.mxu0 0.0
    %5863 = vmatpush1.msra.mxu0 0.0
    %5864 = vmatprep.subr.mxu0 0.0
    %5865 = vmatpush1.msra.mxu0 0.0
    %5866 = vmatprep.mubr.f32.mxu0 0.0
    %5867 = vmatmul.mubr.f32.gmra.mrb[0].mxu0 %v5800
    %v5868 = vpop.f32.mrb[0].mxu0
    %v5869 = vadd.f32 0.0, %v5868
    %v5870 = vpop.f32.mrb[0].mxu0
    %5871 = vdwg.mxu0
    %v5872 = vrot.slane %v5127, 1
    %5873 = vrot.lane.b32.xlu0 %v5872, 96
    %v5874 = vpop.permute.xlu0 %5873
    %v5875 = vsel %vm65, %v5874, 0
    %5877 = vmatprep.subr.mxu0 0.0
    %5878 = vmatpush1.msra.mxu0 %v5227
    %5879 = vmatprep.subr.mxu0 0.0
    %5880 = vmatpush1.msra.mxu0 %v5228
    %5881 = vmatprep.subr.mxu0 0.0
    %5882 = vmatpush1.msra.mxu0 %v5229
    %5883 = vmatprep.subr.mxu0 0.0
    %5884 = vmatpush1.msra.mxu0 %v5230
    %5885 = vmatprep.subr.mxu0 0.0
    %5886 = vmatpush1.msra.mxu0 0.0
    %5887 = vmatprep.subr.mxu0 0.0
    %5888 = vmatpush1.msra.mxu0 0.0
    %5889 = vmatprep.subr.mxu0 0.0
    %5890 = vmatpush1.msra.mxu0 0.0
    %5891 = vmatprep.subr.mxu0 0.0
    %5892 = vmatpush1.msra.mxu0 0.0
    %5893 = vmatprep.subr.mxu0 0.0
    %5894 = vmatpush1.msra.mxu0 0.0
    %5895 = vmatprep.subr.mxu0 0.0
    %5896 = vmatpush1.msra.mxu0 0.0
    %5897 = vmatprep.subr.mxu0 0.0
    %5898 = vmatpush1.msra.mxu0 0.0
    %5899 = vmatprep.subr.mxu0 0.0
    %5900 = vmatpush1.msra.mxu0 0.0
    %5901 = vmatprep.subr.mxu0 0.0
    %5902 = vmatpush1.msra.mxu0 0.0
    %5903 = vmatprep.subr.mxu0 0.0
    %5904 = vmatpush1.msra.mxu0 0.0
    %5905 = vmatprep.subr.mxu0 0.0
    %5906 = vmatpush1.msra.mxu0 0.0
    %5907 = vmatprep.subr.mxu0 0.0
    %5908 = vmatpush1.msra.mxu0 0.0
    %5909 = vmatprep.subr.mxu0 0.0
    %5910 = vmatpush1.msra.mxu0 0.0
    %5911 = vmatprep.subr.mxu0 0.0
    %5912 = vmatpush1.msra.mxu0 0.0
    %5913 = vmatprep.subr.mxu0 0.0
    %5914 = vmatpush1.msra.mxu0 0.0
    %5915 = vmatprep.subr.mxu0 0.0
    %5916 = vmatpush1.msra.mxu0 0.0
    %5917 = vmatprep.subr.mxu0 0.0
    %5918 = vmatpush1.msra.mxu0 0.0
    %5919 = vmatprep.subr.mxu0 0.0
    %5920 = vmatpush1.msra.mxu0 0.0
    %5921 = vmatprep.subr.mxu0 0.0
    %5922 = vmatpush1.msra.mxu0 0.0
    %5923 = vmatprep.subr.mxu0 0.0
    %5924 = vmatpush1.msra.mxu0 0.0
    %5925 = vmatprep.subr.mxu0 0.0
    %5926 = vmatpush1.msra.mxu0 0.0
    %5927 = vmatprep.subr.mxu0 0.0
    %5928 = vmatpush1.msra.mxu0 0.0
    %5929 = vmatprep.subr.mxu0 0.0
    %5930 = vmatpush1.msra.mxu0 0.0
    %5931 = vmatprep.subr.mxu0 0.0
    %5932 = vmatpush1.msra.mxu0 0.0
    %5933 = vmatprep.subr.mxu0 0.0
    %5934 = vmatpush1.msra.mxu0 0.0
    %5935 = vmatprep.subr.mxu0 0.0
    %5936 = vmatpush1.msra.mxu0 0.0
    %5937 = vmatprep.subr.mxu0 0.0
    %5938 = vmatpush1.msra.mxu0 0.0
    %5939 = vmatprep.subr.mxu0 0.0
    %5940 = vmatpush1.msra.mxu0 0.0
    %5941 = vmatprep.mubr.f32.mxu0 0.0
    %5942 = vmatmul.mubr.f32.gmra.mrb[0].mxu0 %v5875
    %v5943 = vpop.f32.mrb[0].mxu0
    %v5944 = vadd.f32 0.0, %v5943
    %v5945 = vpop.f32.mrb[0].mxu0
    %5946 = vdwg.mxu0
    %v5947 = vlaneseq
    %v5948 = vshrl.u32 %v5947, 7
    %v5949 = vsub.s32 0, %v5948
    %v5950 = vrot.slane %v5869, %v5949
    %v5951 = vadd.f32 %v5789, %v5950
    %v5952 = vadd.f32 %v5794, %v5950
    %v5953 = vtanh.pop %v5951
    %v5954 = vtanh.pop %v5952
    %v5956 = vsel %vm2651, %v5953, 0
    %v5959 = vsel %vm2651, %v5954, 0
    %5961 = vmatprep.subr.mxu0 0.0
    %5962 = vmatpush1.msra.mxu0 %v5237
    %5963 = vmatprep.subr.mxu0 0.0
    %5964 = vmatpush1.msra.mxu0 %v5238
    %5965 = vmatprep.subr.mxu0 0.0
    %5966 = vmatpush1.msra.mxu0 0.0
    %5967 = vmatprep.subr.mxu0 0.0
    %5968 = vmatpush1.msra.mxu0 0.0
    %5969 = vmatprep.subr.mxu0 0.0
    %5970 = vmatpush1.msra.mxu0 0.0
    %5971 = vmatprep.subr.mxu0 0.0
    %5972 = vmatpush1.msra.mxu0 0.0
    %5973 = vmatprep.subr.mxu0 0.0
    %5974 = vmatpush1.msra.mxu0 0.0
    %5975 = vmatprep.subr.mxu0 0.0
    %5976 = vmatpush1.msra.mxu0 0.0
    %5977 = vmatprep.subr.mxu0 0.0
    %5978 = vmatpush1.msra.mxu0 0.0
    %5979 = vmatprep.subr.mxu0 0.0
    %5980 = vmatpush1.msra.mxu0 0.0
    %5981 = vmatprep.subr.mxu0 0.0
    %5982 = vmatpush1.msra.mxu0 0.0
    %5983 = vmatprep.subr.mxu0 0.0
    %5984 = vmatpush1.msra.mxu0 0.0
    %5985 = vmatprep.subr.mxu0 0.0
    %5986 = vmatpush1.msra.mxu0 0.0
    %5987 = vmatprep.subr.mxu0 0.0
    %5988 = vmatpush1.msra.mxu0 0.0
    %5989 = vmatprep.subr.mxu0 0.0
    %5990 = vmatpush1.msra.mxu0 0.0
    %5991 = vmatprep.subr.mxu0 0.0
    %5992 = vmatpush1.msra.mxu0 0.0
    %5993 = vmatprep.subr.mxu0 0.0
    %5994 = vmatpush1.msra.mxu0 0.0
    %5995 = vmatprep.subr.mxu0 0.0
    %5996 = vmatpush1.msra.mxu0 0.0
    %5997 = vmatprep.subr.mxu0 0.0
    %5998 = vmatpush1.msra.mxu0 0.0
    %5999 = vmatprep.subr.mxu0 0.0
    %6000 = vmatpush1.msra.mxu0 0.0
    %6001 = vmatprep.subr.mxu0 0.0
    %6002 = vmatpush1.msra.mxu0 0.0
    %6003 = vmatprep.subr.mxu0 0.0
    %6004 = vmatpush1.msra.mxu0 0.0
    %6005 = vmatprep.subr.mxu0 0.0
    %6006 = vmatpush1.msra.mxu0 0.0
    %6007 = vmatprep.subr.mxu0 0.0
    %6008 = vmatpush1.msra.mxu0 0.0
    %6009 = vmatprep.subr.mxu0 0.0
    %6010 = vmatpush1.msra.mxu0 0.0
    %6011 = vmatprep.subr.mxu0 0.0
    %6012 = vmatpush1.msra.mxu0 0.0
    %6013 = vmatprep.subr.mxu0 0.0
    %6014 = vmatpush1.msra.mxu0 0.0
    %6015 = vmatprep.subr.mxu0 0.0
    %6016 = vmatpush1.msra.mxu0 0.0
    %6017 = vmatprep.subr.mxu0 0.0
    %6018 = vmatpush1.msra.mxu0 0.0
    %6019 = vmatprep.subr.mxu0 0.0
    %6020 = vmatpush1.msra.mxu0 0.0
    %6021 = vmatprep.subr.mxu0 0.0
    %6022 = vmatpush1.msra.mxu0 0.0
    %6023 = vmatprep.subr.mxu0 0.0
    %6024 = vmatpush1.msra.mxu0 0.0
    %6025 = vmatprep.mubr.f32.mxu0 0.0
    %6026 = vmatmul.mubr.f32.gmra.mrb[0].mxu0 %v5956
    %v6027 = vpop.f32.mrb[0].mxu0
    %v6028 = vadd.f32 0.0, %v6027
    %v6029 = vpop.f32.mrb[0].mxu0
    %6030 = vmatprep.mubr.f32.mxu0 0.0
    %6031 = vmatmul.mubr.f32.gmra.mrb[0].mxu0 %v5959
    %v6032 = vpop.f32.mrb[0].mxu0
    %v6033 = vadd.f32 0.0, %v6032
    %v6034 = vpop.f32.mrb[0].mxu0
    %6035 = vdwg.mxu0
    %v6036 = vlaneseq
    %v6037 = vshrl.u32 %v6036, 7
    %v6038 = vsub.s32 0, %v6037
    %v6039 = vrot.slane %v5944, %v6038
    %v6040 = vadd.f32 %v5789, %v6039
    %v6041 = vadd.f32 %v5794, %v6039
    %v6042 = vtanh.pop %v6040
    %v6043 = vtanh.pop %v6041
    %v6045 = vsel %vm2651, %v6042, 0
    %v6048 = vsel %vm2651, %v6043, 0
    %6050 = vmatprep.subr.mxu0 0.0
    %6051 = vmatpush1.msra.mxu0 %v5237
    %6052 = vmatprep.subr.mxu0 0.0
    %6053 = vmatpush1.msra.mxu0 %v5238
    %6054 = vmatprep.subr.mxu0 0.0
    %6055 = vmatpush1.msra.mxu0 0.0
    %6056 = vmatprep.subr.mxu0 0.0
    %6057 = vmatpush1.msra.mxu0 0.0
    %6058 = vmatprep.subr.mxu0 0.0
    %6059 = vmatpush1.msra.mxu0 0.0
    %6060 = vmatprep.subr.mxu0 0.0
    %6061 = vmatpush1.msra.mxu0 0.0
    %6062 = vmatprep.subr.mxu0 0.0
    %6063 = vmatpush1.msra.mxu0 0.0
    %6064 = vmatprep.subr.mxu0 0.0
    %6065 = vmatpush1.msra.mxu0 0.0
    %6066 = vmatprep.subr.mxu0 0.0
    %6067 = vmatpush1.msra.mxu0 0.0
    %6068 = vmatprep.subr.mxu0 0.0
    %6069 = vmatpush1.msra.mxu0 0.0
    %6070 = vmatprep.subr.mxu0 0.0
    %6071 = vmatpush1.msra.mxu0 0.0
    %6072 = vmatprep.subr.mxu0 0.0
    %6073 = vmatpush1.msra.mxu0 0.0
    %6074 = vmatprep.subr.mxu0 0.0
    %6075 = vmatpush1.msra.mxu0 0.0
    %6076 = vmatprep.subr.mxu0 0.0
    %6077 = vmatpush1.msra.mxu0 0.0
    %6078 = vmatprep.subr.mxu0 0.0
    %6079 = vmatpush1.msra.mxu0 0.0
    %6080 = vmatprep.subr.mxu0 0.0
    %6081 = vmatpush1.msra.mxu0 0.0
    %6082 = vmatprep.subr.mxu0 0.0
    %6083 = vmatpush1.msra.mxu0 0.0
    %6084 = vmatprep.subr.mxu0 0.0
    %6085 = vmatpush1.msra.mxu0 0.0
    %6086 = vmatprep.subr.mxu0 0.0
    %6087 = vmatpush1.msra.mxu0 0.0
    %6088 = vmatprep.subr.mxu0 0.0
    %6089 = vmatpush1.msra.mxu0 0.0
    %6090 = vmatprep.subr.mxu0 0.0
    %6091 = vmatpush1.msra.mxu0 0.0
    %6092 = vmatprep.subr.mxu0 0.0
    %6093 = vmatpush1.msra.mxu0 0.0
    %6094 = vmatprep.subr.mxu0 0.0
    %6095 = vmatpush1.msra.mxu0 0.0
    %6096 = vmatprep.subr.mxu0 0.0
    %6097 = vmatpush1.msra.mxu0 0.0
    %6098 = vmatprep.subr.mxu0 0.0
    %6099 = vmatpush1.msra.mxu0 0.0
    %6100 = vmatprep.subr.mxu0 0.0
    %6101 = vmatpush1.msra.mxu0 0.0
    %6102 = vmatprep.subr.mxu0 0.0
    %6103 = vmatpush1.msra.mxu0 0.0
    %6104 = vmatprep.subr.mxu0 0.0
    %6105 = vmatpush1.msra.mxu0 0.0
    %6106 = vmatprep.subr.mxu0 0.0
    %6107 = vmatpush1.msra.mxu0 0.0
    %6108 = vmatprep.subr.mxu0 0.0
    %6109 = vmatpush1.msra.mxu0 0.0
    %6110 = vmatprep.subr.mxu0 0.0
    %6111 = vmatpush1.msra.mxu0 0.0
    %6112 = vmatprep.subr.mxu0 0.0
    %6113 = vmatpush1.msra.mxu0 0.0
    %6114 = vmatprep.mubr.f32.mxu0 0.0
    %6115 = vmatmul.mubr.f32.gmra.mrb[0].mxu0 %v6045
    %v6116 = vpop.f32.mrb[0].mxu0
    %v6117 = vadd.f32 0.0, %v6116
    %v6118 = vpop.f32.mrb[0].mxu0
    %6119 = vmatprep.mubr.f32.mxu0 0.0
    %6120 = vmatmul.mubr.f32.gmra.mrb[0].mxu0 %v6048
    %v6121 = vpop.f32.mrb[0].mxu0
    %v6122 = vadd.f32 0.0, %v6121
    %v6123 = vpop.f32.mrb[0].mxu0
    %6124 = vdwg.mxu0
    %v6125 = vmax.f32 %v6028, %v6117
    %v6126 = vmax.f32 %v6033, %v6122
    %v6127 = vsub.f32 %v6028, %v6125
    %v6128 = vsub.f32 %v6033, %v6126
    %v6129 = vmul.f32 %v6127, 1.442695
    %v6130 = vpow.pop %v6129
    %v6131 = vmul.f32 %v6128, 1.442695
    %v6132 = vpow.pop %v6131
    %v6133 = vsub.f32 %v6117, %v6125
    %v6134 = vsub.f32 %v6122, %v6126
    %v6135 = vmul.f32 %v6133, 1.442695
    %v6136 = vpow.pop %v6135
    %v6137 = vmul.f32 %v6134, 1.442695
    %v6138 = vpow.pop %v6137
    %v6139 = vadd.f32 %v6130, %v6136
    %v6140 = vadd.f32 %v6132, %v6138
    %v6141 = vrcp.pop %v6139
    %v6142 = vmul.f32 1.0, %v6141
    %v6143 = vrcp.pop %v6140
    %v6144 = vmul.f32 1.0, %v6143
    %v6145 = vmul.f32 %v6130, %v6142
    %v6146 = vmul.f32 %v6132, %v6144
    %v6147 = vmul.f32 %v6136, %v6142
    %v6148 = vmul.f32 %v6138, %v6144
    %6150 = vset.pattern.permute.xlu0 0
    %6151 = vperm.xlu0 %6150, %v6145
    %v6152 = vpop.permute.xlu0 %6151
    %6155 = vset.pattern.permute.xlu0 0
    %6156 = vperm.xlu0 %6155, %v6146
    %v6157 = vpop.permute.xlu0 %6156
    %v6159 = vmul.f32 %v6152, %v5714
    %v6160 = vmul.f32 %v6157, %v5715
    %v6161 = vsel %vm65, %v6159, 0.0
    %v6162 = vsel %vm67, %v6160, 0.0
    %v6163 = vadd.f32 %v6161, %v6162
    %v6164 = vrot.slane %v6163, 4
    %v6165 = vadd.f32 %v6163, %v6164
    %v6166 = vrot.slane %v6165, 2
    %v6167 = vadd.f32 %v6165, %v6166
    %v6168 = vrot.slane %v6167, 1
    %v6169 = vadd.f32 %v6167, %v6168
    %6171 = vset.pattern.permute.xlu0 0
    %6172 = vperm.xlu0 %6171, %v6147
    %v6173 = vpop.permute.xlu0 %6172
    %6176 = vset.pattern.permute.xlu0 0
    %6177 = vperm.xlu0 %6176, %v6148
    %v6178 = vpop.permute.xlu0 %6177
    %v6180 = vmul.f32 %v6173, %v5714
    %v6181 = vmul.f32 %v6178, %v5715
    %v6182 = vsel %vm65, %v6180, 0.0
    %v6183 = vsel %vm67, %v6181, 0.0
    %v6184 = vadd.f32 %v6182, %v6183
    %v6185 = vrot.slane %v6184, 4
    %v6186 = vadd.f32 %v6184, %v6185
    %v6187 = vrot.slane %v6186, 2
    %v6188 = vadd.f32 %v6186, %v6187
    %v6189 = vrot.slane %v6188, 1
    %v6190 = vadd.f32 %v6188, %v6189
    %v6191 = vsel %vm1507, %v5692, %v6169
    %v6192 = vsel %vm1507, %v5713, %v6190
    %v6193 = vld [vmem:[%s11] sm:$0xff]
    %v6194 = vld [vmem:[%s11 + $0x8] sm:$0xff]
    %v6195 = vld [vmem:[%s11 + $0x10] sm:$0xff]
    %v6196 = vld [vmem:[%s11 + $0x18] sm:$0xff]
    %v6197 = vld [vmem:[%s12] sm:$0xff]
    %v6198 = vld [vmem:[%s12 + $0x8] sm:$0xff]
    %v6199 = vld [vmem:[%s12 + $0x10] sm:$0xff]
    %v6200 = vld [vmem:[%s12 + $0x18] sm:$0xff]
    %6201 = vmatprep.subr.mxu0 0.0
    %6202 = vmatpush1.msra.mxu0 %v6197
    %6203 = vmatprep.subr.mxu0 0.0
    %6204 = vmatpush1.msra.mxu0 %v6198
    %6205 = vmatprep.subr.mxu0 0.0
    %6206 = vmatpush1.msra.mxu0 %v6199
    %6207 = vmatprep.subr.mxu0 0.0
    %6208 = vmatpush1.msra.mxu0 %v6200
    %6209 = vmatprep.subr.mxu0 0.0
    %6210 = vmatpush1.msra.mxu0 0.0
    %6211 = vmatprep.subr.mxu0 0.0
    %6212 = vmatpush1.msra.mxu0 0.0
    %6213 = vmatprep.subr.mxu0 0.0
    %6214 = vmatpush1.msra.mxu0 0.0
    %6215 = vmatprep.subr.mxu0 0.0
    %6216 = vmatpush1.msra.mxu0 0.0
    %6217 = vmatprep.subr.mxu0 0.0
    %6218 = vmatpush1.msra.mxu0 0.0
    %6219 = vmatprep.subr.mxu0 0.0
    %6220 = vmatpush1.msra.mxu0 0.0
    %6221 = vmatprep.subr.mxu0 0.0
    %6222 = vmatpush1.msra.mxu0 0.0
    %6223 = vmatprep.subr.mxu0 0.0
    %6224 = vmatpush1.msra.mxu0 0.0
    %6225 = vmatprep.subr.mxu0 0.0
    %6226 = vmatpush1.msra.mxu0 0.0
    %6227 = vmatprep.subr.mxu0 0.0
    %6228 = vmatpush1.msra.mxu0 0.0
    %6229 = vmatprep.subr.mxu0 0.0
    %6230 = vmatpush1.msra.mxu0 0.0
    %6231 = vmatprep.subr.mxu0 0.0
    %6232 = vmatpush1.msra.mxu0 0.0
    %6233 = vmatprep.subr.mxu0 0.0
    %6234 = vmatpush1.msra.mxu0 0.0
    %6235 = vmatprep.subr.mxu0 0.0
    %6236 = vmatpush1.msra.mxu0 0.0
    %6237 = vmatprep.subr.mxu0 0.0
    %6238 = vmatpush1.msra.mxu0 0.0
    %6239 = vmatprep.subr.mxu0 0.0
    %6240 = vmatpush1.msra.mxu0 0.0
    %6241 = vmatprep.subr.mxu0 0.0
    %6242 = vmatpush1.msra.mxu0 0.0
    %6243 = vmatprep.subr.mxu0 0.0
    %6244 = vmatpush1.msra.mxu0 0.0
    %6245 = vmatprep.subr.mxu0 0.0
    %6246 = vmatpush1.msra.mxu0 0.0
    %6247 = vmatprep.subr.mxu0 0.0
    %6248 = vmatpush1.msra.mxu0 0.0
    %6249 = vmatprep.subr.mxu0 0.0
    %6250 = vmatpush1.msra.mxu0 0.0
    %6251 = vmatprep.subr.mxu0 0.0
    %6252 = vmatpush1.msra.mxu0 0.0
    %6253 = vmatprep.subr.mxu0 0.0
    %6254 = vmatpush1.msra.mxu0 0.0
    %6255 = vmatprep.subr.mxu0 0.0
    %6256 = vmatpush1.msra.mxu0 0.0
    %6257 = vmatprep.subr.mxu0 0.0
    %6258 = vmatpush1.msra.mxu0 0.0
    %6259 = vmatprep.subr.mxu0 0.0
    %6260 = vmatpush1.msra.mxu0 0.0
    %6261 = vmatprep.subr.mxu0 0.0
    %6262 = vmatpush1.msra.mxu0 0.0
    %6263 = vmatprep.subr.mxu0 0.0
    %6264 = vmatpush1.msra.mxu0 0.0
    %6265 = vmatprep.mubr.f32.mxu0 0.0
    %6266 = vmatmul.mubr.f32.gmra.mrb[0].mxu0 %v5148
    %v6267 = vpop.f32.mrb[0].mxu0
    %v6268 = vadd.f32 0.0, %v6267
    %v6269 = vpop.f32.mrb[0].mxu0
    %6270 = vdwg.mxu0
    %v6272 = vsel %vm65, %v6191, 0
    %6274 = vmatprep.subr.mxu0 0.0
    %6275 = vmatpush1.msra.mxu0 %v6193
    %6276 = vmatprep.subr.mxu0 0.0
    %6277 = vmatpush1.msra.mxu0 %v6194
    %6278 = vmatprep.subr.mxu0 0.0
    %6279 = vmatpush1.msra.mxu0 %v6195
    %6280 = vmatprep.subr.mxu0 0.0
    %6281 = vmatpush1.msra.mxu0 %v6196
    %6282 = vmatprep.subr.mxu0 0.0
    %6283 = vmatpush1.msra.mxu0 0.0
    %6284 = vmatprep.subr.mxu0 0.0
    %6285 = vmatpush1.msra.mxu0 0.0
    %6286 = vmatprep.subr.mxu0 0.0
    %6287 = vmatpush1.msra.mxu0 0.0
    %6288 = vmatprep.subr.mxu0 0.0
    %6289 = vmatpush1.msra.mxu0 0.0
    %6290 = vmatprep.subr.mxu0 0.0
    %6291 = vmatpush1.msra.mxu0 0.0
    %6292 = vmatprep.subr.mxu0 0.0
    %6293 = vmatpush1.msra.mxu0 0.0
    %6294 = vmatprep.subr.mxu0 0.0
    %6295 = vmatpush1.msra.mxu0 0.0
    %6296 = vmatprep.subr.mxu0 0.0
    %6297 = vmatpush1.msra.mxu0 0.0
    %6298 = vmatprep.subr.mxu0 0.0
    %6299 = vmatpush1.msra.mxu0 0.0
    %6300 = vmatprep.subr.mxu0 0.0
    %6301 = vmatpush1.msra.mxu0 0.0
    %6302 = vmatprep.subr.mxu0 0.0
    %6303 = vmatpush1.msra.mxu0 0.0
    %6304 = vmatprep.subr.mxu0 0.0
    %6305 = vmatpush1.msra.mxu0 0.0
    %6306 = vmatprep.subr.mxu0 0.0
    %6307 = vmatpush1.msra.mxu0 0.0
    %6308 = vmatprep.subr.mxu0 0.0
    %6309 = vmatpush1.msra.mxu0 0.0
    %6310 = vmatprep.subr.mxu0 0.0
    %6311 = vmatpush1.msra.mxu0 0.0
    %6312 = vmatprep.subr.mxu0 0.0
    %6313 = vmatpush1.msra.mxu0 0.0
    %6314 = vmatprep.subr.mxu0 0.0
    %6315 = vmatpush1.msra.mxu0 0.0
    %6316 = vmatprep.subr.mxu0 0.0
    %6317 = vmatpush1.msra.mxu0 0.0
    %6318 = vmatprep.subr.mxu0 0.0
    %6319 = vmatpush1.msra.mxu0 0.0
    %6320 = vmatprep.subr.mxu0 0.0
    %6321 = vmatpush1.msra.mxu0 0.0
    %6322 = vmatprep.subr.mxu0 0.0
    %6323 = vmatpush1.msra.mxu0 0.0
    %6324 = vmatprep.subr.mxu0 0.0
    %6325 = vmatpush1.msra.mxu0 0.0
    %6326 = vmatprep.subr.mxu0 0.0
    %6327 = vmatpush1.msra.mxu0 0.0
    %6328 = vmatprep.subr.mxu0 0.0
    %6329 = vmatpush1.msra.mxu0 0.0
    %6330 = vmatprep.subr.mxu0 0.0
    %6331 = vmatpush1.msra.mxu0 0.0
    %6332 = vmatprep.subr.mxu0 0.0
    %6333 = vmatpush1.msra.mxu0 0.0
    %6334 = vmatprep.subr.mxu0 0.0
    %6335 = vmatpush1.msra.mxu0 0.0
    %6336 = vmatprep.subr.mxu0 0.0
    %6337 = vmatpush1.msra.mxu0 0.0
    %6338 = vmatprep.mubr.f32.mxu0 0.0
    %6339 = vmatmul.mubr.f32.gmra.mrb[0].mxu0 %v6272
    %v6340 = vpop.f32.mrb[0].mxu0
    %v6341 = vadd.f32 %v6268, %v6340
    %v6342 = vpop.f32.mrb[0].mxu0
    %6343 = vdwg.mxu0
    %v6344 = vld [vmem:[%s13] sm:$0x1]
    %v6346 = vlaneseq
    %v6347 = vshrl.u32 %v6346, 7
    %v6348 = vsub.s32 0, %v6347
    %v6349 = vrot.slane %v6344, %v6348
    %v6351 = vadd.f32 %v6341, %v6349
    %v6352 = vxor.u32 %v6351, 2147483648
    %v6353 = vmul.f32 %v6352, 1.442695
    %v6354 = vpow.pop %v6353
    %v6355 = vadd.f32 %v6354, 1.0
    %v6356 = vrcp.pop %v6355
    %v6357 = vmul.f32 1.0, %v6356
    %v6358 = vtanh.pop %v6351
    %v6359 = vmul.f32 %v6357, %v5127
    %6361 = vrot.lane.b32.xlu0 %v6358, 64
    %v6362 = vpop.permute.xlu0 %6361
    %v6364 = vmul.f32 %v6357, %v6362
    %6366 = vrot.lane.b32.xlu0 %v6364, 32
    %v6367 = vpop.permute.xlu0 %6366
    %v6369 = vadd.f32 %v6359, %v6367
    %v6370 = vtanh.pop %v6369
    %6372 = vrot.lane.b32.xlu0 %v6370, 64
    %v6373 = vpop.permute.xlu0 %6372
    %v6375 = vmul.f32 %v6357, %v6373
    %6377 = vrot.lane.b32.xlu0 %v6375, 32
    %v6378 = vpop.permute.xlu0 %6377
    %v6379 = vsel %vm65, %v6378, 0
    %6381 = vmatprep.subr.mxu0 0.0
    %6382 = vmatpush1.msra.mxu0 %v6197
    %6383 = vmatprep.subr.mxu0 0.0
    %6384 = vmatpush1.msra.mxu0 %v6198
    %6385 = vmatprep.subr.mxu0 0.0
    %6386 = vmatpush1.msra.mxu0 %v6199
    %6387 = vmatprep.subr.mxu0 0.0
    %6388 = vmatpush1.msra.mxu0 %v6200
    %6389 = vmatprep.subr.mxu0 0.0
    %6390 = vmatpush1.msra.mxu0 0.0
    %6391 = vmatprep.subr.mxu0 0.0
    %6392 = vmatpush1.msra.mxu0 0.0
    %6393 = vmatprep.subr.mxu0 0.0
    %6394 = vmatpush1.msra.mxu0 0.0
    %6395 = vmatprep.subr.mxu0 0.0
    %6396 = vmatpush1.msra.mxu0 0.0
    %6397 = vmatprep.subr.mxu0 0.0
    %6398 = vmatpush1.msra.mxu0 0.0
    %6399 = vmatprep.subr.mxu0 0.0
    %6400 = vmatpush1.msra.mxu0 0.0
    %6401 = vmatprep.subr.mxu0 0.0
    %6402 = vmatpush1.msra.mxu0 0.0
    %6403 = vmatprep.subr.mxu0 0.0
    %6404 = vmatpush1.msra.mxu0 0.0
    %6405 = vmatprep.subr.mxu0 0.0
    %6406 = vmatpush1.msra.mxu0 0.0
    %6407 = vmatprep.subr.mxu0 0.0
    %6408 = vmatpush1.msra.mxu0 0.0
    %6409 = vmatprep.subr.mxu0 0.0
    %6410 = vmatpush1.msra.mxu0 0.0
    %6411 = vmatprep.subr.mxu0 0.0
    %6412 = vmatpush1.msra.mxu0 0.0
    %6413 = vmatprep.subr.mxu0 0.0
    %6414 = vmatpush1.msra.mxu0 0.0
    %6415 = vmatprep.subr.mxu0 0.0
    %6416 = vmatpush1.msra.mxu0 0.0
    %6417 = vmatprep.subr.mxu0 0.0
    %6418 = vmatpush1.msra.mxu0 0.0
    %6419 = vmatprep.subr.mxu0 0.0
    %6420 = vmatpush1.msra.mxu0 0.0
    %6421 = vmatprep.subr.mxu0 0.0
    %6422 = vmatpush1.msra.mxu0 0.0
    %6423 = vmatprep.subr.mxu0 0.0
    %6424 = vmatpush1.msra.mxu0 0.0
    %6425 = vmatprep.subr.mxu0 0.0
    %6426 = vmatpush1.msra.mxu0 0.0
    %6427 = vmatprep.subr.mxu0 0.0
    %6428 = vmatpush1.msra.mxu0 0.0
    %6429 = vmatprep.subr.mxu0 0.0
    %6430 = vmatpush1.msra.mxu0 0.0
    %6431 = vmatprep.subr.mxu0 0.0
    %6432 = vmatpush1.msra.mxu0 0.0
    %6433 = vmatprep.subr.mxu0 0.0
    %6434 = vmatpush1.msra.mxu0 0.0
    %6435 = vmatprep.subr.mxu0 0.0
    %6436 = vmatpush1.msra.mxu0 0.0
    %6437 = vmatprep.subr.mxu0 0.0
    %6438 = vmatpush1.msra.mxu0 0.0
    %6439 = vmatprep.subr.mxu0 0.0
    %6440 = vmatpush1.msra.mxu0 0.0
    %6441 = vmatprep.subr.mxu0 0.0
    %6442 = vmatpush1.msra.mxu0 0.0
    %6443 = vmatprep.subr.mxu0 0.0
    %6444 = vmatpush1.msra.mxu0 0.0
    %6445 = vmatprep.mubr.f32.mxu0 0.0
    %6446 = vmatmul.mubr.f32.gmra.mrb[0].mxu0 %v6379
    %v6447 = vpop.f32.mrb[0].mxu0
    %v6448 = vadd.f32 0.0, %v6447
    %v6449 = vpop.f32.mrb[0].mxu0
    %6450 = vdwg.mxu0
    %v6452 = vsel %vm65, %v6192, 0
    %6454 = vmatprep.subr.mxu0 0.0
    %6455 = vmatpush1.msra.mxu0 %v6193
    %6456 = vmatprep.subr.mxu0 0.0
    %6457 = vmatpush1.msra.mxu0 %v6194
    %6458 = vmatprep.subr.mxu0 0.0
    %6459 = vmatpush1.msra.mxu0 %v6195
    %6460 = vmatprep.subr.mxu0 0.0
    %6461 = vmatpush1.msra.mxu0 %v6196
    %6462 = vmatprep.subr.mxu0 0.0
    %6463 = vmatpush1.msra.mxu0 0.0
    %6464 = vmatprep.subr.mxu0 0.0
    %6465 = vmatpush1.msra.mxu0 0.0
    %6466 = vmatprep.subr.mxu0 0.0
    %6467 = vmatpush1.msra.mxu0 0.0
    %6468 = vmatprep.subr.mxu0 0.0
    %6469 = vmatpush1.msra.mxu0 0.0
    %6470 = vmatprep.subr.mxu0 0.0
    %6471 = vmatpush1.msra.mxu0 0.0
    %6472 = vmatprep.subr.mxu0 0.0
    %6473 = vmatpush1.msra.mxu0 0.0
    %6474 = vmatprep.subr.mxu0 0.0
    %6475 = vmatpush1.msra.mxu0 0.0
    %6476 = vmatprep.subr.mxu0 0.0
    %6477 = vmatpush1.msra.mxu0 0.0
    %6478 = vmatprep.subr.mxu0 0.0
    %6479 = vmatpush1.msra.mxu0 0.0
    %6480 = vmatprep.subr.mxu0 0.0
    %6481 = vmatpush1.msra.mxu0 0.0
    %6482 = vmatprep.subr.mxu0 0.0
    %6483 = vmatpush1.msra.mxu0 0.0
    %6484 = vmatprep.subr.mxu0 0.0
    %6485 = vmatpush1.msra.mxu0 0.0
    %6486 = vmatprep.subr.mxu0 0.0
    %6487 = vmatpush1.msra.mxu0 0.0
    %6488 = vmatprep.subr.mxu0 0.0
    %6489 = vmatpush1.msra.mxu0 0.0
    %6490 = vmatprep.subr.mxu0 0.0
    %6491 = vmatpush1.msra.mxu0 0.0
    %6492 = vmatprep.subr.mxu0 0.0
    %6493 = vmatpush1.msra.mxu0 0.0
    %6494 = vmatprep.subr.mxu0 0.0
    %6495 = vmatpush1.msra.mxu0 0.0
    %6496 = vmatprep.subr.mxu0 0.0
    %6497 = vmatpush1.msra.mxu0 0.0
    %6498 = vmatprep.subr.mxu0 0.0
    %6499 = vmatpush1.msra.mxu0 0.0
    %6500 = vmatprep.subr.mxu0 0.0
    %6501 = vmatpush1.msra.mxu0 0.0
    %6502 = vmatprep.subr.mxu0 0.0
    %6503 = vmatpush1.msra.mxu0 0.0
    %6504 = vmatprep.subr.mxu0 0.0
    %6505 = vmatpush1.msra.mxu0 0.0
    %6506 = vmatprep.subr.mxu0 0.0
    %6507 = vmatpush1.msra.mxu0 0.0
    %6508 = vmatprep.subr.mxu0 0.0
    %6509 = vmatpush1.msra.mxu0 0.0
    %6510 = vmatprep.subr.mxu0 0.0
    %6511 = vmatpush1.msra.mxu0 0.0
    %6512 = vmatprep.subr.mxu0 0.0
    %6513 = vmatpush1.msra.mxu0 0.0
    %6514 = vmatprep.subr.mxu0 0.0
    %6515 = vmatpush1.msra.mxu0 0.0
    %6516 = vmatprep.subr.mxu0 0.0
    %6517 = vmatpush1.msra.mxu0 0.0
    %6518 = vmatprep.mubr.f32.mxu0 0.0
    %6519 = vmatmul.mubr.f32.gmra.mrb[0].mxu0 %v6452
    %v6520 = vpop.f32.mrb[0].mxu0
    %v6521 = vadd.f32 %v6448, %v6520
    %v6522 = vpop.f32.mrb[0].mxu0
    %6523 = vdwg.mxu0
    %v6524 = vadd.f32 %v6521, %v6349
    %v6525 = vxor.u32 %v6524, 2147483648
    %v6526 = vmul.f32 %v6525, 1.442695
    %v6527 = vpow.pop %v6526
    %v6528 = vadd.f32 %v6527, 1.0
    %v6529 = vrcp.pop %v6528
    %v6530 = vmul.f32 1.0, %v6529
    %v6531 = vtanh.pop %v6524
    %v6532 = vmul.f32 %v6530, %v6369
    %6534 = vrot.lane.b32.xlu0 %v6531, 64
    %v6535 = vpop.permute.xlu0 %6534
    %v6537 = vmul.f32 %v6530, %v6535
    %6539 = vrot.lane.b32.xlu0 %v6537, 32
    %v6540 = vpop.permute.xlu0 %6539
    %v6542 = vadd.f32 %v6532, %v6540
    %v6543 = vtanh.pop %v6542
    %6545 = vrot.lane.b32.xlu0 %v6543, 64
    %v6546 = vpop.permute.xlu0 %6545
    %v6548 = vmul.f32 %v6530, %v6546
    %v6549 = vld [vmem:[%s14] sm:$0xff]
    %v6550 = vld [vmem:[%s14 + $0x8] sm:$0xff]
    %v6551 = vld [vmem:[%s14 + $0x10] sm:$0xff]
    %v6552 = vld [vmem:[%s14 + $0x18] sm:$0xff]
    %v6553 = vld [vmem:[#allocation3] sm:$0x1]
    %v6555 = vlaneseq
    %v6556 = vshrl.u32 %v6555, 7
    %v6557 = vsub.s32 0, %v6556
    %v6558 = vrot.slane %v6553, %v6557
    %6561 = vrot.lane.b32.xlu0 %v6548, 32
    %v6562 = vpop.permute.xlu0 %6561
    %v6563 = vsel %vm65, %v6562, 0
    %6565 = vmatprep.subr.mxu0 0.0
    %6566 = vmatpush1.msra.mxu0 %v6549
    %6567 = vmatprep.subr.mxu0 0.0
    %6568 = vmatpush1.msra.mxu0 %v6550
    %6569 = vmatprep.subr.mxu0 0.0
    %6570 = vmatpush1.msra.mxu0 %v6551
    %6571 = vmatprep.subr.mxu0 0.0
    %6572 = vmatpush1.msra.mxu0 %v6552
    %6573 = vmatprep.subr.mxu0 0.0
    %6574 = vmatpush1.msra.mxu0 0.0
    %6575 = vmatprep.subr.mxu0 0.0
    %6576 = vmatpush1.msra.mxu0 0.0
    %6577 = vmatprep.subr.mxu0 0.0
    %6578 = vmatpush1.msra.mxu0 0.0
    %6579 = vmatprep.subr.mxu0 0.0
    %6580 = vmatpush1.msra.mxu0 0.0
    %6581 = vmatprep.subr.mxu0 0.0
    %6582 = vmatpush1.msra.mxu0 0.0
    %6583 = vmatprep.subr.mxu0 0.0
    %6584 = vmatpush1.msra.mxu0 0.0
    %6585 = vmatprep.subr.mxu0 0.0
    %6586 = vmatpush1.msra.mxu0 0.0
    %6587 = vmatprep.subr.mxu0 0.0
    %6588 = vmatpush1.msra.mxu0 0.0
    %6589 = vmatprep.subr.mxu0 0.0
    %6590 = vmatpush1.msra.mxu0 0.0
    %6591 = vmatprep.subr.mxu0 0.0
    %6592 = vmatpush1.msra.mxu0 0.0
    %6593 = vmatprep.subr.mxu0 0.0
    %6594 = vmatpush1.msra.mxu0 0.0
    %6595 = vmatprep.subr.mxu0 0.0
    %6596 = vmatpush1.msra.mxu0 0.0
    %6597 = vmatprep.subr.mxu0 0.0
    %6598 = vmatpush1.msra.mxu0 0.0
    %6599 = vmatprep.subr.mxu0 0.0
    %6600 = vmatpush1.msra.mxu0 0.0
    %6601 = vmatprep.subr.mxu0 0.0
    %6602 = vmatpush1.msra.mxu0 0.0
    %6603 = vmatprep.subr.mxu0 0.0
    %6604 = vmatpush1.msra.mxu0 0.0
    %6605 = vmatprep.subr.mxu0 0.0
    %6606 = vmatpush1.msra.mxu0 0.0
    %6607 = vmatprep.subr.mxu0 0.0
    %6608 = vmatpush1.msra.mxu0 0.0
    %6609 = vmatprep.subr.mxu0 0.0
    %6610 = vmatpush1.msra.mxu0 0.0
    %6611 = vmatprep.subr.mxu0 0.0
    %6612 = vmatpush1.msra.mxu0 0.0
    %6613 = vmatprep.subr.mxu0 0.0
    %6614 = vmatpush1.msra.mxu0 0.0
    %6615 = vmatprep.subr.mxu0 0.0
    %6616 = vmatpush1.msra.mxu0 0.0
    %6617 = vmatprep.subr.mxu0 0.0
    %6618 = vmatpush1.msra.mxu0 0.0
    %6619 = vmatprep.subr.mxu0 0.0
    %6620 = vmatpush1.msra.mxu0 0.0
    %6621 = vmatprep.subr.mxu0 0.0
    %6622 = vmatpush1.msra.mxu0 0.0
    %6623 = vmatprep.subr.mxu0 0.0
    %6624 = vmatpush1.msra.mxu0 0.0
    %6625 = vmatprep.subr.mxu0 0.0
    %6626 = vmatpush1.msra.mxu0 0.0
    %6627 = vmatprep.subr.mxu0 0.0
    %6628 = vmatpush1.msra.mxu0 0.0
    %6629 = vmatprep.mubr.f32.mxu0 0.0
    %6630 = vmatmul.mubr.f32.gmra.mrb[0].mxu0 %v6563
    %v6631 = vpop.f32.mrb[0].mxu0
    %v6632 = vadd.f32 %v6558, %v6631
    %v6633 = vpop.f32.mrb[0].mxu0
    %6634 = vdwg.mxu0
    %6636 = vrot.lane.b32.xlu0 %v6632, 2
    %v6637 = vpop.permute.xlu0 %6636
    %vm6639 = vcmask 17424
    %6640 = vst.msk [vmem:[#allocation4] sm:$0x3] %vm6639, %v6637
    %s6641 = scalar_lea.vmem %s16, 96
    %v6642 = vld [vmem:[%s6641] sm:$0xff]
    %v6643 = vld [vmem:[%s6641 + $0x8] sm:$0xff]
    %v6644 = vld [vmem:[%s6641 + $0x10] sm:$0xff]
    %v6645 = vld [vmem:[%s6641 + $0x18] sm:$0xff]
    %s6646 = scalar_lea.vmem %s17, 96
    %v6647 = vld [vmem:[%s6646] sm:$0xff]
    %v6648 = vld [vmem:[%s6646 + $0x8] sm:$0xff]
    %v6649 = vld [vmem:[%s6646 + $0x10] sm:$0xff]
    %v6650 = vld [vmem:[%s6646 + $0x18] sm:$0xff]
    %s6651 = scalar_lea.vmem %s18, 48
    %v6652 = vld [vmem:[%s6651] sm:$0xff]
    %v6653 = vld [vmem:[%s6651 + $0x8] sm:$0xff]
    %6655 = vst.msk [vmem:[#allocation2 + $0xa] sm:$0x1] %vm1615, %v6562
    %6656 = vst.msk [vmem:[%s1617 + $0x9] sm:$0x2] %vm1618, %v6562
    %v6657 = vld [vmem:[#allocation2] sm:$0xff]
    %v6658 = vld [vmem:[#allocation2 + $0x8] sm:$0x7]
    %v6660 = vsel %vm65, %v6657, 0
    %v6663 = vsel %vm65, %v6658, 0
    %6665 = vmatprep.subr.mxu0 0.0
    %6666 = vmatpush1.msra.mxu0 %v6647
    %6667 = vmatprep.subr.mxu0 0.0
    %6668 = vmatpush1.msra.mxu0 %v6648
    %6669 = vmatprep.subr.mxu0 0.0
    %6670 = vmatpush1.msra.mxu0 %v6649
    %6671 = vmatprep.subr.mxu0 0.0
    %6672 = vmatpush1.msra.mxu0 %v6650
    %6673 = vmatprep.subr.mxu0 0.0
    %6674 = vmatpush1.msra.mxu0 0.0
    %6675 = vmatprep.subr.mxu0 0.0
    %6676 = vmatpush1.msra.mxu0 0.0
    %6677 = vmatprep.subr.mxu0 0.0
    %6678 = vmatpush1.msra.mxu0 0.0
    %6679 = vmatprep.subr.mxu0 0.0
    %6680 = vmatpush1.msra.mxu0 0.0
    %6681 = vmatprep.subr.mxu0 0.0
    %6682 = vmatpush1.msra.mxu0 0.0
    %6683 = vmatprep.subr.mxu0 0.0
    %6684 = vmatpush1.msra.mxu0 0.0
    %6685 = vmatprep.subr.mxu0 0.0
    %6686 = vmatpush1.msra.mxu0 0.0
    %6687 = vmatprep.subr.mxu0 0.0
    %6688 = vmatpush1.msra.mxu0 0.0
    %6689 = vmatprep.subr.mxu0 0.0
    %6690 = vmatpush1.msra.mxu0 0.0
    %6691 = vmatprep.subr.mxu0 0.0
    %6692 = vmatpush1.msra.mxu0 0.0
    %6693 = vmatprep.subr.mxu0 0.0
    %6694 = vmatpush1.msra.mxu0 0.0
    %6695 = vmatprep.subr.mxu0 0.0
    %6696 = vmatpush1.msra.mxu0 0.0
    %6697 = vmatprep.subr.mxu0 0.0
    %6698 = vmatpush1.msra.mxu0 0.0
    %6699 = vmatprep.subr.mxu0 0.0
    %6700 = vmatpush1.msra.mxu0 0.0
    %6701 = vmatprep.subr.mxu0 0.0
    %6702 = vmatpush1.msra.mxu0 0.0
    %6703 = vmatprep.subr.mxu0 0.0
    %6704 = vmatpush1.msra.mxu0 0.0
    %6705 = vmatprep.subr.mxu0 0.0
    %6706 = vmatpush1.msra.mxu0 0.0
    %6707 = vmatprep.subr.mxu0 0.0
    %6708 = vmatpush1.msra.mxu0 0.0
    %6709 = vmatprep.subr.mxu0 0.0
    %6710 = vmatpush1.msra.mxu0 0.0
    %6711 = vmatprep.subr.mxu0 0.0
    %6712 = vmatpush1.msra.mxu0 0.0
    %6713 = vmatprep.subr.mxu0 0.0
    %6714 = vmatpush1.msra.mxu0 0.0
    %6715 = vmatprep.subr.mxu0 0.0
    %6716 = vmatpush1.msra.mxu0 0.0
    %6717 = vmatprep.subr.mxu0 0.0
    %6718 = vmatpush1.msra.mxu0 0.0
    %6719 = vmatprep.subr.mxu0 0.0
    %6720 = vmatpush1.msra.mxu0 0.0
    %6721 = vmatprep.subr.mxu0 0.0
    %6722 = vmatpush1.msra.mxu0 0.0
    %6723 = vmatprep.subr.mxu0 0.0
    %6724 = vmatpush1.msra.mxu0 0.0
    %6725 = vmatprep.subr.mxu0 0.0
    %6726 = vmatpush1.msra.mxu0 0.0
    %6727 = vmatprep.subr.mxu0 0.0
    %6728 = vmatpush1.msra.mxu0 0.0
    %6729 = vmatprep.mubr.f32.mxu0 0.0
    %6730 = vmatmul.mubr.f32.gmra.mrb[0].mxu0 %v6660
    %v6731 = vpop.f32.mrb[0].mxu0
    %v6732 = vadd.f32 0.0, %v6731
    %v6733 = vpop.f32.mrb[0].mxu0
    %6734 = vmatprep.mubr.f32.mxu0 0.0
    %6735 = vmatmul.mubr.f32.gmra.mrb[0].mxu0 %v6663
    %v6736 = vpop.f32.mrb[0].mxu0
    %v6737 = vadd.f32 0.0, %v6736
    %v6738 = vpop.f32.mrb[0].mxu0
    %6739 = vdwg.mxu0
    %6740 = vmatprep.subr.mxu0 0.0
    %6741 = vmatpush1.msra.mxu0 %v6642
    %6742 = vmatprep.subr.mxu0 0.0
    %6743 = vmatpush1.msra.mxu0 %v6643
    %6744 = vmatprep.subr.mxu0 0.0
    %6745 = vmatpush1.msra.mxu0 %v6644
    %6746 = vmatprep.subr.mxu0 0.0
    %6747 = vmatpush1.msra.mxu0 %v6645
    %6748 = vmatprep.subr.mxu0 0.0
    %6749 = vmatpush1.msra.mxu0 0.0
    %6750 = vmatprep.subr.mxu0 0.0
    %6751 = vmatpush1.msra.mxu0 0.0
    %6752 = vmatprep.subr.mxu0 0.0
    %6753 = vmatpush1.msra.mxu0 0.0
    %6754 = vmatprep.subr.mxu0 0.0
    %6755 = vmatpush1.msra.mxu0 0.0
    %6756 = vmatprep.subr.mxu0 0.0
    %6757 = vmatpush1.msra.mxu0 0.0
    %6758 = vmatprep.subr.mxu0 0.0
    %6759 = vmatpush1.msra.mxu0 0.0
    %6760 = vmatprep.subr.mxu0 0.0
    %6761 = vmatpush1.msra.mxu0 0.0
    %6762 = vmatprep.subr.mxu0 0.0
    %6763 = vmatpush1.msra.mxu0 0.0
    %6764 = vmatprep.subr.mxu0 0.0
    %6765 = vmatpush1.msra.mxu0 0.0
    %6766 = vmatprep.subr.mxu0 0.0
    %6767 = vmatpush1.msra.mxu0 0.0
    %6768 = vmatprep.subr.mxu0 0.0
    %6769 = vmatpush1.msra.mxu0 0.0
    %6770 = vmatprep.subr.mxu0 0.0
    %6771 = vmatpush1.msra.mxu0 0.0
    %6772 = vmatprep.subr.mxu0 0.0
    %6773 = vmatpush1.msra.mxu0 0.0
    %6774 = vmatprep.subr.mxu0 0.0
    %6775 = vmatpush1.msra.mxu0 0.0
    %6776 = vmatprep.subr.mxu0 0.0
    %6777 = vmatpush1.msra.mxu0 0.0
    %6778 = vmatprep.subr.mxu0 0.0
    %6779 = vmatpush1.msra.mxu0 0.0
    %6780 = vmatprep.subr.mxu0 0.0
    %6781 = vmatpush1.msra.mxu0 0.0
    %6782 = vmatprep.subr.mxu0 0.0
    %6783 = vmatpush1.msra.mxu0 0.0
    %6784 = vmatprep.subr.mxu0 0.0
    %6785 = vmatpush1.msra.mxu0 0.0
    %6786 = vmatprep.subr.mxu0 0.0
    %6787 = vmatpush1.msra.mxu0 0.0
    %6788 = vmatprep.subr.mxu0 0.0
    %6789 = vmatpush1.msra.mxu0 0.0
    %6790 = vmatprep.subr.mxu0 0.0
    %6791 = vmatpush1.msra.mxu0 0.0
    %6792 = vmatprep.subr.mxu0 0.0
    %6793 = vmatpush1.msra.mxu0 0.0
    %6794 = vmatprep.subr.mxu0 0.0
    %6795 = vmatpush1.msra.mxu0 0.0
    %6796 = vmatprep.subr.mxu0 0.0
    %6797 = vmatpush1.msra.mxu0 0.0
    %6798 = vmatprep.subr.mxu0 0.0
    %6799 = vmatpush1.msra.mxu0 0.0
    %6800 = vmatprep.subr.mxu0 0.0
    %6801 = vmatpush1.msra.mxu0 0.0
    %6802 = vmatprep.subr.mxu0 0.0
    %6803 = vmatpush1.msra.mxu0 0.0
    %6804 = vmatprep.mubr.f32.mxu0 0.0
    %6805 = vmatmul.mubr.f32.gmra.mrb[0].mxu0 %v6563
    %v6806 = vpop.f32.mrb[0].mxu0
    %v6807 = vadd.f32 0.0, %v6806
    %v6808 = vpop.f32.mrb[0].mxu0
    %6809 = vdwg.mxu0
    %6811 = vrot.lane.b32.xlu0 %v6542, 96
    %v6812 = vpop.permute.xlu0 %6811
    %v6813 = vsel %vm65, %v6812, 0
    %6815 = vmatprep.subr.mxu0 0.0
    %6816 = vmatpush1.msra.mxu0 %v6642
    %6817 = vmatprep.subr.mxu0 0.0
    %6818 = vmatpush1.msra.mxu0 %v6643
    %6819 = vmatprep.subr.mxu0 0.0
    %6820 = vmatpush1.msra.mxu0 %v6644
    %6821 = vmatprep.subr.mxu0 0.0
    %6822 = vmatpush1.msra.mxu0 %v6645
    %6823 = vmatprep.subr.mxu0 0.0
    %6824 = vmatpush1.msra.mxu0 0.0
    %6825 = vmatprep.subr.mxu0 0.0
    %6826 = vmatpush1.msra.mxu0 0.0
    %6827 = vmatprep.subr.mxu0 0.0
    %6828 = vmatpush1.msra.mxu0 0.0
    %6829 = vmatprep.subr.mxu0 0.0
    %6830 = vmatpush1.msra.mxu0 0.0
    %6831 = vmatprep.subr.mxu0 0.0
    %6832 = vmatpush1.msra.mxu0 0.0
    %6833 = vmatprep.subr.mxu0 0.0
    %6834 = vmatpush1.msra.mxu0 0.0
    %6835 = vmatprep.subr.mxu0 0.0
    %6836 = vmatpush1.msra.mxu0 0.0
    %6837 = vmatprep.subr.mxu0 0.0
    %6838 = vmatpush1.msra.mxu0 0.0
    %6839 = vmatprep.subr.mxu0 0.0
    %6840 = vmatpush1.msra.mxu0 0.0
    %6841 = vmatprep.subr.mxu0 0.0
    %6842 = vmatpush1.msra.mxu0 0.0
    %6843 = vmatprep.subr.mxu0 0.0
    %6844 = vmatpush1.msra.mxu0 0.0
    %6845 = vmatprep.subr.mxu0 0.0
    %6846 = vmatpush1.msra.mxu0 0.0
    %6847 = vmatprep.subr.mxu0 0.0
    %6848 = vmatpush1.msra.mxu0 0.0
    %6849 = vmatprep.subr.mxu0 0.0
    %6850 = vmatpush1.msra.mxu0 0.0
    %6851 = vmatprep.subr.mxu0 0.0
    %6852 = vmatpush1.msra.mxu0 0.0
    %6853 = vmatprep.subr.mxu0 0.0
    %6854 = vmatpush1.msra.mxu0 0.0
    %6855 = vmatprep.subr.mxu0 0.0
    %6856 = vmatpush1.msra.mxu0 0.0
    %6857 = vmatprep.subr.mxu0 0.0
    %6858 = vmatpush1.msra.mxu0 0.0
    %6859 = vmatprep.subr.mxu0 0.0
    %6860 = vmatpush1.msra.mxu0 0.0
    %6861 = vmatprep.subr.mxu0 0.0
    %6862 = vmatpush1.msra.mxu0 0.0
    %6863 = vmatprep.subr.mxu0 0.0
    %6864 = vmatpush1.msra.mxu0 0.0
    %6865 = vmatprep.subr.mxu0 0.0
    %6866 = vmatpush1.msra.mxu0 0.0
    %6867 = vmatprep.subr.mxu0 0.0
    %6868 = vmatpush1.msra.mxu0 0.0
    %6869 = vmatprep.subr.mxu0 0.0
    %6870 = vmatpush1.msra.mxu0 0.0
    %6871 = vmatprep.subr.mxu0 0.0
    %6872 = vmatpush1.msra.mxu0 0.0
    %6873 = vmatprep.subr.mxu0 0.0
    %6874 = vmatpush1.msra.mxu0 0.0
    %6875 = vmatprep.subr.mxu0 0.0
    %6876 = vmatpush1.msra.mxu0 0.0
    %6877 = vmatprep.subr.mxu0 0.0
    %6878 = vmatpush1.msra.mxu0 0.0
    %6879 = vmatprep.mubr.f32.mxu0 0.0
    %6880 = vmatmul.mubr.f32.gmra.mrb[0].mxu0 %v6813
    %v6881 = vpop.f32.mrb[0].mxu0
    %v6882 = vadd.f32 0.0, %v6881
    %v6883 = vpop.f32.mrb[0].mxu0
    %6884 = vdwg.mxu0
    %v6885 = vlaneseq
    %v6886 = vshrl.u32 %v6885, 7
    %v6887 = vsub.s32 0, %v6886
    %v6888 = vrot.slane %v6807, %v6887
    %v6889 = vadd.f32 %v6732, %v6888
    %v6890 = vadd.f32 %v6737, %v6888
    %v6891 = vtanh.pop %v6889
    %v6892 = vtanh.pop %v6890
    %v6894 = vsel %vm2651, %v6891, 0
    %v6897 = vsel %vm2651, %v6892, 0
    %6899 = vmatprep.subr.mxu0 0.0
    %6900 = vmatpush1.msra.mxu0 %v6652
    %6901 = vmatprep.subr.mxu0 0.0
    %6902 = vmatpush1.msra.mxu0 %v6653
    %6903 = vmatprep.subr.mxu0 0.0
    %6904 = vmatpush1.msra.mxu0 0.0
    %6905 = vmatprep.subr.mxu0 0.0
    %6906 = vmatpush1.msra.mxu0 0.0
    %6907 = vmatprep.subr.mxu0 0.0
    %6908 = vmatpush1.msra.mxu0 0.0
    %6909 = vmatprep.subr.mxu0 0.0
    %6910 = vmatpush1.msra.mxu0 0.0
    %6911 = vmatprep.subr.mxu0 0.0
    %6912 = vmatpush1.msra.mxu0 0.0
    %6913 = vmatprep.subr.mxu0 0.0
    %6914 = vmatpush1.msra.mxu0 0.0
    %6915 = vmatprep.subr.mxu0 0.0
    %6916 = vmatpush1.msra.mxu0 0.0
    %6917 = vmatprep.subr.mxu0 0.0
    %6918 = vmatpush1.msra.mxu0 0.0
    %6919 = vmatprep.subr.mxu0 0.0
    %6920 = vmatpush1.msra.mxu0 0.0
    %6921 = vmatprep.subr.mxu0 0.0
    %6922 = vmatpush1.msra.mxu0 0.0
    %6923 = vmatprep.subr.mxu0 0.0
    %6924 = vmatpush1.msra.mxu0 0.0
    %6925 = vmatprep.subr.mxu0 0.0
    %6926 = vmatpush1.msra.mxu0 0.0
    %6927 = vmatprep.subr.mxu0 0.0
    %6928 = vmatpush1.msra.mxu0 0.0
    %6929 = vmatprep.subr.mxu0 0.0
    %6930 = vmatpush1.msra.mxu0 0.0
    %6931 = vmatprep.subr.mxu0 0.0
    %6932 = vmatpush1.msra.mxu0 0.0
    %6933 = vmatprep.subr.mxu0 0.0
    %6934 = vmatpush1.msra.mxu0 0.0
    %6935 = vmatprep.subr.mxu0 0.0
    %6936 = vmatpush1.msra.mxu0 0.0
    %6937 = vmatprep.subr.mxu0 0.0
    %6938 = vmatpush1.msra.mxu0 0.0
    %6939 = vmatprep.subr.mxu0 0.0
    %6940 = vmatpush1.msra.mxu0 0.0
    %6941 = vmatprep.subr.mxu0 0.0
    %6942 = vmatpush1.msra.mxu0 0.0
    %6943 = vmatprep.subr.mxu0 0.0
    %6944 = vmatpush1.msra.mxu0 0.0
    %6945 = vmatprep.subr.mxu0 0.0
    %6946 = vmatpush1.msra.mxu0 0.0
    %6947 = vmatprep.subr.mxu0 0.0
    %6948 = vmatpush1.msra.mxu0 0.0
    %6949 = vmatprep.subr.mxu0 0.0
    %6950 = vmatpush1.msra.mxu0 0.0
    %6951 = vmatprep.subr.mxu0 0.0
    %6952 = vmatpush1.msra.mxu0 0.0
    %6953 = vmatprep.subr.mxu0 0.0
    %6954 = vmatpush1.msra.mxu0 0.0
    %6955 = vmatprep.subr.mxu0 0.0
    %6956 = vmatpush1.msra.mxu0 0.0
    %6957 = vmatprep.subr.mxu0 0.0
    %6958 = vmatpush1.msra.mxu0 0.0
    %6959 = vmatprep.subr.mxu0 0.0
    %6960 = vmatpush1.msra.mxu0 0.0
    %6961 = vmatprep.subr.mxu0 0.0
    %6962 = vmatpush1.msra.mxu0 0.0
    %6963 = vmatprep.mubr.f32.mxu0 0.0
    %6964 = vmatmul.mubr.f32.gmra.mrb[0].mxu0 %v6894
    %v6965 = vpop.f32.mrb[0].mxu0
    %v6966 = vadd.f32 0.0, %v6965
    %v6967 = vpop.f32.mrb[0].mxu0
    %6968 = vmatprep.mubr.f32.mxu0 0.0
    %6969 = vmatmul.mubr.f32.gmra.mrb[0].mxu0 %v6897
    %v6970 = vpop.f32.mrb[0].mxu0
    %v6971 = vadd.f32 0.0, %v6970
    %v6972 = vpop.f32.mrb[0].mxu0
    %6973 = vdwg.mxu0
    %v6974 = vlaneseq
    %v6975 = vshrl.u32 %v6974, 7
    %v6976 = vsub.s32 0, %v6975
    %v6977 = vrot.slane %v6882, %v6976
    %v6978 = vadd.f32 %v6732, %v6977
    %v6979 = vadd.f32 %v6737, %v6977
    %v6980 = vtanh.pop %v6978
    %v6981 = vtanh.pop %v6979
    %v6983 = vsel %vm2651, %v6980, 0
    %v6986 = vsel %vm2651, %v6981, 0
    %6988 = vmatprep.subr.mxu0 0.0
    %6989 = vmatpush1.msra.mxu0 %v6652
    %6990 = vmatprep.subr.mxu0 0.0
    %6991 = vmatpush1.msra.mxu0 %v6653
    %6992 = vmatprep.subr.mxu0 0.0
    %6993 = vmatpush1.msra.mxu0 0.0
    %6994 = vmatprep.subr.mxu0 0.0
    %6995 = vmatpush1.msra.mxu0 0.0
    %6996 = vmatprep.subr.mxu0 0.0
    %6997 = vmatpush1.msra.mxu0 0.0
    %6998 = vmatprep.subr.mxu0 0.0
    %6999 = vmatpush1.msra.mxu0 0.0
    %7000 = vmatprep.subr.mxu0 0.0
    %7001 = vmatpush1.msra.mxu0 0.0
    %7002 = vmatprep.subr.mxu0 0.0
    %7003 = vmatpush1.msra.mxu0 0.0
    %7004 = vmatprep.subr.mxu0 0.0
    %7005 = vmatpush1.msra.mxu0 0.0
    %7006 = vmatprep.subr.mxu0 0.0
    %7007 = vmatpush1.msra.mxu0 0.0
    %7008 = vmatprep.subr.mxu0 0.0
    %7009 = vmatpush1.msra.mxu0 0.0
    %7010 = vmatprep.subr.mxu0 0.0
    %7011 = vmatpush1.msra.mxu0 0.0
    %7012 = vmatprep.subr.mxu0 0.0
    %7013 = vmatpush1.msra.mxu0 0.0
    %7014 = vmatprep.subr.mxu0 0.0
    %7015 = vmatpush1.msra.mxu0 0.0
    %7016 = vmatprep.subr.mxu0 0.0
    %7017 = vmatpush1.msra.mxu0 0.0
    %7018 = vmatprep.subr.mxu0 0.0
    %7019 = vmatpush1.msra.mxu0 0.0
    %7020 = vmatprep.subr.mxu0 0.0
    %7021 = vmatpush1.msra.mxu0 0.0
    %7022 = vmatprep.subr.mxu0 0.0
    %7023 = vmatpush1.msra.mxu0 0.0
    %7024 = vmatprep.subr.mxu0 0.0
    %7025 = vmatpush1.msra.mxu0 0.0
    %7026 = vmatprep.subr.mxu0 0.0
    %7027 = vmatpush1.msra.mxu0 0.0
    %7028 = vmatprep.subr.mxu0 0.0
    %7029 = vmatpush1.msra.mxu0 0.0
    %7030 = vmatprep.subr.mxu0 0.0
    %7031 = vmatpush1.msra.mxu0 0.0
    %7032 = vmatprep.subr.mxu0 0.0
    %7033 = vmatpush1.msra.mxu0 0.0
    %7034 = vmatprep.subr.mxu0 0.0
    %7035 = vmatpush1.msra.mxu0 0.0
    %7036 = vmatprep.subr.mxu0 0.0
    %7037 = vmatpush1.msra.mxu0 0.0
    %7038 = vmatprep.subr.mxu0 0.0
    %7039 = vmatpush1.msra.mxu0 0.0
    %7040 = vmatprep.subr.mxu0 0.0
    %7041 = vmatpush1.msra.mxu0 0.0
    %7042 = vmatprep.subr.mxu0 0.0
    %7043 = vmatpush1.msra.mxu0 0.0
    %7044 = vmatprep.subr.mxu0 0.0
    %7045 = vmatpush1.msra.mxu0 0.0
    %7046 = vmatprep.subr.mxu0 0.0
    %7047 = vmatpush1.msra.mxu0 0.0
    %7048 = vmatprep.subr.mxu0 0.0
    %7049 = vmatpush1.msra.mxu0 0.0
    %7050 = vmatprep.subr.mxu0 0.0
    %7051 = vmatpush1.msra.mxu0 0.0
    %7052 = vmatprep.mubr.f32.mxu0 0.0
    %7053 = vmatmul.mubr.f32.gmra.mrb[0].mxu0 %v6983
    %v7054 = vpop.f32.mrb[0].mxu0
    %v7055 = vadd.f32 0.0, %v7054
    %v7056 = vpop.f32.mrb[0].mxu0
    %7057 = vmatprep.mubr.f32.mxu0 0.0
    %7058 = vmatmul.mubr.f32.gmra.mrb[0].mxu0 %v6986
    %v7059 = vpop.f32.mrb[0].mxu0
    %v7060 = vadd.f32 0.0, %v7059
    %v7061 = vpop.f32.mrb[0].mxu0
    %7062 = vdwg.mxu0
    %v7063 = vmax.f32 %v6966, %v7055
    %v7064 = vmax.f32 %v6971, %v7060
    %v7065 = vsub.f32 %v6966, %v7063
    %v7066 = vsub.f32 %v6971, %v7064
    %v7067 = vmul.f32 %v7065, 1.442695
    %v7068 = vpow.pop %v7067
    %v7069 = vmul.f32 %v7066, 1.442695
    %v7070 = vpow.pop %v7069
    %v7071 = vsub.f32 %v7055, %v7063
    %v7072 = vsub.f32 %v7060, %v7064
    %v7073 = vmul.f32 %v7071, 1.442695
    %v7074 = vpow.pop %v7073
    %v7075 = vmul.f32 %v7072, 1.442695
    %v7076 = vpow.pop %v7075
    %v7077 = vadd.f32 %v7068, %v7074
    %v7078 = vadd.f32 %v7070, %v7076
    %v7079 = vrcp.pop %v7077
    %v7080 = vmul.f32 1.0, %v7079
    %v7081 = vrcp.pop %v7078
    %v7082 = vmul.f32 1.0, %v7081
    %v7083 = vmul.f32 %v7068, %v7080
    %v7084 = vmul.f32 %v7070, %v7082
    %v7085 = vmul.f32 %v7074, %v7080
    %v7086 = vmul.f32 %v7076, %v7082
    %7088 = vset.pattern.permute.xlu0 0
    %7089 = vperm.xlu0 %7088, %v7083
    %v7090 = vpop.permute.xlu0 %7089
    %7093 = vset.pattern.permute.xlu0 0
    %7094 = vperm.xlu0 %7093, %v7084
    %v7095 = vpop.permute.xlu0 %7094
    %v7097 = vmul.f32 %v7090, %v6657
    %v7098 = vmul.f32 %v7095, %v6658
    %v7099 = vsel %vm65, %v7097, 0.0
    %v7100 = vsel %vm67, %v7098, 0.0
    %v7101 = vadd.f32 %v7099, %v7100
    %v7102 = vrot.slane %v7101, 4
    %v7103 = vadd.f32 %v7101, %v7102
    %v7104 = vrot.slane %v7103, 2
    %v7105 = vadd.f32 %v7103, %v7104
    %v7106 = vrot.slane %v7105, 1
    %v7107 = vadd.f32 %v7105, %v7106
    %7109 = vset.pattern.permute.xlu0 0
    %7110 = vperm.xlu0 %7109, %v7085
    %v7111 = vpop.permute.xlu0 %7110
    %7114 = vset.pattern.permute.xlu0 0
    %7115 = vperm.xlu0 %7114, %v7086
    %v7116 = vpop.permute.xlu0 %7115
    %v7118 = vmul.f32 %v7111, %v6657
    %v7119 = vmul.f32 %v7116, %v6658
    %v7120 = vsel %vm65, %v7118, 0.0
    %v7121 = vsel %vm67, %v7119, 0.0
    %v7122 = vadd.f32 %v7120, %v7121
    %v7123 = vrot.slane %v7122, 4
    %v7124 = vadd.f32 %v7122, %v7123
    %v7125 = vrot.slane %v7124, 2
    %v7126 = vadd.f32 %v7124, %v7125
    %v7127 = vrot.slane %v7126, 1
    %v7128 = vadd.f32 %v7126, %v7127
    %v7129 = vld [vmem:[%s1617] sm:$0xff]
    %v7130 = vld [vmem:[%s1617 + $0x8] sm:$0x7]
    %v7132 = vsel %vm65, %v7129, 0
    %v7135 = vsel %vm65, %v7130, 0
    %7137 = vmatprep.subr.mxu0 0.0
    %7138 = vmatpush1.msra.mxu0 %v6647
    %7139 = vmatprep.subr.mxu0 0.0
    %7140 = vmatpush1.msra.mxu0 %v6648
    %7141 = vmatprep.subr.mxu0 0.0
    %7142 = vmatpush1.msra.mxu0 %v6649
    %7143 = vmatprep.subr.mxu0 0.0
    %7144 = vmatpush1.msra.mxu0 %v6650
    %7145 = vmatprep.subr.mxu0 0.0
    %7146 = vmatpush1.msra.mxu0 0.0
    %7147 = vmatprep.subr.mxu0 0.0
    %7148 = vmatpush1.msra.mxu0 0.0
    %7149 = vmatprep.subr.mxu0 0.0
    %7150 = vmatpush1.msra.mxu0 0.0
    %7151 = vmatprep.subr.mxu0 0.0
    %7152 = vmatpush1.msra.mxu0 0.0
    %7153 = vmatprep.subr.mxu0 0.0
    %7154 = vmatpush1.msra.mxu0 0.0
    %7155 = vmatprep.subr.mxu0 0.0
    %7156 = vmatpush1.msra.mxu0 0.0
    %7157 = vmatprep.subr.mxu0 0.0
    %7158 = vmatpush1.msra.mxu0 0.0
    %7159 = vmatprep.subr.mxu0 0.0
    %7160 = vmatpush1.msra.mxu0 0.0
    %7161 = vmatprep.subr.mxu0 0.0
    %7162 = vmatpush1.msra.mxu0 0.0
    %7163 = vmatprep.subr.mxu0 0.0
    %7164 = vmatpush1.msra.mxu0 0.0
    %7165 = vmatprep.subr.mxu0 0.0
    %7166 = vmatpush1.msra.mxu0 0.0
    %7167 = vmatprep.subr.mxu0 0.0
    %7168 = vmatpush1.msra.mxu0 0.0
    %7169 = vmatprep.subr.mxu0 0.0
    %7170 = vmatpush1.msra.mxu0 0.0
    %7171 = vmatprep.subr.mxu0 0.0
    %7172 = vmatpush1.msra.mxu0 0.0
    %7173 = vmatprep.subr.mxu0 0.0
    %7174 = vmatpush1.msra.mxu0 0.0
    %7175 = vmatprep.subr.mxu0 0.0
    %7176 = vmatpush1.msra.mxu0 0.0
    %7177 = vmatprep.subr.mxu0 0.0
    %7178 = vmatpush1.msra.mxu0 0.0
    %7179 = vmatprep.subr.mxu0 0.0
    %7180 = vmatpush1.msra.mxu0 0.0
    %7181 = vmatprep.subr.mxu0 0.0
    %7182 = vmatpush1.msra.mxu0 0.0
    %7183 = vmatprep.subr.mxu0 0.0
    %7184 = vmatpush1.msra.mxu0 0.0
    %7185 = vmatprep.subr.mxu0 0.0
    %7186 = vmatpush1.msra.mxu0 0.0
    %7187 = vmatprep.subr.mxu0 0.0
    %7188 = vmatpush1.msra.mxu0 0.0
    %7189 = vmatprep.subr.mxu0 0.0
    %7190 = vmatpush1.msra.mxu0 0.0
    %7191 = vmatprep.subr.mxu0 0.0
    %7192 = vmatpush1.msra.mxu0 0.0
    %7193 = vmatprep.subr.mxu0 0.0
    %7194 = vmatpush1.msra.mxu0 0.0
    %7195 = vmatprep.subr.mxu0 0.0
    %7196 = vmatpush1.msra.mxu0 0.0
    %7197 = vmatprep.subr.mxu0 0.0
    %7198 = vmatpush1.msra.mxu0 0.0
    %7199 = vmatprep.subr.mxu0 0.0
    %7200 = vmatpush1.msra.mxu0 0.0
    %7201 = vmatprep.mubr.f32.mxu0 0.0
    %7202 = vmatmul.mubr.f32.gmra.mrb[0].mxu0 %v7132
    %v7203 = vpop.f32.mrb[0].mxu0
    %v7204 = vadd.f32 0.0, %v7203
    %v7205 = vpop.f32.mrb[0].mxu0
    %7206 = vmatprep.mubr.f32.mxu0 0.0
    %7207 = vmatmul.mubr.f32.gmra.mrb[0].mxu0 %v7135
    %v7208 = vpop.f32.mrb[0].mxu0
    %v7209 = vadd.f32 0.0, %v7208
    %v7210 = vpop.f32.mrb[0].mxu0
    %7211 = vdwg.mxu0
    %v7212 = vrot.slane %v6548, 1
    %7213 = vrot.lane.b32.xlu0 %v7212, 32
    %v7214 = vpop.permute.xlu0 %7213
    %v7215 = vsel %vm65, %v7214, 0
    %7217 = vmatprep.subr.mxu0 0.0
    %7218 = vmatpush1.msra.mxu0 %v6642
    %7219 = vmatprep.subr.mxu0 0.0
    %7220 = vmatpush1.msra.mxu0 %v6643
    %7221 = vmatprep.subr.mxu0 0.0
    %7222 = vmatpush1.msra.mxu0 %v6644
    %7223 = vmatprep.subr.mxu0 0.0
    %7224 = vmatpush1.msra.mxu0 %v6645
    %7225 = vmatprep.subr.mxu0 0.0
    %7226 = vmatpush1.msra.mxu0 0.0
    %7227 = vmatprep.subr.mxu0 0.0
    %7228 = vmatpush1.msra.mxu0 0.0
    %7229 = vmatprep.subr.mxu0 0.0
    %7230 = vmatpush1.msra.mxu0 0.0
    %7231 = vmatprep.subr.mxu0 0.0
    %7232 = vmatpush1.msra.mxu0 0.0
    %7233 = vmatprep.subr.mxu0 0.0
    %7234 = vmatpush1.msra.mxu0 0.0
    %7235 = vmatprep.subr.mxu0 0.0
    %7236 = vmatpush1.msra.mxu0 0.0
    %7237 = vmatprep.subr.mxu0 0.0
    %7238 = vmatpush1.msra.mxu0 0.0
    %7239 = vmatprep.subr.mxu0 0.0
    %7240 = vmatpush1.msra.mxu0 0.0
    %7241 = vmatprep.subr.mxu0 0.0
    %7242 = vmatpush1.msra.mxu0 0.0
    %7243 = vmatprep.subr.mxu0 0.0
    %7244 = vmatpush1.msra.mxu0 0.0
    %7245 = vmatprep.subr.mxu0 0.0
    %7246 = vmatpush1.msra.mxu0 0.0
    %7247 = vmatprep.subr.mxu0 0.0
    %7248 = vmatpush1.msra.mxu0 0.0
    %7249 = vmatprep.subr.mxu0 0.0
    %7250 = vmatpush1.msra.mxu0 0.0
    %7251 = vmatprep.subr.mxu0 0.0
    %7252 = vmatpush1.msra.mxu0 0.0
    %7253 = vmatprep.subr.mxu0 0.0
    %7254 = vmatpush1.msra.mxu0 0.0
    %7255 = vmatprep.subr.mxu0 0.0
    %7256 = vmatpush1.msra.mxu0 0.0
    %7257 = vmatprep.subr.mxu0 0.0
    %7258 = vmatpush1.msra.mxu0 0.0
    %7259 = vmatprep.subr.mxu0 0.0
    %7260 = vmatpush1.msra.mxu0 0.0
    %7261 = vmatprep.subr.mxu0 0.0
    %7262 = vmatpush1.msra.mxu0 0.0
    %7263 = vmatprep.subr.mxu0 0.0
    %7264 = vmatpush1.msra.mxu0 0.0
    %7265 = vmatprep.subr.mxu0 0.0
    %7266 = vmatpush1.msra.mxu0 0.0
    %7267 = vmatprep.subr.mxu0 0.0
    %7268 = vmatpush1.msra.mxu0 0.0
    %7269 = vmatprep.subr.mxu0 0.0
    %7270 = vmatpush1.msra.mxu0 0.0
    %7271 = vmatprep.subr.mxu0 0.0
    %7272 = vmatpush1.msra.mxu0 0.0
    %7273 = vmatprep.subr.mxu0 0.0
    %7274 = vmatpush1.msra.mxu0 0.0
    %7275 = vmatprep.subr.mxu0 0.0
    %7276 = vmatpush1.msra.mxu0 0.0
    %7277 = vmatprep.subr.mxu0 0.0
    %7278 = vmatpush1.msra.mxu0 0.0
    %7279 = vmatprep.subr.mxu0 0.0
    %7280 = vmatpush1.msra.mxu0 0.0
    %7281 = vmatprep.mubr.f32.mxu0 0.0
    %7282 = vmatmul.mubr.f32.gmra.mrb[0].mxu0 %v7215
    %v7283 = vpop.f32.mrb[0].mxu0
    %v7284 = vadd.f32 0.0, %v7283
    %v7285 = vpop.f32.mrb[0].mxu0
    %7286 = vdwg.mxu0
    %v7287 = vrot.slane %v6542, 1
    %7288 = vrot.lane.b32.xlu0 %v7287, 96
    %v7289 = vpop.permute.xlu0 %7288
    %v7290 = vsel %vm65, %v7289, 0
    %7292 = vmatprep.subr.mxu0 0.0
    %7293 = vmatpush1.msra.mxu0 %v6642
    %7294 = vmatprep.subr.mxu0 0.0
    %7295 = vmatpush1.msra.mxu0 %v6643
    %7296 = vmatprep.subr.mxu0 0.0
    %7297 = vmatpush1.msra.mxu0 %v6644
    %7298 = vmatprep.subr.mxu0 0.0
    %7299 = vmatpush1.msra.mxu0 %v6645
    %7300 = vmatprep.subr.mxu0 0.0
    %7301 = vmatpush1.msra.mxu0 0.0
    %7302 = vmatprep.subr.mxu0 0.0
    %7303 = vmatpush1.msra.mxu0 0.0
    %7304 = vmatprep.subr.mxu0 0.0
    %7305 = vmatpush1.msra.mxu0 0.0
    %7306 = vmatprep.subr.mxu0 0.0
    %7307 = vmatpush1.msra.mxu0 0.0
    %7308 = vmatprep.subr.mxu0 0.0
    %7309 = vmatpush1.msra.mxu0 0.0
    %7310 = vmatprep.subr.mxu0 0.0
    %7311 = vmatpush1.msra.mxu0 0.0
    %7312 = vmatprep.subr.mxu0 0.0
    %7313 = vmatpush1.msra.mxu0 0.0
    %7314 = vmatprep.subr.mxu0 0.0
    %7315 = vmatpush1.msra.mxu0 0.0
    %7316 = vmatprep.subr.mxu0 0.0
    %7317 = vmatpush1.msra.mxu0 0.0
    %7318 = vmatprep.subr.mxu0 0.0
    %7319 = vmatpush1.msra.mxu0 0.0
    %7320 = vmatprep.subr.mxu0 0.0
    %7321 = vmatpush1.msra.mxu0 0.0
    %7322 = vmatprep.subr.mxu0 0.0
    %7323 = vmatpush1.msra.mxu0 0.0
    %7324 = vmatprep.subr.mxu0 0.0
    %7325 = vmatpush1.msra.mxu0 0.0
    %7326 = vmatprep.subr.mxu0 0.0
    %7327 = vmatpush1.msra.mxu0 0.0
    %7328 = vmatprep.subr.mxu0 0.0
    %7329 = vmatpush1.msra.mxu0 0.0
    %7330 = vmatprep.subr.mxu0 0.0
    %7331 = vmatpush1.msra.mxu0 0.0
    %7332 = vmatprep.subr.mxu0 0.0
    %7333 = vmatpush1.msra.mxu0 0.0
    %7334 = vmatprep.subr.mxu0 0.0
    %7335 = vmatpush1.msra.mxu0 0.0
    %7336 = vmatprep.subr.mxu0 0.0
    %7337 = vmatpush1.msra.mxu0 0.0
    %7338 = vmatprep.subr.mxu0 0.0
    %7339 = vmatpush1.msra.mxu0 0.0
    %7340 = vmatprep.subr.mxu0 0.0
    %7341 = vmatpush1.msra.mxu0 0.0
    %7342 = vmatprep.subr.mxu0 0.0
    %7343 = vmatpush1.msra.mxu0 0.0
    %7344 = vmatprep.subr.mxu0 0.0
    %7345 = vmatpush1.msra.mxu0 0.0
    %7346 = vmatprep.subr.mxu0 0.0
    %7347 = vmatpush1.msra.mxu0 0.0
    %7348 = vmatprep.subr.mxu0 0.0
    %7349 = vmatpush1.msra.mxu0 0.0
    %7350 = vmatprep.subr.mxu0 0.0
    %7351 = vmatpush1.msra.mxu0 0.0
    %7352 = vmatprep.subr.mxu0 0.0
    %7353 = vmatpush1.msra.mxu0 0.0
    %7354 = vmatprep.subr.mxu0 0.0
    %7355 = vmatpush1.msra.mxu0 0.0
    %7356 = vmatprep.mubr.f32.mxu0 0.0
    %7357 = vmatmul.mubr.f32.gmra.mrb[0].mxu0 %v7290
    %v7358 = vpop.f32.mrb[0].mxu0
    %v7359 = vadd.f32 0.0, %v7358
    %v7360 = vpop.f32.mrb[0].mxu0
    %7361 = vdwg.mxu0
    %v7362 = vlaneseq
    %v7363 = vshrl.u32 %v7362, 7
    %v7364 = vsub.s32 0, %v7363
    %v7365 = vrot.slane %v7284, %v7364
    %v7366 = vadd.f32 %v7204, %v7365
    %v7367 = vadd.f32 %v7209, %v7365
    %v7368 = vtanh.pop %v7366
    %v7369 = vtanh.pop %v7367
    %v7371 = vsel %vm2651, %v7368, 0
    %v7374 = vsel %vm2651, %v7369, 0
    %7376 = vmatprep.subr.mxu0 0.0
    %7377 = vmatpush1.msra.mxu0 %v6652
    %7378 = vmatprep.subr.mxu0 0.0
    %7379 = vmatpush1.msra.mxu0 %v6653
    %7380 = vmatprep.subr.mxu0 0.0
    %7381 = vmatpush1.msra.mxu0 0.0
    %7382 = vmatprep.subr.mxu0 0.0
    %7383 = vmatpush1.msra.mxu0 0.0
    %7384 = vmatprep.subr.mxu0 0.0
    %7385 = vmatpush1.msra.mxu0 0.0
    %7386 = vmatprep.subr.mxu0 0.0
    %7387 = vmatpush1.msra.mxu0 0.0
    %7388 = vmatprep.subr.mxu0 0.0
    %7389 = vmatpush1.msra.mxu0 0.0
    %7390 = vmatprep.subr.mxu0 0.0
    %7391 = vmatpush1.msra.mxu0 0.0
    %7392 = vmatprep.subr.mxu0 0.0
    %7393 = vmatpush1.msra.mxu0 0.0
    %7394 = vmatprep.subr.mxu0 0.0
    %7395 = vmatpush1.msra.mxu0 0.0
    %7396 = vmatprep.subr.mxu0 0.0
    %7397 = vmatpush1.msra.mxu0 0.0
    %7398 = vmatprep.subr.mxu0 0.0
    %7399 = vmatpush1.msra.mxu0 0.0
    %7400 = vmatprep.subr.mxu0 0.0
    %7401 = vmatpush1.msra.mxu0 0.0
    %7402 = vmatprep.subr.mxu0 0.0
    %7403 = vmatpush1.msra.mxu0 0.0
    %7404 = vmatprep.subr.mxu0 0.0
    %7405 = vmatpush1.msra.mxu0 0.0
    %7406 = vmatprep.subr.mxu0 0.0
    %7407 = vmatpush1.msra.mxu0 0.0
    %7408 = vmatprep.subr.mxu0 0.0
    %7409 = vmatpush1.msra.mxu0 0.0
    %7410 = vmatprep.subr.mxu0 0.0
    %7411 = vmatpush1.msra.mxu0 0.0
    %7412 = vmatprep.subr.mxu0 0.0
    %7413 = vmatpush1.msra.mxu0 0.0
    %7414 = vmatprep.subr.mxu0 0.0
    %7415 = vmatpush1.msra.mxu0 0.0
    %7416 = vmatprep.subr.mxu0 0.0
    %7417 = vmatpush1.msra.mxu0 0.0
    %7418 = vmatprep.subr.mxu0 0.0
    %7419 = vmatpush1.msra.mxu0 0.0
    %7420 = vmatprep.subr.mxu0 0.0
    %7421 = vmatpush1.msra.mxu0 0.0
    %7422 = vmatprep.subr.mxu0 0.0
    %7423 = vmatpush1.msra.mxu0 0.0
    %7424 = vmatprep.subr.mxu0 0.0
    %7425 = vmatpush1.msra.mxu0 0.0
    %7426 = vmatprep.subr.mxu0 0.0
    %7427 = vmatpush1.msra.mxu0 0.0
    %7428 = vmatprep.subr.mxu0 0.0
    %7429 = vmatpush1.msra.mxu0 0.0
    %7430 = vmatprep.subr.mxu0 0.0
    %7431 = vmatpush1.msra.mxu0 0.0
    %7432 = vmatprep.subr.mxu0 0.0
    %7433 = vmatpush1.msra.mxu0 0.0
    %7434 = vmatprep.subr.mxu0 0.0
    %7435 = vmatpush1.msra.mxu0 0.0
    %7436 = vmatprep.subr.mxu0 0.0
    %7437 = vmatpush1.msra.mxu0 0.0
    %7438 = vmatprep.subr.mxu0 0.0
    %7439 = vmatpush1.msra.mxu0 0.0
    %7440 = vmatprep.mubr.f32.mxu0 0.0
    %7441 = vmatmul.mubr.f32.gmra.mrb[0].mxu0 %v7371
    %v7442 = vpop.f32.mrb[0].mxu0
    %v7443 = vadd.f32 0.0, %v7442
    %v7444 = vpop.f32.mrb[0].mxu0
    %7445 = vmatprep.mubr.f32.mxu0 0.0
    %7446 = vmatmul.mubr.f32.gmra.mrb[0].mxu0 %v7374
    %v7447 = vpop.f32.mrb[0].mxu0
    %v7448 = vadd.f32 0.0, %v7447
    %v7449 = vpop.f32.mrb[0].mxu0
    %7450 = vdwg.mxu0
    %v7451 = vlaneseq
    %v7452 = vshrl.u32 %v7451, 7
    %v7453 = vsub.s32 0, %v7452
    %v7454 = vrot.slane %v7359, %v7453
    %v7455 = vadd.f32 %v7204, %v7454
    %v7456 = vadd.f32 %v7209, %v7454
    %v7457 = vtanh.pop %v7455
    %v7458 = vtanh.pop %v7456
    %v7460 = vsel %vm2651, %v7457, 0
    %v7463 = vsel %vm2651, %v7458, 0
    %7465 = vmatprep.subr.mxu0 0.0
    %7466 = vmatpush1.msra.mxu0 %v6652
    %7467 = vmatprep.subr.mxu0 0.0
    %7468 = vmatpush1.msra.mxu0 %v6653
    %7469 = vmatprep.subr.mxu0 0.0
    %7470 = vmatpush1.msra.mxu0 0.0
    %7471 = vmatprep.subr.mxu0 0.0
    %7472 = vmatpush1.msra.mxu0 0.0
    %7473 = vmatprep.subr.mxu0 0.0
    %7474 = vmatpush1.msra.mxu0 0.0
    %7475 = vmatprep.subr.mxu0 0.0
    %7476 = vmatpush1.msra.mxu0 0.0
    %7477 = vmatprep.subr.mxu0 0.0
    %7478 = vmatpush1.msra.mxu0 0.0
    %7479 = vmatprep.subr.mxu0 0.0
    %7480 = vmatpush1.msra.mxu0 0.0
    %7481 = vmatprep.subr.mxu0 0.0
    %7482 = vmatpush1.msra.mxu0 0.0
    %7483 = vmatprep.subr.mxu0 0.0
    %7484 = vmatpush1.msra.mxu0 0.0
    %7485 = vmatprep.subr.mxu0 0.0
    %7486 = vmatpush1.msra.mxu0 0.0
    %7487 = vmatprep.subr.mxu0 0.0
    %7488 = vmatpush1.msra.mxu0 0.0
    %7489 = vmatprep.subr.mxu0 0.0
    %7490 = vmatpush1.msra.mxu0 0.0
    %7491 = vmatprep.subr.mxu0 0.0
    %7492 = vmatpush1.msra.mxu0 0.0
    %7493 = vmatprep.subr.mxu0 0.0
    %7494 = vmatpush1.msra.mxu0 0.0
    %7495 = vmatprep.subr.mxu0 0.0
    %7496 = vmatpush1.msra.mxu0 0.0
    %7497 = vmatprep.subr.mxu0 0.0
    %7498 = vmatpush1.msra.mxu0 0.0
    %7499 = vmatprep.subr.mxu0 0.0
    %7500 = vmatpush1.msra.mxu0 0.0
    %7501 = vmatprep.subr.mxu0 0.0
    %7502 = vmatpush1.msra.mxu0 0.0
    %7503 = vmatprep.subr.mxu0 0.0
    %7504 = vmatpush1.msra.mxu0 0.0
    %7505 = vmatprep.subr.mxu0 0.0
    %7506 = vmatpush1.msra.mxu0 0.0
    %7507 = vmatprep.subr.mxu0 0.0
    %7508 = vmatpush1.msra.mxu0 0.0
    %7509 = vmatprep.subr.mxu0 0.0
    %7510 = vmatpush1.msra.mxu0 0.0
    %7511 = vmatprep.subr.mxu0 0.0
    %7512 = vmatpush1.msra.mxu0 0.0
    %7513 = vmatprep.subr.mxu0 0.0
    %7514 = vmatpush1.msra.mxu0 0.0
    %7515 = vmatprep.subr.mxu0 0.0
    %7516 = vmatpush1.msra.mxu0 0.0
    %7517 = vmatprep.subr.mxu0 0.0
    %7518 = vmatpush1.msra.mxu0 0.0
    %7519 = vmatprep.subr.mxu0 0.0
    %7520 = vmatpush1.msra.mxu0 0.0
    %7521 = vmatprep.subr.mxu0 0.0
    %7522 = vmatpush1.msra.mxu0 0.0
    %7523 = vmatprep.subr.mxu0 0.0
    %7524 = vmatpush1.msra.mxu0 0.0
    %7525 = vmatprep.subr.mxu0 0.0
    %7526 = vmatpush1.msra.mxu0 0.0
    %7527 = vmatprep.subr.mxu0 0.0
    %7528 = vmatpush1.msra.mxu0 0.0
    %7529 = vmatprep.mubr.f32.mxu0 0.0
    %7530 = vmatmul.mubr.f32.gmra.mrb[0].mxu0 %v7460
    %v7531 = vpop.f32.mrb[0].mxu0
    %v7532 = vadd.f32 0.0, %v7531
    %v7533 = vpop.f32.mrb[0].mxu0
    %7534 = vmatprep.mubr.f32.mxu0 0.0
    %7535 = vmatmul.mubr.f32.gmra.mrb[0].mxu0 %v7463
    %v7536 = vpop.f32.mrb[0].mxu0
    %v7537 = vadd.f32 0.0, %v7536
    %v7538 = vpop.f32.mrb[0].mxu0
    %7539 = vdwg.mxu0
    %v7540 = vmax.f32 %v7443, %v7532
    %v7541 = vmax.f32 %v7448, %v7537
    %v7542 = vsub.f32 %v7443, %v7540
    %v7543 = vsub.f32 %v7448, %v7541
    %v7544 = vmul.f32 %v7542, 1.442695
    %v7545 = vpow.pop %v7544
    %v7546 = vmul.f32 %v7543, 1.442695
    %v7547 = vpow.pop %v7546
    %v7548 = vsub.f32 %v7532, %v7540
    %v7549 = vsub.f32 %v7537, %v7541
    %v7550 = vmul.f32 %v7548, 1.442695
    %v7551 = vpow.pop %v7550
    %v7552 = vmul.f32 %v7549, 1.442695
    %v7553 = vpow.pop %v7552
    %v7554 = vadd.f32 %v7545, %v7551
    %v7555 = vadd.f32 %v7547, %v7553
    %v7556 = vrcp.pop %v7554
    %v7557 = vmul.f32 1.0, %v7556
    %v7558 = vrcp.pop %v7555
    %v7559 = vmul.f32 1.0, %v7558
    %v7560 = vmul.f32 %v7545, %v7557
    %v7561 = vmul.f32 %v7547, %v7559
    %v7562 = vmul.f32 %v7551, %v7557
    %v7563 = vmul.f32 %v7553, %v7559
    %7565 = vset.pattern.permute.xlu0 0
    %7566 = vperm.xlu0 %7565, %v7560
    %v7567 = vpop.permute.xlu0 %7566
    %7570 = vset.pattern.permute.xlu0 0
    %7571 = vperm.xlu0 %7570, %v7561
    %v7572 = vpop.permute.xlu0 %7571
    %v7574 = vmul.f32 %v7567, %v7129
    %v7575 = vmul.f32 %v7572, %v7130
    %v7576 = vsel %vm65, %v7574, 0.0
    %v7577 = vsel %vm67, %v7575, 0.0
    %v7578 = vadd.f32 %v7576, %v7577
    %v7579 = vrot.slane %v7578, 4
    %v7580 = vadd.f32 %v7578, %v7579
    %v7581 = vrot.slane %v7580, 2
    %v7582 = vadd.f32 %v7580, %v7581
    %v7583 = vrot.slane %v7582, 1
    %v7584 = vadd.f32 %v7582, %v7583
    %7586 = vset.pattern.permute.xlu0 0
    %7587 = vperm.xlu0 %7586, %v7562
    %v7588 = vpop.permute.xlu0 %7587
    %7591 = vset.pattern.permute.xlu0 0
    %7592 = vperm.xlu0 %7591, %v7563
    %v7593 = vpop.permute.xlu0 %7592
    %v7595 = vmul.f32 %v7588, %v7129
    %v7596 = vmul.f32 %v7593, %v7130
    %v7597 = vsel %vm65, %v7595, 0.0
    %v7598 = vsel %vm67, %v7596, 0.0
    %v7599 = vadd.f32 %v7597, %v7598
    %v7600 = vrot.slane %v7599, 4
    %v7601 = vadd.f32 %v7599, %v7600
    %v7602 = vrot.slane %v7601, 2
    %v7603 = vadd.f32 %v7601, %v7602
    %v7604 = vrot.slane %v7603, 1
    %v7605 = vadd.f32 %v7603, %v7604
    %v7606 = vsel %vm1507, %v7107, %v7584
    %v7607 = vsel %vm1507, %v7128, %v7605
    %v7608 = vld [vmem:[%s11] sm:$0xff]
    %v7609 = vld [vmem:[%s11 + $0x8] sm:$0xff]
    %v7610 = vld [vmem:[%s11 + $0x10] sm:$0xff]
    %v7611 = vld [vmem:[%s11 + $0x18] sm:$0xff]
    %v7612 = vld [vmem:[%s12] sm:$0xff]
    %v7613 = vld [vmem:[%s12 + $0x8] sm:$0xff]
    %v7614 = vld [vmem:[%s12 + $0x10] sm:$0xff]
    %v7615 = vld [vmem:[%s12 + $0x18] sm:$0xff]
    %7616 = vmatprep.subr.mxu0 0.0
    %7617 = vmatpush1.msra.mxu0 %v7612
    %7618 = vmatprep.subr.mxu0 0.0
    %7619 = vmatpush1.msra.mxu0 %v7613
    %7620 = vmatprep.subr.mxu0 0.0
    %7621 = vmatpush1.msra.mxu0 %v7614
    %7622 = vmatprep.subr.mxu0 0.0
    %7623 = vmatpush1.msra.mxu0 %v7615
    %7624 = vmatprep.subr.mxu0 0.0
    %7625 = vmatpush1.msra.mxu0 0.0
    %7626 = vmatprep.subr.mxu0 0.0
    %7627 = vmatpush1.msra.mxu0 0.0
    %7628 = vmatprep.subr.mxu0 0.0
    %7629 = vmatpush1.msra.mxu0 0.0
    %7630 = vmatprep.subr.mxu0 0.0
    %7631 = vmatpush1.msra.mxu0 0.0
    %7632 = vmatprep.subr.mxu0 0.0
    %7633 = vmatpush1.msra.mxu0 0.0
    %7634 = vmatprep.subr.mxu0 0.0
    %7635 = vmatpush1.msra.mxu0 0.0
    %7636 = vmatprep.subr.mxu0 0.0
    %7637 = vmatpush1.msra.mxu0 0.0
    %7638 = vmatprep.subr.mxu0 0.0
    %7639 = vmatpush1.msra.mxu0 0.0
    %7640 = vmatprep.subr.mxu0 0.0
    %7641 = vmatpush1.msra.mxu0 0.0
    %7642 = vmatprep.subr.mxu0 0.0
    %7643 = vmatpush1.msra.mxu0 0.0
    %7644 = vmatprep.subr.mxu0 0.0
    %7645 = vmatpush1.msra.mxu0 0.0
    %7646 = vmatprep.subr.mxu0 0.0
    %7647 = vmatpush1.msra.mxu0 0.0
    %7648 = vmatprep.subr.mxu0 0.0
    %7649 = vmatpush1.msra.mxu0 0.0
    %7650 = vmatprep.subr.mxu0 0.0
    %7651 = vmatpush1.msra.mxu0 0.0
    %7652 = vmatprep.subr.mxu0 0.0
    %7653 = vmatpush1.msra.mxu0 0.0
    %7654 = vmatprep.subr.mxu0 0.0
    %7655 = vmatpush1.msra.mxu0 0.0
    %7656 = vmatprep.subr.mxu0 0.0
    %7657 = vmatpush1.msra.mxu0 0.0
    %7658 = vmatprep.subr.mxu0 0.0
    %7659 = vmatpush1.msra.mxu0 0.0
    %7660 = vmatprep.subr.mxu0 0.0
    %7661 = vmatpush1.msra.mxu0 0.0
    %7662 = vmatprep.subr.mxu0 0.0
    %7663 = vmatpush1.msra.mxu0 0.0
    %7664 = vmatprep.subr.mxu0 0.0
    %7665 = vmatpush1.msra.mxu0 0.0
    %7666 = vmatprep.subr.mxu0 0.0
    %7667 = vmatpush1.msra.mxu0 0.0
    %7668 = vmatprep.subr.mxu0 0.0
    %7669 = vmatpush1.msra.mxu0 0.0
    %7670 = vmatprep.subr.mxu0 0.0
    %7671 = vmatpush1.msra.mxu0 0.0
    %7672 = vmatprep.subr.mxu0 0.0
    %7673 = vmatpush1.msra.mxu0 0.0
    %7674 = vmatprep.subr.mxu0 0.0
    %7675 = vmatpush1.msra.mxu0 0.0
    %7676 = vmatprep.subr.mxu0 0.0
    %7677 = vmatpush1.msra.mxu0 0.0
    %7678 = vmatprep.subr.mxu0 0.0
    %7679 = vmatpush1.msra.mxu0 0.0
    %7680 = vmatprep.mubr.f32.mxu0 0.0
    %7681 = vmatmul.mubr.f32.gmra.mrb[0].mxu0 %v6563
    %v7682 = vpop.f32.mrb[0].mxu0
    %v7683 = vadd.f32 0.0, %v7682
    %v7684 = vpop.f32.mrb[0].mxu0
    %7685 = vdwg.mxu0
    %v7687 = vsel %vm65, %v7606, 0
    %7689 = vmatprep.subr.mxu0 0.0
    %7690 = vmatpush1.msra.mxu0 %v7608
    %7691 = vmatprep.subr.mxu0 0.0
    %7692 = vmatpush1.msra.mxu0 %v7609
    %7693 = vmatprep.subr.mxu0 0.0
    %7694 = vmatpush1.msra.mxu0 %v7610
    %7695 = vmatprep.subr.mxu0 0.0
    %7696 = vmatpush1.msra.mxu0 %v7611
    %7697 = vmatprep.subr.mxu0 0.0
    %7698 = vmatpush1.msra.mxu0 0.0
    %7699 = vmatprep.subr.mxu0 0.0
    %7700 = vmatpush1.msra.mxu0 0.0
    %7701 = vmatprep.subr.mxu0 0.0
    %7702 = vmatpush1.msra.mxu0 0.0
    %7703 = vmatprep.subr.mxu0 0.0
    %7704 = vmatpush1.msra.mxu0 0.0
    %7705 = vmatprep.subr.mxu0 0.0
    %7706 = vmatpush1.msra.mxu0 0.0
    %7707 = vmatprep.subr.mxu0 0.0
    %7708 = vmatpush1.msra.mxu0 0.0
    %7709 = vmatprep.subr.mxu0 0.0
    %7710 = vmatpush1.msra.mxu0 0.0
    %7711 = vmatprep.subr.mxu0 0.0
    %7712 = vmatpush1.msra.mxu0 0.0
    %7713 = vmatprep.subr.mxu0 0.0
    %7714 = vmatpush1.msra.mxu0 0.0
    %7715 = vmatprep.subr.mxu0 0.0
    %7716 = vmatpush1.msra.mxu0 0.0
    %7717 = vmatprep.subr.mxu0 0.0
    %7718 = vmatpush1.msra.mxu0 0.0
    %7719 = vmatprep.subr.mxu0 0.0
    %7720 = vmatpush1.msra.mxu0 0.0
    %7721 = vmatprep.subr.mxu0 0.0
    %7722 = vmatpush1.msra.mxu0 0.0
    %7723 = vmatprep.subr.mxu0 0.0
    %7724 = vmatpush1.msra.mxu0 0.0
    %7725 = vmatprep.subr.mxu0 0.0
    %7726 = vmatpush1.msra.mxu0 0.0
    %7727 = vmatprep.subr.mxu0 0.0
    %7728 = vmatpush1.msra.mxu0 0.0
    %7729 = vmatprep.subr.mxu0 0.0
    %7730 = vmatpush1.msra.mxu0 0.0
    %7731 = vmatprep.subr.mxu0 0.0
    %7732 = vmatpush1.msra.mxu0 0.0
    %7733 = vmatprep.subr.mxu0 0.0
    %7734 = vmatpush1.msra.mxu0 0.0
    %7735 = vmatprep.subr.mxu0 0.0
    %7736 = vmatpush1.msra.mxu0 0.0
    %7737 = vmatprep.subr.mxu0 0.0
    %7738 = vmatpush1.msra.mxu0 0.0
    %7739 = vmatprep.subr.mxu0 0.0
    %7740 = vmatpush1.msra.mxu0 0.0
    %7741 = vmatprep.subr.mxu0 0.0
    %7742 = vmatpush1.msra.mxu0 0.0
    %7743 = vmatprep.subr.mxu0 0.0
    %7744 = vmatpush1.msra.mxu0 0.0
    %7745 = vmatprep.subr.mxu0 0.0
    %7746 = vmatpush1.msra.mxu0 0.0
    %7747 = vmatprep.subr.mxu0 0.0
    %7748 = vmatpush1.msra.mxu0 0.0
    %7749 = vmatprep.subr.mxu0 0.0
    %7750 = vmatpush1.msra.mxu0 0.0
    %7751 = vmatprep.subr.mxu0 0.0
    %7752 = vmatpush1.msra.mxu0 0.0
    %7753 = vmatprep.mubr.f32.mxu0 0.0
    %7754 = vmatmul.mubr.f32.gmra.mrb[0].mxu0 %v7687
    %v7755 = vpop.f32.mrb[0].mxu0
    %v7756 = vadd.f32 %v7683, %v7755
    %v7757 = vpop.f32.mrb[0].mxu0
    %7758 = vdwg.mxu0
    %v7759 = vld [vmem:[%s13] sm:$0x1]
    %v7761 = vlaneseq
    %v7762 = vshrl.u32 %v7761, 7
    %v7763 = vsub.s32 0, %v7762
    %v7764 = vrot.slane %v7759, %v7763
    %v7766 = vadd.f32 %v7756, %v7764
    %v7767 = vxor.u32 %v7766, 2147483648
    %v7768 = vmul.f32 %v7767, 1.442695
    %v7769 = vpow.pop %v7768
    %v7770 = vadd.f32 %v7769, 1.0
    %v7771 = vrcp.pop %v7770
    %v7772 = vmul.f32 1.0, %v7771
    %v7773 = vtanh.pop %v7766
    %v7774 = vmul.f32 %v7772, %v6542
    %7776 = vrot.lane.b32.xlu0 %v7773, 64
    %v7777 = vpop.permute.xlu0 %7776
    %v7779 = vmul.f32 %v7772, %v7777
    %7781 = vrot.lane.b32.xlu0 %v7779, 32
    %v7782 = vpop.permute.xlu0 %7781
    %v7784 = vadd.f32 %v7774, %v7782
    %v7785 = vtanh.pop %v7784
    %7787 = vrot.lane.b32.xlu0 %v7785, 64
    %v7788 = vpop.permute.xlu0 %7787
    %v7790 = vmul.f32 %v7772, %v7788
    %7792 = vrot.lane.b32.xlu0 %v7790, 32
    %v7793 = vpop.permute.xlu0 %7792
    %v7794 = vsel %vm65, %v7793, 0
    %7796 = vmatprep.subr.mxu0 0.0
    %7797 = vmatpush1.msra.mxu0 %v7612
    %7798 = vmatprep.subr.mxu0 0.0
    %7799 = vmatpush1.msra.mxu0 %v7613
    %7800 = vmatprep.subr.mxu0 0.0
    %7801 = vmatpush1.msra.mxu0 %v7614
    %7802 = vmatprep.subr.mxu0 0.0
    %7803 = vmatpush1.msra.mxu0 %v7615
    %7804 = vmatprep.subr.mxu0 0.0
    %7805 = vmatpush1.msra.mxu0 0.0
    %7806 = vmatprep.subr.mxu0 0.0
    %7807 = vmatpush1.msra.mxu0 0.0
    %7808 = vmatprep.subr.mxu0 0.0
    %7809 = vmatpush1.msra.mxu0 0.0
    %7810 = vmatprep.subr.mxu0 0.0
    %7811 = vmatpush1.msra.mxu0 0.0
    %7812 = vmatprep.subr.mxu0 0.0
    %7813 = vmatpush1.msra.mxu0 0.0
    %7814 = vmatprep.subr.mxu0 0.0
    %7815 = vmatpush1.msra.mxu0 0.0
    %7816 = vmatprep.subr.mxu0 0.0
    %7817 = vmatpush1.msra.mxu0 0.0
    %7818 = vmatprep.subr.mxu0 0.0
    %7819 = vmatpush1.msra.mxu0 0.0
    %7820 = vmatprep.subr.mxu0 0.0
    %7821 = vmatpush1.msra.mxu0 0.0
    %7822 = vmatprep.subr.mxu0 0.0
    %7823 = vmatpush1.msra.mxu0 0.0
    %7824 = vmatprep.subr.mxu0 0.0
    %7825 = vmatpush1.msra.mxu0 0.0
    %7826 = vmatprep.subr.mxu0 0.0
    %7827 = vmatpush1.msra.mxu0 0.0
    %7828 = vmatprep.subr.mxu0 0.0
    %7829 = vmatpush1.msra.mxu0 0.0
    %7830 = vmatprep.subr.mxu0 0.0
    %7831 = vmatpush1.msra.mxu0 0.0
    %7832 = vmatprep.subr.mxu0 0.0
    %7833 = vmatpush1.msra.mxu0 0.0
    %7834 = vmatprep.subr.mxu0 0.0
    %7835 = vmatpush1.msra.mxu0 0.0
    %7836 = vmatprep.subr.mxu0 0.0
    %7837 = vmatpush1.msra.mxu0 0.0
    %7838 = vmatprep.subr.mxu0 0.0
    %7839 = vmatpush1.msra.mxu0 0.0
    %7840 = vmatprep.subr.mxu0 0.0
    %7841 = vmatpush1.msra.mxu0 0.0
    %7842 = vmatprep.subr.mxu0 0.0
    %7843 = vmatpush1.msra.mxu0 0.0
    %7844 = vmatprep.subr.mxu0 0.0
    %7845 = vmatpush1.msra.mxu0 0.0
    %7846 = vmatprep.subr.mxu0 0.0
    %7847 = vmatpush1.msra.mxu0 0.0
    %7848 = vmatprep.subr.mxu0 0.0
    %7849 = vmatpush1.msra.mxu0 0.0
    %7850 = vmatprep.subr.mxu0 0.0
    %7851 = vmatpush1.msra.mxu0 0.0
    %7852 = vmatprep.subr.mxu0 0.0
    %7853 = vmatpush1.msra.mxu0 0.0
    %7854 = vmatprep.subr.mxu0 0.0
    %7855 = vmatpush1.msra.mxu0 0.0
    %7856 = vmatprep.subr.mxu0 0.0
    %7857 = vmatpush1.msra.mxu0 0.0
    %7858 = vmatprep.subr.mxu0 0.0
    %7859 = vmatpush1.msra.mxu0 0.0
    %7860 = vmatprep.mubr.f32.mxu0 0.0
    %7861 = vmatmul.mubr.f32.gmra.mrb[0].mxu0 %v7794
    %v7862 = vpop.f32.mrb[0].mxu0
    %v7863 = vadd.f32 0.0, %v7862
    %v7864 = vpop.f32.mrb[0].mxu0
    %7865 = vdwg.mxu0
    %v7867 = vsel %vm65, %v7607, 0
    %7869 = vmatprep.subr.mxu0 0.0
    %7870 = vmatpush1.msra.mxu0 %v7608
    %7871 = vmatprep.subr.mxu0 0.0
    %7872 = vmatpush1.msra.mxu0 %v7609
    %7873 = vmatprep.subr.mxu0 0.0
    %7874 = vmatpush1.msra.mxu0 %v7610
    %7875 = vmatprep.subr.mxu0 0.0
    %7876 = vmatpush1.msra.mxu0 %v7611
    %7877 = vmatprep.subr.mxu0 0.0
    %7878 = vmatpush1.msra.mxu0 0.0
    %7879 = vmatprep.subr.mxu0 0.0
    %7880 = vmatpush1.msra.mxu0 0.0
    %7881 = vmatprep.subr.mxu0 0.0
    %7882 = vmatpush1.msra.mxu0 0.0
    %7883 = vmatprep.subr.mxu0 0.0
    %7884 = vmatpush1.msra.mxu0 0.0
    %7885 = vmatprep.subr.mxu0 0.0
    %7886 = vmatpush1.msra.mxu0 0.0
    %7887 = vmatprep.subr.mxu0 0.0
    %7888 = vmatpush1.msra.mxu0 0.0
    %7889 = vmatprep.subr.mxu0 0.0
    %7890 = vmatpush1.msra.mxu0 0.0
    %7891 = vmatprep.subr.mxu0 0.0
    %7892 = vmatpush1.msra.mxu0 0.0
    %7893 = vmatprep.subr.mxu0 0.0
    %7894 = vmatpush1.msra.mxu0 0.0
    %7895 = vmatprep.subr.mxu0 0.0
    %7896 = vmatpush1.msra.mxu0 0.0
    %7897 = vmatprep.subr.mxu0 0.0
    %7898 = vmatpush1.msra.mxu0 0.0
    %7899 = vmatprep.subr.mxu0 0.0
    %7900 = vmatpush1.msra.mxu0 0.0
    %7901 = vmatprep.subr.mxu0 0.0
    %7902 = vmatpush1.msra.mxu0 0.0
    %7903 = vmatprep.subr.mxu0 0.0
    %7904 = vmatpush1.msra.mxu0 0.0
    %7905 = vmatprep.subr.mxu0 0.0
    %7906 = vmatpush1.msra.mxu0 0.0
    %7907 = vmatprep.subr.mxu0 0.0
    %7908 = vmatpush1.msra.mxu0 0.0
    %7909 = vmatprep.subr.mxu0 0.0
    %7910 = vmatpush1.msra.mxu0 0.0
    %7911 = vmatprep.subr.mxu0 0.0
    %7912 = vmatpush1.msra.mxu0 0.0
    %7913 = vmatprep.subr.mxu0 0.0
    %7914 = vmatpush1.msra.mxu0 0.0
    %7915 = vmatprep.subr.mxu0 0.0
    %7916 = vmatpush1.msra.mxu0 0.0
    %7917 = vmatprep.subr.mxu0 0.0
    %7918 = vmatpush1.msra.mxu0 0.0
    %7919 = vmatprep.subr.mxu0 0.0
    %7920 = vmatpush1.msra.mxu0 0.0
    %7921 = vmatprep.subr.mxu0 0.0
    %7922 = vmatpush1.msra.mxu0 0.0
    %7923 = vmatprep.subr.mxu0 0.0
    %7924 = vmatpush1.msra.mxu0 0.0
    %7925 = vmatprep.subr.mxu0 0.0
    %7926 = vmatpush1.msra.mxu0 0.0
    %7927 = vmatprep.subr.mxu0 0.0
    %7928 = vmatpush1.msra.mxu0 0.0
    %7929 = vmatprep.subr.mxu0 0.0
    %7930 = vmatpush1.msra.mxu0 0.0
    %7931 = vmatprep.subr.mxu0 0.0
    %7932 = vmatpush1.msra.mxu0 0.0
    %7933 = vmatprep.mubr.f32.mxu0 0.0
    %7934 = vmatmul.mubr.f32.gmra.mrb[0].mxu0 %v7867
    %v7935 = vpop.f32.mrb[0].mxu0
    %v7936 = vadd.f32 %v7863, %v7935
    %v7937 = vpop.f32.mrb[0].mxu0
    %7938 = vdwg.mxu0
    %v7939 = vadd.f32 %v7936, %v7764
    %v7940 = vxor.u32 %v7939, 2147483648
    %v7941 = vmul.f32 %v7940, 1.442695
    %v7942 = vpow.pop %v7941
    %v7943 = vadd.f32 %v7942, 1.0
    %v7944 = vrcp.pop %v7943
    %v7945 = vmul.f32 1.0, %v7944
    %v7946 = vtanh.pop %v7939
    %v7947 = vmul.f32 %v7945, %v7784
    %7949 = vrot.lane.b32.xlu0 %v7946, 64
    %v7950 = vpop.permute.xlu0 %7949
    %v7952 = vmul.f32 %v7945, %v7950
    %7954 = vrot.lane.b32.xlu0 %v7952, 32
    %v7955 = vpop.permute.xlu0 %7954
    %v7957 = vadd.f32 %v7947, %v7955
    %v7958 = vtanh.pop %v7957
    %7960 = vrot.lane.b32.xlu0 %v7958, 64
    %v7961 = vpop.permute.xlu0 %7960
    %v7963 = vmul.f32 %v7945, %v7961
    %v7964 = vld [vmem:[%s14] sm:$0xff]
    %v7965 = vld [vmem:[%s14 + $0x8] sm:$0xff]
    %v7966 = vld [vmem:[%s14 + $0x10] sm:$0xff]
    %v7967 = vld [vmem:[%s14 + $0x18] sm:$0xff]
    %v7968 = vld [vmem:[#allocation3] sm:$0x1]
    %v7970 = vlaneseq
    %v7971 = vshrl.u32 %v7970, 7
    %v7972 = vsub.s32 0, %v7971
    %v7973 = vrot.slane %v7968, %v7972
    %7976 = vrot.lane.b32.xlu0 %v7963, 32
    %v7977 = vpop.permute.xlu0 %7976
    %v7978 = vsel %vm65, %v7977, 0
    %7980 = vmatprep.subr.mxu0 0.0
    %7981 = vmatpush1.msra.mxu0 %v7964
    %7982 = vmatprep.subr.mxu0 0.0
    %7983 = vmatpush1.msra.mxu0 %v7965
    %7984 = vmatprep.subr.mxu0 0.0
    %7985 = vmatpush1.msra.mxu0 %v7966
    %7986 = vmatprep.subr.mxu0 0.0
    %7987 = vmatpush1.msra.mxu0 %v7967
    %7988 = vmatprep.subr.mxu0 0.0
    %7989 = vmatpush1.msra.mxu0 0.0
    %7990 = vmatprep.subr.mxu0 0.0
    %7991 = vmatpush1.msra.mxu0 0.0
    %7992 = vmatprep.subr.mxu0 0.0
    %7993 = vmatpush1.msra.mxu0 0.0
    %7994 = vmatprep.subr.mxu0 0.0
    %7995 = vmatpush1.msra.mxu0 0.0
    %7996 = vmatprep.subr.mxu0 0.0
    %7997 = vmatpush1.msra.mxu0 0.0
    %7998 = vmatprep.subr.mxu0 0.0
    %7999 = vmatpush1.msra.mxu0 0.0
    %8000 = vmatprep.subr.mxu0 0.0
    %8001 = vmatpush1.msra.mxu0 0.0
    %8002 = vmatprep.subr.mxu0 0.0
    %8003 = vmatpush1.msra.mxu0 0.0
    %8004 = vmatprep.subr.mxu0 0.0
    %8005 = vmatpush1.msra.mxu0 0.0
    %8006 = vmatprep.subr.mxu0 0.0
    %8007 = vmatpush1.msra.mxu0 0.0
    %8008 = vmatprep.subr.mxu0 0.0
    %8009 = vmatpush1.msra.mxu0 0.0
    %8010 = vmatprep.subr.mxu0 0.0
    %8011 = vmatpush1.msra.mxu0 0.0
    %8012 = vmatprep.subr.mxu0 0.0
    %8013 = vmatpush1.msra.mxu0 0.0
    %8014 = vmatprep.subr.mxu0 0.0
    %8015 = vmatpush1.msra.mxu0 0.0
    %8016 = vmatprep.subr.mxu0 0.0
    %8017 = vmatpush1.msra.mxu0 0.0
    %8018 = vmatprep.subr.mxu0 0.0
    %8019 = vmatpush1.msra.mxu0 0.0
    %8020 = vmatprep.subr.mxu0 0.0
    %8021 = vmatpush1.msra.mxu0 0.0
    %8022 = vmatprep.subr.mxu0 0.0
    %8023 = vmatpush1.msra.mxu0 0.0
    %8024 = vmatprep.subr.mxu0 0.0
    %8025 = vmatpush1.msra.mxu0 0.0
    %8026 = vmatprep.subr.mxu0 0.0
    %8027 = vmatpush1.msra.mxu0 0.0
    %8028 = vmatprep.subr.mxu0 0.0
    %8029 = vmatpush1.msra.mxu0 0.0
    %8030 = vmatprep.subr.mxu0 0.0
    %8031 = vmatpush1.msra.mxu0 0.0
    %8032 = vmatprep.subr.mxu0 0.0
    %8033 = vmatpush1.msra.mxu0 0.0
    %8034 = vmatprep.subr.mxu0 0.0
    %8035 = vmatpush1.msra.mxu0 0.0
    %8036 = vmatprep.subr.mxu0 0.0
    %8037 = vmatpush1.msra.mxu0 0.0
    %8038 = vmatprep.subr.mxu0 0.0
    %8039 = vmatpush1.msra.mxu0 0.0
    %8040 = vmatprep.subr.mxu0 0.0
    %8041 = vmatpush1.msra.mxu0 0.0
    %8042 = vmatprep.subr.mxu0 0.0
    %8043 = vmatpush1.msra.mxu0 0.0
    %8044 = vmatprep.mubr.f32.mxu0 0.0
    %8045 = vmatmul.mubr.f32.gmra.mrb[0].mxu0 %v7978
    %v8046 = vpop.f32.mrb[0].mxu0
    %v8047 = vadd.f32 %v7973, %v8046
    %v8048 = vpop.f32.mrb[0].mxu0
    %8049 = vdwg.mxu0
    %8051 = vrot.lane.b32.xlu0 %v8047, 3
    %v8052 = vpop.permute.xlu0 %8051
    %vm8054 = vcmask 25624
    %8055 = vst.msk [vmem:[#allocation4] sm:$0x3] %vm8054, %v8052
    // Predicated region
    $region78: #{tpu_custom_call.1} parent=1 // pred_check
      _
    $region79: #{tpu_custom_call.1} parent=1 // pred_check_branch
      %8057 = sbr.rel (0) target = $region81
    $region80: #{tpu_custom_call.1} parent=1 // pred_region
      %s8059 = ssub.s32 32, 32
      %8060 = vsyncadd [#allocation5], %s8059
      %s8062 = sshll.u32 [#allocation4], 4
      %s8063 = int_to_ptr.vmem [resolvable:$true] %s8062
      %8065 = dma.vmem_to_hbm [thread:$0]  %s8063, 32, %s19, [#allocation5]
    $region81: #{tpu_custom_call.1} parent=1 // pred_fallthru
      _
    // Predicated region
    $region82: #{tpu_custom_call.1} parent=1 // pred_check
      _
    $region83: #{tpu_custom_call.1} parent=1 // pred_check_branch
      %8067 = sbr.rel (0) target = $region85
    $region84: #{tpu_custom_call.1} parent=1 // pred_region
      %8068 = dma.done [#allocation5], 32
    $region85: #{tpu_custom_call.1} parent=1 // pred_fallthru
      _
    %8069 = vsyncpa [#allocation5], 1

</llo_original>
